<compile_context>
chip_gen: v7x
topology: tpu7x:2x2x1
jax: 0.10.0
libtpu: 0.0.40
codegen_flags: <defaults>
</compile_context>

<pallas_src>
import math

import jax
import jax.numpy as jnp
from jax import lax
from jax.experimental import pallas as pl
from jax.experimental.pallas import tpu as pltpu

EPS = 1e-8
EPS2 = EPS * EPS

# ---------------- model hyper-parameters (small, deterministic) ----------------
B_IMG = 3      # number of images  (== batch)
B_CAP = 3      # number of captions (== batch)
N_REGION = 8   # regions per image (PyTorch uses 36)
SEQ_LEN = 8    # max caption length
IMG_DIM = 48   # raw region feature dim (PyTorch uses 2048)
WORD_DIM = 16  # word embedding dim
EMBED = 32     # joint embedding dim (PyTorch uses 1024)
SIM_DIM = 16   # similarity representation dim
VOCAB = 50     # vocabulary size
NUM_LAYERS = 1  # GRU layers (bi_gru = False)


def _l2n(x):
    """l2norm over the last dim via rsqrt (EUP) instead of sqrt + add-eps + divide."""
    return x * lax.rsqrt(jnp.sum(x * x, axis=-1, keepdims=True) + EPS2)


# =========================== fused SGRAF forward kernel ===========================
def sgraf_kernel(lens_ref, img_ref, xemb_ref,
                 w_img_ref, b_img_ref,
                 wih_r_ref, wih_z_ref, wih_n_ref,
                 whh_r_ref, whh_z_ref, whh_n_ref,
                 b_r_ref, b_z_ref, bi_n_ref, bh_n_ref,
                 wt_ref, bt_ref, we_ref, be_ref,
                 o_ref):
    # lens_ref : (Bc,) int32 in SMEM         caption lengths
    # img_ref  : (Bi, R, IMG_DIM) bf16       raw region features
    # xemb_ref : (L, Bc, WORD_DIM) bf16      word embeddings (word-major)
    # w_img    : (IMG_DIM, E) bf16, b_img: (1, E) f32
    # wih_*    : (WORD_DIM, E) bf16, whh_*: (E, E) bf16     per-gate GRU weights (r, z, n)
    # b_r/b_z  : (1, E) f32  (= b_ih + b_hh for r/z), bi_n/bh_n: (1, E) f32
    # wt       : (E, S) bf16, bt: (1, S) f32, we: (1, S) f32, be: (1, 1) f32
    # o_ref    : (Bi, Bc) f32                image-major similarities (wrapper transposes)
    Bi, R, Dimg = img_ref.shape
    L, Bc, Dw = xemb_ref.shape
    E = w_img_ref.shape[1]
    S = wt_ref.shape[1]
    Q = L * Bc
    f32 = jnp.float32
    bf16 = jnp.bfloat16

    # ----- caption lengths (SMEM scalars) -> word mask & 1/len, built once, vectorized -----
    lane_iota = lax.broadcasted_iota(jnp.int32, (1, Bc), 1)
    len_row = jnp.zeros((1, Bc), jnp.int32)
    for c in range(Bc):                                   # Bc is tiny & static
        len_row = jnp.where(lane_iota == c, lens_ref[c], len_row)
    cmask = (lax.broadcasted_iota(jnp.int32, (L, Bc), 0) < len_row).astype(f32)   # (L, Bc)
    inv_len = 1.0 / jnp.maximum(len_row.astype(f32), 1.0)                          # (1, Bc)

    # ------------------------- EncoderImage: FC + l2norm -------------------------
    img2 = jnp.dot(img_ref[...].reshape(Bi * R, Dimg), w_img_ref[...],
                   preferred_element_type=f32) + b_img_ref[...]
    img_b = _l2n(img2).astype(bf16).reshape(Bi, R, E)     # bf16 MXU operand, (Bi, R, E)

    # ------------------------- EncoderText: GRU ----------------------------------
    # Hoisted per-gate input projections: one matmul per gate over all timesteps.
    xflat = xemb_ref[...].reshape(L * Bc, Dw)             # bf16, word-major rows
    gi_r = (jnp.dot(xflat, wih_r_ref[...], preferred_element_type=f32)
            + b_r_ref[...]).reshape(L, Bc, E)
    gi_z = (jnp.dot(xflat, wih_z_ref[...], preferred_element_type=f32)
            + b_z_ref[...]).reshape(L, Bc, E)
    gi_n = (jnp.dot(xflat, wih_n_ref[...], preferred_element_type=f32)
            + bi_n_ref[...]).reshape(L, Bc, E)

    whh_r = whh_r_ref[...]
    whh_z = whh_z_ref[...]
    whh_n = whh_n_ref[...]
    bh_n = bh_n_ref[...]

    h = jnp.zeros((Bc, E), f32)
    hs = []                                               # register-resident hidden states
    for t in range(L):                                    # static unroll: L=8, E=32 (tiny).
        hb = h.astype(bf16)
        gh_r = jnp.dot(hb, whh_r, preferred_element_type=f32)
        gh_z = jnp.dot(hb, whh_z, preferred_element_type=f32)
        gh_n = jnp.dot(hb, whh_n, preferred_element_type=f32) + bh_n
        r = jax.nn.sigmoid(gi_r[t] + gh_r)
        z = jax.nn.sigmoid(gi_z[t] + gh_z)
        n = jnp.tanh(gi_n[t] + r * gh_n)
        h = (1.0 - z) * n + z * h
        hs.append(h)
    # pack/pad_packed semantics: zero out t >= length (l2norm of the 0/1-masked state equals
    # masked l2norm); the hidden state past each length is contaminated but never consumed.
    cap = _l2n(jnp.stack(hs, axis=0)) * cmask[:, :, None]  # (L, Bc, E), padded rows are 0
    capf = cap.reshape(Q, E)                               # word-major flattening, q = t*Bc+c
    capf_b = capf.astype(bf16)

    # --------------------- EncoderSimilarity: SCAN attention ---------------------
    # attn[b, q, r] = <cap[q], img[b, r]>   (per-image 2-D dots; no cap broadcast)
    attn_rows = []
    for b in range(Bi):                                    # static; the image grid axis at scale
        attn_rows.append(
            lax.dot_general(capf_b, img_b[b], (((1,), (1,)), ((), ())),
                            preferred_element_type=f32))   # (Q, R)
    attn = jnp.stack(attn_rows, axis=0)                    # (Bi, Q, R)
    attn = jnp.maximum(attn, 0.1 * attn)                   # LeakyReLU(0.1)

    attn4 = attn.reshape(Bi, L, Bc, R) * cmask[None, :, :, None]   # drop padded words
    # l2norm over words (== l2norm(attn, dim=2) on torch's (Bi, R, L) tensor)
    attn4 = attn4 * lax.rsqrt(jnp.sum(attn4 * attn4, axis=1, keepdims=True) + EPS2)
    # softmax over regions, smooth = 9.0
    s = attn4 * 9.0
    s = s - jnp.max(s, axis=-1, keepdims=True)
    p = jnp.exp(s)
    p = p * pl.reciprocal(jnp.sum(p, axis=-1, keepdims=True), approx=True)
    p = p * cmask[None, :, :, None]                        # zero padded-word weights

    pq = p.reshape(Bi, Q, R).astype(bf16)
    wc_rows = []
    for b in range(Bi):
        wc_rows.append(jnp.dot(pq[b], img_b[b], preferred_element_type=f32))   # (Q, E)
    wc = _l2n(jnp.stack(wc_rows, axis=0))                  # (Bi, Q, E)

    # --------------- similarity representation + attention filtration ------------
    diff = wc - capf[None]                                 # implicit broadcast, (Bi, Q, E)
    sq = (diff * diff).reshape(Bi * Q, E).astype(bf16)
    sr = jnp.dot(sq, wt_ref[...], preferred_element_type=f32) + bt_ref[...]
    sr = _l2n(sr).reshape(Bi, L, Bc, S) * cmask[None, :, :, None]   # drop padded words
    sr_mean = jnp.sum(sr, axis=1) * inv_len[:, :, None]    # mean over valid words, (Bi, Bc, S)
    sr_mean = _l2n(sr_mean)

    # sim_eval: Linear(S, 1) + tanh; we is stored in torch layout (1, S)
    ev = jnp.tanh(jnp.sum(sr_mean * we_ref[...][None, :, :], axis=-1) + be_ref[...])
    o_ref[...] = ev                                        # (Bi, Bc)


# ============================ wrapper ============================
def sgraf_forward(images, captions, lengths, p):
    bf16 = jnp.bfloat16
    Bi = images.shape[0]
    Bc, L = captions.shape
    E = p['w_img'].shape[1]

    # nn.Embedding lookup (gather) stays in XLA; word-major (L, Bc, Dw) so the in-kernel
    # recurrence only ever slices contiguous leading-dim rows.  nn.Dropout(0.4) = eval identity.
    x_emb = jnp.take(p['emb'], captions.T, axis=0).astype(bf16)        # (L, Bc, WORD_DIM)

    # Split GRU weights per gate (r, z, n) once, outside the kernel; pre-sum the r/z biases.
    wih, whh, bih, bhh = p['wih_t'], p['whh_t'], p['bih'], p['bhh']
    wih_r, wih_z, wih_n = (wih[:, 0:E].astype(bf16), wih[:, E:2 * E].astype(bf16),
                           wih[:, 2 * E:3 * E].astype(bf16))
    whh_r, whh_z, whh_n = (whh[:, 0:E].astype(bf16), whh[:, E:2 * E].astype(bf16),
                           whh[:, 2 * E:3 * E].astype(bf16))
    b_r = bih[:, 0:E] + bhh[:, 0:E]
    b_z = bih[:, E:2 * E] + bhh[:, E:2 * E]
    bi_n = bih[:, 2 * E:3 * E]
    bh_n = bhh[:, 2 * E:3 * E]

    vmem = pl.BlockSpec(memory_space=pltpu.MemorySpace.VMEM)
    smem = pl.BlockSpec(memory_space=pltpu.MemorySpace.SMEM)

    sims_ib = pl.pallas_call(
        sgraf_kernel,
        out_shape=jax.ShapeDtypeStruct((Bi, Bc), jnp.float32),
        in_specs=[smem] + [vmem] * 18,
        out_specs=vmem,
    )(lengths.astype(jnp.int32),
      images.astype(bf16), x_emb,
      p['w_img'].astype(bf16), p['b_img'],
      wih_r, wih_z, wih_n, whh_r, whh_z, whh_n,
      b_r, b_z, bi_n, bh_n,
      p['wt'].astype(bf16), p['bt'], p['we'], p['be'])

    # (n_caption, n_image) == sims.permute(1, 0) of the PyTorch module (3x3 transpose, free)
    return sims_ib.T


# ============================ parameter init (deterministic) ==================
def init_params(key):
    k_img, k_emb, k_wih, k_whh, k_bih, k_bhh, k_wt, k_we = jax.random.split(key, 8)

    r_img = math.sqrt(6.0) / math.sqrt(IMG_DIM + EMBED)
    w_img = jax.random.uniform(k_img, (IMG_DIM, EMBED), jnp.float32, -r_img, r_img)
    b_img = jnp.zeros((1, EMBED), jnp.float32)

    emb_table = jax.random.uniform(k_emb, (VOCAB, WORD_DIM), jnp.float32, -0.1, 0.1)

    std = 1.0 / math.sqrt(EMBED)                      # PyTorch GRU default init range
    wih_t = jax.random.uniform(k_wih, (WORD_DIM, 3 * EMBED), jnp.float32, -std, std)
    whh_t = jax.random.uniform(k_whh, (EMBED, 3 * EMBED), jnp.float32, -std, std)
    bih = jax.random.uniform(k_bih, (1, 3 * EMBED), jnp.float32, -std, std)
    bhh = jax.random.uniform(k_bhh, (1, 3 * EMBED), jnp.float32, -std, std)

    r_t = math.sqrt(6.0) / math.sqrt(EMBED + SIM_DIM)
    wt = jax.random.uniform(k_wt, (EMBED, SIM_DIM), jnp.float32, -r_t, r_t)
    bt = jnp.zeros((1, SIM_DIM), jnp.float32)

    r_e = math.sqrt(6.0) / math.sqrt(SIM_DIM + 1)
    we = jax.random.uniform(k_we, (1, SIM_DIM), jnp.float32, -r_e, r_e)  # torch Linear(S,1) layout
    be = jnp.zeros((1, 1), jnp.float32)

    return dict(w_img=w_img, b_img=b_img, emb=emb_table,
                wih_t=wih_t, whh_t=whh_t, bih=bih, bhh=bhh,
                wt=wt, bt=bt, we=we, be=be)


# ===================================== main ===================================
if __name__ == "__main__":
    key = jax.random.PRNGKey(0)
    k_in_img, k_in_cap, k_par = jax.random.split(key, 3)

    images = jax.random.normal(k_in_img, (B_IMG, N_REGION, IMG_DIM), jnp.float32)
    captions = jax.random.randint(k_in_cap, (B_CAP, SEQ_LEN), 0, VOCAB)
    lengths = jnp.array([SEQ_LEN, 6, 5], dtype=jnp.int32)

    params = init_params(k_par)

    sims = jax.jit(sgraf_forward)(images, captions, lengths, params)
    sims = jax.block_until_ready(sims)

    assert sims.shape == (B_CAP, B_IMG)
    assert bool(jnp.all(jnp.isfinite(sims)))
    print("KERNEL_OK")
</pallas_src>

<mosaic_0001>
module attributes {stable_mosaic.version = 11 : i64} {
  func.func @sgraf_kernel(%arg0: memref<3xi32, #tpu.memory_space<smem>>, %arg1: memref<3x8x48xbf16, #tpu.memory_space<vmem>>, %arg2: memref<8x3x16xbf16, #tpu.memory_space<vmem>>, %arg3: memref<48x32xbf16, #tpu.memory_space<vmem>>, %arg4: memref<1x32xf32, #tpu.memory_space<vmem>>, %arg5: memref<16x32xbf16, #tpu.memory_space<vmem>>, %arg6: memref<16x32xbf16, #tpu.memory_space<vmem>>, %arg7: memref<16x32xbf16, #tpu.memory_space<vmem>>, %arg8: memref<32x32xbf16, #tpu.memory_space<vmem>>, %arg9: memref<32x32xbf16, #tpu.memory_space<vmem>>, %arg10: memref<32x32xbf16, #tpu.memory_space<vmem>>, %arg11: memref<1x32xf32, #tpu.memory_space<vmem>>, %arg12: memref<1x32xf32, #tpu.memory_space<vmem>>, %arg13: memref<1x32xf32, #tpu.memory_space<vmem>>, %arg14: memref<1x32xf32, #tpu.memory_space<vmem>>, %arg15: memref<32x16xbf16, #tpu.memory_space<vmem>>, %arg16: memref<1x16xf32, #tpu.memory_space<vmem>>, %arg17: memref<1x16xf32, #tpu.memory_space<vmem>>, %arg18: memref<1x1xf32, #tpu.memory_space<vmem>>, %arg19: memref<3x3xf32, #tpu.memory_space<vmem>>) attributes {dimension_semantics = [], scalar_prefetch = 0 : i64, scratch_operands = 0 : i64, tpu.core_type = #tpu.core_type<tc>} {
    %0 = tpu.iota {dimensions = array<i32: 1>} : vector<1x3xi32>
    %c0_i32 = arith.constant 0 : i32
    %1 = vector.broadcast %c0_i32 : i32 to vector<1x3xi32>
    %c0_i32_0 = arith.constant 0 : i32
    %2 = vector.broadcast %c0_i32_0 : i32 to vector<1x3xi32>
    %3 = arith.cmpi eq, %0, %2 : vector<1x3xi32>
    %c0 = arith.constant 0 : index
    %4 = memref.load %arg0[%c0] : memref<3xi32, #tpu.memory_space<smem>>
    %5 = vector.broadcast %4 : i32 to vector<1x3xi32>
    %6 = arith.select %3, %5, %1 : vector<1x3xi1>, vector<1x3xi32>
    %c1_i32 = arith.constant 1 : i32
    %7 = vector.broadcast %c1_i32 : i32 to vector<1x3xi32>
    %8 = arith.cmpi eq, %0, %7 : vector<1x3xi32>
    %c1 = arith.constant 1 : index
    %9 = memref.load %arg0[%c1] : memref<3xi32, #tpu.memory_space<smem>>
    %10 = vector.broadcast %9 : i32 to vector<1x3xi32>
    %11 = arith.select %8, %10, %6 : vector<1x3xi1>, vector<1x3xi32>
    %c2_i32 = arith.constant 2 : i32
    %12 = vector.broadcast %c2_i32 : i32 to vector<1x3xi32>
    %13 = arith.cmpi eq, %0, %12 : vector<1x3xi32>
    %c2 = arith.constant 2 : index
    %14 = memref.load %arg0[%c2] : memref<3xi32, #tpu.memory_space<smem>>
    %15 = vector.broadcast %14 : i32 to vector<1x3xi32>
    %16 = arith.select %13, %15, %11 : vector<1x3xi1>, vector<1x3xi32>
    %17 = tpu.iota {dimensions = array<i32: 0>} : vector<8x3xi32>
    %18 = vector.broadcast %16 : vector<1x3xi32> to vector<8x3xi32>
    %19 = arith.cmpi slt, %17, %18 : vector<8x3xi32>
    %20 = arith.extui %19 : vector<8x3xi1> to vector<8x3xi32>
    %21 = arith.sitofp %20 : vector<8x3xi32> to vector<8x3xf32>
    %22 = arith.sitofp %16 : vector<1x3xi32> to vector<1x3xf32>
    %cst = arith.constant 1.000000e+00 : f32
    %23 = vector.broadcast %cst : f32 to vector<1x3xf32>
    %24 = arith.maximumf %22, %23 : vector<1x3xf32>
    %cst_1 = arith.constant 1.000000e+00 : f32
    %25 = vector.broadcast %cst_1 : f32 to vector<1x3xf32>
    %26 = arith.divf %25, %24 : vector<1x3xf32>
    %c0_2 = arith.constant 0 : index
    %c0_3 = arith.constant 0 : index
    %c0_4 = arith.constant 0 : index
    %27 = vector.load %arg1[%c0_2, %c0_3, %c0_4] : memref<3x8x48xbf16, #tpu.memory_space<vmem>>, vector<3x8x48xbf16>
    %28 = vector.shape_cast %27 : vector<3x8x48xbf16> to vector<24x48xbf16>
    %c0_5 = arith.constant 0 : index
    %c0_6 = arith.constant 0 : index
    %29 = vector.load %arg3[%c0_5, %c0_6] : memref<48x32xbf16, #tpu.memory_space<vmem>>, vector<48x32xbf16>
    %cst_7 = arith.constant dense<0.000000e+00> : vector<24x32xf32>
    %30 = tpu.matmul %28, %29, %cst_7 {dimension_numbers = #tpu.dot_dimension_numbers<[1], [0], [0], [1], [0, 0, 1, 1], [], []>} : vector<24x48xbf16>, vector<48x32xbf16>, vector<24x32xf32> -> vector<24x32xf32>
    %c0_8 = arith.constant 0 : index
    %c0_9 = arith.constant 0 : index
    %31 = vector.load %arg4[%c0_8, %c0_9] : memref<1x32xf32, #tpu.memory_space<vmem>>, vector<1x32xf32>
    %32 = vector.broadcast %31 : vector<1x32xf32> to vector<24x32xf32>
    %33 = arith.addf %30, %32 : vector<24x32xf32>
    %34 = arith.mulf %33, %33 : vector<24x32xf32>
    %cst_10 = arith.constant dense<0.000000e+00> : vector<24xf32>
    %35 = vector.multi_reduction <add>, %34, %cst_10 [1] : vector<24x32xf32> to vector<24xf32>
    %36 = vector.shape_cast %35 : vector<24xf32> to vector<24x1xf32>
    %cst_11 = arith.constant 1.000000e-16 : f32
    %37 = vector.broadcast %cst_11 : f32 to vector<24x1xf32>
    %38 = arith.addf %36, %37 : vector<24x1xf32>
    %39 = math.rsqrt %38 : vector<24x1xf32>
    %40 = vector.broadcast %39 : vector<24x1xf32> to vector<24x32xf32>
    %41 = arith.mulf %33, %40 : vector<24x32xf32>
    %42 = arith.truncf %41 : vector<24x32xf32> to vector<24x32xbf16>
    %43 = vector.shape_cast %42 : vector<24x32xbf16> to vector<3x8x32xbf16>
    %c0_12 = arith.constant 0 : index
    %c0_13 = arith.constant 0 : index
    %c0_14 = arith.constant 0 : index
    %44 = vector.load %arg2[%c0_12, %c0_13, %c0_14] : memref<8x3x16xbf16, #tpu.memory_space<vmem>>, vector<8x3x16xbf16>
    %45 = vector.shape_cast %44 : vector<8x3x16xbf16> to vector<24x16xbf16>
    %c0_15 = arith.constant 0 : index
    %c0_16 = arith.constant 0 : index
    %46 = vector.load %arg5[%c0_15, %c0_16] : memref<16x32xbf16, #tpu.memory_space<vmem>>, vector<16x32xbf16>
    %cst_17 = arith.constant dense<0.000000e+00> : vector<24x32xf32>
    %47 = tpu.matmul %45, %46, %cst_17 {dimension_numbers = #tpu.dot_dimension_numbers<[1], [0], [0], [1], [0, 0, 1, 1], [], []>} : vector<24x16xbf16>, vector<16x32xbf16>, vector<24x32xf32> -> vector<24x32xf32>
    %c0_18 = arith.constant 0 : index
    %c0_19 = arith.constant 0 : index
    %48 = vector.load %arg11[%c0_18, %c0_19] : memref<1x32xf32, #tpu.memory_space<vmem>>, vector<1x32xf32>
    %49 = vector.broadcast %48 : vector<1x32xf32> to vector<24x32xf32>
    %50 = arith.addf %47, %49 : vector<24x32xf32>
    %51 = vector.shape_cast %50 : vector<24x32xf32> to vector<8x3x32xf32>
    %c0_20 = arith.constant 0 : index
    %c0_21 = arith.constant 0 : index
    %52 = vector.load %arg6[%c0_20, %c0_21] : memref<16x32xbf16, #tpu.memory_space<vmem>>, vector<16x32xbf16>
    %cst_22 = arith.constant dense<0.000000e+00> : vector<24x32xf32>
    %53 = tpu.matmul %45, %52, %cst_22 {dimension_numbers = #tpu.dot_dimension_numbers<[1], [0], [0], [1], [0, 0, 1, 1], [], []>} : vector<24x16xbf16>, vector<16x32xbf16>, vector<24x32xf32> -> vector<24x32xf32>
    %c0_23 = arith.constant 0 : index
    %c0_24 = arith.constant 0 : index
    %54 = vector.load %arg12[%c0_23, %c0_24] : memref<1x32xf32, #tpu.memory_space<vmem>>, vector<1x32xf32>
    %55 = vector.broadcast %54 : vector<1x32xf32> to vector<24x32xf32>
    %56 = arith.addf %53, %55 : vector<24x32xf32>
    %57 = vector.shape_cast %56 : vector<24x32xf32> to vector<8x3x32xf32>
    %c0_25 = arith.constant 0 : index
    %c0_26 = arith.constant 0 : index
    %58 = vector.load %arg7[%c0_25, %c0_26] : memref<16x32xbf16, #tpu.memory_space<vmem>>, vector<16x32xbf16>
    %cst_27 = arith.constant dense<0.000000e+00> : vector<24x32xf32>
    %59 = tpu.matmul %45, %58, %cst_27 {dimension_numbers = #tpu.dot_dimension_numbers<[1], [0], [0], [1], [0, 0, 1, 1], [], []>} : vector<24x16xbf16>, vector<16x32xbf16>, vector<24x32xf32> -> vector<24x32xf32>
    %c0_28 = arith.constant 0 : index
    %c0_29 = arith.constant 0 : index
    %60 = vector.load %arg13[%c0_28, %c0_29] : memref<1x32xf32, #tpu.memory_space<vmem>>, vector<1x32xf32>
    %61 = vector.broadcast %60 : vector<1x32xf32> to vector<24x32xf32>
    %62 = arith.addf %59, %61 : vector<24x32xf32>
    %63 = vector.shape_cast %62 : vector<24x32xf32> to vector<8x3x32xf32>
    %c0_30 = arith.constant 0 : index
    %c0_31 = arith.constant 0 : index
    %64 = vector.load %arg8[%c0_30, %c0_31] : memref<32x32xbf16, #tpu.memory_space<vmem>>, vector<32x32xbf16>
    %c0_32 = arith.constant 0 : index
    %c0_33 = arith.constant 0 : index
    %65 = vector.load %arg9[%c0_32, %c0_33] : memref<32x32xbf16, #tpu.memory_space<vmem>>, vector<32x32xbf16>
    %c0_34 = arith.constant 0 : index
    %c0_35 = arith.constant 0 : index
    %66 = vector.load %arg10[%c0_34, %c0_35] : memref<32x32xbf16, #tpu.memory_space<vmem>>, vector<32x32xbf16>
    %c0_36 = arith.constant 0 : index
    %c0_37 = arith.constant 0 : index
    %67 = vector.load %arg14[%c0_36, %c0_37] : memref<1x32xf32, #tpu.memory_space<vmem>>, vector<1x32xf32>
    %cst_38 = arith.constant 0.000000e+00 : f32
    %68 = vector.broadcast %cst_38 : f32 to vector<3x32xf32>
    %69 = arith.truncf %68 : vector<3x32xf32> to vector<3x32xbf16>
    %cst_39 = arith.constant dense<0.000000e+00> : vector<3x32xf32>
    %70 = tpu.matmul %69, %64, %cst_39 {dimension_numbers = #tpu.dot_dimension_numbers<[1], [0], [0], [1], [0, 0, 1, 1], [], []>} : vector<3x32xbf16>, vector<32x32xbf16>, vector<3x32xf32> -> vector<3x32xf32>
    %cst_40 = arith.constant dense<0.000000e+00> : vector<3x32xf32>
    %71 = tpu.matmul %69, %65, %cst_40 {dimension_numbers = #tpu.dot_dimension_numbers<[1], [0], [0], [1], [0, 0, 1, 1], [], []>} : vector<3x32xbf16>, vector<32x32xbf16>, vector<3x32xf32> -> vector<3x32xf32>
    %cst_41 = arith.constant dense<0.000000e+00> : vector<3x32xf32>
    %72 = tpu.matmul %69, %66, %cst_41 {dimension_numbers = #tpu.dot_dimension_numbers<[1], [0], [0], [1], [0, 0, 1, 1], [], []>} : vector<3x32xbf16>, vector<32x32xbf16>, vector<3x32xf32> -> vector<3x32xf32>
    %73 = vector.broadcast %67 : vector<1x32xf32> to vector<3x32xf32>
    %74 = arith.addf %72, %73 : vector<3x32xf32>
    %75 = vector.extract_strided_slice %51 {offsets = [0, 0, 0], sizes = [1, 3, 32], strides = [1, 1, 1]} : vector<8x3x32xf32> to vector<1x3x32xf32>
    %76 = vector.shape_cast %75 : vector<1x3x32xf32> to vector<3x32xf32>
    %77 = arith.addf %76, %70 : vector<3x32xf32>
    %78 = arith.negf %77 : vector<3x32xf32>
    %79 = math.exp %78 : vector<3x32xf32>
    %cst_42 = arith.constant 1.000000e+00 : f32
    %80 = vector.broadcast %cst_42 : f32 to vector<3x32xf32>
    %81 = arith.addf %80, %79 : vector<3x32xf32>
    %82 = arith.divf %80, %81 : vector<3x32xf32>
    %83 = vector.extract_strided_slice %57 {offsets = [0, 0, 0], sizes = [1, 3, 32], strides = [1, 1, 1]} : vector<8x3x32xf32> to vector<1x3x32xf32>
    %84 = vector.shape_cast %83 : vector<1x3x32xf32> to vector<3x32xf32>
    %85 = arith.addf %84, %71 : vector<3x32xf32>
    %86 = arith.negf %85 : vector<3x32xf32>
    %87 = math.exp %86 : vector<3x32xf32>
    %cst_43 = arith.constant 1.000000e+00 : f32
    %88 = vector.broadcast %cst_43 : f32 to vector<3x32xf32>
    %89 = arith.addf %88, %87 : vector<3x32xf32>
    %90 = arith.divf %88, %89 : vector<3x32xf32>
    %91 = vector.extract_strided_slice %63 {offsets = [0, 0, 0], sizes = [1, 3, 32], strides = [1, 1, 1]} : vector<8x3x32xf32> to vector<1x3x32xf32>
    %92 = vector.shape_cast %91 : vector<1x3x32xf32> to vector<3x32xf32>
    %93 = arith.mulf %82, %74 : vector<3x32xf32>
    %94 = arith.addf %92, %93 : vector<3x32xf32>
    %95 = math.tanh %94 : vector<3x32xf32>
    %cst_44 = arith.constant 1.000000e+00 : f32
    %96 = vector.broadcast %cst_44 : f32 to vector<3x32xf32>
    %97 = arith.subf %96, %90 : vector<3x32xf32>
    %98 = arith.mulf %97, %95 : vector<3x32xf32>
    %99 = arith.mulf %90, %68 : vector<3x32xf32>
    %100 = arith.addf %98, %99 : vector<3x32xf32>
    %101 = arith.truncf %100 : vector<3x32xf32> to vector<3x32xbf16>
    %cst_45 = arith.constant dense<0.000000e+00> : vector<3x32xf32>
    %102 = tpu.matmul %101, %64, %cst_45 {dimension_numbers = #tpu.dot_dimension_numbers<[1], [0], [0], [1], [0, 0, 1, 1], [], []>} : vector<3x32xbf16>, vector<32x32xbf16>, vector<3x32xf32> -> vector<3x32xf32>
    %cst_46 = arith.constant dense<0.000000e+00> : vector<3x32xf32>
    %103 = tpu.matmul %101, %65, %cst_46 {dimension_numbers = #tpu.dot_dimension_numbers<[1], [0], [0], [1], [0, 0, 1, 1], [], []>} : vector<3x32xbf16>, vector<32x32xbf16>, vector<3x32xf32> -> vector<3x32xf32>
    %cst_47 = arith.constant dense<0.000000e+00> : vector<3x32xf32>
    %104 = tpu.matmul %101, %66, %cst_47 {dimension_numbers = #tpu.dot_dimension_numbers<[1], [0], [0], [1], [0, 0, 1, 1], [], []>} : vector<3x32xbf16>, vector<32x32xbf16>, vector<3x32xf32> -> vector<3x32xf32>
    %105 = vector.broadcast %67 : vector<1x32xf32> to vector<3x32xf32>
    %106 = arith.addf %104, %105 : vector<3x32xf32>
    %107 = vector.extract_strided_slice %51 {offsets = [1, 0, 0], sizes = [1, 3, 32], strides = [1, 1, 1]} : vector<8x3x32xf32> to vector<1x3x32xf32>
    %108 = vector.shape_cast %107 : vector<1x3x32xf32> to vector<3x32xf32>
    %109 = arith.addf %108, %102 : vector<3x32xf32>
    %110 = arith.negf %109 : vector<3x32xf32>
    %111 = math.exp %110 : vector<3x32xf32>
    %cst_48 = arith.constant 1.000000e+00 : f32
    %112 = vector.broadcast %cst_48 : f32 to vector<3x32xf32>
    %113 = arith.addf %112, %111 : vector<3x32xf32>
    %114 = arith.divf %112, %113 : vector<3x32xf32>
    %115 = vector.extract_strided_slice %57 {offsets = [1, 0, 0], sizes = [1, 3, 32], strides = [1, 1, 1]} : vector<8x3x32xf32> to vector<1x3x32xf32>
    %116 = vector.shape_cast %115 : vector<1x3x32xf32> to vector<3x32xf32>
    %117 = arith.addf %116, %103 : vector<3x32xf32>
    %118 = arith.negf %117 : vector<3x32xf32>
    %119 = math.exp %118 : vector<3x32xf32>
    %cst_49 = arith.constant 1.000000e+00 : f32
    %120 = vector.broadcast %cst_49 : f32 to vector<3x32xf32>
    %121 = arith.addf %120, %119 : vector<3x32xf32>
    %122 = arith.divf %120, %121 : vector<3x32xf32>
    %123 = vector.extract_strided_slice %63 {offsets = [1, 0, 0], sizes = [1, 3, 32], strides = [1, 1, 1]} : vector<8x3x32xf32> to vector<1x3x32xf32>
    %124 = vector.shape_cast %123 : vector<1x3x32xf32> to vector<3x32xf32>
    %125 = arith.mulf %114, %106 : vector<3x32xf32>
    %126 = arith.addf %124, %125 : vector<3x32xf32>
    %127 = math.tanh %126 : vector<3x32xf32>
    %cst_50 = arith.constant 1.000000e+00 : f32
    %128 = vector.broadcast %cst_50 : f32 to vector<3x32xf32>
    %129 = arith.subf %128, %122 : vector<3x32xf32>
    %130 = arith.mulf %129, %127 : vector<3x32xf32>
    %131 = arith.mulf %122, %100 : vector<3x32xf32>
    %132 = arith.addf %130, %131 : vector<3x32xf32>
    %133 = arith.truncf %132 : vector<3x32xf32> to vector<3x32xbf16>
    %cst_51 = arith.constant dense<0.000000e+00> : vector<3x32xf32>
    %134 = tpu.matmul %133, %64, %cst_51 {dimension_numbers = #tpu.dot_dimension_numbers<[1], [0], [0], [1], [0, 0, 1, 1], [], []>} : vector<3x32xbf16>, vector<32x32xbf16>, vector<3x32xf32> -> vector<3x32xf32>
    %cst_52 = arith.constant dense<0.000000e+00> : vector<3x32xf32>
    %135 = tpu.matmul %133, %65, %cst_52 {dimension_numbers = #tpu.dot_dimension_numbers<[1], [0], [0], [1], [0, 0, 1, 1], [], []>} : vector<3x32xbf16>, vector<32x32xbf16>, vector<3x32xf32> -> vector<3x32xf32>
    %cst_53 = arith.constant dense<0.000000e+00> : vector<3x32xf32>
    %136 = tpu.matmul %133, %66, %cst_53 {dimension_numbers = #tpu.dot_dimension_numbers<[1], [0], [0], [1], [0, 0, 1, 1], [], []>} : vector<3x32xbf16>, vector<32x32xbf16>, vector<3x32xf32> -> vector<3x32xf32>
    %137 = vector.broadcast %67 : vector<1x32xf32> to vector<3x32xf32>
    %138 = arith.addf %136, %137 : vector<3x32xf32>
    %139 = vector.extract_strided_slice %51 {offsets = [2, 0, 0], sizes = [1, 3, 32], strides = [1, 1, 1]} : vector<8x3x32xf32> to vector<1x3x32xf32>
    %140 = vector.shape_cast %139 : vector<1x3x32xf32> to vector<3x32xf32>
    %141 = arith.addf %140, %134 : vector<3x32xf32>
    %142 = arith.negf %141 : vector<3x32xf32>
    %143 = math.exp %142 : vector<3x32xf32>
    %cst_54 = arith.constant 1.000000e+00 : f32
    %144 = vector.broadcast %cst_54 : f32 to vector<3x32xf32>
    %145 = arith.addf %144, %143 : vector<3x32xf32>
    %146 = arith.divf %144, %145 : vector<3x32xf32>
    %147 = vector.extract_strided_slice %57 {offsets = [2, 0, 0], sizes = [1, 3, 32], strides = [1, 1, 1]} : vector<8x3x32xf32> to vector<1x3x32xf32>
    %148 = vector.shape_cast %147 : vector<1x3x32xf32> to vector<3x32xf32>
    %149 = arith.addf %148, %135 : vector<3x32xf32>
    %150 = arith.negf %149 : vector<3x32xf32>
    %151 = math.exp %150 : vector<3x32xf32>
    %cst_55 = arith.constant 1.000000e+00 : f32
    %152 = vector.broadcast %cst_55 : f32 to vector<3x32xf32>
    %153 = arith.addf %152, %151 : vector<3x32xf32>
    %154 = arith.divf %152, %153 : vector<3x32xf32>
    %155 = vector.extract_strided_slice %63 {offsets = [2, 0, 0], sizes = [1, 3, 32], strides = [1, 1, 1]} : vector<8x3x32xf32> to vector<1x3x32xf32>
    %156 = vector.shape_cast %155 : vector<1x3x32xf32> to vector<3x32xf32>
    %157 = arith.mulf %146, %138 : vector<3x32xf32>
    %158 = arith.addf %156, %157 : vector<3x32xf32>
    %159 = math.tanh %158 : vector<3x32xf32>
    %cst_56 = arith.constant 1.000000e+00 : f32
    %160 = vector.broadcast %cst_56 : f32 to vector<3x32xf32>
    %161 = arith.subf %160, %154 : vector<3x32xf32>
    %162 = arith.mulf %161, %159 : vector<3x32xf32>
    %163 = arith.mulf %154, %132 : vector<3x32xf32>
    %164 = arith.addf %162, %163 : vector<3x32xf32>
    %165 = arith.truncf %164 : vector<3x32xf32> to vector<3x32xbf16>
    %cst_57 = arith.constant dense<0.000000e+00> : vector<3x32xf32>
    %166 = tpu.matmul %165, %64, %cst_57 {dimension_numbers = #tpu.dot_dimension_numbers<[1], [0], [0], [1], [0, 0, 1, 1], [], []>} : vector<3x32xbf16>, vector<32x32xbf16>, vector<3x32xf32> -> vector<3x32xf32>
    %cst_58 = arith.constant dense<0.000000e+00> : vector<3x32xf32>
    %167 = tpu.matmul %165, %65, %cst_58 {dimension_numbers = #tpu.dot_dimension_numbers<[1], [0], [0], [1], [0, 0, 1, 1], [], []>} : vector<3x32xbf16>, vector<32x32xbf16>, vector<3x32xf32> -> vector<3x32xf32>
    %cst_59 = arith.constant dense<0.000000e+00> : vector<3x32xf32>
    %168 = tpu.matmul %165, %66, %cst_59 {dimension_numbers = #tpu.dot_dimension_numbers<[1], [0], [0], [1], [0, 0, 1, 1], [], []>} : vector<3x32xbf16>, vector<32x32xbf16>, vector<3x32xf32> -> vector<3x32xf32>
    %169 = vector.broadcast %67 : vector<1x32xf32> to vector<3x32xf32>
    %170 = arith.addf %168, %169 : vector<3x32xf32>
    %171 = vector.extract_strided_slice %51 {offsets = [3, 0, 0], sizes = [1, 3, 32], strides = [1, 1, 1]} : vector<8x3x32xf32> to vector<1x3x32xf32>
    %172 = vector.shape_cast %171 : vector<1x3x32xf32> to vector<3x32xf32>
    %173 = arith.addf %172, %166 : vector<3x32xf32>
    %174 = arith.negf %173 : vector<3x32xf32>
    %175 = math.exp %174 : vector<3x32xf32>
    %cst_60 = arith.constant 1.000000e+00 : f32
    %176 = vector.broadcast %cst_60 : f32 to vector<3x32xf32>
    %177 = arith.addf %176, %175 : vector<3x32xf32>
    %178 = arith.divf %176, %177 : vector<3x32xf32>
    %179 = vector.extract_strided_slice %57 {offsets = [3, 0, 0], sizes = [1, 3, 32], strides = [1, 1, 1]} : vector<8x3x32xf32> to vector<1x3x32xf32>
    %180 = vector.shape_cast %179 : vector<1x3x32xf32> to vector<3x32xf32>
    %181 = arith.addf %180, %167 : vector<3x32xf32>
    %182 = arith.negf %181 : vector<3x32xf32>
    %183 = math.exp %182 : vector<3x32xf32>
    %cst_61 = arith.constant 1.000000e+00 : f32
    %184 = vector.broadcast %cst_61 : f32 to vector<3x32xf32>
    %185 = arith.addf %184, %183 : vector<3x32xf32>
    %186 = arith.divf %184, %185 : vector<3x32xf32>
    %187 = vector.extract_strided_slice %63 {offsets = [3, 0, 0], sizes = [1, 3, 32], strides = [1, 1, 1]} : vector<8x3x32xf32> to vector<1x3x32xf32>
    %188 = vector.shape_cast %187 : vector<1x3x32xf32> to vector<3x32xf32>
    %189 = arith.mulf %178, %170 : vector<3x32xf32>
    %190 = arith.addf %188, %189 : vector<3x32xf32>
    %191 = math.tanh %190 : vector<3x32xf32>
    %cst_62 = arith.constant 1.000000e+00 : f32
    %192 = vector.broadcast %cst_62 : f32 to vector<3x32xf32>
    %193 = arith.subf %192, %186 : vector<3x32xf32>
    %194 = arith.mulf %193, %191 : vector<3x32xf32>
    %195 = arith.mulf %186, %164 : vector<3x32xf32>
    %196 = arith.addf %194, %195 : vector<3x32xf32>
    %197 = arith.truncf %196 : vector<3x32xf32> to vector<3x32xbf16>
    %cst_63 = arith.constant dense<0.000000e+00> : vector<3x32xf32>
    %198 = tpu.matmul %197, %64, %cst_63 {dimension_numbers = #tpu.dot_dimension_numbers<[1], [0], [0], [1], [0, 0, 1, 1], [], []>} : vector<3x32xbf16>, vector<32x32xbf16>, vector<3x32xf32> -> vector<3x32xf32>
    %cst_64 = arith.constant dense<0.000000e+00> : vector<3x32xf32>
    %199 = tpu.matmul %197, %65, %cst_64 {dimension_numbers = #tpu.dot_dimension_numbers<[1], [0], [0], [1], [0, 0, 1, 1], [], []>} : vector<3x32xbf16>, vector<32x32xbf16>, vector<3x32xf32> -> vector<3x32xf32>
    %cst_65 = arith.constant dense<0.000000e+00> : vector<3x32xf32>
    %200 = tpu.matmul %197, %66, %cst_65 {dimension_numbers = #tpu.dot_dimension_numbers<[1], [0], [0], [1], [0, 0, 1, 1], [], []>} : vector<3x32xbf16>, vector<32x32xbf16>, vector<3x32xf32> -> vector<3x32xf32>
    %201 = vector.broadcast %67 : vector<1x32xf32> to vector<3x32xf32>
    %202 = arith.addf %200, %201 : vector<3x32xf32>
    %203 = vector.extract_strided_slice %51 {offsets = [4, 0, 0], sizes = [1, 3, 32], strides = [1, 1, 1]} : vector<8x3x32xf32> to vector<1x3x32xf32>
    %204 = vector.shape_cast %203 : vector<1x3x32xf32> to vector<3x32xf32>
    %205 = arith.addf %204, %198 : vector<3x32xf32>
    %206 = arith.negf %205 : vector<3x32xf32>
    %207 = math.exp %206 : vector<3x32xf32>
    %cst_66 = arith.constant 1.000000e+00 : f32
    %208 = vector.broadcast %cst_66 : f32 to vector<3x32xf32>
    %209 = arith.addf %208, %207 : vector<3x32xf32>
    %210 = arith.divf %208, %209 : vector<3x32xf32>
    %211 = vector.extract_strided_slice %57 {offsets = [4, 0, 0], sizes = [1, 3, 32], strides = [1, 1, 1]} : vector<8x3x32xf32> to vector<1x3x32xf32>
    %212 = vector.shape_cast %211 : vector<1x3x32xf32> to vector<3x32xf32>
    %213 = arith.addf %212, %199 : vector<3x32xf32>
    %214 = arith.negf %213 : vector<3x32xf32>
    %215 = math.exp %214 : vector<3x32xf32>
    %cst_67 = arith.constant 1.000000e+00 : f32
    %216 = vector.broadcast %cst_67 : f32 to vector<3x32xf32>
    %217 = arith.addf %216, %215 : vector<3x32xf32>
    %218 = arith.divf %216, %217 : vector<3x32xf32>
    %219 = vector.extract_strided_slice %63 {offsets = [4, 0, 0], sizes = [1, 3, 32], strides = [1, 1, 1]} : vector<8x3x32xf32> to vector<1x3x32xf32>
    %220 = vector.shape_cast %219 : vector<1x3x32xf32> to vector<3x32xf32>
    %221 = arith.mulf %210, %202 : vector<3x32xf32>
    %222 = arith.addf %220, %221 : vector<3x32xf32>
    %223 = math.tanh %222 : vector<3x32xf32>
    %cst_68 = arith.constant 1.000000e+00 : f32
    %224 = vector.broadcast %cst_68 : f32 to vector<3x32xf32>
    %225 = arith.subf %224, %218 : vector<3x32xf32>
    %226 = arith.mulf %225, %223 : vector<3x32xf32>
    %227 = arith.mulf %218, %196 : vector<3x32xf32>
    %228 = arith.addf %226, %227 : vector<3x32xf32>
    %229 = arith.truncf %228 : vector<3x32xf32> to vector<3x32xbf16>
    %cst_69 = arith.constant dense<0.000000e+00> : vector<3x32xf32>
    %230 = tpu.matmul %229, %64, %cst_69 {dimension_numbers = #tpu.dot_dimension_numbers<[1], [0], [0], [1], [0, 0, 1, 1], [], []>} : vector<3x32xbf16>, vector<32x32xbf16>, vector<3x32xf32> -> vector<3x32xf32>
    %cst_70 = arith.constant dense<0.000000e+00> : vector<3x32xf32>
    %231 = tpu.matmul %229, %65, %cst_70 {dimension_numbers = #tpu.dot_dimension_numbers<[1], [0], [0], [1], [0, 0, 1, 1], [], []>} : vector<3x32xbf16>, vector<32x32xbf16>, vector<3x32xf32> -> vector<3x32xf32>
    %cst_71 = arith.constant dense<0.000000e+00> : vector<3x32xf32>
    %232 = tpu.matmul %229, %66, %cst_71 {dimension_numbers = #tpu.dot_dimension_numbers<[1], [0], [0], [1], [0, 0, 1, 1], [], []>} : vector<3x32xbf16>, vector<32x32xbf16>, vector<3x32xf32> -> vector<3x32xf32>
    %233 = vector.broadcast %67 : vector<1x32xf32> to vector<3x32xf32>
    %234 = arith.addf %232, %233 : vector<3x32xf32>
    %235 = vector.extract_strided_slice %51 {offsets = [5, 0, 0], sizes = [1, 3, 32], strides = [1, 1, 1]} : vector<8x3x32xf32> to vector<1x3x32xf32>
    %236 = vector.shape_cast %235 : vector<1x3x32xf32> to vector<3x32xf32>
    %237 = arith.addf %236, %230 : vector<3x32xf32>
    %238 = arith.negf %237 : vector<3x32xf32>
    %239 = math.exp %238 : vector<3x32xf32>
    %cst_72 = arith.constant 1.000000e+00 : f32
    %240 = vector.broadcast %cst_72 : f32 to vector<3x32xf32>
    %241 = arith.addf %240, %239 : vector<3x32xf32>
    %242 = arith.divf %240, %241 : vector<3x32xf32>
    %243 = vector.extract_strided_slice %57 {offsets = [5, 0, 0], sizes = [1, 3, 32], strides = [1, 1, 1]} : vector<8x3x32xf32> to vector<1x3x32xf32>
    %244 = vector.shape_cast %243 : vector<1x3x32xf32> to vector<3x32xf32>
    %245 = arith.addf %244, %231 : vector<3x32xf32>
    %246 = arith.negf %245 : vector<3x32xf32>
    %247 = math.exp %246 : vector<3x32xf32>
    %cst_73 = arith.constant 1.000000e+00 : f32
    %248 = vector.broadcast %cst_73 : f32 to vector<3x32xf32>
    %249 = arith.addf %248, %247 : vector<3x32xf32>
    %250 = arith.divf %248, %249 : vector<3x32xf32>
    %251 = vector.extract_strided_slice %63 {offsets = [5, 0, 0], sizes = [1, 3, 32], strides = [1, 1, 1]} : vector<8x3x32xf32> to vector<1x3x32xf32>
    %252 = vector.shape_cast %251 : vector<1x3x32xf32> to vector<3x32xf32>
    %253 = arith.mulf %242, %234 : vector<3x32xf32>
    %254 = arith.addf %252, %253 : vector<3x32xf32>
    %255 = math.tanh %254 : vector<3x32xf32>
    %cst_74 = arith.constant 1.000000e+00 : f32
    %256 = vector.broadcast %cst_74 : f32 to vector<3x32xf32>
    %257 = arith.subf %256, %250 : vector<3x32xf32>
    %258 = arith.mulf %257, %255 : vector<3x32xf32>
    %259 = arith.mulf %250, %228 : vector<3x32xf32>
    %260 = arith.addf %258, %259 : vector<3x32xf32>
    %261 = arith.truncf %260 : vector<3x32xf32> to vector<3x32xbf16>
    %cst_75 = arith.constant dense<0.000000e+00> : vector<3x32xf32>
    %262 = tpu.matmul %261, %64, %cst_75 {dimension_numbers = #tpu.dot_dimension_numbers<[1], [0], [0], [1], [0, 0, 1, 1], [], []>} : vector<3x32xbf16>, vector<32x32xbf16>, vector<3x32xf32> -> vector<3x32xf32>
    %cst_76 = arith.constant dense<0.000000e+00> : vector<3x32xf32>
    %263 = tpu.matmul %261, %65, %cst_76 {dimension_numbers = #tpu.dot_dimension_numbers<[1], [0], [0], [1], [0, 0, 1, 1], [], []>} : vector<3x32xbf16>, vector<32x32xbf16>, vector<3x32xf32> -> vector<3x32xf32>
    %cst_77 = arith.constant dense<0.000000e+00> : vector<3x32xf32>
    %264 = tpu.matmul %261, %66, %cst_77 {dimension_numbers = #tpu.dot_dimension_numbers<[1], [0], [0], [1], [0, 0, 1, 1], [], []>} : vector<3x32xbf16>, vector<32x32xbf16>, vector<3x32xf32> -> vector<3x32xf32>
    %265 = vector.broadcast %67 : vector<1x32xf32> to vector<3x32xf32>
    %266 = arith.addf %264, %265 : vector<3x32xf32>
    %267 = vector.extract_strided_slice %51 {offsets = [6, 0, 0], sizes = [1, 3, 32], strides = [1, 1, 1]} : vector<8x3x32xf32> to vector<1x3x32xf32>
    %268 = vector.shape_cast %267 : vector<1x3x32xf32> to vector<3x32xf32>
    %269 = arith.addf %268, %262 : vector<3x32xf32>
    %270 = arith.negf %269 : vector<3x32xf32>
    %271 = math.exp %270 : vector<3x32xf32>
    %cst_78 = arith.constant 1.000000e+00 : f32
    %272 = vector.broadcast %cst_78 : f32 to vector<3x32xf32>
    %273 = arith.addf %272, %271 : vector<3x32xf32>
    %274 = arith.divf %272, %273 : vector<3x32xf32>
    %275 = vector.extract_strided_slice %57 {offsets = [6, 0, 0], sizes = [1, 3, 32], strides = [1, 1, 1]} : vector<8x3x32xf32> to vector<1x3x32xf32>
    %276 = vector.shape_cast %275 : vector<1x3x32xf32> to vector<3x32xf32>
    %277 = arith.addf %276, %263 : vector<3x32xf32>
    %278 = arith.negf %277 : vector<3x32xf32>
    %279 = math.exp %278 : vector<3x32xf32>
    %cst_79 = arith.constant 1.000000e+00 : f32
    %280 = vector.broadcast %cst_79 : f32 to vector<3x32xf32>
    %281 = arith.addf %280, %279 : vector<3x32xf32>
    %282 = arith.divf %280, %281 : vector<3x32xf32>
    %283 = vector.extract_strided_slice %63 {offsets = [6, 0, 0], sizes = [1, 3, 32], strides = [1, 1, 1]} : vector<8x3x32xf32> to vector<1x3x32xf32>
    %284 = vector.shape_cast %283 : vector<1x3x32xf32> to vector<3x32xf32>
    %285 = arith.mulf %274, %266 : vector<3x32xf32>
    %286 = arith.addf %284, %285 : vector<3x32xf32>
    %287 = math.tanh %286 : vector<3x32xf32>
    %cst_80 = arith.constant 1.000000e+00 : f32
    %288 = vector.broadcast %cst_80 : f32 to vector<3x32xf32>
    %289 = arith.subf %288, %282 : vector<3x32xf32>
    %290 = arith.mulf %289, %287 : vector<3x32xf32>
    %291 = arith.mulf %282, %260 : vector<3x32xf32>
    %292 = arith.addf %290, %291 : vector<3x32xf32>
    %293 = arith.truncf %292 : vector<3x32xf32> to vector<3x32xbf16>
    %cst_81 = arith.constant dense<0.000000e+00> : vector<3x32xf32>
    %294 = tpu.matmul %293, %64, %cst_81 {dimension_numbers = #tpu.dot_dimension_numbers<[1], [0], [0], [1], [0, 0, 1, 1], [], []>} : vector<3x32xbf16>, vector<32x32xbf16>, vector<3x32xf32> -> vector<3x32xf32>
    %cst_82 = arith.constant dense<0.000000e+00> : vector<3x32xf32>
    %295 = tpu.matmul %293, %65, %cst_82 {dimension_numbers = #tpu.dot_dimension_numbers<[1], [0], [0], [1], [0, 0, 1, 1], [], []>} : vector<3x32xbf16>, vector<32x32xbf16>, vector<3x32xf32> -> vector<3x32xf32>
    %cst_83 = arith.constant dense<0.000000e+00> : vector<3x32xf32>
    %296 = tpu.matmul %293, %66, %cst_83 {dimension_numbers = #tpu.dot_dimension_numbers<[1], [0], [0], [1], [0, 0, 1, 1], [], []>} : vector<3x32xbf16>, vector<32x32xbf16>, vector<3x32xf32> -> vector<3x32xf32>
    %297 = vector.broadcast %67 : vector<1x32xf32> to vector<3x32xf32>
    %298 = arith.addf %296, %297 : vector<3x32xf32>
    %299 = vector.extract_strided_slice %51 {offsets = [7, 0, 0], sizes = [1, 3, 32], strides = [1, 1, 1]} : vector<8x3x32xf32> to vector<1x3x32xf32>
    %300 = vector.shape_cast %299 : vector<1x3x32xf32> to vector<3x32xf32>
    %301 = arith.addf %300, %294 : vector<3x32xf32>
    %302 = arith.negf %301 : vector<3x32xf32>
    %303 = math.exp %302 : vector<3x32xf32>
    %cst_84 = arith.constant 1.000000e+00 : f32
    %304 = vector.broadcast %cst_84 : f32 to vector<3x32xf32>
    %305 = arith.addf %304, %303 : vector<3x32xf32>
    %306 = arith.divf %304, %305 : vector<3x32xf32>
    %307 = vector.extract_strided_slice %57 {offsets = [7, 0, 0], sizes = [1, 3, 32], strides = [1, 1, 1]} : vector<8x3x32xf32> to vector<1x3x32xf32>
    %308 = vector.shape_cast %307 : vector<1x3x32xf32> to vector<3x32xf32>
    %309 = arith.addf %308, %295 : vector<3x32xf32>
    %310 = arith.negf %309 : vector<3x32xf32>
    %311 = math.exp %310 : vector<3x32xf32>
    %cst_85 = arith.constant 1.000000e+00 : f32
    %312 = vector.broadcast %cst_85 : f32 to vector<3x32xf32>
    %313 = arith.addf %312, %311 : vector<3x32xf32>
    %314 = arith.divf %312, %313 : vector<3x32xf32>
    %315 = vector.extract_strided_slice %63 {offsets = [7, 0, 0], sizes = [1, 3, 32], strides = [1, 1, 1]} : vector<8x3x32xf32> to vector<1x3x32xf32>
    %316 = vector.shape_cast %315 : vector<1x3x32xf32> to vector<3x32xf32>
    %317 = arith.mulf %306, %298 : vector<3x32xf32>
    %318 = arith.addf %316, %317 : vector<3x32xf32>
    %319 = math.tanh %318 : vector<3x32xf32>
    %cst_86 = arith.constant 1.000000e+00 : f32
    %320 = vector.broadcast %cst_86 : f32 to vector<3x32xf32>
    %321 = arith.subf %320, %314 : vector<3x32xf32>
    %322 = arith.mulf %321, %319 : vector<3x32xf32>
    %323 = arith.mulf %314, %292 : vector<3x32xf32>
    %324 = arith.addf %322, %323 : vector<3x32xf32>
    %325 = vector.shape_cast %100 : vector<3x32xf32> to vector<1x3x32xf32>
    %326 = vector.shape_cast %132 : vector<3x32xf32> to vector<1x3x32xf32>
    %327 = vector.shape_cast %164 : vector<3x32xf32> to vector<1x3x32xf32>
    %328 = vector.shape_cast %196 : vector<3x32xf32> to vector<1x3x32xf32>
    %329 = vector.shape_cast %228 : vector<3x32xf32> to vector<1x3x32xf32>
    %330 = vector.shape_cast %260 : vector<3x32xf32> to vector<1x3x32xf32>
    %331 = vector.shape_cast %292 : vector<3x32xf32> to vector<1x3x32xf32>
    %332 = vector.shape_cast %324 : vector<3x32xf32> to vector<1x3x32xf32>
    %333 = tpu.concatenate %325, %326, %327, %328, %329, %330, %331, %332 in 0 : vector<1x3x32xf32>, vector<1x3x32xf32>, vector<1x3x32xf32>, vector<1x3x32xf32>, vector<1x3x32xf32>, vector<1x3x32xf32>, vector<1x3x32xf32>, vector<1x3x32xf32> -> vector<8x3x32xf32>
    %334 = arith.mulf %333, %333 : vector<8x3x32xf32>
    %cst_87 = arith.constant dense<0.000000e+00> : vector<8x3xf32>
    %335 = vector.multi_reduction <add>, %334, %cst_87 [2] : vector<8x3x32xf32> to vector<8x3xf32>
    %336 = vector.shape_cast %335 : vector<8x3xf32> to vector<8x3x1xf32>
    %cst_88 = arith.constant 1.000000e-16 : f32
    %337 = vector.broadcast %cst_88 : f32 to vector<8x3x1xf32>
    %338 = arith.addf %336, %337 : vector<8x3x1xf32>
    %339 = math.rsqrt %338 : vector<8x3x1xf32>
    %340 = vector.broadcast %339 : vector<8x3x1xf32> to vector<8x3x32xf32>
    %341 = arith.mulf %333, %340 : vector<8x3x32xf32>
    %342 = vector.shape_cast %21 : vector<8x3xf32> to vector<8x3x1xf32>
    %343 = vector.broadcast %342 : vector<8x3x1xf32> to vector<8x3x32xf32>
    %344 = arith.mulf %341, %343 : vector<8x3x32xf32>
    %345 = vector.shape_cast %344 : vector<8x3x32xf32> to vector<24x32xf32>
    %346 = arith.truncf %345 : vector<24x32xf32> to vector<24x32xbf16>
    %347 = vector.extract_strided_slice %43 {offsets = [0, 0, 0], sizes = [1, 8, 32], strides = [1, 1, 1]} : vector<3x8x32xbf16> to vector<1x8x32xbf16>
    %348 = vector.shape_cast %347 : vector<1x8x32xbf16> to vector<8x32xbf16>
    %cst_89 = arith.constant dense<0.000000e+00> : vector<24x8xf32>
    %349 = tpu.matmul %346, %348, %cst_89 {dimension_numbers = #tpu.dot_dimension_numbers<[1], [1], [0], [0], [0, 0, 1, 0], [], []>} : vector<24x32xbf16>, vector<8x32xbf16>, vector<24x8xf32> -> vector<24x8xf32>
    %350 = vector.extract_strided_slice %43 {offsets = [1, 0, 0], sizes = [1, 8, 32], strides = [1, 1, 1]} : vector<3x8x32xbf16> to vector<1x8x32xbf16>
    %351 = vector.shape_cast %350 : vector<1x8x32xbf16> to vector<8x32xbf16>
    %cst_90 = arith.constant dense<0.000000e+00> : vector<24x8xf32>
    %352 = tpu.matmul %346, %351, %cst_90 {dimension_numbers = #tpu.dot_dimension_numbers<[1], [1], [0], [0], [0, 0, 1, 0], [], []>} : vector<24x32xbf16>, vector<8x32xbf16>, vector<24x8xf32> -> vector<24x8xf32>
    %353 = vector.extract_strided_slice %43 {offsets = [2, 0, 0], sizes = [1, 8, 32], strides = [1, 1, 1]} : vector<3x8x32xbf16> to vector<1x8x32xbf16>
    %354 = vector.shape_cast %353 : vector<1x8x32xbf16> to vector<8x32xbf16>
    %cst_91 = arith.constant dense<0.000000e+00> : vector<24x8xf32>
    %355 = tpu.matmul %346, %354, %cst_91 {dimension_numbers = #tpu.dot_dimension_numbers<[1], [1], [0], [0], [0, 0, 1, 0], [], []>} : vector<24x32xbf16>, vector<8x32xbf16>, vector<24x8xf32> -> vector<24x8xf32>
    %356 = vector.shape_cast %349 : vector<24x8xf32> to vector<1x24x8xf32>
    %357 = vector.shape_cast %352 : vector<24x8xf32> to vector<1x24x8xf32>
    %358 = vector.shape_cast %355 : vector<24x8xf32> to vector<1x24x8xf32>
    %359 = tpu.concatenate %356, %357, %358 in 0 : vector<1x24x8xf32>, vector<1x24x8xf32>, vector<1x24x8xf32> -> vector<3x24x8xf32>
    %cst_92 = arith.constant 1.000000e-01 : f32
    %360 = vector.broadcast %cst_92 : f32 to vector<3x24x8xf32>
    %361 = arith.mulf %360, %359 : vector<3x24x8xf32>
    %362 = arith.maximumf %359, %361 : vector<3x24x8xf32>
    %363 = vector.shape_cast %362 : vector<3x24x8xf32> to vector<3x8x3x8xf32>
    %364 = vector.shape_cast %21 : vector<8x3xf32> to vector<1x8x3x1xf32>
    %365 = vector.broadcast %364 : vector<1x8x3x1xf32> to vector<3x8x3x8xf32>
    %366 = arith.mulf %363, %365 : vector<3x8x3x8xf32>
    %367 = arith.mulf %366, %366 : vector<3x8x3x8xf32>
    %cst_93 = arith.constant dense<0.000000e+00> : vector<3x3x8xf32>
    %368 = vector.multi_reduction <add>, %367, %cst_93 [1] : vector<3x8x3x8xf32> to vector<3x3x8xf32>
    %369 = vector.shape_cast %368 : vector<3x3x8xf32> to vector<3x1x3x8xf32>
    %cst_94 = arith.constant 1.000000e-16 : f32
    %370 = vector.broadcast %cst_94 : f32 to vector<3x1x3x8xf32>
    %371 = arith.addf %369, %370 : vector<3x1x3x8xf32>
    %372 = math.rsqrt %371 : vector<3x1x3x8xf32>
    %373 = vector.broadcast %372 : vector<3x1x3x8xf32> to vector<3x8x3x8xf32>
    %374 = arith.mulf %366, %373 : vector<3x8x3x8xf32>
    %cst_95 = arith.constant 9.000000e+00 : f32
    %375 = vector.broadcast %cst_95 : f32 to vector<3x8x3x8xf32>
    %376 = arith.mulf %374, %375 : vector<3x8x3x8xf32>
    %cst_96 = arith.constant dense<0xFF800000> : vector<3x8x3xf32>
    %377 = vector.multi_reduction <maximumf>, %376, %cst_96 [3] : vector<3x8x3x8xf32> to vector<3x8x3xf32>
    %378 = vector.shape_cast %377 : vector<3x8x3xf32> to vector<3x8x3x1xf32>
    %379 = vector.broadcast %378 : vector<3x8x3x1xf32> to vector<3x8x3x8xf32>
    %380 = arith.subf %376, %379 : vector<3x8x3x8xf32>
    %381 = math.exp %380 : vector<3x8x3x8xf32>
    %cst_97 = arith.constant dense<0.000000e+00> : vector<3x8x3xf32>
    %382 = vector.multi_reduction <add>, %381, %cst_97 [3] : vector<3x8x3x8xf32> to vector<3x8x3xf32>
    %383 = vector.shape_cast %382 : vector<3x8x3xf32> to vector<3x8x3x1xf32>
    %384 = tpu.reciprocal %383 {approx = true} : vector<3x8x3x1xf32> -> vector<3x8x3x1xf32>
    %385 = vector.broadcast %384 : vector<3x8x3x1xf32> to vector<3x8x3x8xf32>
    %386 = arith.mulf %381, %385 : vector<3x8x3x8xf32>
    %387 = vector.shape_cast %21 : vector<8x3xf32> to vector<1x8x3x1xf32>
    %388 = vector.broadcast %387 : vector<1x8x3x1xf32> to vector<3x8x3x8xf32>
    %389 = arith.mulf %386, %388 : vector<3x8x3x8xf32>
    %390 = vector.shape_cast %389 : vector<3x8x3x8xf32> to vector<3x24x8xf32>
    %391 = arith.truncf %390 : vector<3x24x8xf32> to vector<3x24x8xbf16>
    %392 = vector.extract_strided_slice %391 {offsets = [0, 0, 0], sizes = [1, 24, 8], strides = [1, 1, 1]} : vector<3x24x8xbf16> to vector<1x24x8xbf16>
    %393 = vector.shape_cast %392 : vector<1x24x8xbf16> to vector<24x8xbf16>
    %394 = vector.extract_strided_slice %43 {offsets = [0, 0, 0], sizes = [1, 8, 32], strides = [1, 1, 1]} : vector<3x8x32xbf16> to vector<1x8x32xbf16>
    %395 = vector.shape_cast %394 : vector<1x8x32xbf16> to vector<8x32xbf16>
    %cst_98 = arith.constant dense<0.000000e+00> : vector<24x32xf32>
    %396 = tpu.matmul %393, %395, %cst_98 {dimension_numbers = #tpu.dot_dimension_numbers<[1], [0], [0], [1], [0, 0, 1, 1], [], []>} : vector<24x8xbf16>, vector<8x32xbf16>, vector<24x32xf32> -> vector<24x32xf32>
    %397 = vector.extract_strided_slice %391 {offsets = [1, 0, 0], sizes = [1, 24, 8], strides = [1, 1, 1]} : vector<3x24x8xbf16> to vector<1x24x8xbf16>
    %398 = vector.shape_cast %397 : vector<1x24x8xbf16> to vector<24x8xbf16>
    %399 = vector.extract_strided_slice %43 {offsets = [1, 0, 0], sizes = [1, 8, 32], strides = [1, 1, 1]} : vector<3x8x32xbf16> to vector<1x8x32xbf16>
    %400 = vector.shape_cast %399 : vector<1x8x32xbf16> to vector<8x32xbf16>
    %cst_99 = arith.constant dense<0.000000e+00> : vector<24x32xf32>
    %401 = tpu.matmul %398, %400, %cst_99 {dimension_numbers = #tpu.dot_dimension_numbers<[1], [0], [0], [1], [0, 0, 1, 1], [], []>} : vector<24x8xbf16>, vector<8x32xbf16>, vector<24x32xf32> -> vector<24x32xf32>
    %402 = vector.extract_strided_slice %391 {offsets = [2, 0, 0], sizes = [1, 24, 8], strides = [1, 1, 1]} : vector<3x24x8xbf16> to vector<1x24x8xbf16>
    %403 = vector.shape_cast %402 : vector<1x24x8xbf16> to vector<24x8xbf16>
    %404 = vector.extract_strided_slice %43 {offsets = [2, 0, 0], sizes = [1, 8, 32], strides = [1, 1, 1]} : vector<3x8x32xbf16> to vector<1x8x32xbf16>
    %405 = vector.shape_cast %404 : vector<1x8x32xbf16> to vector<8x32xbf16>
    %cst_100 = arith.constant dense<0.000000e+00> : vector<24x32xf32>
    %406 = tpu.matmul %403, %405, %cst_100 {dimension_numbers = #tpu.dot_dimension_numbers<[1], [0], [0], [1], [0, 0, 1, 1], [], []>} : vector<24x8xbf16>, vector<8x32xbf16>, vector<24x32xf32> -> vector<24x32xf32>
    %407 = vector.shape_cast %396 : vector<24x32xf32> to vector<1x24x32xf32>
    %408 = vector.shape_cast %401 : vector<24x32xf32> to vector<1x24x32xf32>
    %409 = vector.shape_cast %406 : vector<24x32xf32> to vector<1x24x32xf32>
    %410 = tpu.concatenate %407, %408, %409 in 0 : vector<1x24x32xf32>, vector<1x24x32xf32>, vector<1x24x32xf32> -> vector<3x24x32xf32>
    %411 = arith.mulf %410, %410 : vector<3x24x32xf32>
    %cst_101 = arith.constant dense<0.000000e+00> : vector<3x24xf32>
    %412 = vector.multi_reduction <add>, %411, %cst_101 [2] : vector<3x24x32xf32> to vector<3x24xf32>
    %413 = vector.shape_cast %412 : vector<3x24xf32> to vector<3x24x1xf32>
    %cst_102 = arith.constant 1.000000e-16 : f32
    %414 = vector.broadcast %cst_102 : f32 to vector<3x24x1xf32>
    %415 = arith.addf %413, %414 : vector<3x24x1xf32>
    %416 = math.rsqrt %415 : vector<3x24x1xf32>
    %417 = vector.broadcast %416 : vector<3x24x1xf32> to vector<3x24x32xf32>
    %418 = arith.mulf %410, %417 : vector<3x24x32xf32>
    %419 = vector.shape_cast %345 : vector<24x32xf32> to vector<1x24x32xf32>
    %420 = vector.broadcast %419 : vector<1x24x32xf32> to vector<3x24x32xf32>
    %421 = arith.subf %418, %420 : vector<3x24x32xf32>
    %422 = arith.mulf %421, %421 : vector<3x24x32xf32>
    %423 = vector.shape_cast %422 : vector<3x24x32xf32> to vector<72x32xf32>
    %424 = arith.truncf %423 : vector<72x32xf32> to vector<72x32xbf16>
    %c0_103 = arith.constant 0 : index
    %c0_104 = arith.constant 0 : index
    %425 = vector.load %arg15[%c0_103, %c0_104] : memref<32x16xbf16, #tpu.memory_space<vmem>>, vector<32x16xbf16>
    %cst_105 = arith.constant dense<0.000000e+00> : vector<72x16xf32>
    %426 = tpu.matmul %424, %425, %cst_105 {dimension_numbers = #tpu.dot_dimension_numbers<[1], [0], [0], [1], [0, 0, 1, 1], [], []>} : vector<72x32xbf16>, vector<32x16xbf16>, vector<72x16xf32> -> vector<72x16xf32>
    %c0_106 = arith.constant 0 : index
    %c0_107 = arith.constant 0 : index
    %427 = vector.load %arg16[%c0_106, %c0_107] : memref<1x16xf32, #tpu.memory_space<vmem>>, vector<1x16xf32>
    %428 = vector.broadcast %427 : vector<1x16xf32> to vector<72x16xf32>
    %429 = arith.addf %426, %428 : vector<72x16xf32>
    %430 = arith.mulf %429, %429 : vector<72x16xf32>
    %cst_108 = arith.constant dense<0.000000e+00> : vector<72xf32>
    %431 = vector.multi_reduction <add>, %430, %cst_108 [1] : vector<72x16xf32> to vector<72xf32>
    %432 = vector.shape_cast %431 : vector<72xf32> to vector<72x1xf32>
    %cst_109 = arith.constant 1.000000e-16 : f32
    %433 = vector.broadcast %cst_109 : f32 to vector<72x1xf32>
    %434 = arith.addf %432, %433 : vector<72x1xf32>
    %435 = math.rsqrt %434 : vector<72x1xf32>
    %436 = vector.broadcast %435 : vector<72x1xf32> to vector<72x16xf32>
    %437 = arith.mulf %429, %436 : vector<72x16xf32>
    %438 = vector.shape_cast %437 : vector<72x16xf32> to vector<3x8x3x16xf32>
    %439 = vector.shape_cast %21 : vector<8x3xf32> to vector<1x8x3x1xf32>
    %440 = vector.broadcast %439 : vector<1x8x3x1xf32> to vector<3x8x3x16xf32>
    %441 = arith.mulf %438, %440 : vector<3x8x3x16xf32>
    %cst_110 = arith.constant dense<0.000000e+00> : vector<3x3x16xf32>
    %442 = vector.multi_reduction <add>, %441, %cst_110 [1] : vector<3x8x3x16xf32> to vector<3x3x16xf32>
    %443 = vector.shape_cast %26 : vector<1x3xf32> to vector<1x3x1xf32>
    %444 = vector.broadcast %443 : vector<1x3x1xf32> to vector<3x3x16xf32>
    %445 = arith.mulf %442, %444 : vector<3x3x16xf32>
    %446 = arith.mulf %445, %445 : vector<3x3x16xf32>
    %cst_111 = arith.constant dense<0.000000e+00> : vector<3x3xf32>
    %447 = vector.multi_reduction <add>, %446, %cst_111 [2] : vector<3x3x16xf32> to vector<3x3xf32>
    %448 = vector.shape_cast %447 : vector<3x3xf32> to vector<3x3x1xf32>
    %cst_112 = arith.constant 1.000000e-16 : f32
    %449 = vector.broadcast %cst_112 : f32 to vector<3x3x1xf32>
    %450 = arith.addf %448, %449 : vector<3x3x1xf32>
    %451 = math.rsqrt %450 : vector<3x3x1xf32>
    %452 = vector.broadcast %451 : vector<3x3x1xf32> to vector<3x3x16xf32>
    %453 = arith.mulf %445, %452 : vector<3x3x16xf32>
    %c0_113 = arith.constant 0 : index
    %c0_114 = arith.constant 0 : index
    %454 = vector.load %arg17[%c0_113, %c0_114] : memref<1x16xf32, #tpu.memory_space<vmem>>, vector<1x16xf32>
    %455 = vector.shape_cast %454 : vector<1x16xf32> to vector<1x1x16xf32>
    %456 = vector.broadcast %455 : vector<1x1x16xf32> to vector<3x3x16xf32>
    %457 = arith.mulf %453, %456 : vector<3x3x16xf32>
    %cst_115 = arith.constant dense<0.000000e+00> : vector<3x3xf32>
    %458 = vector.multi_reduction <add>, %457, %cst_115 [2] : vector<3x3x16xf32> to vector<3x3xf32>
    %c0_116 = arith.constant 0 : index
    %c0_117 = arith.constant 0 : index
    %459 = vector.load %arg18[%c0_116, %c0_117] : memref<1x1xf32, #tpu.memory_space<vmem>>, vector<1x1xf32>
    %460 = vector.broadcast %459 : vector<1x1xf32> to vector<3x3xf32>
    %461 = arith.addf %458, %460 : vector<3x3xf32>
    %462 = math.tanh %461 : vector<3x3xf32>
    %c0_118 = arith.constant 0 : index
    %c0_119 = arith.constant 0 : index
    %463 = vector.load %arg19[%c0_118, %c0_119] : memref<3x3xf32, #tpu.memory_space<vmem>>, vector<3x3xf32>
    tpu.vector_store %arg19[%c0_118, %c0_119], %462 {strides = array<i32>} : memref<3x3xf32, #tpu.memory_space<vmem>>, vector<3x3xf32>,
    return
  }
}

</mosaic_0001>

<llo_original>
// kernel: sgraf_forward.1
$region0: #{sgraf_forward.1}
  #allocation0 [shape = 'u32[]', space=smem, size = 0x4, offset = 0x4, fixed_abs, tag = 'smem constant byte address 0x4 - core index']
  #allocation1 [shape = 'u32[144,128]{1,0:T(1,128)}', space=vmem, size = 0x12000, scoped, tag = 'internal scratch']
  #allocation2 [shape = 'f32[1,1]{1,0:T(1,128)S(1)}', space=vmem, size = 0x200, scoped, tag = 'scoped memory for sgraf_forward.1']
  %s0 = inlined_call_operand.vmem [shape: s32[3], index: 0, kind: input, shape index: {}]
  %s1 = inlined_call_operand.vmem [shape: bf16[3,8,48], index: 1, kind: input, shape index: {}]
  %s2 = inlined_call_operand.vmem [shape: bf16[8,3,16], index: 2, kind: input, shape index: {}]
  %s3 = inlined_call_operand.vmem [shape: bf16[48,32], index: 3, kind: input, shape index: {}]
  %s4 = inlined_call_operand.vmem [shape: f32[1,32], index: 4, kind: input, shape index: {}]
  %s5 = inlined_call_operand.vmem [shape: bf16[16,32], index: 5, kind: input, shape index: {}]
  %s6 = inlined_call_operand.vmem [shape: bf16[16,32], index: 6, kind: input, shape index: {}]
  %s7 = inlined_call_operand.vmem [shape: bf16[16,32], index: 7, kind: input, shape index: {}]
  %s8 = inlined_call_operand.vmem [shape: bf16[32,32], index: 8, kind: input, shape index: {}]
  %s9 = inlined_call_operand.vmem [shape: bf16[32,32], index: 9, kind: input, shape index: {}]
  %s10 = inlined_call_operand.vmem [shape: bf16[32,32], index: 10, kind: input, shape index: {}]
  %s11 = inlined_call_operand.vmem [shape: f32[1,32], index: 11, kind: input, shape index: {}]
  %s12 = inlined_call_operand.vmem [shape: f32[1,32], index: 12, kind: input, shape index: {}]
  %s13 = inlined_call_operand.vmem [shape: f32[1,32], index: 13, kind: input, shape index: {}]
  %s14 = inlined_call_operand.vmem [shape: f32[1,32], index: 14, kind: input, shape index: {}]
  %s15 = inlined_call_operand.vmem [shape: bf16[32,16], index: 15, kind: input, shape index: {}]
  %s16 = inlined_call_operand.vmem [shape: f32[1,16], index: 16, kind: input, shape index: {}]
  %s17 = inlined_call_operand.vmem [shape: f32[1,16], index: 17, kind: input, shape index: {}]
  %s18 = inlined_call_operand.<no memory space> [shape: f32[1,1], index: 18, kind: input, shape index: {}]
  %s19 = inlined_call_operand.vmem [shape: f32[3,3], index: 19, kind: output, shape index: {}]
  %s20 = sld [smem:[#allocation0]]
  $region90: #{sgraf_forward.1} parent=0
    _
  %s22 = ssub.s32 1, %s20
  %s23 = scalar_select 0, %s22, %s20
  %v24 = vstv %s18
  %25 = vst [vmem:[#allocation2] sm:$0x1] %v24
  $region1: #{sgraf_forward.1} parent=0
    #allocation3 [shape = 'u8[512]{0}', space=smem, size = 0x200, scoped, tag = 'input window, operand 0, single buffered']
    #allocation4 [shape = 's32[1]{0}', space=sflag, size = 0x4, scoped, tag = 'scoped memory for sgraf_forward.1']
    %26 = vsyncpa [#allocation4], 0
    // Predicated region
    $region2: #{sgraf_forward.1} parent=1 // pred_check
      _
    $region3: #{sgraf_forward.1} parent=1 // pred_check_branch
      %28 = sbr.rel (0) target = $region5
    $region4: #{sgraf_forward.1} parent=1 // pred_region
      %s30 = ssub.s32 16, 16
      %31 = vsyncadd [#allocation4], %s30
      %s33 = sshll.u32 %s0, 4
      %s34 = int_to_ptr.vmem [resolvable:$true] %s33
      %36 = dma.vmem_to_smem %s34, 16, [#allocation3], [#allocation4]
    $region5: #{sgraf_forward.1} parent=1 // pred_fallthru
      _
    // Predicated region
    $region6: #{sgraf_forward.1} parent=1 // pred_check
      _
    $region7: #{sgraf_forward.1} parent=1 // pred_check_branch
      %38 = sbr.rel (0) target = $region9
    $region8: #{sgraf_forward.1} parent=1 // pred_region
      _
    $region9: #{sgraf_forward.1} parent=1 // pred_fallthru
      _
    // Predicated region
    $region10: #{sgraf_forward.1} parent=1 // pred_check
      _
    $region11: #{sgraf_forward.1} parent=1 // pred_check_branch
      %40 = sbr.rel (0) target = $region13
    $region12: #{sgraf_forward.1} parent=1 // pred_region
      _
    $region13: #{sgraf_forward.1} parent=1 // pred_fallthru
      _
    // Predicated region
    $region14: #{sgraf_forward.1} parent=1 // pred_check
      _
    $region15: #{sgraf_forward.1} parent=1 // pred_check_branch
      %42 = sbr.rel (0) target = $region17
    $region16: #{sgraf_forward.1} parent=1 // pred_region
      _
    $region17: #{sgraf_forward.1} parent=1 // pred_fallthru
      _
    // Predicated region
    $region18: #{sgraf_forward.1} parent=1 // pred_check
      _
    $region19: #{sgraf_forward.1} parent=1 // pred_check_branch
      %44 = sbr.rel (0) target = $region21
    $region20: #{sgraf_forward.1} parent=1 // pred_region
      _
    $region21: #{sgraf_forward.1} parent=1 // pred_fallthru
      _
    // Predicated region
    $region22: #{sgraf_forward.1} parent=1 // pred_check
      _
    $region23: #{sgraf_forward.1} parent=1 // pred_check_branch
      %46 = sbr.rel (0) target = $region25
    $region24: #{sgraf_forward.1} parent=1 // pred_region
      _
    $region25: #{sgraf_forward.1} parent=1 // pred_fallthru
      _
    // Predicated region
    $region26: #{sgraf_forward.1} parent=1 // pred_check
      _
    $region27: #{sgraf_forward.1} parent=1 // pred_check_branch
      %48 = sbr.rel (0) target = $region29
    $region28: #{sgraf_forward.1} parent=1 // pred_region
      _
    $region29: #{sgraf_forward.1} parent=1 // pred_fallthru
      _
    // Predicated region
    $region30: #{sgraf_forward.1} parent=1 // pred_check
      _
    $region31: #{sgraf_forward.1} parent=1 // pred_check_branch
      %50 = sbr.rel (0) target = $region33
    $region32: #{sgraf_forward.1} parent=1 // pred_region
      _
    $region33: #{sgraf_forward.1} parent=1 // pred_fallthru
      _
    // Predicated region
    $region34: #{sgraf_forward.1} parent=1 // pred_check
      _
    $region35: #{sgraf_forward.1} parent=1 // pred_check_branch
      %52 = sbr.rel (0) target = $region37
    $region36: #{sgraf_forward.1} parent=1 // pred_region
      _
    $region37: #{sgraf_forward.1} parent=1 // pred_fallthru
      _
    // Predicated region
    $region38: #{sgraf_forward.1} parent=1 // pred_check
      _
    $region39: #{sgraf_forward.1} parent=1 // pred_check_branch
      %54 = sbr.rel (0) target = $region41
    $region40: #{sgraf_forward.1} parent=1 // pred_region
      _
    $region41: #{sgraf_forward.1} parent=1 // pred_fallthru
      _
    // Predicated region
    $region42: #{sgraf_forward.1} parent=1 // pred_check
      _
    $region43: #{sgraf_forward.1} parent=1 // pred_check_branch
      %56 = sbr.rel (0) target = $region45
    $region44: #{sgraf_forward.1} parent=1 // pred_region
      _
    $region45: #{sgraf_forward.1} parent=1 // pred_fallthru
      _
    // Predicated region
    $region46: #{sgraf_forward.1} parent=1 // pred_check
      _
    $region47: #{sgraf_forward.1} parent=1 // pred_check_branch
      %58 = sbr.rel (0) target = $region49
    $region48: #{sgraf_forward.1} parent=1 // pred_region
      _
    $region49: #{sgraf_forward.1} parent=1 // pred_fallthru
      _
    // Predicated region
    $region50: #{sgraf_forward.1} parent=1 // pred_check
      _
    $region51: #{sgraf_forward.1} parent=1 // pred_check_branch
      %60 = sbr.rel (0) target = $region53
    $region52: #{sgraf_forward.1} parent=1 // pred_region
      _
    $region53: #{sgraf_forward.1} parent=1 // pred_fallthru
      _
    // Predicated region
    $region54: #{sgraf_forward.1} parent=1 // pred_check
      _
    $region55: #{sgraf_forward.1} parent=1 // pred_check_branch
      %62 = sbr.rel (0) target = $region57
    $region56: #{sgraf_forward.1} parent=1 // pred_region
      _
    $region57: #{sgraf_forward.1} parent=1 // pred_fallthru
      _
    // Predicated region
    $region58: #{sgraf_forward.1} parent=1 // pred_check
      _
    $region59: #{sgraf_forward.1} parent=1 // pred_check_branch
      %64 = sbr.rel (0) target = $region61
    $region60: #{sgraf_forward.1} parent=1 // pred_region
      _
    $region61: #{sgraf_forward.1} parent=1 // pred_fallthru
      _
    // Predicated region
    $region62: #{sgraf_forward.1} parent=1 // pred_check
      _
    $region63: #{sgraf_forward.1} parent=1 // pred_check_branch
      %66 = sbr.rel (0) target = $region65
    $region64: #{sgraf_forward.1} parent=1 // pred_region
      _
    $region65: #{sgraf_forward.1} parent=1 // pred_fallthru
      _
    // Predicated region
    $region66: #{sgraf_forward.1} parent=1 // pred_check
      _
    $region67: #{sgraf_forward.1} parent=1 // pred_check_branch
      %68 = sbr.rel (0) target = $region69
    $region68: #{sgraf_forward.1} parent=1 // pred_region
      _
    $region69: #{sgraf_forward.1} parent=1 // pred_fallthru
      _
    // Predicated region
    $region70: #{sgraf_forward.1} parent=1 // pred_check
      _
    $region71: #{sgraf_forward.1} parent=1 // pred_check_branch
      %70 = sbr.rel (0) target = $region73
    $region72: #{sgraf_forward.1} parent=1 // pred_region
      _
    $region73: #{sgraf_forward.1} parent=1 // pred_fallthru
      _
    // Predicated region
    $region74: #{sgraf_forward.1} parent=1 // pred_check
      _
    $region75: #{sgraf_forward.1} parent=1 // pred_check_branch
      %72 = sbr.rel (0) target = $region77
    $region76: #{sgraf_forward.1} parent=1 // pred_region
      _
    $region77: #{sgraf_forward.1} parent=1 // pred_fallthru
      _
    // Predicated region
    $region78: #{sgraf_forward.1} parent=1 // pred_check
      _
    $region79: #{sgraf_forward.1} parent=1 // pred_check_branch
      %74 = sbr.rel (0) target = $region81
    $region80: #{sgraf_forward.1} parent=1 // pred_region
      %75 = dma.done [#allocation4], 16
    $region81: #{sgraf_forward.1} parent=1 // pred_fallthru
      _
    %76 = sfence
    %v78 = vlaneseq
    %v79 = vand.u32 %v78, 127
    %vm80 = vcmp.eq.s32.totalorder %v79, 0
    %s81 = sld [smem:[#allocation3]]
    %v82 = vstv %s81
    %v83 = vsel %vm80, %v82, 0
    %vm84 = vcmp.eq.s32.totalorder %v79, 1
    %s85 = sld [smem:[#allocation3 + $0x1]]
    %v86 = vstv %s85
    %v87 = vsel %vm84, %v86, %v83
    %vm88 = vcmp.eq.s32.totalorder %v79, 2
    %s89 = sld [smem:[#allocation3 + $0x2]]
    %v90 = vstv %s89
    %v91 = vsel %vm88, %v90, %v87
    %v92 = vlaneseq
    %v93 = vshrl.u32 %v92, 7
    %vm94 = vcmp.lt.s32.totalorder %v93, %v91
    %v95 = vsel %vm94, 1, 0
    %v96 = vcvt.s32.f32 %v95
    %v97 = vcvt.s32.f32 %v91
    %v98 = vmax.f32 %v97, 1.0
    %v99 = vrcp.pop %v98
    %v100 = vmul.f32 1.0, %v99
    %v101 = vld [vmem:[%s1] sm:$0xf]
    %v102 = vld [vmem:[%s1 + $0x4] sm:$0xf]
    %v103 = vld [vmem:[%s1 + $0x8] sm:$0xf]
    %v104 = vld [vmem:[%s3] sm:$0xf]
    %v105 = vld [vmem:[%s3 + $0x4] sm:$0xf]
    %v106 = vld [vmem:[%s3 + $0x8] sm:$0xf]
    %v107 = vld [vmem:[%s3 + $0xc] sm:$0xf]
    %v108 = vld [vmem:[%s3 + $0x10] sm:$0xf]
    %v109 = vld [vmem:[%s3 + $0x14] sm:$0xf]
    %v110 = vld [vmem:[%s4] sm:$0x1]
    %v112 = vlaneseq
    %v113 = vshrl.u32 %v112, 7
    %v114 = vsub.s32 0, %v113
    %v115 = vrot.slane %v110, %v114
    %v120 = vunpack.c.l.b16 %v101
    %v121 = vunpack.c.l.b16 %v102
    %v122 = vunpack.c.l.b16 %v103
    %v123 = vpack.c.b16 %v121, %v120
    %v124 = vpack.c.b16 %v122, %v122
    %v131 = vunpack.c.l.b16 %v104
    %v132 = vunpack.c.l.b16 %v105
    %v133 = vunpack.c.l.b16 %v106
    %v134 = vunpack.c.l.b16 %v107
    %v135 = vunpack.c.l.b16 %v108
    %v136 = vunpack.c.l.b16 %v109
    %v137 = vpack.c.b16 %v132, %v131
    %v138 = vpack.c.b16 %v134, %v133
    %v139 = vpack.c.b16 %v136, %v135
    %vm143 = vcmask 392192
    %v145 = vsel %vm143, %v123, 0
    %v148 = vsel %vm143, %v124, 0
    %150 = vmatprep.subr.bf16.mxu0 0
    %151 = vmatpush1.bf16.msra.mxu0 %v137
    %152 = vmatprep.subr.bf16.mxu0 0
    %153 = vmatpush1.bf16.msra.mxu0 %v138
    %154 = vmatprep.subr.bf16.mxu0 0
    %155 = vmatpush1.bf16.msra.mxu0 %v139
    %156 = vmatprep.subr.bf16.mxu0 0
    %157 = vmatpush1.bf16.msra.mxu0 0
    %158 = vmatprep.subr.bf16.mxu0 0
    %159 = vmatpush1.bf16.msra.mxu0 0
    %160 = vmatprep.subr.bf16.mxu0 0
    %161 = vmatpush1.bf16.msra.mxu0 0
    %162 = vmatprep.subr.bf16.mxu0 0
    %163 = vmatpush1.bf16.msra.mxu0 0
    %164 = vmatprep.subr.bf16.mxu0 0
    %165 = vmatpush1.bf16.msra.mxu0 0
    %166 = vmatprep.subr.bf16.mxu0 0
    %167 = vmatpush1.bf16.msra.mxu0 0
    %168 = vmatprep.subr.bf16.mxu0 0
    %169 = vmatpush1.bf16.msra.mxu0 0
    %170 = vmatprep.subr.bf16.mxu0 0
    %171 = vmatpush1.bf16.msra.mxu0 0
    %172 = vmatprep.subr.bf16.mxu0 0
    %173 = vmatpush1.bf16.msra.mxu0 0
    %174 = vmatprep.subr.bf16.mxu0 0
    %175 = vmatpush1.bf16.msra.mxu0 0
    %176 = vmatprep.subr.bf16.mxu0 0
    %177 = vmatpush1.bf16.msra.mxu0 0
    %178 = vmatprep.subr.bf16.mxu0 0
    %179 = vmatpush1.bf16.msra.mxu0 0
    %180 = vmatprep.subr.bf16.mxu0 0
    %181 = vmatpush1.bf16.msra.mxu0 0
    %182 = vmatprep.mubr.bf16.mxu0 0
    %183 = vmatmul.mubr.bf16.gmra.mrb[0].mxu0 %v145
    %v184 = vpop.f32.mrb[0].mxu0
    %v185 = vadd.f32 %v115, %v184
    %v186 = vpop.f32.mrb[0].mxu0
    %v187 = vpop.f32.mrb[0].mxu0
    %v188 = vadd.f32 %v115, %v187
    %v189 = vpop.f32.mrb[0].mxu0
    %190 = vmatprep.mubr.bf16.mxu0 0
    %191 = vmatmul.mubr.bf16.gmra.mrb[0].mxu0 %v148
    %v192 = vpop.f32.mrb[0].mxu0
    %v193 = vadd.f32 %v115, %v192
    %v194 = vpop.f32.mrb[0].mxu0
    %v195 = vpop.f32.mrb[0].mxu0
    %v196 = vpop.f32.mrb[0].mxu0
    %197 = vdwg.mxu0
    %v198 = vmul.f32 %v185, %v185
    %v199 = vmul.f32 %v188, %v188
    %v200 = vmul.f32 %v193, %v193
    %vm201 = vcmask 261120
    %v202 = vsel %vm201, %v198, 0.0
    %203 = vadd.xlane.f32.xlu0 %v202
    %v204 = vpop.xlane.xlu0 %203
    %v205 = vsel %vm201, %v199, 0.0
    %206 = vadd.xlane.f32.xlu0 %v205
    %v207 = vpop.xlane.xlu0 %206
    %v208 = vsel %vm201, %v200, 0.0
    %209 = vadd.xlane.f32.xlu0 %v208
    %v210 = vpop.xlane.xlu0 %209
    %v211 = vadd.f32 %v204, 1e-16
    %v212 = vadd.f32 %v207, 1e-16
    %v213 = vadd.f32 %v210, 1e-16
    %v214 = vrsqrt.pop %v211
    %v215 = vrsqrt.pop %v212
    %v216 = vrsqrt.pop %v213
    %v217 = vmul.f32 %v185, %v214
    %v218 = vmul.f32 %v188, %v215
    %v219 = vmul.f32 %v193, %v216
    %v220 = vpack.c.bf16 %v218, %v217
    %v221 = vpack.c.bf16 %v219, %v219
    %v224 = vunpack.c.l.b16 %v220
    %v225 = vunpack.c.h.b16 %v220
    %v226 = vunpack.c.l.b16 %v221
    %v227 = vpack.c.b16 %v224, %v224
    %v228 = vpack.c.b16 %v225, %v225
    %v229 = vpack.c.b16 %v226, %v226
    %v230 = vld [vmem:[%s2] sm:$0x3]
    %v231 = vld [vmem:[%s2 + $0x2] sm:$0x3]
    %v232 = vld [vmem:[%s2 + $0x4] sm:$0x3]
    %v233 = vld [vmem:[%s2 + $0x6] sm:$0x3]
    %v234 = vld [vmem:[%s2 + $0x8] sm:$0x3]
    %v235 = vld [vmem:[%s2 + $0xa] sm:$0x3]
    %v236 = vld [vmem:[%s2 + $0xc] sm:$0x3]
    %v237 = vld [vmem:[%s2 + $0xe] sm:$0x3]
    %v247 = vunpack.c.l.s4 1966171168
    %v248 = vunpack.c.0.s8 %v247
    %v249 = vlaneseq
    %v250 = vshrl.u32 %v249, 7
    %v251 = vsub.s32 %v248, %v250
    %v252 = vrot.slane %v230, %v251
    %v253 = vcombine.high %v252, %v252
    %v255 = vunpack.c.l.s4 1966171168
    %v256 = vunpack.c.0.s8 %v255
    %v257 = vlaneseq
    %v258 = vshrl.u32 %v257, 7
    %v259 = vsub.s32 %v256, %v258
    %v260 = vrot.slane %v231, %v259
    %v261 = vcombine.high %v260, %v260
    %v263 = vunpack.c.l.s4 1966171168
    %v264 = vunpack.c.0.s8 %v263
    %v265 = vlaneseq
    %v266 = vshrl.u32 %v265, 7
    %v267 = vsub.s32 %v264, %v266
    %v268 = vrot.slane %v232, %v267
    %v269 = vcombine.high %v268, %v268
    %v271 = vunpack.c.l.s4 1966171168
    %v272 = vunpack.c.0.s8 %v271
    %v273 = vlaneseq
    %v274 = vshrl.u32 %v273, 7
    %v275 = vsub.s32 %v272, %v274
    %v276 = vrot.slane %v233, %v275
    %v277 = vcombine.high %v276, %v276
    %v279 = vunpack.c.l.s4 1966171168
    %v280 = vunpack.c.0.s8 %v279
    %v281 = vlaneseq
    %v282 = vshrl.u32 %v281, 7
    %v283 = vsub.s32 %v280, %v282
    %v284 = vrot.slane %v234, %v283
    %v285 = vcombine.high %v284, %v284
    %v287 = vunpack.c.l.s4 1966171168
    %v288 = vunpack.c.0.s8 %v287
    %v289 = vlaneseq
    %v290 = vshrl.u32 %v289, 7
    %v291 = vsub.s32 %v288, %v290
    %v292 = vrot.slane %v235, %v291
    %v293 = vcombine.high %v292, %v292
    %v295 = vunpack.c.l.s4 1966171168
    %v296 = vunpack.c.0.s8 %v295
    %v297 = vlaneseq
    %v298 = vshrl.u32 %v297, 7
    %v299 = vsub.s32 %v296, %v298
    %v300 = vrot.slane %v236, %v299
    %v301 = vcombine.high %v300, %v300
    %v303 = vunpack.c.l.s4 1966171168
    %v304 = vunpack.c.0.s8 %v303
    %v305 = vlaneseq
    %v306 = vshrl.u32 %v305, 7
    %v307 = vsub.s32 %v304, %v306
    %v308 = vrot.slane %v237, %v307
    %v309 = vcombine.high %v308, %v308
    %v310 = vunpack.i.l.s16 %v252
    %v311 = vunpack.i.h.s16 %v252
    %v312 = vunpack.i.l.s16 %v253
    %v313 = vunpack.i.l.s16 %v260
    %v314 = vunpack.i.h.s16 %v260
    %v315 = vunpack.i.l.s16 %v261
    %v316 = vunpack.i.l.s16 %v268
    %v317 = vunpack.i.h.s16 %v268
    %v318 = vunpack.i.l.s16 %v269
    %v319 = vunpack.i.l.s16 %v276
    %v320 = vunpack.i.h.s16 %v276
    %v321 = vunpack.i.l.s16 %v277
    %v322 = vunpack.i.l.s16 %v284
    %v323 = vunpack.i.h.s16 %v284
    %v324 = vunpack.i.l.s16 %v285
    %v325 = vunpack.i.l.s16 %v292
    %v326 = vunpack.i.h.s16 %v292
    %v327 = vunpack.i.l.s16 %v293
    %v328 = vunpack.i.l.s16 %v300
    %v329 = vunpack.i.h.s16 %v300
    %v330 = vunpack.i.l.s16 %v301
    %v331 = vunpack.i.l.s16 %v308
    %v332 = vunpack.i.h.s16 %v308
    %v333 = vunpack.i.l.s16 %v309
    %v334 = vld [vmem:[%s5] sm:$0xf]
    %v335 = vld [vmem:[%s5 + $0x4] sm:$0xf]
    %v336 = vld [vmem:[%s11] sm:$0x1]
    %v338 = vlaneseq
    %v339 = vshrl.u32 %v338, 7
    %v340 = vsub.s32 0, %v339
    %v341 = vrot.slane %v336, %v340
    %v343 = vpack.i.b16 %v311, %v310
    %v344 = vpack.i.b16 %v313, %v312
    %v345 = vpack.i.b16 %v315, %v314
    %v346 = vpack.i.b16 %v317, %v316
    %v347 = vpack.i.b16 %v319, %v318
    %v348 = vpack.i.b16 %v321, %v320
    %v349 = vpack.i.b16 %v323, %v322
    %v350 = vpack.i.b16 %v325, %v324
    %v351 = vpack.i.b16 %v327, %v326
    %v352 = vpack.i.b16 %v329, %v328
    %v353 = vpack.i.b16 %v331, %v330
    %v354 = vpack.i.b16 %v333, %v332
    %v355 = vcombine.low %v343, %v344
    %v356 = vcombine.low %v345, %v346
    %v357 = vcombine.low %v347, %v348
    %v358 = vcombine.low %v349, %v350
    %v360 = vunpack.c.l.s4 1966171168
    %v361 = vunpack.c.0.s8 %v360
    %v362 = vlaneseq
    %v363 = vshrl.u32 %v362, 7
    %v364 = vsub.s32 %v361, %v363
    %v365 = vrot.slane %v355, %v364
    %v367 = vunpack.c.l.s4 1966171168
    %v368 = vunpack.c.0.s8 %v367
    %v369 = vlaneseq
    %v370 = vshrl.u32 %v369, 7
    %v371 = vsub.s32 %v368, %v370
    %v372 = vrot.slane %v356, %v371
    %v374 = vunpack.c.l.s4 1966171168
    %v375 = vunpack.c.0.s8 %v374
    %v376 = vlaneseq
    %v377 = vshrl.u32 %v376, 7
    %v378 = vsub.s32 %v375, %v377
    %v379 = vrot.slane %v357, %v378
    %v381 = vunpack.c.l.s4 1966171168
    %v382 = vunpack.c.0.s8 %v381
    %v383 = vlaneseq
    %v384 = vshrl.u32 %v383, 7
    %v385 = vsub.s32 %v382, %v384
    %v386 = vrot.slane %v358, %v385
    %v387 = vcombine.low %v365, %v372
    %v388 = vcombine.low %v379, %v386
    %v390 = vunpack.c.l.s4 1966171168
    %v391 = vunpack.c.0.s8 %v390
    %v392 = vlaneseq
    %v393 = vshrl.u32 %v392, 7
    %v394 = vsub.s32 %v391, %v393
    %v395 = vrot.slane %v387, %v394
    %v397 = vunpack.c.l.s4 1966171168
    %v398 = vunpack.c.0.s8 %v397
    %v399 = vlaneseq
    %v400 = vshrl.u32 %v399, 7
    %v401 = vsub.s32 %v398, %v400
    %v402 = vrot.slane %v388, %v401
    %v403 = vcombine.low %v395, %v402
    %v404 = vcombine.low %v351, %v352
    %v405 = vcombine.low %v353, %v354
    %v407 = vunpack.c.l.s4 1966171168
    %v408 = vunpack.c.0.s8 %v407
    %v409 = vlaneseq
    %v410 = vshrl.u32 %v409, 7
    %v411 = vsub.s32 %v408, %v410
    %v412 = vrot.slane %v404, %v411
    %v414 = vunpack.c.l.s4 1966171168
    %v415 = vunpack.c.0.s8 %v414
    %v416 = vlaneseq
    %v417 = vshrl.u32 %v416, 7
    %v418 = vsub.s32 %v415, %v417
    %v419 = vrot.slane %v405, %v418
    %v420 = vcombine.low %v412, %v419
    %v422 = vunpack.c.l.s4 1966171168
    %v423 = vunpack.c.0.s8 %v422
    %v424 = vlaneseq
    %v425 = vshrl.u32 %v424, 7
    %v426 = vsub.s32 %v423, %v425
    %v427 = vrot.slane %v420, %v426
    %v430 = vunpack.c.l.b16 %v334
    %v431 = vunpack.c.l.b16 %v335
    %v432 = vpack.c.b16 %v431, %v430
    %vm434 = vcmask 130048
    %v436 = vsel %vm434, %v403, 0
    %v439 = vsel %vm434, %v427, 0
    %441 = vmatprep.subr.bf16.mxu0 0
    %442 = vmatpush1.bf16.msra.mxu0 %v432
    %443 = vmatprep.subr.bf16.mxu0 0
    %444 = vmatpush1.bf16.msra.mxu0 0
    %445 = vmatprep.subr.bf16.mxu0 0
    %446 = vmatpush1.bf16.msra.mxu0 0
    %447 = vmatprep.subr.bf16.mxu0 0
    %448 = vmatpush1.bf16.msra.mxu0 0
    %449 = vmatprep.subr.bf16.mxu0 0
    %450 = vmatpush1.bf16.msra.mxu0 0
    %451 = vmatprep.subr.bf16.mxu0 0
    %452 = vmatpush1.bf16.msra.mxu0 0
    %453 = vmatprep.subr.bf16.mxu0 0
    %454 = vmatpush1.bf16.msra.mxu0 0
    %455 = vmatprep.subr.bf16.mxu0 0
    %456 = vmatpush1.bf16.msra.mxu0 0
    %457 = vmatprep.subr.bf16.mxu0 0
    %458 = vmatpush1.bf16.msra.mxu0 0
    %459 = vmatprep.subr.bf16.mxu0 0
    %460 = vmatpush1.bf16.msra.mxu0 0
    %461 = vmatprep.subr.bf16.mxu0 0
    %462 = vmatpush1.bf16.msra.mxu0 0
    %463 = vmatprep.subr.bf16.mxu0 0
    %464 = vmatpush1.bf16.msra.mxu0 0
    %465 = vmatprep.subr.bf16.mxu0 0
    %466 = vmatpush1.bf16.msra.mxu0 0
    %467 = vmatprep.subr.bf16.mxu0 0
    %468 = vmatpush1.bf16.msra.mxu0 0
    %469 = vmatprep.subr.bf16.mxu0 0
    %470 = vmatpush1.bf16.msra.mxu0 0
    %471 = vmatprep.subr.bf16.mxu0 0
    %472 = vmatpush1.bf16.msra.mxu0 0
    %473 = vmatprep.mubr.bf16.mxu0 0
    %474 = vmatmul.mubr.bf16.gmra.mrb[0].mxu0 %v436
    %v475 = vpop.f32.mrb[0].mxu0
    %v476 = vadd.f32 %v341, %v475
    %v477 = vpop.f32.mrb[0].mxu0
    %v478 = vpop.f32.mrb[0].mxu0
    %v479 = vadd.f32 %v341, %v478
    %v480 = vpop.f32.mrb[0].mxu0
    %481 = vmatprep.mubr.bf16.mxu0 0
    %482 = vmatmul.mubr.bf16.gmra.mrb[0].mxu0 %v439
    %v483 = vpop.f32.mrb[0].mxu0
    %v484 = vadd.f32 %v341, %v483
    %v485 = vpop.f32.mrb[0].mxu0
    %v486 = vpop.f32.mrb[0].mxu0
    %v487 = vpop.f32.mrb[0].mxu0
    %488 = vdwg.mxu0
    %v492 = vcombine.high %v476, %v476
    %v494 = vunpack.c.l.s4 1966171168
    %v495 = vunpack.c.0.s8 %v494
    %v496 = vlaneseq
    %v497 = vshrl.u32 %v496, 7
    %v498 = vsub.s32 %v495, %v497
    %v499 = vrot.slane %v476, %v498
    %v501 = vunpack.c.l.s4 1966171168
    %v502 = vunpack.c.0.s8 %v501
    %v503 = vlaneseq
    %v504 = vshrl.u32 %v503, 7
    %v505 = vsub.s32 %v502, %v504
    %v506 = vrot.slane %v492, %v505
    %v507 = vcombine.high %v499, %v499
    %v508 = vcombine.high %v506, %v506
    %v510 = vunpack.c.l.s4 1966171168
    %v511 = vunpack.c.0.s8 %v510
    %v512 = vlaneseq
    %v513 = vshrl.u32 %v512, 7
    %v514 = vsub.s32 %v511, %v513
    %v515 = vrot.slane %v499, %v514
    %v517 = vunpack.c.l.s4 1966171168
    %v518 = vunpack.c.0.s8 %v517
    %v519 = vlaneseq
    %v520 = vshrl.u32 %v519, 7
    %v521 = vsub.s32 %v518, %v520
    %v522 = vrot.slane %v506, %v521
    %v524 = vunpack.c.l.s4 1966171168
    %v525 = vunpack.c.0.s8 %v524
    %v526 = vlaneseq
    %v527 = vshrl.u32 %v526, 7
    %v528 = vsub.s32 %v525, %v527
    %v529 = vrot.slane %v507, %v528
    %v531 = vunpack.c.l.s4 1966171168
    %v532 = vunpack.c.0.s8 %v531
    %v533 = vlaneseq
    %v534 = vshrl.u32 %v533, 7
    %v535 = vsub.s32 %v532, %v534
    %v536 = vrot.slane %v508, %v535
    %v537 = vcombine.high %v515, %v515
    %v538 = vcombine.high %v522, %v522
    %v539 = vcombine.high %v529, %v529
    %v540 = vcombine.high %v536, %v536
    %v541 = vcombine.high %v479, %v479
    %v543 = vunpack.c.l.s4 1966171168
    %v544 = vunpack.c.0.s8 %v543
    %v545 = vlaneseq
    %v546 = vshrl.u32 %v545, 7
    %v547 = vsub.s32 %v544, %v546
    %v548 = vrot.slane %v479, %v547
    %v550 = vunpack.c.l.s4 1966171168
    %v551 = vunpack.c.0.s8 %v550
    %v552 = vlaneseq
    %v553 = vshrl.u32 %v552, 7
    %v554 = vsub.s32 %v551, %v553
    %v555 = vrot.slane %v541, %v554
    %v556 = vcombine.high %v548, %v548
    %v557 = vcombine.high %v555, %v555
    %v559 = vunpack.c.l.s4 1966171168
    %v560 = vunpack.c.0.s8 %v559
    %v561 = vlaneseq
    %v562 = vshrl.u32 %v561, 7
    %v563 = vsub.s32 %v560, %v562
    %v564 = vrot.slane %v548, %v563
    %v566 = vunpack.c.l.s4 1966171168
    %v567 = vunpack.c.0.s8 %v566
    %v568 = vlaneseq
    %v569 = vshrl.u32 %v568, 7
    %v570 = vsub.s32 %v567, %v569
    %v571 = vrot.slane %v555, %v570
    %v573 = vunpack.c.l.s4 1966171168
    %v574 = vunpack.c.0.s8 %v573
    %v575 = vlaneseq
    %v576 = vshrl.u32 %v575, 7
    %v577 = vsub.s32 %v574, %v576
    %v578 = vrot.slane %v556, %v577
    %v580 = vunpack.c.l.s4 1966171168
    %v581 = vunpack.c.0.s8 %v580
    %v582 = vlaneseq
    %v583 = vshrl.u32 %v582, 7
    %v584 = vsub.s32 %v581, %v583
    %v585 = vrot.slane %v557, %v584
    %v586 = vcombine.high %v564, %v564
    %v587 = vcombine.high %v571, %v571
    %v588 = vcombine.high %v578, %v578
    %v589 = vcombine.high %v585, %v585
    %v590 = vcombine.high %v484, %v484
    %v592 = vunpack.c.l.s4 1966171168
    %v593 = vunpack.c.0.s8 %v592
    %v594 = vlaneseq
    %v595 = vshrl.u32 %v594, 7
    %v596 = vsub.s32 %v593, %v595
    %v597 = vrot.slane %v484, %v596
    %v599 = vunpack.c.l.s4 1966171168
    %v600 = vunpack.c.0.s8 %v599
    %v601 = vlaneseq
    %v602 = vshrl.u32 %v601, 7
    %v603 = vsub.s32 %v600, %v602
    %v604 = vrot.slane %v590, %v603
    %v605 = vcombine.high %v597, %v597
    %v606 = vcombine.high %v604, %v604
    %v608 = vunpack.c.l.s4 1966171168
    %v609 = vunpack.c.0.s8 %v608
    %v610 = vlaneseq
    %v611 = vshrl.u32 %v610, 7
    %v612 = vsub.s32 %v609, %v611
    %v613 = vrot.slane %v597, %v612
    %v615 = vunpack.c.l.s4 1966171168
    %v616 = vunpack.c.0.s8 %v615
    %v617 = vlaneseq
    %v618 = vshrl.u32 %v617, 7
    %v619 = vsub.s32 %v616, %v618
    %v620 = vrot.slane %v604, %v619
    %v622 = vunpack.c.l.s4 1966171168
    %v623 = vunpack.c.0.s8 %v622
    %v624 = vlaneseq
    %v625 = vshrl.u32 %v624, 7
    %v626 = vsub.s32 %v623, %v625
    %v627 = vrot.slane %v605, %v626
    %v629 = vunpack.c.l.s4 1966171168
    %v630 = vunpack.c.0.s8 %v629
    %v631 = vlaneseq
    %v632 = vshrl.u32 %v631, 7
    %v633 = vsub.s32 %v630, %v632
    %v634 = vrot.slane %v606, %v633
    %v635 = vcombine.high %v613, %v613
    %v636 = vcombine.high %v620, %v620
    %v637 = vcombine.high %v627, %v627
    %v638 = vcombine.high %v634, %v634
    %v663 = vld [vmem:[%s6] sm:$0xf]
    %v664 = vld [vmem:[%s6 + $0x4] sm:$0xf]
    %v665 = vld [vmem:[%s12] sm:$0x1]
    %v667 = vlaneseq
    %v668 = vshrl.u32 %v667, 7
    %v669 = vsub.s32 0, %v668
    %v670 = vrot.slane %v665, %v669
    %v674 = vunpack.c.l.b16 %v663
    %v675 = vunpack.c.l.b16 %v664
    %v676 = vpack.c.b16 %v675, %v674
    %678 = vmatprep.subr.bf16.mxu0 0
    %679 = vmatpush1.bf16.msra.mxu0 %v676
    %680 = vmatprep.subr.bf16.mxu0 0
    %681 = vmatpush1.bf16.msra.mxu0 0
    %682 = vmatprep.subr.bf16.mxu0 0
    %683 = vmatpush1.bf16.msra.mxu0 0
    %684 = vmatprep.subr.bf16.mxu0 0
    %685 = vmatpush1.bf16.msra.mxu0 0
    %686 = vmatprep.subr.bf16.mxu0 0
    %687 = vmatpush1.bf16.msra.mxu0 0
    %688 = vmatprep.subr.bf16.mxu0 0
    %689 = vmatpush1.bf16.msra.mxu0 0
    %690 = vmatprep.subr.bf16.mxu0 0
    %691 = vmatpush1.bf16.msra.mxu0 0
    %692 = vmatprep.subr.bf16.mxu0 0
    %693 = vmatpush1.bf16.msra.mxu0 0
    %694 = vmatprep.subr.bf16.mxu0 0
    %695 = vmatpush1.bf16.msra.mxu0 0
    %696 = vmatprep.subr.bf16.mxu0 0
    %697 = vmatpush1.bf16.msra.mxu0 0
    %698 = vmatprep.subr.bf16.mxu0 0
    %699 = vmatpush1.bf16.msra.mxu0 0
    %700 = vmatprep.subr.bf16.mxu0 0
    %701 = vmatpush1.bf16.msra.mxu0 0
    %702 = vmatprep.subr.bf16.mxu0 0
    %703 = vmatpush1.bf16.msra.mxu0 0
    %704 = vmatprep.subr.bf16.mxu0 0
    %705 = vmatpush1.bf16.msra.mxu0 0
    %706 = vmatprep.subr.bf16.mxu0 0
    %707 = vmatpush1.bf16.msra.mxu0 0
    %708 = vmatprep.subr.bf16.mxu0 0
    %709 = vmatpush1.bf16.msra.mxu0 0
    %710 = vmatprep.mubr.bf16.mxu0 0
    %711 = vmatmul.mubr.bf16.gmra.mrb[0].mxu0 %v436
    %v712 = vpop.f32.mrb[0].mxu0
    %v713 = vadd.f32 %v670, %v712
    %v714 = vpop.f32.mrb[0].mxu0
    %v715 = vpop.f32.mrb[0].mxu0
    %v716 = vadd.f32 %v670, %v715
    %v717 = vpop.f32.mrb[0].mxu0
    %718 = vmatprep.mubr.bf16.mxu0 0
    %719 = vmatmul.mubr.bf16.gmra.mrb[0].mxu0 %v439
    %v720 = vpop.f32.mrb[0].mxu0
    %v721 = vadd.f32 %v670, %v720
    %v722 = vpop.f32.mrb[0].mxu0
    %v723 = vpop.f32.mrb[0].mxu0
    %v724 = vpop.f32.mrb[0].mxu0
    %725 = vdwg.mxu0
    %v729 = vcombine.high %v713, %v713
    %v731 = vunpack.c.l.s4 1966171168
    %v732 = vunpack.c.0.s8 %v731
    %v733 = vlaneseq
    %v734 = vshrl.u32 %v733, 7
    %v735 = vsub.s32 %v732, %v734
    %v736 = vrot.slane %v713, %v735
    %v738 = vunpack.c.l.s4 1966171168
    %v739 = vunpack.c.0.s8 %v738
    %v740 = vlaneseq
    %v741 = vshrl.u32 %v740, 7
    %v742 = vsub.s32 %v739, %v741
    %v743 = vrot.slane %v729, %v742
    %v744 = vcombine.high %v736, %v736
    %v745 = vcombine.high %v743, %v743
    %v747 = vunpack.c.l.s4 1966171168
    %v748 = vunpack.c.0.s8 %v747
    %v749 = vlaneseq
    %v750 = vshrl.u32 %v749, 7
    %v751 = vsub.s32 %v748, %v750
    %v752 = vrot.slane %v736, %v751
    %v754 = vunpack.c.l.s4 1966171168
    %v755 = vunpack.c.0.s8 %v754
    %v756 = vlaneseq
    %v757 = vshrl.u32 %v756, 7
    %v758 = vsub.s32 %v755, %v757
    %v759 = vrot.slane %v743, %v758
    %v761 = vunpack.c.l.s4 1966171168
    %v762 = vunpack.c.0.s8 %v761
    %v763 = vlaneseq
    %v764 = vshrl.u32 %v763, 7
    %v765 = vsub.s32 %v762, %v764
    %v766 = vrot.slane %v744, %v765
    %v768 = vunpack.c.l.s4 1966171168
    %v769 = vunpack.c.0.s8 %v768
    %v770 = vlaneseq
    %v771 = vshrl.u32 %v770, 7
    %v772 = vsub.s32 %v769, %v771
    %v773 = vrot.slane %v745, %v772
    %v774 = vcombine.high %v752, %v752
    %v775 = vcombine.high %v759, %v759
    %v776 = vcombine.high %v766, %v766
    %v777 = vcombine.high %v773, %v773
    %v778 = vcombine.high %v716, %v716
    %v780 = vunpack.c.l.s4 1966171168
    %v781 = vunpack.c.0.s8 %v780
    %v782 = vlaneseq
    %v783 = vshrl.u32 %v782, 7
    %v784 = vsub.s32 %v781, %v783
    %v785 = vrot.slane %v716, %v784
    %v787 = vunpack.c.l.s4 1966171168
    %v788 = vunpack.c.0.s8 %v787
    %v789 = vlaneseq
    %v790 = vshrl.u32 %v789, 7
    %v791 = vsub.s32 %v788, %v790
    %v792 = vrot.slane %v778, %v791
    %v793 = vcombine.high %v785, %v785
    %v794 = vcombine.high %v792, %v792
    %v796 = vunpack.c.l.s4 1966171168
    %v797 = vunpack.c.0.s8 %v796
    %v798 = vlaneseq
    %v799 = vshrl.u32 %v798, 7
    %v800 = vsub.s32 %v797, %v799
    %v801 = vrot.slane %v785, %v800
    %v803 = vunpack.c.l.s4 1966171168
    %v804 = vunpack.c.0.s8 %v803
    %v805 = vlaneseq
    %v806 = vshrl.u32 %v805, 7
    %v807 = vsub.s32 %v804, %v806
    %v808 = vrot.slane %v792, %v807
    %v810 = vunpack.c.l.s4 1966171168
    %v811 = vunpack.c.0.s8 %v810
    %v812 = vlaneseq
    %v813 = vshrl.u32 %v812, 7
    %v814 = vsub.s32 %v811, %v813
    %v815 = vrot.slane %v793, %v814
    %v817 = vunpack.c.l.s4 1966171168
    %v818 = vunpack.c.0.s8 %v817
    %v819 = vlaneseq
    %v820 = vshrl.u32 %v819, 7
    %v821 = vsub.s32 %v818, %v820
    %v822 = vrot.slane %v794, %v821
    %v823 = vcombine.high %v801, %v801
    %v824 = vcombine.high %v808, %v808
    %v825 = vcombine.high %v815, %v815
    %v826 = vcombine.high %v822, %v822
    %v827 = vcombine.high %v721, %v721
    %v829 = vunpack.c.l.s4 1966171168
    %v830 = vunpack.c.0.s8 %v829
    %v831 = vlaneseq
    %v832 = vshrl.u32 %v831, 7
    %v833 = vsub.s32 %v830, %v832
    %v834 = vrot.slane %v721, %v833
    %v836 = vunpack.c.l.s4 1966171168
    %v837 = vunpack.c.0.s8 %v836
    %v838 = vlaneseq
    %v839 = vshrl.u32 %v838, 7
    %v840 = vsub.s32 %v837, %v839
    %v841 = vrot.slane %v827, %v840
    %v842 = vcombine.high %v834, %v834
    %v843 = vcombine.high %v841, %v841
    %v845 = vunpack.c.l.s4 1966171168
    %v846 = vunpack.c.0.s8 %v845
    %v847 = vlaneseq
    %v848 = vshrl.u32 %v847, 7
    %v849 = vsub.s32 %v846, %v848
    %v850 = vrot.slane %v834, %v849
    %v852 = vunpack.c.l.s4 1966171168
    %v853 = vunpack.c.0.s8 %v852
    %v854 = vlaneseq
    %v855 = vshrl.u32 %v854, 7
    %v856 = vsub.s32 %v853, %v855
    %v857 = vrot.slane %v841, %v856
    %v859 = vunpack.c.l.s4 1966171168
    %v860 = vunpack.c.0.s8 %v859
    %v861 = vlaneseq
    %v862 = vshrl.u32 %v861, 7
    %v863 = vsub.s32 %v860, %v862
    %v864 = vrot.slane %v842, %v863
    %v866 = vunpack.c.l.s4 1966171168
    %v867 = vunpack.c.0.s8 %v866
    %v868 = vlaneseq
    %v869 = vshrl.u32 %v868, 7
    %v870 = vsub.s32 %v867, %v869
    %v871 = vrot.slane %v843, %v870
    %v872 = vcombine.high %v850, %v850
    %v873 = vcombine.high %v857, %v857
    %v874 = vcombine.high %v864, %v864
    %v875 = vcombine.high %v871, %v871
    %v900 = vld [vmem:[%s7] sm:$0xf]
    %v901 = vld [vmem:[%s7 + $0x4] sm:$0xf]
    %v902 = vld [vmem:[%s13] sm:$0x1]
    %v904 = vlaneseq
    %v905 = vshrl.u32 %v904, 7
    %v906 = vsub.s32 0, %v905
    %v907 = vrot.slane %v902, %v906
    %v911 = vunpack.c.l.b16 %v900
    %v912 = vunpack.c.l.b16 %v901
    %v913 = vpack.c.b16 %v912, %v911
    %915 = vmatprep.subr.bf16.mxu0 0
    %916 = vmatpush1.bf16.msra.mxu0 %v913
    %917 = vmatprep.subr.bf16.mxu0 0
    %918 = vmatpush1.bf16.msra.mxu0 0
    %919 = vmatprep.subr.bf16.mxu0 0
    %920 = vmatpush1.bf16.msra.mxu0 0
    %921 = vmatprep.subr.bf16.mxu0 0
    %922 = vmatpush1.bf16.msra.mxu0 0
    %923 = vmatprep.subr.bf16.mxu0 0
    %924 = vmatpush1.bf16.msra.mxu0 0
    %925 = vmatprep.subr.bf16.mxu0 0
    %926 = vmatpush1.bf16.msra.mxu0 0
    %927 = vmatprep.subr.bf16.mxu0 0
    %928 = vmatpush1.bf16.msra.mxu0 0
    %929 = vmatprep.subr.bf16.mxu0 0
    %930 = vmatpush1.bf16.msra.mxu0 0
    %931 = vmatprep.subr.bf16.mxu0 0
    %932 = vmatpush1.bf16.msra.mxu0 0
    %933 = vmatprep.subr.bf16.mxu0 0
    %934 = vmatpush1.bf16.msra.mxu0 0
    %935 = vmatprep.subr.bf16.mxu0 0
    %936 = vmatpush1.bf16.msra.mxu0 0
    %937 = vmatprep.subr.bf16.mxu0 0
    %938 = vmatpush1.bf16.msra.mxu0 0
    %939 = vmatprep.subr.bf16.mxu0 0
    %940 = vmatpush1.bf16.msra.mxu0 0
    %941 = vmatprep.subr.bf16.mxu0 0
    %942 = vmatpush1.bf16.msra.mxu0 0
    %943 = vmatprep.subr.bf16.mxu0 0
    %944 = vmatpush1.bf16.msra.mxu0 0
    %945 = vmatprep.subr.bf16.mxu0 0
    %946 = vmatpush1.bf16.msra.mxu0 0
    %947 = vmatprep.mubr.bf16.mxu0 0
    %948 = vmatmul.mubr.bf16.gmra.mrb[0].mxu0 %v436
    %v949 = vpop.f32.mrb[0].mxu0
    %v950 = vadd.f32 %v907, %v949
    %v951 = vpop.f32.mrb[0].mxu0
    %v952 = vpop.f32.mrb[0].mxu0
    %v953 = vadd.f32 %v907, %v952
    %v954 = vpop.f32.mrb[0].mxu0
    %955 = vmatprep.mubr.bf16.mxu0 0
    %956 = vmatmul.mubr.bf16.gmra.mrb[0].mxu0 %v439
    %v957 = vpop.f32.mrb[0].mxu0
    %v958 = vadd.f32 %v907, %v957
    %v959 = vpop.f32.mrb[0].mxu0
    %v960 = vpop.f32.mrb[0].mxu0
    %v961 = vpop.f32.mrb[0].mxu0
    %962 = vdwg.mxu0
    %v966 = vcombine.high %v950, %v950
    %v968 = vunpack.c.l.s4 1966171168
    %v969 = vunpack.c.0.s8 %v968
    %v970 = vlaneseq
    %v971 = vshrl.u32 %v970, 7
    %v972 = vsub.s32 %v969, %v971
    %v973 = vrot.slane %v950, %v972
    %v975 = vunpack.c.l.s4 1966171168
    %v976 = vunpack.c.0.s8 %v975
    %v977 = vlaneseq
    %v978 = vshrl.u32 %v977, 7
    %v979 = vsub.s32 %v976, %v978
    %v980 = vrot.slane %v966, %v979
    %v981 = vcombine.high %v973, %v973
    %v982 = vcombine.high %v980, %v980
    %v984 = vunpack.c.l.s4 1966171168
    %v985 = vunpack.c.0.s8 %v984
    %v986 = vlaneseq
    %v987 = vshrl.u32 %v986, 7
    %v988 = vsub.s32 %v985, %v987
    %v989 = vrot.slane %v973, %v988
    %v991 = vunpack.c.l.s4 1966171168
    %v992 = vunpack.c.0.s8 %v991
    %v993 = vlaneseq
    %v994 = vshrl.u32 %v993, 7
    %v995 = vsub.s32 %v992, %v994
    %v996 = vrot.slane %v980, %v995
    %v998 = vunpack.c.l.s4 1966171168
    %v999 = vunpack.c.0.s8 %v998
    %v1000 = vlaneseq
    %v1001 = vshrl.u32 %v1000, 7
    %v1002 = vsub.s32 %v999, %v1001
    %v1003 = vrot.slane %v981, %v1002
    %v1005 = vunpack.c.l.s4 1966171168
    %v1006 = vunpack.c.0.s8 %v1005
    %v1007 = vlaneseq
    %v1008 = vshrl.u32 %v1007, 7
    %v1009 = vsub.s32 %v1006, %v1008
    %v1010 = vrot.slane %v982, %v1009
    %v1011 = vcombine.high %v989, %v989
    %v1012 = vcombine.high %v996, %v996
    %v1013 = vcombine.high %v1003, %v1003
    %v1014 = vcombine.high %v1010, %v1010
    %v1015 = vcombine.high %v953, %v953
    %v1017 = vunpack.c.l.s4 1966171168
    %v1018 = vunpack.c.0.s8 %v1017
    %v1019 = vlaneseq
    %v1020 = vshrl.u32 %v1019, 7
    %v1021 = vsub.s32 %v1018, %v1020
    %v1022 = vrot.slane %v953, %v1021
    %v1024 = vunpack.c.l.s4 1966171168
    %v1025 = vunpack.c.0.s8 %v1024
    %v1026 = vlaneseq
    %v1027 = vshrl.u32 %v1026, 7
    %v1028 = vsub.s32 %v1025, %v1027
    %v1029 = vrot.slane %v1015, %v1028
    %v1030 = vcombine.high %v1022, %v1022
    %v1031 = vcombine.high %v1029, %v1029
    %v1033 = vunpack.c.l.s4 1966171168
    %v1034 = vunpack.c.0.s8 %v1033
    %v1035 = vlaneseq
    %v1036 = vshrl.u32 %v1035, 7
    %v1037 = vsub.s32 %v1034, %v1036
    %v1038 = vrot.slane %v1022, %v1037
    %v1040 = vunpack.c.l.s4 1966171168
    %v1041 = vunpack.c.0.s8 %v1040
    %v1042 = vlaneseq
    %v1043 = vshrl.u32 %v1042, 7
    %v1044 = vsub.s32 %v1041, %v1043
    %v1045 = vrot.slane %v1029, %v1044
    %v1047 = vunpack.c.l.s4 1966171168
    %v1048 = vunpack.c.0.s8 %v1047
    %v1049 = vlaneseq
    %v1050 = vshrl.u32 %v1049, 7
    %v1051 = vsub.s32 %v1048, %v1050
    %v1052 = vrot.slane %v1030, %v1051
    %v1054 = vunpack.c.l.s4 1966171168
    %v1055 = vunpack.c.0.s8 %v1054
    %v1056 = vlaneseq
    %v1057 = vshrl.u32 %v1056, 7
    %v1058 = vsub.s32 %v1055, %v1057
    %v1059 = vrot.slane %v1031, %v1058
    %v1060 = vcombine.high %v1038, %v1038
    %v1061 = vcombine.high %v1045, %v1045
    %v1062 = vcombine.high %v1052, %v1052
    %v1063 = vcombine.high %v1059, %v1059
    %v1064 = vcombine.high %v958, %v958
    %v1066 = vunpack.c.l.s4 1966171168
    %v1067 = vunpack.c.0.s8 %v1066
    %v1068 = vlaneseq
    %v1069 = vshrl.u32 %v1068, 7
    %v1070 = vsub.s32 %v1067, %v1069
    %v1071 = vrot.slane %v958, %v1070
    %v1073 = vunpack.c.l.s4 1966171168
    %v1074 = vunpack.c.0.s8 %v1073
    %v1075 = vlaneseq
    %v1076 = vshrl.u32 %v1075, 7
    %v1077 = vsub.s32 %v1074, %v1076
    %v1078 = vrot.slane %v1064, %v1077
    %v1079 = vcombine.high %v1071, %v1071
    %v1080 = vcombine.high %v1078, %v1078
    %v1082 = vunpack.c.l.s4 1966171168
    %v1083 = vunpack.c.0.s8 %v1082
    %v1084 = vlaneseq
    %v1085 = vshrl.u32 %v1084, 7
    %v1086 = vsub.s32 %v1083, %v1085
    %v1087 = vrot.slane %v1071, %v1086
    %v1089 = vunpack.c.l.s4 1966171168
    %v1090 = vunpack.c.0.s8 %v1089
    %v1091 = vlaneseq
    %v1092 = vshrl.u32 %v1091, 7
    %v1093 = vsub.s32 %v1090, %v1092
    %v1094 = vrot.slane %v1078, %v1093
    %v1096 = vunpack.c.l.s4 1966171168
    %v1097 = vunpack.c.0.s8 %v1096
    %v1098 = vlaneseq
    %v1099 = vshrl.u32 %v1098, 7
    %v1100 = vsub.s32 %v1097, %v1099
    %v1101 = vrot.slane %v1079, %v1100
    %v1103 = vunpack.c.l.s4 1966171168
    %v1104 = vunpack.c.0.s8 %v1103
    %v1105 = vlaneseq
    %v1106 = vshrl.u32 %v1105, 7
    %v1107 = vsub.s32 %v1104, %v1106
    %v1108 = vrot.slane %v1080, %v1107
    %v1109 = vcombine.high %v1087, %v1087
    %v1110 = vcombine.high %v1094, %v1094
    %v1111 = vcombine.high %v1101, %v1101
    %v1112 = vcombine.high %v1108, %v1108
    %v1137 = vld [vmem:[%s8] sm:$0xf]
    %v1138 = vld [vmem:[%s8 + $0x4] sm:$0xf]
    %v1139 = vld [vmem:[%s8 + $0x8] sm:$0xf]
    %v1140 = vld [vmem:[%s8 + $0xc] sm:$0xf]
    %v1141 = vld [vmem:[%s9] sm:$0xf]
    %v1142 = vld [vmem:[%s9 + $0x4] sm:$0xf]
    %v1143 = vld [vmem:[%s9 + $0x8] sm:$0xf]
    %v1144 = vld [vmem:[%s9 + $0xc] sm:$0xf]
    %v1145 = vld [vmem:[%s10] sm:$0xf]
    %v1146 = vld [vmem:[%s10 + $0x4] sm:$0xf]
    %v1147 = vld [vmem:[%s10 + $0x8] sm:$0xf]
    %v1148 = vld [vmem:[%s10 + $0xc] sm:$0xf]
    %v1149 = vld [vmem:[%s14] sm:$0x1]
    %v1154 = vunpack.c.l.b16 %v1137
    %v1155 = vunpack.c.l.b16 %v1138
    %v1156 = vunpack.c.l.b16 %v1139
    %v1157 = vunpack.c.l.b16 %v1140
    %v1158 = vpack.c.b16 %v1155, %v1154
    %v1159 = vpack.c.b16 %v1157, %v1156
    %v1163 = vsel %vm201, 0, 0
    %1165 = vmatprep.subr.bf16.mxu0 0
    %1166 = vmatpush1.bf16.msra.mxu0 %v1158
    %1167 = vmatprep.subr.bf16.mxu0 0
    %1168 = vmatpush1.bf16.msra.mxu0 %v1159
    %1169 = vmatprep.subr.bf16.mxu0 0
    %1170 = vmatpush1.bf16.msra.mxu0 0
    %1171 = vmatprep.subr.bf16.mxu0 0
    %1172 = vmatpush1.bf16.msra.mxu0 0
    %1173 = vmatprep.subr.bf16.mxu0 0
    %1174 = vmatpush1.bf16.msra.mxu0 0
    %1175 = vmatprep.subr.bf16.mxu0 0
    %1176 = vmatpush1.bf16.msra.mxu0 0
    %1177 = vmatprep.subr.bf16.mxu0 0
    %1178 = vmatpush1.bf16.msra.mxu0 0
    %1179 = vmatprep.subr.bf16.mxu0 0
    %1180 = vmatpush1.bf16.msra.mxu0 0
    %1181 = vmatprep.subr.bf16.mxu0 0
    %1182 = vmatpush1.bf16.msra.mxu0 0
    %1183 = vmatprep.subr.bf16.mxu0 0
    %1184 = vmatpush1.bf16.msra.mxu0 0
    %1185 = vmatprep.subr.bf16.mxu0 0
    %1186 = vmatpush1.bf16.msra.mxu0 0
    %1187 = vmatprep.subr.bf16.mxu0 0
    %1188 = vmatpush1.bf16.msra.mxu0 0
    %1189 = vmatprep.subr.bf16.mxu0 0
    %1190 = vmatpush1.bf16.msra.mxu0 0
    %1191 = vmatprep.subr.bf16.mxu0 0
    %1192 = vmatpush1.bf16.msra.mxu0 0
    %1193 = vmatprep.subr.bf16.mxu0 0
    %1194 = vmatpush1.bf16.msra.mxu0 0
    %1195 = vmatprep.subr.bf16.mxu0 0
    %1196 = vmatpush1.bf16.msra.mxu0 0
    %1197 = vmatprep.mubr.bf16.mxu0 0
    %1198 = vmatmul.mubr.bf16.gmra.mrb[0].mxu0 %v1163
    %v1199 = vpop.f32.mrb[0].mxu0
    %v1200 = vadd.f32 0.0, %v1199
    %v1201 = vpop.f32.mrb[0].mxu0
    %v1202 = vpop.f32.mrb[0].mxu0
    %v1203 = vpop.f32.mrb[0].mxu0
    %1204 = vdwg.mxu0
    %v1209 = vunpack.c.l.b16 %v1141
    %v1210 = vunpack.c.l.b16 %v1142
    %v1211 = vunpack.c.l.b16 %v1143
    %v1212 = vunpack.c.l.b16 %v1144
    %v1213 = vpack.c.b16 %v1210, %v1209
    %v1214 = vpack.c.b16 %v1212, %v1211
    %1217 = vmatprep.subr.bf16.mxu0 0
    %1218 = vmatpush1.bf16.msra.mxu0 %v1213
    %1219 = vmatprep.subr.bf16.mxu0 0
    %1220 = vmatpush1.bf16.msra.mxu0 %v1214
    %1221 = vmatprep.subr.bf16.mxu0 0
    %1222 = vmatpush1.bf16.msra.mxu0 0
    %1223 = vmatprep.subr.bf16.mxu0 0
    %1224 = vmatpush1.bf16.msra.mxu0 0
    %1225 = vmatprep.subr.bf16.mxu0 0
    %1226 = vmatpush1.bf16.msra.mxu0 0
    %1227 = vmatprep.subr.bf16.mxu0 0
    %1228 = vmatpush1.bf16.msra.mxu0 0
    %1229 = vmatprep.subr.bf16.mxu0 0
    %1230 = vmatpush1.bf16.msra.mxu0 0
    %1231 = vmatprep.subr.bf16.mxu0 0
    %1232 = vmatpush1.bf16.msra.mxu0 0
    %1233 = vmatprep.subr.bf16.mxu0 0
    %1234 = vmatpush1.bf16.msra.mxu0 0
    %1235 = vmatprep.subr.bf16.mxu0 0
    %1236 = vmatpush1.bf16.msra.mxu0 0
    %1237 = vmatprep.subr.bf16.mxu0 0
    %1238 = vmatpush1.bf16.msra.mxu0 0
    %1239 = vmatprep.subr.bf16.mxu0 0
    %1240 = vmatpush1.bf16.msra.mxu0 0
    %1241 = vmatprep.subr.bf16.mxu0 0
    %1242 = vmatpush1.bf16.msra.mxu0 0
    %1243 = vmatprep.subr.bf16.mxu0 0
    %1244 = vmatpush1.bf16.msra.mxu0 0
    %1245 = vmatprep.subr.bf16.mxu0 0
    %1246 = vmatpush1.bf16.msra.mxu0 0
    %1247 = vmatprep.subr.bf16.mxu0 0
    %1248 = vmatpush1.bf16.msra.mxu0 0
    %1249 = vmatprep.mubr.bf16.mxu0 0
    %1250 = vmatmul.mubr.bf16.gmra.mrb[0].mxu0 %v1163
    %v1251 = vpop.f32.mrb[0].mxu0
    %v1252 = vadd.f32 0.0, %v1251
    %v1253 = vpop.f32.mrb[0].mxu0
    %v1254 = vpop.f32.mrb[0].mxu0
    %v1255 = vpop.f32.mrb[0].mxu0
    %1256 = vdwg.mxu0
    %v1258 = vlaneseq
    %v1259 = vshrl.u32 %v1258, 7
    %v1260 = vsub.s32 0, %v1259
    %v1261 = vrot.slane %v1149, %v1260
    %v1267 = vunpack.c.l.b16 %v1145
    %v1268 = vunpack.c.l.b16 %v1146
    %v1269 = vunpack.c.l.b16 %v1147
    %v1270 = vunpack.c.l.b16 %v1148
    %v1271 = vpack.c.b16 %v1268, %v1267
    %v1272 = vpack.c.b16 %v1270, %v1269
    %1275 = vmatprep.subr.bf16.mxu0 0
    %1276 = vmatpush1.bf16.msra.mxu0 %v1271
    %1277 = vmatprep.subr.bf16.mxu0 0
    %1278 = vmatpush1.bf16.msra.mxu0 %v1272
    %1279 = vmatprep.subr.bf16.mxu0 0
    %1280 = vmatpush1.bf16.msra.mxu0 0
    %1281 = vmatprep.subr.bf16.mxu0 0
    %1282 = vmatpush1.bf16.msra.mxu0 0
    %1283 = vmatprep.subr.bf16.mxu0 0
    %1284 = vmatpush1.bf16.msra.mxu0 0
    %1285 = vmatprep.subr.bf16.mxu0 0
    %1286 = vmatpush1.bf16.msra.mxu0 0
    %1287 = vmatprep.subr.bf16.mxu0 0
    %1288 = vmatpush1.bf16.msra.mxu0 0
    %1289 = vmatprep.subr.bf16.mxu0 0
    %1290 = vmatpush1.bf16.msra.mxu0 0
    %1291 = vmatprep.subr.bf16.mxu0 0
    %1292 = vmatpush1.bf16.msra.mxu0 0
    %1293 = vmatprep.subr.bf16.mxu0 0
    %1294 = vmatpush1.bf16.msra.mxu0 0
    %1295 = vmatprep.subr.bf16.mxu0 0
    %1296 = vmatpush1.bf16.msra.mxu0 0
    %1297 = vmatprep.subr.bf16.mxu0 0
    %1298 = vmatpush1.bf16.msra.mxu0 0
    %1299 = vmatprep.subr.bf16.mxu0 0
    %1300 = vmatpush1.bf16.msra.mxu0 0
    %1301 = vmatprep.subr.bf16.mxu0 0
    %1302 = vmatpush1.bf16.msra.mxu0 0
    %1303 = vmatprep.subr.bf16.mxu0 0
    %1304 = vmatpush1.bf16.msra.mxu0 0
    %1305 = vmatprep.subr.bf16.mxu0 0
    %1306 = vmatpush1.bf16.msra.mxu0 0
    %1307 = vmatprep.mubr.bf16.mxu0 0
    %1308 = vmatmul.mubr.bf16.gmra.mrb[0].mxu0 %v1163
    %v1309 = vpop.f32.mrb[0].mxu0
    %v1310 = vadd.f32 %v1261, %v1309
    %v1311 = vpop.f32.mrb[0].mxu0
    %v1312 = vpop.f32.mrb[0].mxu0
    %v1313 = vpop.f32.mrb[0].mxu0
    %1314 = vdwg.mxu0
    %v1317 = vunpack.c.l.s4 1966171168
    %v1318 = vunpack.c.0.s8 %v1317
    %v1319 = vlaneseq
    %v1320 = vshrl.u32 %v1319, 7
    %v1321 = vsub.s32 %v1318, %v1320
    %v1322 = vrot.slane %v1200, %v1321
    %v1323 = vcombine.high %v1322, %v1322
    %v1325 = vunpack.c.l.s4 1966171168
    %v1326 = vunpack.c.0.s8 %v1325
    %v1327 = vlaneseq
    %v1328 = vshrl.u32 %v1327, 7
    %v1329 = vsub.s32 %v1326, %v1328
    %v1330 = vrot.slane %v1322, %v1329
    %v1332 = vunpack.c.l.s4 1966171168
    %v1333 = vunpack.c.0.s8 %v1332
    %v1334 = vlaneseq
    %v1335 = vshrl.u32 %v1334, 7
    %v1336 = vsub.s32 %v1333, %v1335
    %v1337 = vrot.slane %v1323, %v1336
    %v1338 = vcombine.high %v1330, %v1330
    %v1342 = vadd.f32 %v515, %v1330
    %v1343 = vadd.f32 %v529, %v1337
    %v1344 = vadd.f32 %v537, %v1338
    %v1345 = vxor.u32 %v1342, 2147483648
    %v1346 = vxor.u32 %v1343, 2147483648
    %v1347 = vxor.u32 %v1344, 2147483648
    %v1348 = vmul.f32 %v1345, 1.442695
    %v1349 = vpow.pop %v1348
    %v1350 = vmul.f32 %v1346, 1.442695
    %v1351 = vpow.pop %v1350
    %v1352 = vmul.f32 %v1347, 1.442695
    %v1353 = vpow.pop %v1352
    %v1354 = vadd.f32 %v1349, 1.0
    %v1355 = vadd.f32 %v1351, 1.0
    %v1356 = vadd.f32 %v1353, 1.0
    %v1357 = vrcp.pop %v1354
    %v1358 = vmul.f32 1.0, %v1357
    %v1359 = vrcp.pop %v1355
    %v1360 = vmul.f32 1.0, %v1359
    %v1361 = vrcp.pop %v1356
    %v1362 = vmul.f32 1.0, %v1361
    %v1365 = vunpack.c.l.s4 1966171168
    %v1366 = vunpack.c.0.s8 %v1365
    %v1367 = vlaneseq
    %v1368 = vshrl.u32 %v1367, 7
    %v1369 = vsub.s32 %v1366, %v1368
    %v1370 = vrot.slane %v1252, %v1369
    %v1371 = vcombine.high %v1370, %v1370
    %v1373 = vunpack.c.l.s4 1966171168
    %v1374 = vunpack.c.0.s8 %v1373
    %v1375 = vlaneseq
    %v1376 = vshrl.u32 %v1375, 7
    %v1377 = vsub.s32 %v1374, %v1376
    %v1378 = vrot.slane %v1370, %v1377
    %v1380 = vunpack.c.l.s4 1966171168
    %v1381 = vunpack.c.0.s8 %v1380
    %v1382 = vlaneseq
    %v1383 = vshrl.u32 %v1382, 7
    %v1384 = vsub.s32 %v1381, %v1383
    %v1385 = vrot.slane %v1371, %v1384
    %v1386 = vcombine.high %v1378, %v1378
    %v1390 = vadd.f32 %v752, %v1378
    %v1391 = vadd.f32 %v766, %v1385
    %v1392 = vadd.f32 %v774, %v1386
    %v1393 = vxor.u32 %v1390, 2147483648
    %v1394 = vxor.u32 %v1391, 2147483648
    %v1395 = vxor.u32 %v1392, 2147483648
    %v1396 = vmul.f32 %v1393, 1.442695
    %v1397 = vpow.pop %v1396
    %v1398 = vmul.f32 %v1394, 1.442695
    %v1399 = vpow.pop %v1398
    %v1400 = vmul.f32 %v1395, 1.442695
    %v1401 = vpow.pop %v1400
    %v1402 = vadd.f32 %v1397, 1.0
    %v1403 = vadd.f32 %v1399, 1.0
    %v1404 = vadd.f32 %v1401, 1.0
    %v1405 = vrcp.pop %v1402
    %v1406 = vmul.f32 1.0, %v1405
    %v1407 = vrcp.pop %v1403
    %v1408 = vmul.f32 1.0, %v1407
    %v1409 = vrcp.pop %v1404
    %v1410 = vmul.f32 1.0, %v1409
    %v1413 = vunpack.c.l.s4 1966171168
    %v1414 = vunpack.c.0.s8 %v1413
    %v1415 = vlaneseq
    %v1416 = vshrl.u32 %v1415, 7
    %v1417 = vsub.s32 %v1414, %v1416
    %v1418 = vrot.slane %v1310, %v1417
    %v1419 = vcombine.high %v1418, %v1418
    %v1421 = vunpack.c.l.s4 1966171168
    %v1422 = vunpack.c.0.s8 %v1421
    %v1423 = vlaneseq
    %v1424 = vshrl.u32 %v1423, 7
    %v1425 = vsub.s32 %v1422, %v1424
    %v1426 = vrot.slane %v1418, %v1425
    %v1428 = vunpack.c.l.s4 1966171168
    %v1429 = vunpack.c.0.s8 %v1428
    %v1430 = vlaneseq
    %v1431 = vshrl.u32 %v1430, 7
    %v1432 = vsub.s32 %v1429, %v1431
    %v1433 = vrot.slane %v1419, %v1432
    %v1434 = vcombine.high %v1426, %v1426
    %v1438 = vmul.f32 %v1358, %v1426
    %v1439 = vmul.f32 %v1360, %v1433
    %v1440 = vmul.f32 %v1362, %v1434
    %v1441 = vadd.f32 %v989, %v1438
    %v1442 = vadd.f32 %v1003, %v1439
    %v1443 = vadd.f32 %v1011, %v1440
    %v1444 = vtanh.pop %v1441
    %v1445 = vtanh.pop %v1442
    %v1446 = vtanh.pop %v1443
    %v1447 = vsub.f32 1.0, %v1406
    %v1448 = vsub.f32 1.0, %v1408
    %v1449 = vsub.f32 1.0, %v1410
    %v1450 = vmul.f32 %v1447, %v1444
    %v1451 = vmul.f32 %v1448, %v1445
    %v1452 = vmul.f32 %v1449, %v1446
    %v1453 = vmul.f32 %v1406, 0.0
    %v1454 = vmul.f32 %v1408, 0.0
    %v1455 = vmul.f32 %v1410, 0.0
    %v1456 = vadd.f32 %v1450, %v1453
    %v1457 = vadd.f32 %v1451, %v1454
    %v1458 = vadd.f32 %v1452, %v1455
    %v1462 = vcombine.low %v1456, %v1457
    %v1464 = vunpack.c.l.s4 1966171168
    %v1465 = vunpack.c.0.s8 %v1464
    %v1466 = vlaneseq
    %v1467 = vshrl.u32 %v1466, 7
    %v1468 = vsub.s32 %v1465, %v1467
    %v1469 = vrot.slane %v1462, %v1468
    %v1471 = vunpack.c.l.s4 1966171168
    %v1472 = vunpack.c.0.s8 %v1471
    %v1473 = vlaneseq
    %v1474 = vshrl.u32 %v1473, 7
    %v1475 = vsub.s32 %v1472, %v1474
    %v1476 = vrot.slane %v1458, %v1475
    %v1477 = vcombine.low %v1469, %v1476
    %v1479 = vunpack.c.l.s4 1966171168
    %v1480 = vunpack.c.0.s8 %v1479
    %v1481 = vlaneseq
    %v1482 = vshrl.u32 %v1481, 7
    %v1483 = vsub.s32 %v1480, %v1482
    %v1484 = vrot.slane %v1477, %v1483
    %v1486 = vpack.c.bf16 %v1484, %v1484
    %v1488 = vsel %vm201, %v1486, 0
    %1490 = vmatprep.subr.bf16.mxu0 0
    %1491 = vmatpush1.bf16.msra.mxu0 %v1158
    %1492 = vmatprep.subr.bf16.mxu0 0
    %1493 = vmatpush1.bf16.msra.mxu0 %v1159
    %1494 = vmatprep.subr.bf16.mxu0 0
    %1495 = vmatpush1.bf16.msra.mxu0 0
    %1496 = vmatprep.subr.bf16.mxu0 0
    %1497 = vmatpush1.bf16.msra.mxu0 0
    %1498 = vmatprep.subr.bf16.mxu0 0
    %1499 = vmatpush1.bf16.msra.mxu0 0
    %1500 = vmatprep.subr.bf16.mxu0 0
    %1501 = vmatpush1.bf16.msra.mxu0 0
    %1502 = vmatprep.subr.bf16.mxu0 0
    %1503 = vmatpush1.bf16.msra.mxu0 0
    %1504 = vmatprep.subr.bf16.mxu0 0
    %1505 = vmatpush1.bf16.msra.mxu0 0
    %1506 = vmatprep.subr.bf16.mxu0 0
    %1507 = vmatpush1.bf16.msra.mxu0 0
    %1508 = vmatprep.subr.bf16.mxu0 0
    %1509 = vmatpush1.bf16.msra.mxu0 0
    %1510 = vmatprep.subr.bf16.mxu0 0
    %1511 = vmatpush1.bf16.msra.mxu0 0
    %1512 = vmatprep.subr.bf16.mxu0 0
    %1513 = vmatpush1.bf16.msra.mxu0 0
    %1514 = vmatprep.subr.bf16.mxu0 0
    %1515 = vmatpush1.bf16.msra.mxu0 0
    %1516 = vmatprep.subr.bf16.mxu0 0
    %1517 = vmatpush1.bf16.msra.mxu0 0
    %1518 = vmatprep.subr.bf16.mxu0 0
    %1519 = vmatpush1.bf16.msra.mxu0 0
    %1520 = vmatprep.subr.bf16.mxu0 0
    %1521 = vmatpush1.bf16.msra.mxu0 0
    %1522 = vmatprep.mubr.bf16.mxu0 0
    %1523 = vmatmul.mubr.bf16.gmra.mrb[0].mxu0 %v1488
    %v1524 = vpop.f32.mrb[0].mxu0
    %v1525 = vadd.f32 0.0, %v1524
    %v1526 = vpop.f32.mrb[0].mxu0
    %v1527 = vpop.f32.mrb[0].mxu0
    %v1528 = vpop.f32.mrb[0].mxu0
    %1529 = vdwg.mxu0
    %1530 = vmatprep.subr.bf16.mxu0 0
    %1531 = vmatpush1.bf16.msra.mxu0 %v1213
    %1532 = vmatprep.subr.bf16.mxu0 0
    %1533 = vmatpush1.bf16.msra.mxu0 %v1214
    %1534 = vmatprep.subr.bf16.mxu0 0
    %1535 = vmatpush1.bf16.msra.mxu0 0
    %1536 = vmatprep.subr.bf16.mxu0 0
    %1537 = vmatpush1.bf16.msra.mxu0 0
    %1538 = vmatprep.subr.bf16.mxu0 0
    %1539 = vmatpush1.bf16.msra.mxu0 0
    %1540 = vmatprep.subr.bf16.mxu0 0
    %1541 = vmatpush1.bf16.msra.mxu0 0
    %1542 = vmatprep.subr.bf16.mxu0 0
    %1543 = vmatpush1.bf16.msra.mxu0 0
    %1544 = vmatprep.subr.bf16.mxu0 0
    %1545 = vmatpush1.bf16.msra.mxu0 0
    %1546 = vmatprep.subr.bf16.mxu0 0
    %1547 = vmatpush1.bf16.msra.mxu0 0
    %1548 = vmatprep.subr.bf16.mxu0 0
    %1549 = vmatpush1.bf16.msra.mxu0 0
    %1550 = vmatprep.subr.bf16.mxu0 0
    %1551 = vmatpush1.bf16.msra.mxu0 0
    %1552 = vmatprep.subr.bf16.mxu0 0
    %1553 = vmatpush1.bf16.msra.mxu0 0
    %1554 = vmatprep.subr.bf16.mxu0 0
    %1555 = vmatpush1.bf16.msra.mxu0 0
    %1556 = vmatprep.subr.bf16.mxu0 0
    %1557 = vmatpush1.bf16.msra.mxu0 0
    %1558 = vmatprep.subr.bf16.mxu0 0
    %1559 = vmatpush1.bf16.msra.mxu0 0
    %1560 = vmatprep.subr.bf16.mxu0 0
    %1561 = vmatpush1.bf16.msra.mxu0 0
    %1562 = vmatprep.mubr.bf16.mxu0 0
    %1563 = vmatmul.mubr.bf16.gmra.mrb[0].mxu0 %v1488
    %v1564 = vpop.f32.mrb[0].mxu0
    %v1565 = vadd.f32 0.0, %v1564
    %v1566 = vpop.f32.mrb[0].mxu0
    %v1567 = vpop.f32.mrb[0].mxu0
    %v1568 = vpop.f32.mrb[0].mxu0
    %1569 = vdwg.mxu0
    %1570 = vmatprep.subr.bf16.mxu0 0
    %1571 = vmatpush1.bf16.msra.mxu0 %v1271
    %1572 = vmatprep.subr.bf16.mxu0 0
    %1573 = vmatpush1.bf16.msra.mxu0 %v1272
    %1574 = vmatprep.subr.bf16.mxu0 0
    %1575 = vmatpush1.bf16.msra.mxu0 0
    %1576 = vmatprep.subr.bf16.mxu0 0
    %1577 = vmatpush1.bf16.msra.mxu0 0
    %1578 = vmatprep.subr.bf16.mxu0 0
    %1579 = vmatpush1.bf16.msra.mxu0 0
    %1580 = vmatprep.subr.bf16.mxu0 0
    %1581 = vmatpush1.bf16.msra.mxu0 0
    %1582 = vmatprep.subr.bf16.mxu0 0
    %1583 = vmatpush1.bf16.msra.mxu0 0
    %1584 = vmatprep.subr.bf16.mxu0 0
    %1585 = vmatpush1.bf16.msra.mxu0 0
    %1586 = vmatprep.subr.bf16.mxu0 0
    %1587 = vmatpush1.bf16.msra.mxu0 0
    %1588 = vmatprep.subr.bf16.mxu0 0
    %1589 = vmatpush1.bf16.msra.mxu0 0
    %1590 = vmatprep.subr.bf16.mxu0 0
    %1591 = vmatpush1.bf16.msra.mxu0 0
    %1592 = vmatprep.subr.bf16.mxu0 0
    %1593 = vmatpush1.bf16.msra.mxu0 0
    %1594 = vmatprep.subr.bf16.mxu0 0
    %1595 = vmatpush1.bf16.msra.mxu0 0
    %1596 = vmatprep.subr.bf16.mxu0 0
    %1597 = vmatpush1.bf16.msra.mxu0 0
    %1598 = vmatprep.subr.bf16.mxu0 0
    %1599 = vmatpush1.bf16.msra.mxu0 0
    %1600 = vmatprep.subr.bf16.mxu0 0
    %1601 = vmatpush1.bf16.msra.mxu0 0
    %1602 = vmatprep.mubr.bf16.mxu0 0
    %1603 = vmatmul.mubr.bf16.gmra.mrb[0].mxu0 %v1488
    %v1604 = vpop.f32.mrb[0].mxu0
    %v1605 = vadd.f32 %v1261, %v1604
    %v1606 = vpop.f32.mrb[0].mxu0
    %v1607 = vpop.f32.mrb[0].mxu0
    %v1608 = vpop.f32.mrb[0].mxu0
    %1609 = vdwg.mxu0
    %v1612 = vunpack.c.l.s4 1966171168
    %v1613 = vunpack.c.0.s8 %v1612
    %v1614 = vlaneseq
    %v1615 = vshrl.u32 %v1614, 7
    %v1616 = vsub.s32 %v1613, %v1615
    %v1617 = vrot.slane %v1525, %v1616
    %v1618 = vcombine.high %v1617, %v1617
    %v1620 = vunpack.c.l.s4 1966171168
    %v1621 = vunpack.c.0.s8 %v1620
    %v1622 = vlaneseq
    %v1623 = vshrl.u32 %v1622, 7
    %v1624 = vsub.s32 %v1621, %v1623
    %v1625 = vrot.slane %v1617, %v1624
    %v1627 = vunpack.c.l.s4 1966171168
    %v1628 = vunpack.c.0.s8 %v1627
    %v1629 = vlaneseq
    %v1630 = vshrl.u32 %v1629, 7
    %v1631 = vsub.s32 %v1628, %v1630
    %v1632 = vrot.slane %v1618, %v1631
    %v1633 = vcombine.high %v1625, %v1625
    %v1637 = vadd.f32 %v539, %v1625
    %v1638 = vadd.f32 %v522, %v1632
    %v1639 = vadd.f32 %v536, %v1633
    %v1640 = vxor.u32 %v1637, 2147483648
    %v1641 = vxor.u32 %v1638, 2147483648
    %v1642 = vxor.u32 %v1639, 2147483648
    %v1643 = vmul.f32 %v1640, 1.442695
    %v1644 = vpow.pop %v1643
    %v1645 = vmul.f32 %v1641, 1.442695
    %v1646 = vpow.pop %v1645
    %v1647 = vmul.f32 %v1642, 1.442695
    %v1648 = vpow.pop %v1647
    %v1649 = vadd.f32 %v1644, 1.0
    %v1650 = vadd.f32 %v1646, 1.0
    %v1651 = vadd.f32 %v1648, 1.0
    %v1652 = vrcp.pop %v1649
    %v1653 = vmul.f32 1.0, %v1652
    %v1654 = vrcp.pop %v1650
    %v1655 = vmul.f32 1.0, %v1654
    %v1656 = vrcp.pop %v1651
    %v1657 = vmul.f32 1.0, %v1656
    %v1660 = vunpack.c.l.s4 1966171168
    %v1661 = vunpack.c.0.s8 %v1660
    %v1662 = vlaneseq
    %v1663 = vshrl.u32 %v1662, 7
    %v1664 = vsub.s32 %v1661, %v1663
    %v1665 = vrot.slane %v1565, %v1664
    %v1666 = vcombine.high %v1665, %v1665
    %v1668 = vunpack.c.l.s4 1966171168
    %v1669 = vunpack.c.0.s8 %v1668
    %v1670 = vlaneseq
    %v1671 = vshrl.u32 %v1670, 7
    %v1672 = vsub.s32 %v1669, %v1671
    %v1673 = vrot.slane %v1665, %v1672
    %v1675 = vunpack.c.l.s4 1966171168
    %v1676 = vunpack.c.0.s8 %v1675
    %v1677 = vlaneseq
    %v1678 = vshrl.u32 %v1677, 7
    %v1679 = vsub.s32 %v1676, %v1678
    %v1680 = vrot.slane %v1666, %v1679
    %v1681 = vcombine.high %v1673, %v1673
    %v1685 = vadd.f32 %v776, %v1673
    %v1686 = vadd.f32 %v759, %v1680
    %v1687 = vadd.f32 %v773, %v1681
    %v1688 = vxor.u32 %v1685, 2147483648
    %v1689 = vxor.u32 %v1686, 2147483648
    %v1690 = vxor.u32 %v1687, 2147483648
    %v1691 = vmul.f32 %v1688, 1.442695
    %v1692 = vpow.pop %v1691
    %v1693 = vmul.f32 %v1689, 1.442695
    %v1694 = vpow.pop %v1693
    %v1695 = vmul.f32 %v1690, 1.442695
    %v1696 = vpow.pop %v1695
    %v1697 = vadd.f32 %v1692, 1.0
    %v1698 = vadd.f32 %v1694, 1.0
    %v1699 = vadd.f32 %v1696, 1.0
    %v1700 = vrcp.pop %v1697
    %v1701 = vmul.f32 1.0, %v1700
    %v1702 = vrcp.pop %v1698
    %v1703 = vmul.f32 1.0, %v1702
    %v1704 = vrcp.pop %v1699
    %v1705 = vmul.f32 1.0, %v1704
    %v1708 = vunpack.c.l.s4 1966171168
    %v1709 = vunpack.c.0.s8 %v1708
    %v1710 = vlaneseq
    %v1711 = vshrl.u32 %v1710, 7
    %v1712 = vsub.s32 %v1709, %v1711
    %v1713 = vrot.slane %v1605, %v1712
    %v1714 = vcombine.high %v1713, %v1713
    %v1716 = vunpack.c.l.s4 1966171168
    %v1717 = vunpack.c.0.s8 %v1716
    %v1718 = vlaneseq
    %v1719 = vshrl.u32 %v1718, 7
    %v1720 = vsub.s32 %v1717, %v1719
    %v1721 = vrot.slane %v1713, %v1720
    %v1723 = vunpack.c.l.s4 1966171168
    %v1724 = vunpack.c.0.s8 %v1723
    %v1725 = vlaneseq
    %v1726 = vshrl.u32 %v1725, 7
    %v1727 = vsub.s32 %v1724, %v1726
    %v1728 = vrot.slane %v1714, %v1727
    %v1729 = vcombine.high %v1721, %v1721
    %v1733 = vmul.f32 %v1653, %v1721
    %v1734 = vmul.f32 %v1655, %v1728
    %v1735 = vmul.f32 %v1657, %v1729
    %v1736 = vadd.f32 %v1013, %v1733
    %v1737 = vadd.f32 %v996, %v1734
    %v1738 = vadd.f32 %v1010, %v1735
    %v1739 = vtanh.pop %v1736
    %v1740 = vtanh.pop %v1737
    %v1741 = vtanh.pop %v1738
    %v1742 = vsub.f32 1.0, %v1701
    %v1743 = vsub.f32 1.0, %v1703
    %v1744 = vsub.f32 1.0, %v1705
    %v1745 = vmul.f32 %v1742, %v1739
    %v1746 = vmul.f32 %v1743, %v1740
    %v1747 = vmul.f32 %v1744, %v1741
    %v1748 = vmul.f32 %v1701, %v1456
    %v1749 = vmul.f32 %v1703, %v1457
    %v1750 = vmul.f32 %v1705, %v1458
    %v1751 = vadd.f32 %v1745, %v1748
    %v1752 = vadd.f32 %v1746, %v1749
    %v1753 = vadd.f32 %v1747, %v1750
    %v1757 = vcombine.low %v1751, %v1752
    %v1759 = vunpack.c.l.s4 1966171168
    %v1760 = vunpack.c.0.s8 %v1759
    %v1761 = vlaneseq
    %v1762 = vshrl.u32 %v1761, 7
    %v1763 = vsub.s32 %v1760, %v1762
    %v1764 = vrot.slane %v1757, %v1763
    %v1766 = vunpack.c.l.s4 1966171168
    %v1767 = vunpack.c.0.s8 %v1766
    %v1768 = vlaneseq
    %v1769 = vshrl.u32 %v1768, 7
    %v1770 = vsub.s32 %v1767, %v1769
    %v1771 = vrot.slane %v1753, %v1770
    %v1772 = vcombine.low %v1764, %v1771
    %v1774 = vunpack.c.l.s4 1966171168
    %v1775 = vunpack.c.0.s8 %v1774
    %v1776 = vlaneseq
    %v1777 = vshrl.u32 %v1776, 7
    %v1778 = vsub.s32 %v1775, %v1777
    %v1779 = vrot.slane %v1772, %v1778
    %v1781 = vpack.c.bf16 %v1779, %v1779
    %v1783 = vsel %vm201, %v1781, 0
    %1785 = vmatprep.subr.bf16.mxu0 0
    %1786 = vmatpush1.bf16.msra.mxu0 %v1158
    %1787 = vmatprep.subr.bf16.mxu0 0
    %1788 = vmatpush1.bf16.msra.mxu0 %v1159
    %1789 = vmatprep.subr.bf16.mxu0 0
    %1790 = vmatpush1.bf16.msra.mxu0 0
    %1791 = vmatprep.subr.bf16.mxu0 0
    %1792 = vmatpush1.bf16.msra.mxu0 0
    %1793 = vmatprep.subr.bf16.mxu0 0
    %1794 = vmatpush1.bf16.msra.mxu0 0
    %1795 = vmatprep.subr.bf16.mxu0 0
    %1796 = vmatpush1.bf16.msra.mxu0 0
    %1797 = vmatprep.subr.bf16.mxu0 0
    %1798 = vmatpush1.bf16.msra.mxu0 0
    %1799 = vmatprep.subr.bf16.mxu0 0
    %1800 = vmatpush1.bf16.msra.mxu0 0
    %1801 = vmatprep.subr.bf16.mxu0 0
    %1802 = vmatpush1.bf16.msra.mxu0 0
    %1803 = vmatprep.subr.bf16.mxu0 0
    %1804 = vmatpush1.bf16.msra.mxu0 0
    %1805 = vmatprep.subr.bf16.mxu0 0
    %1806 = vmatpush1.bf16.msra.mxu0 0
    %1807 = vmatprep.subr.bf16.mxu0 0
    %1808 = vmatpush1.bf16.msra.mxu0 0
    %1809 = vmatprep.subr.bf16.mxu0 0
    %1810 = vmatpush1.bf16.msra.mxu0 0
    %1811 = vmatprep.subr.bf16.mxu0 0
    %1812 = vmatpush1.bf16.msra.mxu0 0
    %1813 = vmatprep.subr.bf16.mxu0 0
    %1814 = vmatpush1.bf16.msra.mxu0 0
    %1815 = vmatprep.subr.bf16.mxu0 0
    %1816 = vmatpush1.bf16.msra.mxu0 0
    %1817 = vmatprep.mubr.bf16.mxu0 0
    %1818 = vmatmul.mubr.bf16.gmra.mrb[0].mxu0 %v1783
    %v1819 = vpop.f32.mrb[0].mxu0
    %v1820 = vadd.f32 0.0, %v1819
    %v1821 = vpop.f32.mrb[0].mxu0
    %v1822 = vpop.f32.mrb[0].mxu0
    %v1823 = vpop.f32.mrb[0].mxu0
    %1824 = vdwg.mxu0
    %1825 = vmatprep.subr.bf16.mxu0 0
    %1826 = vmatpush1.bf16.msra.mxu0 %v1213
    %1827 = vmatprep.subr.bf16.mxu0 0
    %1828 = vmatpush1.bf16.msra.mxu0 %v1214
    %1829 = vmatprep.subr.bf16.mxu0 0
    %1830 = vmatpush1.bf16.msra.mxu0 0
    %1831 = vmatprep.subr.bf16.mxu0 0
    %1832 = vmatpush1.bf16.msra.mxu0 0
    %1833 = vmatprep.subr.bf16.mxu0 0
    %1834 = vmatpush1.bf16.msra.mxu0 0
    %1835 = vmatprep.subr.bf16.mxu0 0
    %1836 = vmatpush1.bf16.msra.mxu0 0
    %1837 = vmatprep.subr.bf16.mxu0 0
    %1838 = vmatpush1.bf16.msra.mxu0 0
    %1839 = vmatprep.subr.bf16.mxu0 0
    %1840 = vmatpush1.bf16.msra.mxu0 0
    %1841 = vmatprep.subr.bf16.mxu0 0
    %1842 = vmatpush1.bf16.msra.mxu0 0
    %1843 = vmatprep.subr.bf16.mxu0 0
    %1844 = vmatpush1.bf16.msra.mxu0 0
    %1845 = vmatprep.subr.bf16.mxu0 0
    %1846 = vmatpush1.bf16.msra.mxu0 0
    %1847 = vmatprep.subr.bf16.mxu0 0
    %1848 = vmatpush1.bf16.msra.mxu0 0
    %1849 = vmatprep.subr.bf16.mxu0 0
    %1850 = vmatpush1.bf16.msra.mxu0 0
    %1851 = vmatprep.subr.bf16.mxu0 0
    %1852 = vmatpush1.bf16.msra.mxu0 0
    %1853 = vmatprep.subr.bf16.mxu0 0
    %1854 = vmatpush1.bf16.msra.mxu0 0
    %1855 = vmatprep.subr.bf16.mxu0 0
    %1856 = vmatpush1.bf16.msra.mxu0 0
    %1857 = vmatprep.mubr.bf16.mxu0 0
    %1858 = vmatmul.mubr.bf16.gmra.mrb[0].mxu0 %v1783
    %v1859 = vpop.f32.mrb[0].mxu0
    %v1860 = vadd.f32 0.0, %v1859
    %v1861 = vpop.f32.mrb[0].mxu0
    %v1862 = vpop.f32.mrb[0].mxu0
    %v1863 = vpop.f32.mrb[0].mxu0
    %1864 = vdwg.mxu0
    %1865 = vmatprep.subr.bf16.mxu0 0
    %1866 = vmatpush1.bf16.msra.mxu0 %v1271
    %1867 = vmatprep.subr.bf16.mxu0 0
    %1868 = vmatpush1.bf16.msra.mxu0 %v1272
    %1869 = vmatprep.subr.bf16.mxu0 0
    %1870 = vmatpush1.bf16.msra.mxu0 0
    %1871 = vmatprep.subr.bf16.mxu0 0
    %1872 = vmatpush1.bf16.msra.mxu0 0
    %1873 = vmatprep.subr.bf16.mxu0 0
    %1874 = vmatpush1.bf16.msra.mxu0 0
    %1875 = vmatprep.subr.bf16.mxu0 0
    %1876 = vmatpush1.bf16.msra.mxu0 0
    %1877 = vmatprep.subr.bf16.mxu0 0
    %1878 = vmatpush1.bf16.msra.mxu0 0
    %1879 = vmatprep.subr.bf16.mxu0 0
    %1880 = vmatpush1.bf16.msra.mxu0 0
    %1881 = vmatprep.subr.bf16.mxu0 0
    %1882 = vmatpush1.bf16.msra.mxu0 0
    %1883 = vmatprep.subr.bf16.mxu0 0
    %1884 = vmatpush1.bf16.msra.mxu0 0
    %1885 = vmatprep.subr.bf16.mxu0 0
    %1886 = vmatpush1.bf16.msra.mxu0 0
    %1887 = vmatprep.subr.bf16.mxu0 0
    %1888 = vmatpush1.bf16.msra.mxu0 0
    %1889 = vmatprep.subr.bf16.mxu0 0
    %1890 = vmatpush1.bf16.msra.mxu0 0
    %1891 = vmatprep.subr.bf16.mxu0 0
    %1892 = vmatpush1.bf16.msra.mxu0 0
    %1893 = vmatprep.subr.bf16.mxu0 0
    %1894 = vmatpush1.bf16.msra.mxu0 0
    %1895 = vmatprep.subr.bf16.mxu0 0
    %1896 = vmatpush1.bf16.msra.mxu0 0
    %1897 = vmatprep.mubr.bf16.mxu0 0
    %1898 = vmatmul.mubr.bf16.gmra.mrb[0].mxu0 %v1783
    %v1899 = vpop.f32.mrb[0].mxu0
    %v1900 = vadd.f32 %v1261, %v1899
    %v1901 = vpop.f32.mrb[0].mxu0
    %v1902 = vpop.f32.mrb[0].mxu0
    %v1903 = vpop.f32.mrb[0].mxu0
    %1904 = vdwg.mxu0
    %v1907 = vunpack.c.l.s4 1966171168
    %v1908 = vunpack.c.0.s8 %v1907
    %v1909 = vlaneseq
    %v1910 = vshrl.u32 %v1909, 7
    %v1911 = vsub.s32 %v1908, %v1910
    %v1912 = vrot.slane %v1820, %v1911
    %v1913 = vcombine.high %v1912, %v1912
    %v1915 = vunpack.c.l.s4 1966171168
    %v1916 = vunpack.c.0.s8 %v1915
    %v1917 = vlaneseq
    %v1918 = vshrl.u32 %v1917, 7
    %v1919 = vsub.s32 %v1916, %v1918
    %v1920 = vrot.slane %v1912, %v1919
    %v1922 = vunpack.c.l.s4 1966171168
    %v1923 = vunpack.c.0.s8 %v1922
    %v1924 = vlaneseq
    %v1925 = vshrl.u32 %v1924, 7
    %v1926 = vsub.s32 %v1923, %v1925
    %v1927 = vrot.slane %v1913, %v1926
    %v1928 = vcombine.high %v1920, %v1920
    %v1932 = vadd.f32 %v538, %v1920
    %v1933 = vadd.f32 %v540, %v1927
    %v1934 = vadd.f32 %v564, %v1928
    %v1935 = vxor.u32 %v1932, 2147483648
    %v1936 = vxor.u32 %v1933, 2147483648
    %v1937 = vxor.u32 %v1934, 2147483648
    %v1938 = vmul.f32 %v1935, 1.442695
    %v1939 = vpow.pop %v1938
    %v1940 = vmul.f32 %v1936, 1.442695
    %v1941 = vpow.pop %v1940
    %v1942 = vmul.f32 %v1937, 1.442695
    %v1943 = vpow.pop %v1942
    %v1944 = vadd.f32 %v1939, 1.0
    %v1945 = vadd.f32 %v1941, 1.0
    %v1946 = vadd.f32 %v1943, 1.0
    %v1947 = vrcp.pop %v1944
    %v1948 = vmul.f32 1.0, %v1947
    %v1949 = vrcp.pop %v1945
    %v1950 = vmul.f32 1.0, %v1949
    %v1951 = vrcp.pop %v1946
    %v1952 = vmul.f32 1.0, %v1951
    %v1955 = vunpack.c.l.s4 1966171168
    %v1956 = vunpack.c.0.s8 %v1955
    %v1957 = vlaneseq
    %v1958 = vshrl.u32 %v1957, 7
    %v1959 = vsub.s32 %v1956, %v1958
    %v1960 = vrot.slane %v1860, %v1959
    %v1961 = vcombine.high %v1960, %v1960
    %v1963 = vunpack.c.l.s4 1966171168
    %v1964 = vunpack.c.0.s8 %v1963
    %v1965 = vlaneseq
    %v1966 = vshrl.u32 %v1965, 7
    %v1967 = vsub.s32 %v1964, %v1966
    %v1968 = vrot.slane %v1960, %v1967
    %v1970 = vunpack.c.l.s4 1966171168
    %v1971 = vunpack.c.0.s8 %v1970
    %v1972 = vlaneseq
    %v1973 = vshrl.u32 %v1972, 7
    %v1974 = vsub.s32 %v1971, %v1973
    %v1975 = vrot.slane %v1961, %v1974
    %v1976 = vcombine.high %v1968, %v1968
    %v1980 = vadd.f32 %v775, %v1968
    %v1981 = vadd.f32 %v777, %v1975
    %v1982 = vadd.f32 %v801, %v1976
    %v1983 = vxor.u32 %v1980, 2147483648
    %v1984 = vxor.u32 %v1981, 2147483648
    %v1985 = vxor.u32 %v1982, 2147483648
    %v1986 = vmul.f32 %v1983, 1.442695
    %v1987 = vpow.pop %v1986
    %v1988 = vmul.f32 %v1984, 1.442695
    %v1989 = vpow.pop %v1988
    %v1990 = vmul.f32 %v1985, 1.442695
    %v1991 = vpow.pop %v1990
    %v1992 = vadd.f32 %v1987, 1.0
    %v1993 = vadd.f32 %v1989, 1.0
    %v1994 = vadd.f32 %v1991, 1.0
    %v1995 = vrcp.pop %v1992
    %v1996 = vmul.f32 1.0, %v1995
    %v1997 = vrcp.pop %v1993
    %v1998 = vmul.f32 1.0, %v1997
    %v1999 = vrcp.pop %v1994
    %v2000 = vmul.f32 1.0, %v1999
    %v2003 = vunpack.c.l.s4 1966171168
    %v2004 = vunpack.c.0.s8 %v2003
    %v2005 = vlaneseq
    %v2006 = vshrl.u32 %v2005, 7
    %v2007 = vsub.s32 %v2004, %v2006
    %v2008 = vrot.slane %v1900, %v2007
    %v2009 = vcombine.high %v2008, %v2008
    %v2011 = vunpack.c.l.s4 1966171168
    %v2012 = vunpack.c.0.s8 %v2011
    %v2013 = vlaneseq
    %v2014 = vshrl.u32 %v2013, 7
    %v2015 = vsub.s32 %v2012, %v2014
    %v2016 = vrot.slane %v2008, %v2015
    %v2018 = vunpack.c.l.s4 1966171168
    %v2019 = vunpack.c.0.s8 %v2018
    %v2020 = vlaneseq
    %v2021 = vshrl.u32 %v2020, 7
    %v2022 = vsub.s32 %v2019, %v2021
    %v2023 = vrot.slane %v2009, %v2022
    %v2024 = vcombine.high %v2016, %v2016
    %v2028 = vmul.f32 %v1948, %v2016
    %v2029 = vmul.f32 %v1950, %v2023
    %v2030 = vmul.f32 %v1952, %v2024
    %v2031 = vadd.f32 %v1012, %v2028
    %v2032 = vadd.f32 %v1014, %v2029
    %v2033 = vadd.f32 %v1038, %v2030
    %v2034 = vtanh.pop %v2031
    %v2035 = vtanh.pop %v2032
    %v2036 = vtanh.pop %v2033
    %v2037 = vsub.f32 1.0, %v1996
    %v2038 = vsub.f32 1.0, %v1998
    %v2039 = vsub.f32 1.0, %v2000
    %v2040 = vmul.f32 %v2037, %v2034
    %v2041 = vmul.f32 %v2038, %v2035
    %v2042 = vmul.f32 %v2039, %v2036
    %v2043 = vmul.f32 %v1996, %v1751
    %v2044 = vmul.f32 %v1998, %v1752
    %v2045 = vmul.f32 %v2000, %v1753
    %v2046 = vadd.f32 %v2040, %v2043
    %v2047 = vadd.f32 %v2041, %v2044
    %v2048 = vadd.f32 %v2042, %v2045
    %v2052 = vcombine.low %v2046, %v2047
    %v2054 = vunpack.c.l.s4 1966171168
    %v2055 = vunpack.c.0.s8 %v2054
    %v2056 = vlaneseq
    %v2057 = vshrl.u32 %v2056, 7
    %v2058 = vsub.s32 %v2055, %v2057
    %v2059 = vrot.slane %v2052, %v2058
    %v2061 = vunpack.c.l.s4 1966171168
    %v2062 = vunpack.c.0.s8 %v2061
    %v2063 = vlaneseq
    %v2064 = vshrl.u32 %v2063, 7
    %v2065 = vsub.s32 %v2062, %v2064
    %v2066 = vrot.slane %v2048, %v2065
    %v2067 = vcombine.low %v2059, %v2066
    %v2069 = vunpack.c.l.s4 1966171168
    %v2070 = vunpack.c.0.s8 %v2069
    %v2071 = vlaneseq
    %v2072 = vshrl.u32 %v2071, 7
    %v2073 = vsub.s32 %v2070, %v2072
    %v2074 = vrot.slane %v2067, %v2073
    %v2076 = vpack.c.bf16 %v2074, %v2074
    %v2078 = vsel %vm201, %v2076, 0
    %2080 = vmatprep.subr.bf16.mxu0 0
    %2081 = vmatpush1.bf16.msra.mxu0 %v1158
    %2082 = vmatprep.subr.bf16.mxu0 0
    %2083 = vmatpush1.bf16.msra.mxu0 %v1159
    %2084 = vmatprep.subr.bf16.mxu0 0
    %2085 = vmatpush1.bf16.msra.mxu0 0
    %2086 = vmatprep.subr.bf16.mxu0 0
    %2087 = vmatpush1.bf16.msra.mxu0 0
    %2088 = vmatprep.subr.bf16.mxu0 0
    %2089 = vmatpush1.bf16.msra.mxu0 0
    %2090 = vmatprep.subr.bf16.mxu0 0
    %2091 = vmatpush1.bf16.msra.mxu0 0
    %2092 = vmatprep.subr.bf16.mxu0 0
    %2093 = vmatpush1.bf16.msra.mxu0 0
    %2094 = vmatprep.subr.bf16.mxu0 0
    %2095 = vmatpush1.bf16.msra.mxu0 0
    %2096 = vmatprep.subr.bf16.mxu0 0
    %2097 = vmatpush1.bf16.msra.mxu0 0
    %2098 = vmatprep.subr.bf16.mxu0 0
    %2099 = vmatpush1.bf16.msra.mxu0 0
    %2100 = vmatprep.subr.bf16.mxu0 0
    %2101 = vmatpush1.bf16.msra.mxu0 0
    %2102 = vmatprep.subr.bf16.mxu0 0
    %2103 = vmatpush1.bf16.msra.mxu0 0
    %2104 = vmatprep.subr.bf16.mxu0 0
    %2105 = vmatpush1.bf16.msra.mxu0 0
    %2106 = vmatprep.subr.bf16.mxu0 0
    %2107 = vmatpush1.bf16.msra.mxu0 0
    %2108 = vmatprep.subr.bf16.mxu0 0
    %2109 = vmatpush1.bf16.msra.mxu0 0
    %2110 = vmatprep.subr.bf16.mxu0 0
    %2111 = vmatpush1.bf16.msra.mxu0 0
    %2112 = vmatprep.mubr.bf16.mxu0 0
    %2113 = vmatmul.mubr.bf16.gmra.mrb[0].mxu0 %v2078
    %v2114 = vpop.f32.mrb[0].mxu0
    %v2115 = vadd.f32 0.0, %v2114
    %v2116 = vpop.f32.mrb[0].mxu0
    %v2117 = vpop.f32.mrb[0].mxu0
    %v2118 = vpop.f32.mrb[0].mxu0
    %2119 = vdwg.mxu0
    %2120 = vmatprep.subr.bf16.mxu0 0
    %2121 = vmatpush1.bf16.msra.mxu0 %v1213
    %2122 = vmatprep.subr.bf16.mxu0 0
    %2123 = vmatpush1.bf16.msra.mxu0 %v1214
    %2124 = vmatprep.subr.bf16.mxu0 0
    %2125 = vmatpush1.bf16.msra.mxu0 0
    %2126 = vmatprep.subr.bf16.mxu0 0
    %2127 = vmatpush1.bf16.msra.mxu0 0
    %2128 = vmatprep.subr.bf16.mxu0 0
    %2129 = vmatpush1.bf16.msra.mxu0 0
    %2130 = vmatprep.subr.bf16.mxu0 0
    %2131 = vmatpush1.bf16.msra.mxu0 0
    %2132 = vmatprep.subr.bf16.mxu0 0
    %2133 = vmatpush1.bf16.msra.mxu0 0
    %2134 = vmatprep.subr.bf16.mxu0 0
    %2135 = vmatpush1.bf16.msra.mxu0 0
    %2136 = vmatprep.subr.bf16.mxu0 0
    %2137 = vmatpush1.bf16.msra.mxu0 0
    %2138 = vmatprep.subr.bf16.mxu0 0
    %2139 = vmatpush1.bf16.msra.mxu0 0
    %2140 = vmatprep.subr.bf16.mxu0 0
    %2141 = vmatpush1.bf16.msra.mxu0 0
    %2142 = vmatprep.subr.bf16.mxu0 0
    %2143 = vmatpush1.bf16.msra.mxu0 0
    %2144 = vmatprep.subr.bf16.mxu0 0
    %2145 = vmatpush1.bf16.msra.mxu0 0
    %2146 = vmatprep.subr.bf16.mxu0 0
    %2147 = vmatpush1.bf16.msra.mxu0 0
    %2148 = vmatprep.subr.bf16.mxu0 0
    %2149 = vmatpush1.bf16.msra.mxu0 0
    %2150 = vmatprep.subr.bf16.mxu0 0
    %2151 = vmatpush1.bf16.msra.mxu0 0
    %2152 = vmatprep.mubr.bf16.mxu0 0
    %2153 = vmatmul.mubr.bf16.gmra.mrb[0].mxu0 %v2078
    %v2154 = vpop.f32.mrb[0].mxu0
    %v2155 = vadd.f32 0.0, %v2154
    %v2156 = vpop.f32.mrb[0].mxu0
    %v2157 = vpop.f32.mrb[0].mxu0
    %v2158 = vpop.f32.mrb[0].mxu0
    %2159 = vdwg.mxu0
    %2160 = vmatprep.subr.bf16.mxu0 0
    %2161 = vmatpush1.bf16.msra.mxu0 %v1271
    %2162 = vmatprep.subr.bf16.mxu0 0
    %2163 = vmatpush1.bf16.msra.mxu0 %v1272
    %2164 = vmatprep.subr.bf16.mxu0 0
    %2165 = vmatpush1.bf16.msra.mxu0 0
    %2166 = vmatprep.subr.bf16.mxu0 0
    %2167 = vmatpush1.bf16.msra.mxu0 0
    %2168 = vmatprep.subr.bf16.mxu0 0
    %2169 = vmatpush1.bf16.msra.mxu0 0
    %2170 = vmatprep.subr.bf16.mxu0 0
    %2171 = vmatpush1.bf16.msra.mxu0 0
    %2172 = vmatprep.subr.bf16.mxu0 0
    %2173 = vmatpush1.bf16.msra.mxu0 0
    %2174 = vmatprep.subr.bf16.mxu0 0
    %2175 = vmatpush1.bf16.msra.mxu0 0
    %2176 = vmatprep.subr.bf16.mxu0 0
    %2177 = vmatpush1.bf16.msra.mxu0 0
    %2178 = vmatprep.subr.bf16.mxu0 0
    %2179 = vmatpush1.bf16.msra.mxu0 0
    %2180 = vmatprep.subr.bf16.mxu0 0
    %2181 = vmatpush1.bf16.msra.mxu0 0
    %2182 = vmatprep.subr.bf16.mxu0 0
    %2183 = vmatpush1.bf16.msra.mxu0 0
    %2184 = vmatprep.subr.bf16.mxu0 0
    %2185 = vmatpush1.bf16.msra.mxu0 0
    %2186 = vmatprep.subr.bf16.mxu0 0
    %2187 = vmatpush1.bf16.msra.mxu0 0
    %2188 = vmatprep.subr.bf16.mxu0 0
    %2189 = vmatpush1.bf16.msra.mxu0 0
    %2190 = vmatprep.subr.bf16.mxu0 0
    %2191 = vmatpush1.bf16.msra.mxu0 0
    %2192 = vmatprep.mubr.bf16.mxu0 0
    %2193 = vmatmul.mubr.bf16.gmra.mrb[0].mxu0 %v2078
    %v2194 = vpop.f32.mrb[0].mxu0
    %v2195 = vadd.f32 %v1261, %v2194
    %v2196 = vpop.f32.mrb[0].mxu0
    %v2197 = vpop.f32.mrb[0].mxu0
    %v2198 = vpop.f32.mrb[0].mxu0
    %2199 = vdwg.mxu0
    %v2202 = vunpack.c.l.s4 1966171168
    %v2203 = vunpack.c.0.s8 %v2202
    %v2204 = vlaneseq
    %v2205 = vshrl.u32 %v2204, 7
    %v2206 = vsub.s32 %v2203, %v2205
    %v2207 = vrot.slane %v2115, %v2206
    %v2208 = vcombine.high %v2207, %v2207
    %v2210 = vunpack.c.l.s4 1966171168
    %v2211 = vunpack.c.0.s8 %v2210
    %v2212 = vlaneseq
    %v2213 = vshrl.u32 %v2212, 7
    %v2214 = vsub.s32 %v2211, %v2213
    %v2215 = vrot.slane %v2207, %v2214
    %v2217 = vunpack.c.l.s4 1966171168
    %v2218 = vunpack.c.0.s8 %v2217
    %v2219 = vlaneseq
    %v2220 = vshrl.u32 %v2219, 7
    %v2221 = vsub.s32 %v2218, %v2220
    %v2222 = vrot.slane %v2208, %v2221
    %v2223 = vcombine.high %v2215, %v2215
    %v2227 = vadd.f32 %v578, %v2215
    %v2228 = vadd.f32 %v586, %v2222
    %v2229 = vadd.f32 %v588, %v2223
    %v2230 = vxor.u32 %v2227, 2147483648
    %v2231 = vxor.u32 %v2228, 2147483648
    %v2232 = vxor.u32 %v2229, 2147483648
    %v2233 = vmul.f32 %v2230, 1.442695
    %v2234 = vpow.pop %v2233
    %v2235 = vmul.f32 %v2231, 1.442695
    %v2236 = vpow.pop %v2235
    %v2237 = vmul.f32 %v2232, 1.442695
    %v2238 = vpow.pop %v2237
    %v2239 = vadd.f32 %v2234, 1.0
    %v2240 = vadd.f32 %v2236, 1.0
    %v2241 = vadd.f32 %v2238, 1.0
    %v2242 = vrcp.pop %v2239
    %v2243 = vmul.f32 1.0, %v2242
    %v2244 = vrcp.pop %v2240
    %v2245 = vmul.f32 1.0, %v2244
    %v2246 = vrcp.pop %v2241
    %v2247 = vmul.f32 1.0, %v2246
    %v2250 = vunpack.c.l.s4 1966171168
    %v2251 = vunpack.c.0.s8 %v2250
    %v2252 = vlaneseq
    %v2253 = vshrl.u32 %v2252, 7
    %v2254 = vsub.s32 %v2251, %v2253
    %v2255 = vrot.slane %v2155, %v2254
    %v2256 = vcombine.high %v2255, %v2255
    %v2258 = vunpack.c.l.s4 1966171168
    %v2259 = vunpack.c.0.s8 %v2258
    %v2260 = vlaneseq
    %v2261 = vshrl.u32 %v2260, 7
    %v2262 = vsub.s32 %v2259, %v2261
    %v2263 = vrot.slane %v2255, %v2262
    %v2265 = vunpack.c.l.s4 1966171168
    %v2266 = vunpack.c.0.s8 %v2265
    %v2267 = vlaneseq
    %v2268 = vshrl.u32 %v2267, 7
    %v2269 = vsub.s32 %v2266, %v2268
    %v2270 = vrot.slane %v2256, %v2269
    %v2271 = vcombine.high %v2263, %v2263
    %v2275 = vadd.f32 %v815, %v2263
    %v2276 = vadd.f32 %v823, %v2270
    %v2277 = vadd.f32 %v825, %v2271
    %v2278 = vxor.u32 %v2275, 2147483648
    %v2279 = vxor.u32 %v2276, 2147483648
    %v2280 = vxor.u32 %v2277, 2147483648
    %v2281 = vmul.f32 %v2278, 1.442695
    %v2282 = vpow.pop %v2281
    %v2283 = vmul.f32 %v2279, 1.442695
    %v2284 = vpow.pop %v2283
    %v2285 = vmul.f32 %v2280, 1.442695
    %v2286 = vpow.pop %v2285
    %v2287 = vadd.f32 %v2282, 1.0
    %v2288 = vadd.f32 %v2284, 1.0
    %v2289 = vadd.f32 %v2286, 1.0
    %v2290 = vrcp.pop %v2287
    %v2291 = vmul.f32 1.0, %v2290
    %v2292 = vrcp.pop %v2288
    %v2293 = vmul.f32 1.0, %v2292
    %v2294 = vrcp.pop %v2289
    %v2295 = vmul.f32 1.0, %v2294
    %v2298 = vunpack.c.l.s4 1966171168
    %v2299 = vunpack.c.0.s8 %v2298
    %v2300 = vlaneseq
    %v2301 = vshrl.u32 %v2300, 7
    %v2302 = vsub.s32 %v2299, %v2301
    %v2303 = vrot.slane %v2195, %v2302
    %v2304 = vcombine.high %v2303, %v2303
    %v2306 = vunpack.c.l.s4 1966171168
    %v2307 = vunpack.c.0.s8 %v2306
    %v2308 = vlaneseq
    %v2309 = vshrl.u32 %v2308, 7
    %v2310 = vsub.s32 %v2307, %v2309
    %v2311 = vrot.slane %v2303, %v2310
    %v2313 = vunpack.c.l.s4 1966171168
    %v2314 = vunpack.c.0.s8 %v2313
    %v2315 = vlaneseq
    %v2316 = vshrl.u32 %v2315, 7
    %v2317 = vsub.s32 %v2314, %v2316
    %v2318 = vrot.slane %v2304, %v2317
    %v2319 = vcombine.high %v2311, %v2311
    %v2323 = vmul.f32 %v2243, %v2311
    %v2324 = vmul.f32 %v2245, %v2318
    %v2325 = vmul.f32 %v2247, %v2319
    %v2326 = vadd.f32 %v1052, %v2323
    %v2327 = vadd.f32 %v1060, %v2324
    %v2328 = vadd.f32 %v1062, %v2325
    %v2329 = vtanh.pop %v2326
    %v2330 = vtanh.pop %v2327
    %v2331 = vtanh.pop %v2328
    %v2332 = vsub.f32 1.0, %v2291
    %v2333 = vsub.f32 1.0, %v2293
    %v2334 = vsub.f32 1.0, %v2295
    %v2335 = vmul.f32 %v2332, %v2329
    %v2336 = vmul.f32 %v2333, %v2330
    %v2337 = vmul.f32 %v2334, %v2331
    %v2338 = vmul.f32 %v2291, %v2046
    %v2339 = vmul.f32 %v2293, %v2047
    %v2340 = vmul.f32 %v2295, %v2048
    %v2341 = vadd.f32 %v2335, %v2338
    %v2342 = vadd.f32 %v2336, %v2339
    %v2343 = vadd.f32 %v2337, %v2340
    %v2347 = vcombine.low %v2341, %v2342
    %v2349 = vunpack.c.l.s4 1966171168
    %v2350 = vunpack.c.0.s8 %v2349
    %v2351 = vlaneseq
    %v2352 = vshrl.u32 %v2351, 7
    %v2353 = vsub.s32 %v2350, %v2352
    %v2354 = vrot.slane %v2347, %v2353
    %v2356 = vunpack.c.l.s4 1966171168
    %v2357 = vunpack.c.0.s8 %v2356
    %v2358 = vlaneseq
    %v2359 = vshrl.u32 %v2358, 7
    %v2360 = vsub.s32 %v2357, %v2359
    %v2361 = vrot.slane %v2343, %v2360
    %v2362 = vcombine.low %v2354, %v2361
    %v2364 = vunpack.c.l.s4 1966171168
    %v2365 = vunpack.c.0.s8 %v2364
    %v2366 = vlaneseq
    %v2367 = vshrl.u32 %v2366, 7
    %v2368 = vsub.s32 %v2365, %v2367
    %v2369 = vrot.slane %v2362, %v2368
    %v2371 = vpack.c.bf16 %v2369, %v2369
    %v2373 = vsel %vm201, %v2371, 0
    %2375 = vmatprep.subr.bf16.mxu0 0
    %2376 = vmatpush1.bf16.msra.mxu0 %v1158
    %2377 = vmatprep.subr.bf16.mxu0 0
    %2378 = vmatpush1.bf16.msra.mxu0 %v1159
    %2379 = vmatprep.subr.bf16.mxu0 0
    %2380 = vmatpush1.bf16.msra.mxu0 0
    %2381 = vmatprep.subr.bf16.mxu0 0
    %2382 = vmatpush1.bf16.msra.mxu0 0
    %2383 = vmatprep.subr.bf16.mxu0 0
    %2384 = vmatpush1.bf16.msra.mxu0 0
    %2385 = vmatprep.subr.bf16.mxu0 0
    %2386 = vmatpush1.bf16.msra.mxu0 0
    %2387 = vmatprep.subr.bf16.mxu0 0
    %2388 = vmatpush1.bf16.msra.mxu0 0
    %2389 = vmatprep.subr.bf16.mxu0 0
    %2390 = vmatpush1.bf16.msra.mxu0 0
    %2391 = vmatprep.subr.bf16.mxu0 0
    %2392 = vmatpush1.bf16.msra.mxu0 0
    %2393 = vmatprep.subr.bf16.mxu0 0
    %2394 = vmatpush1.bf16.msra.mxu0 0
    %2395 = vmatprep.subr.bf16.mxu0 0
    %2396 = vmatpush1.bf16.msra.mxu0 0
    %2397 = vmatprep.subr.bf16.mxu0 0
    %2398 = vmatpush1.bf16.msra.mxu0 0
    %2399 = vmatprep.subr.bf16.mxu0 0
    %2400 = vmatpush1.bf16.msra.mxu0 0
    %2401 = vmatprep.subr.bf16.mxu0 0
    %2402 = vmatpush1.bf16.msra.mxu0 0
    %2403 = vmatprep.subr.bf16.mxu0 0
    %2404 = vmatpush1.bf16.msra.mxu0 0
    %2405 = vmatprep.subr.bf16.mxu0 0
    %2406 = vmatpush1.bf16.msra.mxu0 0
    %2407 = vmatprep.mubr.bf16.mxu0 0
    %2408 = vmatmul.mubr.bf16.gmra.mrb[0].mxu0 %v2373
    %v2409 = vpop.f32.mrb[0].mxu0
    %v2410 = vadd.f32 0.0, %v2409
    %v2411 = vpop.f32.mrb[0].mxu0
    %v2412 = vpop.f32.mrb[0].mxu0
    %v2413 = vpop.f32.mrb[0].mxu0
    %2414 = vdwg.mxu0
    %2415 = vmatprep.subr.bf16.mxu0 0
    %2416 = vmatpush1.bf16.msra.mxu0 %v1213
    %2417 = vmatprep.subr.bf16.mxu0 0
    %2418 = vmatpush1.bf16.msra.mxu0 %v1214
    %2419 = vmatprep.subr.bf16.mxu0 0
    %2420 = vmatpush1.bf16.msra.mxu0 0
    %2421 = vmatprep.subr.bf16.mxu0 0
    %2422 = vmatpush1.bf16.msra.mxu0 0
    %2423 = vmatprep.subr.bf16.mxu0 0
    %2424 = vmatpush1.bf16.msra.mxu0 0
    %2425 = vmatprep.subr.bf16.mxu0 0
    %2426 = vmatpush1.bf16.msra.mxu0 0
    %2427 = vmatprep.subr.bf16.mxu0 0
    %2428 = vmatpush1.bf16.msra.mxu0 0
    %2429 = vmatprep.subr.bf16.mxu0 0
    %2430 = vmatpush1.bf16.msra.mxu0 0
    %2431 = vmatprep.subr.bf16.mxu0 0
    %2432 = vmatpush1.bf16.msra.mxu0 0
    %2433 = vmatprep.subr.bf16.mxu0 0
    %2434 = vmatpush1.bf16.msra.mxu0 0
    %2435 = vmatprep.subr.bf16.mxu0 0
    %2436 = vmatpush1.bf16.msra.mxu0 0
    %2437 = vmatprep.subr.bf16.mxu0 0
    %2438 = vmatpush1.bf16.msra.mxu0 0
    %2439 = vmatprep.subr.bf16.mxu0 0
    %2440 = vmatpush1.bf16.msra.mxu0 0
    %2441 = vmatprep.subr.bf16.mxu0 0
    %2442 = vmatpush1.bf16.msra.mxu0 0
    %2443 = vmatprep.subr.bf16.mxu0 0
    %2444 = vmatpush1.bf16.msra.mxu0 0
    %2445 = vmatprep.subr.bf16.mxu0 0
    %2446 = vmatpush1.bf16.msra.mxu0 0
    %2447 = vmatprep.mubr.bf16.mxu0 0
    %2448 = vmatmul.mubr.bf16.gmra.mrb[0].mxu0 %v2373
    %v2449 = vpop.f32.mrb[0].mxu0
    %v2450 = vadd.f32 0.0, %v2449
    %v2451 = vpop.f32.mrb[0].mxu0
    %v2452 = vpop.f32.mrb[0].mxu0
    %v2453 = vpop.f32.mrb[0].mxu0
    %2454 = vdwg.mxu0
    %2455 = vmatprep.subr.bf16.mxu0 0
    %2456 = vmatpush1.bf16.msra.mxu0 %v1271
    %2457 = vmatprep.subr.bf16.mxu0 0
    %2458 = vmatpush1.bf16.msra.mxu0 %v1272
    %2459 = vmatprep.subr.bf16.mxu0 0
    %2460 = vmatpush1.bf16.msra.mxu0 0
    %2461 = vmatprep.subr.bf16.mxu0 0
    %2462 = vmatpush1.bf16.msra.mxu0 0
    %2463 = vmatprep.subr.bf16.mxu0 0
    %2464 = vmatpush1.bf16.msra.mxu0 0
    %2465 = vmatprep.subr.bf16.mxu0 0
    %2466 = vmatpush1.bf16.msra.mxu0 0
    %2467 = vmatprep.subr.bf16.mxu0 0
    %2468 = vmatpush1.bf16.msra.mxu0 0
    %2469 = vmatprep.subr.bf16.mxu0 0
    %2470 = vmatpush1.bf16.msra.mxu0 0
    %2471 = vmatprep.subr.bf16.mxu0 0
    %2472 = vmatpush1.bf16.msra.mxu0 0
    %2473 = vmatprep.subr.bf16.mxu0 0
    %2474 = vmatpush1.bf16.msra.mxu0 0
    %2475 = vmatprep.subr.bf16.mxu0 0
    %2476 = vmatpush1.bf16.msra.mxu0 0
    %2477 = vmatprep.subr.bf16.mxu0 0
    %2478 = vmatpush1.bf16.msra.mxu0 0
    %2479 = vmatprep.subr.bf16.mxu0 0
    %2480 = vmatpush1.bf16.msra.mxu0 0
    %2481 = vmatprep.subr.bf16.mxu0 0
    %2482 = vmatpush1.bf16.msra.mxu0 0
    %2483 = vmatprep.subr.bf16.mxu0 0
    %2484 = vmatpush1.bf16.msra.mxu0 0
    %2485 = vmatprep.subr.bf16.mxu0 0
    %2486 = vmatpush1.bf16.msra.mxu0 0
    %2487 = vmatprep.mubr.bf16.mxu0 0
    %2488 = vmatmul.mubr.bf16.gmra.mrb[0].mxu0 %v2373
    %v2489 = vpop.f32.mrb[0].mxu0
    %v2490 = vadd.f32 %v1261, %v2489
    %v2491 = vpop.f32.mrb[0].mxu0
    %v2492 = vpop.f32.mrb[0].mxu0
    %v2493 = vpop.f32.mrb[0].mxu0
    %2494 = vdwg.mxu0
    %v2497 = vunpack.c.l.s4 1966171168
    %v2498 = vunpack.c.0.s8 %v2497
    %v2499 = vlaneseq
    %v2500 = vshrl.u32 %v2499, 7
    %v2501 = vsub.s32 %v2498, %v2500
    %v2502 = vrot.slane %v2410, %v2501
    %v2503 = vcombine.high %v2502, %v2502
    %v2505 = vunpack.c.l.s4 1966171168
    %v2506 = vunpack.c.0.s8 %v2505
    %v2507 = vlaneseq
    %v2508 = vshrl.u32 %v2507, 7
    %v2509 = vsub.s32 %v2506, %v2508
    %v2510 = vrot.slane %v2502, %v2509
    %v2512 = vunpack.c.l.s4 1966171168
    %v2513 = vunpack.c.0.s8 %v2512
    %v2514 = vlaneseq
    %v2515 = vshrl.u32 %v2514, 7
    %v2516 = vsub.s32 %v2513, %v2515
    %v2517 = vrot.slane %v2503, %v2516
    %v2518 = vcombine.high %v2510, %v2510
    %v2522 = vadd.f32 %v571, %v2510
    %v2523 = vadd.f32 %v585, %v2517
    %v2524 = vadd.f32 %v587, %v2518
    %v2525 = vxor.u32 %v2522, 2147483648
    %v2526 = vxor.u32 %v2523, 2147483648
    %v2527 = vxor.u32 %v2524, 2147483648
    %v2528 = vmul.f32 %v2525, 1.442695
    %v2529 = vpow.pop %v2528
    %v2530 = vmul.f32 %v2526, 1.442695
    %v2531 = vpow.pop %v2530
    %v2532 = vmul.f32 %v2527, 1.442695
    %v2533 = vpow.pop %v2532
    %v2534 = vadd.f32 %v2529, 1.0
    %v2535 = vadd.f32 %v2531, 1.0
    %v2536 = vadd.f32 %v2533, 1.0
    %v2537 = vrcp.pop %v2534
    %v2538 = vmul.f32 1.0, %v2537
    %v2539 = vrcp.pop %v2535
    %v2540 = vmul.f32 1.0, %v2539
    %v2541 = vrcp.pop %v2536
    %v2542 = vmul.f32 1.0, %v2541
    %v2545 = vunpack.c.l.s4 1966171168
    %v2546 = vunpack.c.0.s8 %v2545
    %v2547 = vlaneseq
    %v2548 = vshrl.u32 %v2547, 7
    %v2549 = vsub.s32 %v2546, %v2548
    %v2550 = vrot.slane %v2450, %v2549
    %v2551 = vcombine.high %v2550, %v2550
    %v2553 = vunpack.c.l.s4 1966171168
    %v2554 = vunpack.c.0.s8 %v2553
    %v2555 = vlaneseq
    %v2556 = vshrl.u32 %v2555, 7
    %v2557 = vsub.s32 %v2554, %v2556
    %v2558 = vrot.slane %v2550, %v2557
    %v2560 = vunpack.c.l.s4 1966171168
    %v2561 = vunpack.c.0.s8 %v2560
    %v2562 = vlaneseq
    %v2563 = vshrl.u32 %v2562, 7
    %v2564 = vsub.s32 %v2561, %v2563
    %v2565 = vrot.slane %v2551, %v2564
    %v2566 = vcombine.high %v2558, %v2558
    %v2570 = vadd.f32 %v808, %v2558
    %v2571 = vadd.f32 %v822, %v2565
    %v2572 = vadd.f32 %v824, %v2566
    %v2573 = vxor.u32 %v2570, 2147483648
    %v2574 = vxor.u32 %v2571, 2147483648
    %v2575 = vxor.u32 %v2572, 2147483648
    %v2576 = vmul.f32 %v2573, 1.442695
    %v2577 = vpow.pop %v2576
    %v2578 = vmul.f32 %v2574, 1.442695
    %v2579 = vpow.pop %v2578
    %v2580 = vmul.f32 %v2575, 1.442695
    %v2581 = vpow.pop %v2580
    %v2582 = vadd.f32 %v2577, 1.0
    %v2583 = vadd.f32 %v2579, 1.0
    %v2584 = vadd.f32 %v2581, 1.0
    %v2585 = vrcp.pop %v2582
    %v2586 = vmul.f32 1.0, %v2585
    %v2587 = vrcp.pop %v2583
    %v2588 = vmul.f32 1.0, %v2587
    %v2589 = vrcp.pop %v2584
    %v2590 = vmul.f32 1.0, %v2589
    %v2593 = vunpack.c.l.s4 1966171168
    %v2594 = vunpack.c.0.s8 %v2593
    %v2595 = vlaneseq
    %v2596 = vshrl.u32 %v2595, 7
    %v2597 = vsub.s32 %v2594, %v2596
    %v2598 = vrot.slane %v2490, %v2597
    %v2599 = vcombine.high %v2598, %v2598
    %v2601 = vunpack.c.l.s4 1966171168
    %v2602 = vunpack.c.0.s8 %v2601
    %v2603 = vlaneseq
    %v2604 = vshrl.u32 %v2603, 7
    %v2605 = vsub.s32 %v2602, %v2604
    %v2606 = vrot.slane %v2598, %v2605
    %v2608 = vunpack.c.l.s4 1966171168
    %v2609 = vunpack.c.0.s8 %v2608
    %v2610 = vlaneseq
    %v2611 = vshrl.u32 %v2610, 7
    %v2612 = vsub.s32 %v2609, %v2611
    %v2613 = vrot.slane %v2599, %v2612
    %v2614 = vcombine.high %v2606, %v2606
    %v2618 = vmul.f32 %v2538, %v2606
    %v2619 = vmul.f32 %v2540, %v2613
    %v2620 = vmul.f32 %v2542, %v2614
    %v2621 = vadd.f32 %v1045, %v2618
    %v2622 = vadd.f32 %v1059, %v2619
    %v2623 = vadd.f32 %v1061, %v2620
    %v2624 = vtanh.pop %v2621
    %v2625 = vtanh.pop %v2622
    %v2626 = vtanh.pop %v2623
    %v2627 = vsub.f32 1.0, %v2586
    %v2628 = vsub.f32 1.0, %v2588
    %v2629 = vsub.f32 1.0, %v2590
    %v2630 = vmul.f32 %v2627, %v2624
    %v2631 = vmul.f32 %v2628, %v2625
    %v2632 = vmul.f32 %v2629, %v2626
    %v2633 = vmul.f32 %v2586, %v2341
    %v2634 = vmul.f32 %v2588, %v2342
    %v2635 = vmul.f32 %v2590, %v2343
    %v2636 = vadd.f32 %v2630, %v2633
    %v2637 = vadd.f32 %v2631, %v2634
    %v2638 = vadd.f32 %v2632, %v2635
    %v2642 = vcombine.low %v2636, %v2637
    %v2644 = vunpack.c.l.s4 1966171168
    %v2645 = vunpack.c.0.s8 %v2644
    %v2646 = vlaneseq
    %v2647 = vshrl.u32 %v2646, 7
    %v2648 = vsub.s32 %v2645, %v2647
    %v2649 = vrot.slane %v2642, %v2648
    %v2651 = vunpack.c.l.s4 1966171168
    %v2652 = vunpack.c.0.s8 %v2651
    %v2653 = vlaneseq
    %v2654 = vshrl.u32 %v2653, 7
    %v2655 = vsub.s32 %v2652, %v2654
    %v2656 = vrot.slane %v2638, %v2655
    %v2657 = vcombine.low %v2649, %v2656
    %v2659 = vunpack.c.l.s4 1966171168
    %v2660 = vunpack.c.0.s8 %v2659
    %v2661 = vlaneseq
    %v2662 = vshrl.u32 %v2661, 7
    %v2663 = vsub.s32 %v2660, %v2662
    %v2664 = vrot.slane %v2657, %v2663
    %v2666 = vpack.c.bf16 %v2664, %v2664
    %v2668 = vsel %vm201, %v2666, 0
    %2670 = vmatprep.subr.bf16.mxu0 0
    %2671 = vmatpush1.bf16.msra.mxu0 %v1158
    %2672 = vmatprep.subr.bf16.mxu0 0
    %2673 = vmatpush1.bf16.msra.mxu0 %v1159
    %2674 = vmatprep.subr.bf16.mxu0 0
    %2675 = vmatpush1.bf16.msra.mxu0 0
    %2676 = vmatprep.subr.bf16.mxu0 0
    %2677 = vmatpush1.bf16.msra.mxu0 0
    %2678 = vmatprep.subr.bf16.mxu0 0
    %2679 = vmatpush1.bf16.msra.mxu0 0
    %2680 = vmatprep.subr.bf16.mxu0 0
    %2681 = vmatpush1.bf16.msra.mxu0 0
    %2682 = vmatprep.subr.bf16.mxu0 0
    %2683 = vmatpush1.bf16.msra.mxu0 0
    %2684 = vmatprep.subr.bf16.mxu0 0
    %2685 = vmatpush1.bf16.msra.mxu0 0
    %2686 = vmatprep.subr.bf16.mxu0 0
    %2687 = vmatpush1.bf16.msra.mxu0 0
    %2688 = vmatprep.subr.bf16.mxu0 0
    %2689 = vmatpush1.bf16.msra.mxu0 0
    %2690 = vmatprep.subr.bf16.mxu0 0
    %2691 = vmatpush1.bf16.msra.mxu0 0
    %2692 = vmatprep.subr.bf16.mxu0 0
    %2693 = vmatpush1.bf16.msra.mxu0 0
    %2694 = vmatprep.subr.bf16.mxu0 0
    %2695 = vmatpush1.bf16.msra.mxu0 0
    %2696 = vmatprep.subr.bf16.mxu0 0
    %2697 = vmatpush1.bf16.msra.mxu0 0
    %2698 = vmatprep.subr.bf16.mxu0 0
    %2699 = vmatpush1.bf16.msra.mxu0 0
    %2700 = vmatprep.subr.bf16.mxu0 0
    %2701 = vmatpush1.bf16.msra.mxu0 0
    %2702 = vmatprep.mubr.bf16.mxu0 0
    %2703 = vmatmul.mubr.bf16.gmra.mrb[0].mxu0 %v2668
    %v2704 = vpop.f32.mrb[0].mxu0
    %v2705 = vadd.f32 0.0, %v2704
    %v2706 = vpop.f32.mrb[0].mxu0
    %v2707 = vpop.f32.mrb[0].mxu0
    %v2708 = vpop.f32.mrb[0].mxu0
    %2709 = vdwg.mxu0
    %2710 = vmatprep.subr.bf16.mxu0 0
    %2711 = vmatpush1.bf16.msra.mxu0 %v1213
    %2712 = vmatprep.subr.bf16.mxu0 0
    %2713 = vmatpush1.bf16.msra.mxu0 %v1214
    %2714 = vmatprep.subr.bf16.mxu0 0
    %2715 = vmatpush1.bf16.msra.mxu0 0
    %2716 = vmatprep.subr.bf16.mxu0 0
    %2717 = vmatpush1.bf16.msra.mxu0 0
    %2718 = vmatprep.subr.bf16.mxu0 0
    %2719 = vmatpush1.bf16.msra.mxu0 0
    %2720 = vmatprep.subr.bf16.mxu0 0
    %2721 = vmatpush1.bf16.msra.mxu0 0
    %2722 = vmatprep.subr.bf16.mxu0 0
    %2723 = vmatpush1.bf16.msra.mxu0 0
    %2724 = vmatprep.subr.bf16.mxu0 0
    %2725 = vmatpush1.bf16.msra.mxu0 0
    %2726 = vmatprep.subr.bf16.mxu0 0
    %2727 = vmatpush1.bf16.msra.mxu0 0
    %2728 = vmatprep.subr.bf16.mxu0 0
    %2729 = vmatpush1.bf16.msra.mxu0 0
    %2730 = vmatprep.subr.bf16.mxu0 0
    %2731 = vmatpush1.bf16.msra.mxu0 0
    %2732 = vmatprep.subr.bf16.mxu0 0
    %2733 = vmatpush1.bf16.msra.mxu0 0
    %2734 = vmatprep.subr.bf16.mxu0 0
    %2735 = vmatpush1.bf16.msra.mxu0 0
    %2736 = vmatprep.subr.bf16.mxu0 0
    %2737 = vmatpush1.bf16.msra.mxu0 0
    %2738 = vmatprep.subr.bf16.mxu0 0
    %2739 = vmatpush1.bf16.msra.mxu0 0
    %2740 = vmatprep.subr.bf16.mxu0 0
    %2741 = vmatpush1.bf16.msra.mxu0 0
    %2742 = vmatprep.mubr.bf16.mxu0 0
    %2743 = vmatmul.mubr.bf16.gmra.mrb[0].mxu0 %v2668
    %v2744 = vpop.f32.mrb[0].mxu0
    %v2745 = vadd.f32 0.0, %v2744
    %v2746 = vpop.f32.mrb[0].mxu0
    %v2747 = vpop.f32.mrb[0].mxu0
    %v2748 = vpop.f32.mrb[0].mxu0
    %2749 = vdwg.mxu0
    %2750 = vmatprep.subr.bf16.mxu0 0
    %2751 = vmatpush1.bf16.msra.mxu0 %v1271
    %2752 = vmatprep.subr.bf16.mxu0 0
    %2753 = vmatpush1.bf16.msra.mxu0 %v1272
    %2754 = vmatprep.subr.bf16.mxu0 0
    %2755 = vmatpush1.bf16.msra.mxu0 0
    %2756 = vmatprep.subr.bf16.mxu0 0
    %2757 = vmatpush1.bf16.msra.mxu0 0
    %2758 = vmatprep.subr.bf16.mxu0 0
    %2759 = vmatpush1.bf16.msra.mxu0 0
    %2760 = vmatprep.subr.bf16.mxu0 0
    %2761 = vmatpush1.bf16.msra.mxu0 0
    %2762 = vmatprep.subr.bf16.mxu0 0
    %2763 = vmatpush1.bf16.msra.mxu0 0
    %2764 = vmatprep.subr.bf16.mxu0 0
    %2765 = vmatpush1.bf16.msra.mxu0 0
    %2766 = vmatprep.subr.bf16.mxu0 0
    %2767 = vmatpush1.bf16.msra.mxu0 0
    %2768 = vmatprep.subr.bf16.mxu0 0
    %2769 = vmatpush1.bf16.msra.mxu0 0
    %2770 = vmatprep.subr.bf16.mxu0 0
    %2771 = vmatpush1.bf16.msra.mxu0 0
    %2772 = vmatprep.subr.bf16.mxu0 0
    %2773 = vmatpush1.bf16.msra.mxu0 0
    %2774 = vmatprep.subr.bf16.mxu0 0
    %2775 = vmatpush1.bf16.msra.mxu0 0
    %2776 = vmatprep.subr.bf16.mxu0 0
    %2777 = vmatpush1.bf16.msra.mxu0 0
    %2778 = vmatprep.subr.bf16.mxu0 0
    %2779 = vmatpush1.bf16.msra.mxu0 0
    %2780 = vmatprep.subr.bf16.mxu0 0
    %2781 = vmatpush1.bf16.msra.mxu0 0
    %2782 = vmatprep.mubr.bf16.mxu0 0
    %2783 = vmatmul.mubr.bf16.gmra.mrb[0].mxu0 %v2668
    %v2784 = vpop.f32.mrb[0].mxu0
    %v2785 = vadd.f32 %v1261, %v2784
    %v2786 = vpop.f32.mrb[0].mxu0
    %v2787 = vpop.f32.mrb[0].mxu0
    %v2788 = vpop.f32.mrb[0].mxu0
    %2789 = vdwg.mxu0
    %v2792 = vunpack.c.l.s4 1966171168
    %v2793 = vunpack.c.0.s8 %v2792
    %v2794 = vlaneseq
    %v2795 = vshrl.u32 %v2794, 7
    %v2796 = vsub.s32 %v2793, %v2795
    %v2797 = vrot.slane %v2705, %v2796
    %v2798 = vcombine.high %v2797, %v2797
    %v2800 = vunpack.c.l.s4 1966171168
    %v2801 = vunpack.c.0.s8 %v2800
    %v2802 = vlaneseq
    %v2803 = vshrl.u32 %v2802, 7
    %v2804 = vsub.s32 %v2801, %v2803
    %v2805 = vrot.slane %v2797, %v2804
    %v2807 = vunpack.c.l.s4 1966171168
    %v2808 = vunpack.c.0.s8 %v2807
    %v2809 = vlaneseq
    %v2810 = vshrl.u32 %v2809, 7
    %v2811 = vsub.s32 %v2808, %v2810
    %v2812 = vrot.slane %v2798, %v2811
    %v2813 = vcombine.high %v2805, %v2805
    %v2817 = vadd.f32 %v589, %v2805
    %v2818 = vadd.f32 %v613, %v2812
    %v2819 = vadd.f32 %v627, %v2813
    %v2820 = vxor.u32 %v2817, 2147483648
    %v2821 = vxor.u32 %v2818, 2147483648
    %v2822 = vxor.u32 %v2819, 2147483648
    %v2823 = vmul.f32 %v2820, 1.442695
    %v2824 = vpow.pop %v2823
    %v2825 = vmul.f32 %v2821, 1.442695
    %v2826 = vpow.pop %v2825
    %v2827 = vmul.f32 %v2822, 1.442695
    %v2828 = vpow.pop %v2827
    %v2829 = vadd.f32 %v2824, 1.0
    %v2830 = vadd.f32 %v2826, 1.0
    %v2831 = vadd.f32 %v2828, 1.0
    %v2832 = vrcp.pop %v2829
    %v2833 = vmul.f32 1.0, %v2832
    %v2834 = vrcp.pop %v2830
    %v2835 = vmul.f32 1.0, %v2834
    %v2836 = vrcp.pop %v2831
    %v2837 = vmul.f32 1.0, %v2836
    %v2840 = vunpack.c.l.s4 1966171168
    %v2841 = vunpack.c.0.s8 %v2840
    %v2842 = vlaneseq
    %v2843 = vshrl.u32 %v2842, 7
    %v2844 = vsub.s32 %v2841, %v2843
    %v2845 = vrot.slane %v2745, %v2844
    %v2846 = vcombine.high %v2845, %v2845
    %v2848 = vunpack.c.l.s4 1966171168
    %v2849 = vunpack.c.0.s8 %v2848
    %v2850 = vlaneseq
    %v2851 = vshrl.u32 %v2850, 7
    %v2852 = vsub.s32 %v2849, %v2851
    %v2853 = vrot.slane %v2845, %v2852
    %v2855 = vunpack.c.l.s4 1966171168
    %v2856 = vunpack.c.0.s8 %v2855
    %v2857 = vlaneseq
    %v2858 = vshrl.u32 %v2857, 7
    %v2859 = vsub.s32 %v2856, %v2858
    %v2860 = vrot.slane %v2846, %v2859
    %v2861 = vcombine.high %v2853, %v2853
    %v2865 = vadd.f32 %v826, %v2853
    %v2866 = vadd.f32 %v850, %v2860
    %v2867 = vadd.f32 %v864, %v2861
    %v2868 = vxor.u32 %v2865, 2147483648
    %v2869 = vxor.u32 %v2866, 2147483648
    %v2870 = vxor.u32 %v2867, 2147483648
    %v2871 = vmul.f32 %v2868, 1.442695
    %v2872 = vpow.pop %v2871
    %v2873 = vmul.f32 %v2869, 1.442695
    %v2874 = vpow.pop %v2873
    %v2875 = vmul.f32 %v2870, 1.442695
    %v2876 = vpow.pop %v2875
    %v2877 = vadd.f32 %v2872, 1.0
    %v2878 = vadd.f32 %v2874, 1.0
    %v2879 = vadd.f32 %v2876, 1.0
    %v2880 = vrcp.pop %v2877
    %v2881 = vmul.f32 1.0, %v2880
    %v2882 = vrcp.pop %v2878
    %v2883 = vmul.f32 1.0, %v2882
    %v2884 = vrcp.pop %v2879
    %v2885 = vmul.f32 1.0, %v2884
    %v2888 = vunpack.c.l.s4 1966171168
    %v2889 = vunpack.c.0.s8 %v2888
    %v2890 = vlaneseq
    %v2891 = vshrl.u32 %v2890, 7
    %v2892 = vsub.s32 %v2889, %v2891
    %v2893 = vrot.slane %v2785, %v2892
    %v2894 = vcombine.high %v2893, %v2893
    %v2896 = vunpack.c.l.s4 1966171168
    %v2897 = vunpack.c.0.s8 %v2896
    %v2898 = vlaneseq
    %v2899 = vshrl.u32 %v2898, 7
    %v2900 = vsub.s32 %v2897, %v2899
    %v2901 = vrot.slane %v2893, %v2900
    %v2903 = vunpack.c.l.s4 1966171168
    %v2904 = vunpack.c.0.s8 %v2903
    %v2905 = vlaneseq
    %v2906 = vshrl.u32 %v2905, 7
    %v2907 = vsub.s32 %v2904, %v2906
    %v2908 = vrot.slane %v2894, %v2907
    %v2909 = vcombine.high %v2901, %v2901
    %v2913 = vmul.f32 %v2833, %v2901
    %v2914 = vmul.f32 %v2835, %v2908
    %v2915 = vmul.f32 %v2837, %v2909
    %v2916 = vadd.f32 %v1063, %v2913
    %v2917 = vadd.f32 %v1087, %v2914
    %v2918 = vadd.f32 %v1101, %v2915
    %v2919 = vtanh.pop %v2916
    %v2920 = vtanh.pop %v2917
    %v2921 = vtanh.pop %v2918
    %v2922 = vsub.f32 1.0, %v2881
    %v2923 = vsub.f32 1.0, %v2883
    %v2924 = vsub.f32 1.0, %v2885
    %v2925 = vmul.f32 %v2922, %v2919
    %v2926 = vmul.f32 %v2923, %v2920
    %v2927 = vmul.f32 %v2924, %v2921
    %v2928 = vmul.f32 %v2881, %v2636
    %v2929 = vmul.f32 %v2883, %v2637
    %v2930 = vmul.f32 %v2885, %v2638
    %v2931 = vadd.f32 %v2925, %v2928
    %v2932 = vadd.f32 %v2926, %v2929
    %v2933 = vadd.f32 %v2927, %v2930
    %v2937 = vcombine.low %v2931, %v2932
    %v2939 = vunpack.c.l.s4 1966171168
    %v2940 = vunpack.c.0.s8 %v2939
    %v2941 = vlaneseq
    %v2942 = vshrl.u32 %v2941, 7
    %v2943 = vsub.s32 %v2940, %v2942
    %v2944 = vrot.slane %v2937, %v2943
    %v2946 = vunpack.c.l.s4 1966171168
    %v2947 = vunpack.c.0.s8 %v2946
    %v2948 = vlaneseq
    %v2949 = vshrl.u32 %v2948, 7
    %v2950 = vsub.s32 %v2947, %v2949
    %v2951 = vrot.slane %v2933, %v2950
    %v2952 = vcombine.low %v2944, %v2951
    %v2954 = vunpack.c.l.s4 1966171168
    %v2955 = vunpack.c.0.s8 %v2954
    %v2956 = vlaneseq
    %v2957 = vshrl.u32 %v2956, 7
    %v2958 = vsub.s32 %v2955, %v2957
    %v2959 = vrot.slane %v2952, %v2958
    %v2961 = vpack.c.bf16 %v2959, %v2959
    %v2963 = vsel %vm201, %v2961, 0
    %2965 = vmatprep.subr.bf16.mxu0 0
    %2966 = vmatpush1.bf16.msra.mxu0 %v1158
    %2967 = vmatprep.subr.bf16.mxu0 0
    %2968 = vmatpush1.bf16.msra.mxu0 %v1159
    %2969 = vmatprep.subr.bf16.mxu0 0
    %2970 = vmatpush1.bf16.msra.mxu0 0
    %2971 = vmatprep.subr.bf16.mxu0 0
    %2972 = vmatpush1.bf16.msra.mxu0 0
    %2973 = vmatprep.subr.bf16.mxu0 0
    %2974 = vmatpush1.bf16.msra.mxu0 0
    %2975 = vmatprep.subr.bf16.mxu0 0
    %2976 = vmatpush1.bf16.msra.mxu0 0
    %2977 = vmatprep.subr.bf16.mxu0 0
    %2978 = vmatpush1.bf16.msra.mxu0 0
    %2979 = vmatprep.subr.bf16.mxu0 0
    %2980 = vmatpush1.bf16.msra.mxu0 0
    %2981 = vmatprep.subr.bf16.mxu0 0
    %2982 = vmatpush1.bf16.msra.mxu0 0
    %2983 = vmatprep.subr.bf16.mxu0 0
    %2984 = vmatpush1.bf16.msra.mxu0 0
    %2985 = vmatprep.subr.bf16.mxu0 0
    %2986 = vmatpush1.bf16.msra.mxu0 0
    %2987 = vmatprep.subr.bf16.mxu0 0
    %2988 = vmatpush1.bf16.msra.mxu0 0
    %2989 = vmatprep.subr.bf16.mxu0 0
    %2990 = vmatpush1.bf16.msra.mxu0 0
    %2991 = vmatprep.subr.bf16.mxu0 0
    %2992 = vmatpush1.bf16.msra.mxu0 0
    %2993 = vmatprep.subr.bf16.mxu0 0
    %2994 = vmatpush1.bf16.msra.mxu0 0
    %2995 = vmatprep.subr.bf16.mxu0 0
    %2996 = vmatpush1.bf16.msra.mxu0 0
    %2997 = vmatprep.mubr.bf16.mxu0 0
    %2998 = vmatmul.mubr.bf16.gmra.mrb[0].mxu0 %v2963
    %v2999 = vpop.f32.mrb[0].mxu0
    %v3000 = vadd.f32 0.0, %v2999
    %v3001 = vpop.f32.mrb[0].mxu0
    %v3002 = vpop.f32.mrb[0].mxu0
    %v3003 = vpop.f32.mrb[0].mxu0
    %3004 = vdwg.mxu0
    %3005 = vmatprep.subr.bf16.mxu0 0
    %3006 = vmatpush1.bf16.msra.mxu0 %v1213
    %3007 = vmatprep.subr.bf16.mxu0 0
    %3008 = vmatpush1.bf16.msra.mxu0 %v1214
    %3009 = vmatprep.subr.bf16.mxu0 0
    %3010 = vmatpush1.bf16.msra.mxu0 0
    %3011 = vmatprep.subr.bf16.mxu0 0
    %3012 = vmatpush1.bf16.msra.mxu0 0
    %3013 = vmatprep.subr.bf16.mxu0 0
    %3014 = vmatpush1.bf16.msra.mxu0 0
    %3015 = vmatprep.subr.bf16.mxu0 0
    %3016 = vmatpush1.bf16.msra.mxu0 0
    %3017 = vmatprep.subr.bf16.mxu0 0
    %3018 = vmatpush1.bf16.msra.mxu0 0
    %3019 = vmatprep.subr.bf16.mxu0 0
    %3020 = vmatpush1.bf16.msra.mxu0 0
    %3021 = vmatprep.subr.bf16.mxu0 0
    %3022 = vmatpush1.bf16.msra.mxu0 0
    %3023 = vmatprep.subr.bf16.mxu0 0
    %3024 = vmatpush1.bf16.msra.mxu0 0
    %3025 = vmatprep.subr.bf16.mxu0 0
    %3026 = vmatpush1.bf16.msra.mxu0 0
    %3027 = vmatprep.subr.bf16.mxu0 0
    %3028 = vmatpush1.bf16.msra.mxu0 0
    %3029 = vmatprep.subr.bf16.mxu0 0
    %3030 = vmatpush1.bf16.msra.mxu0 0
    %3031 = vmatprep.subr.bf16.mxu0 0
    %3032 = vmatpush1.bf16.msra.mxu0 0
    %3033 = vmatprep.subr.bf16.mxu0 0
    %3034 = vmatpush1.bf16.msra.mxu0 0
    %3035 = vmatprep.subr.bf16.mxu0 0
    %3036 = vmatpush1.bf16.msra.mxu0 0
    %3037 = vmatprep.mubr.bf16.mxu0 0
    %3038 = vmatmul.mubr.bf16.gmra.mrb[0].mxu0 %v2963
    %v3039 = vpop.f32.mrb[0].mxu0
    %v3040 = vadd.f32 0.0, %v3039
    %v3041 = vpop.f32.mrb[0].mxu0
    %v3042 = vpop.f32.mrb[0].mxu0
    %v3043 = vpop.f32.mrb[0].mxu0
    %3044 = vdwg.mxu0
    %3045 = vmatprep.subr.bf16.mxu0 0
    %3046 = vmatpush1.bf16.msra.mxu0 %v1271
    %3047 = vmatprep.subr.bf16.mxu0 0
    %3048 = vmatpush1.bf16.msra.mxu0 %v1272
    %3049 = vmatprep.subr.bf16.mxu0 0
    %3050 = vmatpush1.bf16.msra.mxu0 0
    %3051 = vmatprep.subr.bf16.mxu0 0
    %3052 = vmatpush1.bf16.msra.mxu0 0
    %3053 = vmatprep.subr.bf16.mxu0 0
    %3054 = vmatpush1.bf16.msra.mxu0 0
    %3055 = vmatprep.subr.bf16.mxu0 0
    %3056 = vmatpush1.bf16.msra.mxu0 0
    %3057 = vmatprep.subr.bf16.mxu0 0
    %3058 = vmatpush1.bf16.msra.mxu0 0
    %3059 = vmatprep.subr.bf16.mxu0 0
    %3060 = vmatpush1.bf16.msra.mxu0 0
    %3061 = vmatprep.subr.bf16.mxu0 0
    %3062 = vmatpush1.bf16.msra.mxu0 0
    %3063 = vmatprep.subr.bf16.mxu0 0
    %3064 = vmatpush1.bf16.msra.mxu0 0
    %3065 = vmatprep.subr.bf16.mxu0 0
    %3066 = vmatpush1.bf16.msra.mxu0 0
    %3067 = vmatprep.subr.bf16.mxu0 0
    %3068 = vmatpush1.bf16.msra.mxu0 0
    %3069 = vmatprep.subr.bf16.mxu0 0
    %3070 = vmatpush1.bf16.msra.mxu0 0
    %3071 = vmatprep.subr.bf16.mxu0 0
    %3072 = vmatpush1.bf16.msra.mxu0 0
    %3073 = vmatprep.subr.bf16.mxu0 0
    %3074 = vmatpush1.bf16.msra.mxu0 0
    %3075 = vmatprep.subr.bf16.mxu0 0
    %3076 = vmatpush1.bf16.msra.mxu0 0
    %3077 = vmatprep.mubr.bf16.mxu0 0
    %3078 = vmatmul.mubr.bf16.gmra.mrb[0].mxu0 %v2963
    %v3079 = vpop.f32.mrb[0].mxu0
    %v3080 = vadd.f32 %v1261, %v3079
    %v3081 = vpop.f32.mrb[0].mxu0
    %v3082 = vpop.f32.mrb[0].mxu0
    %v3083 = vpop.f32.mrb[0].mxu0
    %3084 = vdwg.mxu0
    %v3087 = vunpack.c.l.s4 1966171168
    %v3088 = vunpack.c.0.s8 %v3087
    %v3089 = vlaneseq
    %v3090 = vshrl.u32 %v3089, 7
    %v3091 = vsub.s32 %v3088, %v3090
    %v3092 = vrot.slane %v3000, %v3091
    %v3093 = vcombine.high %v3092, %v3092
    %v3095 = vunpack.c.l.s4 1966171168
    %v3096 = vunpack.c.0.s8 %v3095
    %v3097 = vlaneseq
    %v3098 = vshrl.u32 %v3097, 7
    %v3099 = vsub.s32 %v3096, %v3098
    %v3100 = vrot.slane %v3092, %v3099
    %v3102 = vunpack.c.l.s4 1966171168
    %v3103 = vunpack.c.0.s8 %v3102
    %v3104 = vlaneseq
    %v3105 = vshrl.u32 %v3104, 7
    %v3106 = vsub.s32 %v3103, %v3105
    %v3107 = vrot.slane %v3093, %v3106
    %v3108 = vcombine.high %v3100, %v3100
    %v3112 = vadd.f32 %v635, %v3100
    %v3113 = vadd.f32 %v637, %v3107
    %v3114 = vadd.f32 %v620, %v3108
    %v3115 = vxor.u32 %v3112, 2147483648
    %v3116 = vxor.u32 %v3113, 2147483648
    %v3117 = vxor.u32 %v3114, 2147483648
    %v3118 = vmul.f32 %v3115, 1.442695
    %v3119 = vpow.pop %v3118
    %v3120 = vmul.f32 %v3116, 1.442695
    %v3121 = vpow.pop %v3120
    %v3122 = vmul.f32 %v3117, 1.442695
    %v3123 = vpow.pop %v3122
    %v3124 = vadd.f32 %v3119, 1.0
    %v3125 = vadd.f32 %v3121, 1.0
    %v3126 = vadd.f32 %v3123, 1.0
    %v3127 = vrcp.pop %v3124
    %v3128 = vmul.f32 1.0, %v3127
    %v3129 = vrcp.pop %v3125
    %v3130 = vmul.f32 1.0, %v3129
    %v3131 = vrcp.pop %v3126
    %v3132 = vmul.f32 1.0, %v3131
    %v3135 = vunpack.c.l.s4 1966171168
    %v3136 = vunpack.c.0.s8 %v3135
    %v3137 = vlaneseq
    %v3138 = vshrl.u32 %v3137, 7
    %v3139 = vsub.s32 %v3136, %v3138
    %v3140 = vrot.slane %v3040, %v3139
    %v3141 = vcombine.high %v3140, %v3140
    %v3143 = vunpack.c.l.s4 1966171168
    %v3144 = vunpack.c.0.s8 %v3143
    %v3145 = vlaneseq
    %v3146 = vshrl.u32 %v3145, 7
    %v3147 = vsub.s32 %v3144, %v3146
    %v3148 = vrot.slane %v3140, %v3147
    %v3150 = vunpack.c.l.s4 1966171168
    %v3151 = vunpack.c.0.s8 %v3150
    %v3152 = vlaneseq
    %v3153 = vshrl.u32 %v3152, 7
    %v3154 = vsub.s32 %v3151, %v3153
    %v3155 = vrot.slane %v3141, %v3154
    %v3156 = vcombine.high %v3148, %v3148
    %v3160 = vadd.f32 %v872, %v3148
    %v3161 = vadd.f32 %v874, %v3155
    %v3162 = vadd.f32 %v857, %v3156
    %v3163 = vxor.u32 %v3160, 2147483648
    %v3164 = vxor.u32 %v3161, 2147483648
    %v3165 = vxor.u32 %v3162, 2147483648
    %v3166 = vmul.f32 %v3163, 1.442695
    %v3167 = vpow.pop %v3166
    %v3168 = vmul.f32 %v3164, 1.442695
    %v3169 = vpow.pop %v3168
    %v3170 = vmul.f32 %v3165, 1.442695
    %v3171 = vpow.pop %v3170
    %v3172 = vadd.f32 %v3167, 1.0
    %v3173 = vadd.f32 %v3169, 1.0
    %v3174 = vadd.f32 %v3171, 1.0
    %v3175 = vrcp.pop %v3172
    %v3176 = vmul.f32 1.0, %v3175
    %v3177 = vrcp.pop %v3173
    %v3178 = vmul.f32 1.0, %v3177
    %v3179 = vrcp.pop %v3174
    %v3180 = vmul.f32 1.0, %v3179
    %v3183 = vunpack.c.l.s4 1966171168
    %v3184 = vunpack.c.0.s8 %v3183
    %v3185 = vlaneseq
    %v3186 = vshrl.u32 %v3185, 7
    %v3187 = vsub.s32 %v3184, %v3186
    %v3188 = vrot.slane %v3080, %v3187
    %v3189 = vcombine.high %v3188, %v3188
    %v3191 = vunpack.c.l.s4 1966171168
    %v3192 = vunpack.c.0.s8 %v3191
    %v3193 = vlaneseq
    %v3194 = vshrl.u32 %v3193, 7
    %v3195 = vsub.s32 %v3192, %v3194
    %v3196 = vrot.slane %v3188, %v3195
    %v3198 = vunpack.c.l.s4 1966171168
    %v3199 = vunpack.c.0.s8 %v3198
    %v3200 = vlaneseq
    %v3201 = vshrl.u32 %v3200, 7
    %v3202 = vsub.s32 %v3199, %v3201
    %v3203 = vrot.slane %v3189, %v3202
    %v3204 = vcombine.high %v3196, %v3196
    %v3208 = vmul.f32 %v3128, %v3196
    %v3209 = vmul.f32 %v3130, %v3203
    %v3210 = vmul.f32 %v3132, %v3204
    %v3211 = vadd.f32 %v1109, %v3208
    %v3212 = vadd.f32 %v1111, %v3209
    %v3213 = vadd.f32 %v1094, %v3210
    %v3214 = vtanh.pop %v3211
    %v3215 = vtanh.pop %v3212
    %v3216 = vtanh.pop %v3213
    %v3217 = vsub.f32 1.0, %v3176
    %v3218 = vsub.f32 1.0, %v3178
    %v3219 = vsub.f32 1.0, %v3180
    %v3220 = vmul.f32 %v3217, %v3214
    %v3221 = vmul.f32 %v3218, %v3215
    %v3222 = vmul.f32 %v3219, %v3216
    %v3223 = vmul.f32 %v3176, %v2931
    %v3224 = vmul.f32 %v3178, %v2932
    %v3225 = vmul.f32 %v3180, %v2933
    %v3226 = vadd.f32 %v3220, %v3223
    %v3227 = vadd.f32 %v3221, %v3224
    %v3228 = vadd.f32 %v3222, %v3225
    %v3232 = vcombine.low %v3226, %v3227
    %v3234 = vunpack.c.l.s4 1966171168
    %v3235 = vunpack.c.0.s8 %v3234
    %v3236 = vlaneseq
    %v3237 = vshrl.u32 %v3236, 7
    %v3238 = vsub.s32 %v3235, %v3237
    %v3239 = vrot.slane %v3232, %v3238
    %v3241 = vunpack.c.l.s4 1966171168
    %v3242 = vunpack.c.0.s8 %v3241
    %v3243 = vlaneseq
    %v3244 = vshrl.u32 %v3243, 7
    %v3245 = vsub.s32 %v3242, %v3244
    %v3246 = vrot.slane %v3228, %v3245
    %v3247 = vcombine.low %v3239, %v3246
    %v3249 = vunpack.c.l.s4 1966171168
    %v3250 = vunpack.c.0.s8 %v3249
    %v3251 = vlaneseq
    %v3252 = vshrl.u32 %v3251, 7
    %v3253 = vsub.s32 %v3250, %v3252
    %v3254 = vrot.slane %v3247, %v3253
    %v3256 = vpack.c.bf16 %v3254, %v3254
    %v3258 = vsel %vm201, %v3256, 0
    %3260 = vmatprep.subr.bf16.mxu0 0
    %3261 = vmatpush1.bf16.msra.mxu0 %v1158
    %3262 = vmatprep.subr.bf16.mxu0 0
    %3263 = vmatpush1.bf16.msra.mxu0 %v1159
    %3264 = vmatprep.subr.bf16.mxu0 0
    %3265 = vmatpush1.bf16.msra.mxu0 0
    %3266 = vmatprep.subr.bf16.mxu0 0
    %3267 = vmatpush1.bf16.msra.mxu0 0
    %3268 = vmatprep.subr.bf16.mxu0 0
    %3269 = vmatpush1.bf16.msra.mxu0 0
    %3270 = vmatprep.subr.bf16.mxu0 0
    %3271 = vmatpush1.bf16.msra.mxu0 0
    %3272 = vmatprep.subr.bf16.mxu0 0
    %3273 = vmatpush1.bf16.msra.mxu0 0
    %3274 = vmatprep.subr.bf16.mxu0 0
    %3275 = vmatpush1.bf16.msra.mxu0 0
    %3276 = vmatprep.subr.bf16.mxu0 0
    %3277 = vmatpush1.bf16.msra.mxu0 0
    %3278 = vmatprep.subr.bf16.mxu0 0
    %3279 = vmatpush1.bf16.msra.mxu0 0
    %3280 = vmatprep.subr.bf16.mxu0 0
    %3281 = vmatpush1.bf16.msra.mxu0 0
    %3282 = vmatprep.subr.bf16.mxu0 0
    %3283 = vmatpush1.bf16.msra.mxu0 0
    %3284 = vmatprep.subr.bf16.mxu0 0
    %3285 = vmatpush1.bf16.msra.mxu0 0
    %3286 = vmatprep.subr.bf16.mxu0 0
    %3287 = vmatpush1.bf16.msra.mxu0 0
    %3288 = vmatprep.subr.bf16.mxu0 0
    %3289 = vmatpush1.bf16.msra.mxu0 0
    %3290 = vmatprep.subr.bf16.mxu0 0
    %3291 = vmatpush1.bf16.msra.mxu0 0
    %3292 = vmatprep.mubr.bf16.mxu0 0
    %3293 = vmatmul.mubr.bf16.gmra.mrb[0].mxu0 %v3258
    %v3294 = vpop.f32.mrb[0].mxu0
    %v3295 = vadd.f32 0.0, %v3294
    %v3296 = vpop.f32.mrb[0].mxu0
    %v3297 = vpop.f32.mrb[0].mxu0
    %v3298 = vpop.f32.mrb[0].mxu0
    %3299 = vdwg.mxu0
    %3300 = vmatprep.subr.bf16.mxu0 0
    %3301 = vmatpush1.bf16.msra.mxu0 %v1213
    %3302 = vmatprep.subr.bf16.mxu0 0
    %3303 = vmatpush1.bf16.msra.mxu0 %v1214
    %3304 = vmatprep.subr.bf16.mxu0 0
    %3305 = vmatpush1.bf16.msra.mxu0 0
    %3306 = vmatprep.subr.bf16.mxu0 0
    %3307 = vmatpush1.bf16.msra.mxu0 0
    %3308 = vmatprep.subr.bf16.mxu0 0
    %3309 = vmatpush1.bf16.msra.mxu0 0
    %3310 = vmatprep.subr.bf16.mxu0 0
    %3311 = vmatpush1.bf16.msra.mxu0 0
    %3312 = vmatprep.subr.bf16.mxu0 0
    %3313 = vmatpush1.bf16.msra.mxu0 0
    %3314 = vmatprep.subr.bf16.mxu0 0
    %3315 = vmatpush1.bf16.msra.mxu0 0
    %3316 = vmatprep.subr.bf16.mxu0 0
    %3317 = vmatpush1.bf16.msra.mxu0 0
    %3318 = vmatprep.subr.bf16.mxu0 0
    %3319 = vmatpush1.bf16.msra.mxu0 0
    %3320 = vmatprep.subr.bf16.mxu0 0
    %3321 = vmatpush1.bf16.msra.mxu0 0
    %3322 = vmatprep.subr.bf16.mxu0 0
    %3323 = vmatpush1.bf16.msra.mxu0 0
    %3324 = vmatprep.subr.bf16.mxu0 0
    %3325 = vmatpush1.bf16.msra.mxu0 0
    %3326 = vmatprep.subr.bf16.mxu0 0
    %3327 = vmatpush1.bf16.msra.mxu0 0
    %3328 = vmatprep.subr.bf16.mxu0 0
    %3329 = vmatpush1.bf16.msra.mxu0 0
    %3330 = vmatprep.subr.bf16.mxu0 0
    %3331 = vmatpush1.bf16.msra.mxu0 0
    %3332 = vmatprep.mubr.bf16.mxu0 0
    %3333 = vmatmul.mubr.bf16.gmra.mrb[0].mxu0 %v3258
    %v3334 = vpop.f32.mrb[0].mxu0
    %v3335 = vadd.f32 0.0, %v3334
    %v3336 = vpop.f32.mrb[0].mxu0
    %v3337 = vpop.f32.mrb[0].mxu0
    %v3338 = vpop.f32.mrb[0].mxu0
    %3339 = vdwg.mxu0
    %3340 = vmatprep.subr.bf16.mxu0 0
    %3341 = vmatpush1.bf16.msra.mxu0 %v1271
    %3342 = vmatprep.subr.bf16.mxu0 0
    %3343 = vmatpush1.bf16.msra.mxu0 %v1272
    %3344 = vmatprep.subr.bf16.mxu0 0
    %3345 = vmatpush1.bf16.msra.mxu0 0
    %3346 = vmatprep.subr.bf16.mxu0 0
    %3347 = vmatpush1.bf16.msra.mxu0 0
    %3348 = vmatprep.subr.bf16.mxu0 0
    %3349 = vmatpush1.bf16.msra.mxu0 0
    %3350 = vmatprep.subr.bf16.mxu0 0
    %3351 = vmatpush1.bf16.msra.mxu0 0
    %3352 = vmatprep.subr.bf16.mxu0 0
    %3353 = vmatpush1.bf16.msra.mxu0 0
    %3354 = vmatprep.subr.bf16.mxu0 0
    %3355 = vmatpush1.bf16.msra.mxu0 0
    %3356 = vmatprep.subr.bf16.mxu0 0
    %3357 = vmatpush1.bf16.msra.mxu0 0
    %3358 = vmatprep.subr.bf16.mxu0 0
    %3359 = vmatpush1.bf16.msra.mxu0 0
    %3360 = vmatprep.subr.bf16.mxu0 0
    %3361 = vmatpush1.bf16.msra.mxu0 0
    %3362 = vmatprep.subr.bf16.mxu0 0
    %3363 = vmatpush1.bf16.msra.mxu0 0
    %3364 = vmatprep.subr.bf16.mxu0 0
    %3365 = vmatpush1.bf16.msra.mxu0 0
    %3366 = vmatprep.subr.bf16.mxu0 0
    %3367 = vmatpush1.bf16.msra.mxu0 0
    %3368 = vmatprep.subr.bf16.mxu0 0
    %3369 = vmatpush1.bf16.msra.mxu0 0
    %3370 = vmatprep.subr.bf16.mxu0 0
    %3371 = vmatpush1.bf16.msra.mxu0 0
    %3372 = vmatprep.mubr.bf16.mxu0 0
    %3373 = vmatmul.mubr.bf16.gmra.mrb[0].mxu0 %v3258
    %v3374 = vpop.f32.mrb[0].mxu0
    %v3375 = vadd.f32 %v1261, %v3374
    %v3376 = vpop.f32.mrb[0].mxu0
    %v3377 = vpop.f32.mrb[0].mxu0
    %v3378 = vpop.f32.mrb[0].mxu0
    %3379 = vdwg.mxu0
    %v3382 = vunpack.c.l.s4 1966171168
    %v3383 = vunpack.c.0.s8 %v3382
    %v3384 = vlaneseq
    %v3385 = vshrl.u32 %v3384, 7
    %v3386 = vsub.s32 %v3383, %v3385
    %v3387 = vrot.slane %v3295, %v3386
    %v3388 = vcombine.high %v3387, %v3387
    %v3390 = vunpack.c.l.s4 1966171168
    %v3391 = vunpack.c.0.s8 %v3390
    %v3392 = vlaneseq
    %v3393 = vshrl.u32 %v3392, 7
    %v3394 = vsub.s32 %v3391, %v3393
    %v3395 = vrot.slane %v3387, %v3394
    %v3397 = vunpack.c.l.s4 1966171168
    %v3398 = vunpack.c.0.s8 %v3397
    %v3399 = vlaneseq
    %v3400 = vshrl.u32 %v3399, 7
    %v3401 = vsub.s32 %v3398, %v3400
    %v3402 = vrot.slane %v3388, %v3401
    %v3403 = vcombine.high %v3395, %v3395
    %v3407 = vadd.f32 %v634, %v3395
    %v3408 = vadd.f32 %v636, %v3402
    %v3409 = vadd.f32 %v638, %v3403
    %v3410 = vxor.u32 %v3407, 2147483648
    %v3411 = vxor.u32 %v3408, 2147483648
    %v3412 = vxor.u32 %v3409, 2147483648
    %v3413 = vmul.f32 %v3410, 1.442695
    %v3414 = vpow.pop %v3413
    %v3415 = vmul.f32 %v3411, 1.442695
    %v3416 = vpow.pop %v3415
    %v3417 = vmul.f32 %v3412, 1.442695
    %v3418 = vpow.pop %v3417
    %v3419 = vadd.f32 %v3414, 1.0
    %v3420 = vadd.f32 %v3416, 1.0
    %v3421 = vadd.f32 %v3418, 1.0
    %v3422 = vrcp.pop %v3419
    %v3423 = vmul.f32 1.0, %v3422
    %v3424 = vrcp.pop %v3420
    %v3425 = vmul.f32 1.0, %v3424
    %v3426 = vrcp.pop %v3421
    %v3427 = vmul.f32 1.0, %v3426
    %v3430 = vunpack.c.l.s4 1966171168
    %v3431 = vunpack.c.0.s8 %v3430
    %v3432 = vlaneseq
    %v3433 = vshrl.u32 %v3432, 7
    %v3434 = vsub.s32 %v3431, %v3433
    %v3435 = vrot.slane %v3335, %v3434
    %v3436 = vcombine.high %v3435, %v3435
    %v3438 = vunpack.c.l.s4 1966171168
    %v3439 = vunpack.c.0.s8 %v3438
    %v3440 = vlaneseq
    %v3441 = vshrl.u32 %v3440, 7
    %v3442 = vsub.s32 %v3439, %v3441
    %v3443 = vrot.slane %v3435, %v3442
    %v3445 = vunpack.c.l.s4 1966171168
    %v3446 = vunpack.c.0.s8 %v3445
    %v3447 = vlaneseq
    %v3448 = vshrl.u32 %v3447, 7
    %v3449 = vsub.s32 %v3446, %v3448
    %v3450 = vrot.slane %v3436, %v3449
    %v3451 = vcombine.high %v3443, %v3443
    %v3455 = vadd.f32 %v871, %v3443
    %v3456 = vadd.f32 %v873, %v3450
    %v3457 = vadd.f32 %v875, %v3451
    %v3458 = vxor.u32 %v3455, 2147483648
    %v3459 = vxor.u32 %v3456, 2147483648
    %v3460 = vxor.u32 %v3457, 2147483648
    %v3461 = vmul.f32 %v3458, 1.442695
    %v3462 = vpow.pop %v3461
    %v3463 = vmul.f32 %v3459, 1.442695
    %v3464 = vpow.pop %v3463
    %v3465 = vmul.f32 %v3460, 1.442695
    %v3466 = vpow.pop %v3465
    %v3467 = vadd.f32 %v3462, 1.0
    %v3468 = vadd.f32 %v3464, 1.0
    %v3469 = vadd.f32 %v3466, 1.0
    %v3470 = vrcp.pop %v3467
    %v3471 = vmul.f32 1.0, %v3470
    %v3472 = vrcp.pop %v3468
    %v3473 = vmul.f32 1.0, %v3472
    %v3474 = vrcp.pop %v3469
    %v3475 = vmul.f32 1.0, %v3474
    %v3478 = vunpack.c.l.s4 1966171168
    %v3479 = vunpack.c.0.s8 %v3478
    %v3480 = vlaneseq
    %v3481 = vshrl.u32 %v3480, 7
    %v3482 = vsub.s32 %v3479, %v3481
    %v3483 = vrot.slane %v3375, %v3482
    %v3484 = vcombine.high %v3483, %v3483
    %v3486 = vunpack.c.l.s4 1966171168
    %v3487 = vunpack.c.0.s8 %v3486
    %v3488 = vlaneseq
    %v3489 = vshrl.u32 %v3488, 7
    %v3490 = vsub.s32 %v3487, %v3489
    %v3491 = vrot.slane %v3483, %v3490
    %v3493 = vunpack.c.l.s4 1966171168
    %v3494 = vunpack.c.0.s8 %v3493
    %v3495 = vlaneseq
    %v3496 = vshrl.u32 %v3495, 7
    %v3497 = vsub.s32 %v3494, %v3496
    %v3498 = vrot.slane %v3484, %v3497
    %v3499 = vcombine.high %v3491, %v3491
    %v3503 = vmul.f32 %v3423, %v3491
    %v3504 = vmul.f32 %v3425, %v3498
    %v3505 = vmul.f32 %v3427, %v3499
    %v3506 = vadd.f32 %v1108, %v3503
    %v3507 = vadd.f32 %v1110, %v3504
    %v3508 = vadd.f32 %v1112, %v3505
    %v3509 = vtanh.pop %v3506
    %v3510 = vtanh.pop %v3507
    %v3511 = vtanh.pop %v3508
    %v3512 = vsub.f32 1.0, %v3471
    %v3513 = vsub.f32 1.0, %v3473
    %v3514 = vsub.f32 1.0, %v3475
    %v3515 = vmul.f32 %v3512, %v3509
    %v3516 = vmul.f32 %v3513, %v3510
    %v3517 = vmul.f32 %v3514, %v3511
    %v3518 = vmul.f32 %v3471, %v3226
    %v3519 = vmul.f32 %v3473, %v3227
    %v3520 = vmul.f32 %v3475, %v3228
    %v3521 = vadd.f32 %v3515, %v3518
    %v3522 = vadd.f32 %v3516, %v3519
    %v3523 = vadd.f32 %v3517, %v3520
    %v3524 = vmul.f32 %v1456, %v1456
    %v3525 = vmul.f32 %v1457, %v1457
    %v3526 = vmul.f32 %v1458, %v1458
    %v3527 = vmul.f32 %v1751, %v1751
    %v3528 = vmul.f32 %v1752, %v1752
    %v3529 = vmul.f32 %v1753, %v1753
    %v3530 = vmul.f32 %v2046, %v2046
    %v3531 = vmul.f32 %v2047, %v2047
    %v3532 = vmul.f32 %v2048, %v2048
    %v3533 = vmul.f32 %v2341, %v2341
    %v3534 = vmul.f32 %v2342, %v2342
    %v3535 = vmul.f32 %v2343, %v2343
    %v3536 = vmul.f32 %v2636, %v2636
    %v3537 = vmul.f32 %v2637, %v2637
    %v3538 = vmul.f32 %v2638, %v2638
    %v3539 = vmul.f32 %v2931, %v2931
    %v3540 = vmul.f32 %v2932, %v2932
    %v3541 = vmul.f32 %v2933, %v2933
    %v3542 = vmul.f32 %v3226, %v3226
    %v3543 = vmul.f32 %v3227, %v3227
    %v3544 = vmul.f32 %v3228, %v3228
    %v3545 = vmul.f32 %v3521, %v3521
    %v3546 = vmul.f32 %v3522, %v3522
    %v3547 = vmul.f32 %v3523, %v3523
    %v3572 = vcombine.low %v3524, %v3525
    %v3574 = vunpack.c.l.s4 1966171168
    %v3575 = vunpack.c.0.s8 %v3574
    %v3576 = vlaneseq
    %v3577 = vshrl.u32 %v3576, 7
    %v3578 = vsub.s32 %v3575, %v3577
    %v3579 = vrot.slane %v3572, %v3578
    %v3581 = vunpack.c.l.s4 1966171168
    %v3582 = vunpack.c.0.s8 %v3581
    %v3583 = vlaneseq
    %v3584 = vshrl.u32 %v3583, 7
    %v3585 = vsub.s32 %v3582, %v3584
    %v3586 = vrot.slane %v3526, %v3585
    %v3587 = vcombine.low %v3579, %v3586
    %v3589 = vunpack.c.l.s4 1966171168
    %v3590 = vunpack.c.0.s8 %v3589
    %v3591 = vlaneseq
    %v3592 = vshrl.u32 %v3591, 7
    %v3593 = vsub.s32 %v3590, %v3592
    %v3594 = vrot.slane %v3587, %v3593
    %v3595 = vcombine.low %v3527, %v3528
    %v3597 = vunpack.c.l.s4 1966171168
    %v3598 = vunpack.c.0.s8 %v3597
    %v3599 = vlaneseq
    %v3600 = vshrl.u32 %v3599, 7
    %v3601 = vsub.s32 %v3598, %v3600
    %v3602 = vrot.slane %v3595, %v3601
    %v3604 = vunpack.c.l.s4 1966171168
    %v3605 = vunpack.c.0.s8 %v3604
    %v3606 = vlaneseq
    %v3607 = vshrl.u32 %v3606, 7
    %v3608 = vsub.s32 %v3605, %v3607
    %v3609 = vrot.slane %v3529, %v3608
    %v3610 = vcombine.low %v3602, %v3609
    %v3612 = vunpack.c.l.s4 1966171168
    %v3613 = vunpack.c.0.s8 %v3612
    %v3614 = vlaneseq
    %v3615 = vshrl.u32 %v3614, 7
    %v3616 = vsub.s32 %v3613, %v3615
    %v3617 = vrot.slane %v3610, %v3616
    %v3618 = vcombine.low %v3530, %v3531
    %v3620 = vunpack.c.l.s4 1966171168
    %v3621 = vunpack.c.0.s8 %v3620
    %v3622 = vlaneseq
    %v3623 = vshrl.u32 %v3622, 7
    %v3624 = vsub.s32 %v3621, %v3623
    %v3625 = vrot.slane %v3618, %v3624
    %v3627 = vunpack.c.l.s4 1966171168
    %v3628 = vunpack.c.0.s8 %v3627
    %v3629 = vlaneseq
    %v3630 = vshrl.u32 %v3629, 7
    %v3631 = vsub.s32 %v3628, %v3630
    %v3632 = vrot.slane %v3532, %v3631
    %v3633 = vcombine.low %v3625, %v3632
    %v3635 = vunpack.c.l.s4 1966171168
    %v3636 = vunpack.c.0.s8 %v3635
    %v3637 = vlaneseq
    %v3638 = vshrl.u32 %v3637, 7
    %v3639 = vsub.s32 %v3636, %v3638
    %v3640 = vrot.slane %v3633, %v3639
    %v3641 = vcombine.low %v3533, %v3534
    %v3643 = vunpack.c.l.s4 1966171168
    %v3644 = vunpack.c.0.s8 %v3643
    %v3645 = vlaneseq
    %v3646 = vshrl.u32 %v3645, 7
    %v3647 = vsub.s32 %v3644, %v3646
    %v3648 = vrot.slane %v3641, %v3647
    %v3650 = vunpack.c.l.s4 1966171168
    %v3651 = vunpack.c.0.s8 %v3650
    %v3652 = vlaneseq
    %v3653 = vshrl.u32 %v3652, 7
    %v3654 = vsub.s32 %v3651, %v3653
    %v3655 = vrot.slane %v3535, %v3654
    %v3656 = vcombine.low %v3648, %v3655
    %v3658 = vunpack.c.l.s4 1966171168
    %v3659 = vunpack.c.0.s8 %v3658
    %v3660 = vlaneseq
    %v3661 = vshrl.u32 %v3660, 7
    %v3662 = vsub.s32 %v3659, %v3661
    %v3663 = vrot.slane %v3656, %v3662
    %v3664 = vcombine.low %v3536, %v3537
    %v3666 = vunpack.c.l.s4 1966171168
    %v3667 = vunpack.c.0.s8 %v3666
    %v3668 = vlaneseq
    %v3669 = vshrl.u32 %v3668, 7
    %v3670 = vsub.s32 %v3667, %v3669
    %v3671 = vrot.slane %v3664, %v3670
    %v3673 = vunpack.c.l.s4 1966171168
    %v3674 = vunpack.c.0.s8 %v3673
    %v3675 = vlaneseq
    %v3676 = vshrl.u32 %v3675, 7
    %v3677 = vsub.s32 %v3674, %v3676
    %v3678 = vrot.slane %v3538, %v3677
    %v3679 = vcombine.low %v3671, %v3678
    %v3681 = vunpack.c.l.s4 1966171168
    %v3682 = vunpack.c.0.s8 %v3681
    %v3683 = vlaneseq
    %v3684 = vshrl.u32 %v3683, 7
    %v3685 = vsub.s32 %v3682, %v3684
    %v3686 = vrot.slane %v3679, %v3685
    %v3687 = vcombine.low %v3539, %v3540
    %v3689 = vunpack.c.l.s4 1966171168
    %v3690 = vunpack.c.0.s8 %v3689
    %v3691 = vlaneseq
    %v3692 = vshrl.u32 %v3691, 7
    %v3693 = vsub.s32 %v3690, %v3692
    %v3694 = vrot.slane %v3687, %v3693
    %v3696 = vunpack.c.l.s4 1966171168
    %v3697 = vunpack.c.0.s8 %v3696
    %v3698 = vlaneseq
    %v3699 = vshrl.u32 %v3698, 7
    %v3700 = vsub.s32 %v3697, %v3699
    %v3701 = vrot.slane %v3541, %v3700
    %v3702 = vcombine.low %v3694, %v3701
    %v3704 = vunpack.c.l.s4 1966171168
    %v3705 = vunpack.c.0.s8 %v3704
    %v3706 = vlaneseq
    %v3707 = vshrl.u32 %v3706, 7
    %v3708 = vsub.s32 %v3705, %v3707
    %v3709 = vrot.slane %v3702, %v3708
    %v3710 = vcombine.low %v3542, %v3543
    %v3712 = vunpack.c.l.s4 1966171168
    %v3713 = vunpack.c.0.s8 %v3712
    %v3714 = vlaneseq
    %v3715 = vshrl.u32 %v3714, 7
    %v3716 = vsub.s32 %v3713, %v3715
    %v3717 = vrot.slane %v3710, %v3716
    %v3719 = vunpack.c.l.s4 1966171168
    %v3720 = vunpack.c.0.s8 %v3719
    %v3721 = vlaneseq
    %v3722 = vshrl.u32 %v3721, 7
    %v3723 = vsub.s32 %v3720, %v3722
    %v3724 = vrot.slane %v3544, %v3723
    %v3725 = vcombine.low %v3717, %v3724
    %v3727 = vunpack.c.l.s4 1966171168
    %v3728 = vunpack.c.0.s8 %v3727
    %v3729 = vlaneseq
    %v3730 = vshrl.u32 %v3729, 7
    %v3731 = vsub.s32 %v3728, %v3730
    %v3732 = vrot.slane %v3725, %v3731
    %v3733 = vcombine.low %v3545, %v3546
    %v3735 = vunpack.c.l.s4 1966171168
    %v3736 = vunpack.c.0.s8 %v3735
    %v3737 = vlaneseq
    %v3738 = vshrl.u32 %v3737, 7
    %v3739 = vsub.s32 %v3736, %v3738
    %v3740 = vrot.slane %v3733, %v3739
    %v3742 = vunpack.c.l.s4 1966171168
    %v3743 = vunpack.c.0.s8 %v3742
    %v3744 = vlaneseq
    %v3745 = vshrl.u32 %v3744, 7
    %v3746 = vsub.s32 %v3743, %v3745
    %v3747 = vrot.slane %v3547, %v3746
    %v3748 = vcombine.low %v3740, %v3747
    %v3750 = vunpack.c.l.s4 1966171168
    %v3751 = vunpack.c.0.s8 %v3750
    %v3752 = vlaneseq
    %v3753 = vshrl.u32 %v3752, 7
    %v3754 = vsub.s32 %v3751, %v3753
    %v3755 = vrot.slane %v3748, %v3754
    %vm3764 = vcmask 256000
    %v3765 = vsel %vm3764, %v3594, 0.0
    %3766 = vadd.xlane.f32.xlu0 %v3765
    %v3767 = vpop.xlane.xlu0 %3766
    %v3768 = vsel %vm3764, %v3617, 0.0
    %3769 = vadd.xlane.f32.xlu0 %v3768
    %v3770 = vpop.xlane.xlu0 %3769
    %v3771 = vsel %vm3764, %v3640, 0.0
    %3772 = vadd.xlane.f32.xlu0 %v3771
    %v3773 = vpop.xlane.xlu0 %3772
    %v3774 = vsel %vm3764, %v3663, 0.0
    %3775 = vadd.xlane.f32.xlu0 %v3774
    %v3776 = vpop.xlane.xlu0 %3775
    %v3777 = vsel %vm3764, %v3686, 0.0
    %3778 = vadd.xlane.f32.xlu0 %v3777
    %v3779 = vpop.xlane.xlu0 %3778
    %v3780 = vsel %vm3764, %v3709, 0.0
    %3781 = vadd.xlane.f32.xlu0 %v3780
    %v3782 = vpop.xlane.xlu0 %3781
    %v3783 = vsel %vm3764, %v3732, 0.0
    %3784 = vadd.xlane.f32.xlu0 %v3783
    %v3785 = vpop.xlane.xlu0 %3784
    %v3786 = vsel %vm3764, %v3755, 0.0
    %3787 = vadd.xlane.f32.xlu0 %v3786
    %v3788 = vpop.xlane.xlu0 %3787
    %v3789 = vadd.f32 %v3767, 1e-16
    %v3790 = vadd.f32 %v3770, 1e-16
    %v3791 = vadd.f32 %v3773, 1e-16
    %v3792 = vadd.f32 %v3776, 1e-16
    %v3793 = vadd.f32 %v3779, 1e-16
    %v3794 = vadd.f32 %v3782, 1e-16
    %v3795 = vadd.f32 %v3785, 1e-16
    %v3796 = vadd.f32 %v3788, 1e-16
    %v3797 = vrsqrt.pop %v3789
    %v3798 = vrsqrt.pop %v3790
    %v3799 = vrsqrt.pop %v3791
    %v3800 = vrsqrt.pop %v3792
    %v3801 = vrsqrt.pop %v3793
    %v3802 = vrsqrt.pop %v3794
    %v3803 = vrsqrt.pop %v3795
    %v3804 = vrsqrt.pop %v3796
    %v3813 = vlaneseq
    %v3814 = vshrl.u32 %v3813, 7
    %v3815 = vsub.s32 0, %v3814
    %v3816 = vrot.slane %v3797, %v3815
    %v3817 = vlaneseq
    %v3818 = vshrl.u32 %v3817, 7
    %v3819 = vsub.s32 1, %v3818
    %v3820 = vrot.slane %v3797, %v3819
    %v3821 = vlaneseq
    %v3822 = vshrl.u32 %v3821, 7
    %v3823 = vsub.s32 2, %v3822
    %v3824 = vrot.slane %v3797, %v3823
    %v3825 = vlaneseq
    %v3826 = vshrl.u32 %v3825, 7
    %v3827 = vsub.s32 0, %v3826
    %v3828 = vrot.slane %v3798, %v3827
    %v3829 = vlaneseq
    %v3830 = vshrl.u32 %v3829, 7
    %v3831 = vsub.s32 1, %v3830
    %v3832 = vrot.slane %v3798, %v3831
    %v3833 = vlaneseq
    %v3834 = vshrl.u32 %v3833, 7
    %v3835 = vsub.s32 2, %v3834
    %v3836 = vrot.slane %v3798, %v3835
    %v3837 = vlaneseq
    %v3838 = vshrl.u32 %v3837, 7
    %v3839 = vsub.s32 0, %v3838
    %v3840 = vrot.slane %v3799, %v3839
    %v3841 = vlaneseq
    %v3842 = vshrl.u32 %v3841, 7
    %v3843 = vsub.s32 1, %v3842
    %v3844 = vrot.slane %v3799, %v3843
    %v3845 = vlaneseq
    %v3846 = vshrl.u32 %v3845, 7
    %v3847 = vsub.s32 2, %v3846
    %v3848 = vrot.slane %v3799, %v3847
    %v3849 = vlaneseq
    %v3850 = vshrl.u32 %v3849, 7
    %v3851 = vsub.s32 0, %v3850
    %v3852 = vrot.slane %v3800, %v3851
    %v3853 = vlaneseq
    %v3854 = vshrl.u32 %v3853, 7
    %v3855 = vsub.s32 1, %v3854
    %v3856 = vrot.slane %v3800, %v3855
    %v3857 = vlaneseq
    %v3858 = vshrl.u32 %v3857, 7
    %v3859 = vsub.s32 2, %v3858
    %v3860 = vrot.slane %v3800, %v3859
    %v3861 = vlaneseq
    %v3862 = vshrl.u32 %v3861, 7
    %v3863 = vsub.s32 0, %v3862
    %v3864 = vrot.slane %v3801, %v3863
    %v3865 = vlaneseq
    %v3866 = vshrl.u32 %v3865, 7
    %v3867 = vsub.s32 1, %v3866
    %v3868 = vrot.slane %v3801, %v3867
    %v3869 = vlaneseq
    %v3870 = vshrl.u32 %v3869, 7
    %v3871 = vsub.s32 2, %v3870
    %v3872 = vrot.slane %v3801, %v3871
    %v3873 = vlaneseq
    %v3874 = vshrl.u32 %v3873, 7
    %v3875 = vsub.s32 0, %v3874
    %v3876 = vrot.slane %v3802, %v3875
    %v3877 = vlaneseq
    %v3878 = vshrl.u32 %v3877, 7
    %v3879 = vsub.s32 1, %v3878
    %v3880 = vrot.slane %v3802, %v3879
    %v3881 = vlaneseq
    %v3882 = vshrl.u32 %v3881, 7
    %v3883 = vsub.s32 2, %v3882
    %v3884 = vrot.slane %v3802, %v3883
    %v3885 = vlaneseq
    %v3886 = vshrl.u32 %v3885, 7
    %v3887 = vsub.s32 0, %v3886
    %v3888 = vrot.slane %v3803, %v3887
    %v3889 = vlaneseq
    %v3890 = vshrl.u32 %v3889, 7
    %v3891 = vsub.s32 1, %v3890
    %v3892 = vrot.slane %v3803, %v3891
    %v3893 = vlaneseq
    %v3894 = vshrl.u32 %v3893, 7
    %v3895 = vsub.s32 2, %v3894
    %v3896 = vrot.slane %v3803, %v3895
    %v3897 = vlaneseq
    %v3898 = vshrl.u32 %v3897, 7
    %v3899 = vsub.s32 0, %v3898
    %v3900 = vrot.slane %v3804, %v3899
    %v3901 = vlaneseq
    %v3902 = vshrl.u32 %v3901, 7
    %v3903 = vsub.s32 1, %v3902
    %v3904 = vrot.slane %v3804, %v3903
    %v3905 = vlaneseq
    %v3906 = vshrl.u32 %v3905, 7
    %v3907 = vsub.s32 2, %v3906
    %v3908 = vrot.slane %v3804, %v3907
    %v3933 = vmul.f32 %v1456, %v3816
    %v3934 = vmul.f32 %v1457, %v3820
    %v3935 = vmul.f32 %v1458, %v3824
    %v3936 = vmul.f32 %v1751, %v3828
    %v3937 = vmul.f32 %v1752, %v3832
    %v3938 = vmul.f32 %v1753, %v3836
    %v3939 = vmul.f32 %v2046, %v3840
    %v3940 = vmul.f32 %v2047, %v3844
    %v3941 = vmul.f32 %v2048, %v3848
    %v3942 = vmul.f32 %v2341, %v3852
    %v3943 = vmul.f32 %v2342, %v3856
    %v3944 = vmul.f32 %v2343, %v3860
    %v3945 = vmul.f32 %v2636, %v3864
    %v3946 = vmul.f32 %v2637, %v3868
    %v3947 = vmul.f32 %v2638, %v3872
    %v3948 = vmul.f32 %v2931, %v3876
    %v3949 = vmul.f32 %v2932, %v3880
    %v3950 = vmul.f32 %v2933, %v3884
    %v3951 = vmul.f32 %v3226, %v3888
    %v3952 = vmul.f32 %v3227, %v3892
    %v3953 = vmul.f32 %v3228, %v3896
    %v3954 = vmul.f32 %v3521, %v3900
    %v3955 = vmul.f32 %v3522, %v3904
    %v3956 = vmul.f32 %v3523, %v3908
    %v3957 = vlaneseq
    %v3958 = vshrl.u32 %v3957, 7
    %v3959 = vsub.s32 0, %v3958
    %v3960 = vrot.slane %v96, %v3959
    %3962 = vbcast.lane.b32.xlu0 %v3960, 256
    %v3963 = vpop.permute.xlu0 %3962
    %v3964 = vlaneseq
    %v3965 = vshrl.u32 %v3964, 7
    %v3966 = vsub.s32 1, %v3965
    %v3967 = vrot.slane %v96, %v3966
    %3969 = vbcast.lane.b32.xlu0 %v3967, 256
    %v3970 = vpop.permute.xlu0 %3969
    %v3971 = vlaneseq
    %v3972 = vshrl.u32 %v3971, 7
    %v3973 = vsub.s32 2, %v3972
    %v3974 = vrot.slane %v96, %v3973
    %3976 = vbcast.lane.b32.xlu0 %v3974, 256
    %v3977 = vpop.permute.xlu0 %3976
    %v3978 = vlaneseq
    %v3979 = vshrl.u32 %v3978, 7
    %v3980 = vsub.s32 3, %v3979
    %v3981 = vrot.slane %v96, %v3980
    %3983 = vbcast.lane.b32.xlu0 %v3981, 256
    %v3984 = vpop.permute.xlu0 %3983
    %v3985 = vlaneseq
    %v3986 = vshrl.u32 %v3985, 7
    %v3987 = vsub.s32 4, %v3986
    %v3988 = vrot.slane %v96, %v3987
    %3990 = vbcast.lane.b32.xlu0 %v3988, 256
    %v3991 = vpop.permute.xlu0 %3990
    %v3992 = vlaneseq
    %v3993 = vshrl.u32 %v3992, 7
    %v3994 = vsub.s32 5, %v3993
    %v3995 = vrot.slane %v96, %v3994
    %3997 = vbcast.lane.b32.xlu0 %v3995, 256
    %v3998 = vpop.permute.xlu0 %3997
    %v3999 = vlaneseq
    %v4000 = vshrl.u32 %v3999, 7
    %v4001 = vsub.s32 6, %v4000
    %v4002 = vrot.slane %v96, %v4001
    %4004 = vbcast.lane.b32.xlu0 %v4002, 256
    %v4005 = vpop.permute.xlu0 %4004
    %v4006 = vlaneseq
    %v4007 = vshrl.u32 %v4006, 7
    %v4008 = vsub.s32 7, %v4007
    %v4009 = vrot.slane %v96, %v4008
    %4011 = vbcast.lane.b32.xlu0 %v4009, 256
    %v4012 = vpop.permute.xlu0 %4011
    %v4021 = vlaneseq
    %v4022 = vshrl.u32 %v4021, 7
    %v4023 = vsub.s32 0, %v4022
    %v4024 = vrot.slane %v3963, %v4023
    %v4025 = vlaneseq
    %v4026 = vshrl.u32 %v4025, 7
    %v4027 = vsub.s32 1, %v4026
    %v4028 = vrot.slane %v3963, %v4027
    %v4029 = vlaneseq
    %v4030 = vshrl.u32 %v4029, 7
    %v4031 = vsub.s32 2, %v4030
    %v4032 = vrot.slane %v3963, %v4031
    %v4033 = vlaneseq
    %v4034 = vshrl.u32 %v4033, 7
    %v4035 = vsub.s32 0, %v4034
    %v4036 = vrot.slane %v3970, %v4035
    %v4037 = vlaneseq
    %v4038 = vshrl.u32 %v4037, 7
    %v4039 = vsub.s32 1, %v4038
    %v4040 = vrot.slane %v3970, %v4039
    %v4041 = vlaneseq
    %v4042 = vshrl.u32 %v4041, 7
    %v4043 = vsub.s32 2, %v4042
    %v4044 = vrot.slane %v3970, %v4043
    %v4045 = vlaneseq
    %v4046 = vshrl.u32 %v4045, 7
    %v4047 = vsub.s32 0, %v4046
    %v4048 = vrot.slane %v3977, %v4047
    %v4049 = vlaneseq
    %v4050 = vshrl.u32 %v4049, 7
    %v4051 = vsub.s32 1, %v4050
    %v4052 = vrot.slane %v3977, %v4051
    %v4053 = vlaneseq
    %v4054 = vshrl.u32 %v4053, 7
    %v4055 = vsub.s32 2, %v4054
    %v4056 = vrot.slane %v3977, %v4055
    %v4057 = vlaneseq
    %v4058 = vshrl.u32 %v4057, 7
    %v4059 = vsub.s32 0, %v4058
    %v4060 = vrot.slane %v3984, %v4059
    %v4061 = vlaneseq
    %v4062 = vshrl.u32 %v4061, 7
    %v4063 = vsub.s32 1, %v4062
    %v4064 = vrot.slane %v3984, %v4063
    %v4065 = vlaneseq
    %v4066 = vshrl.u32 %v4065, 7
    %v4067 = vsub.s32 2, %v4066
    %v4068 = vrot.slane %v3984, %v4067
    %v4069 = vlaneseq
    %v4070 = vshrl.u32 %v4069, 7
    %v4071 = vsub.s32 0, %v4070
    %v4072 = vrot.slane %v3991, %v4071
    %v4073 = vlaneseq
    %v4074 = vshrl.u32 %v4073, 7
    %v4075 = vsub.s32 1, %v4074
    %v4076 = vrot.slane %v3991, %v4075
    %v4077 = vlaneseq
    %v4078 = vshrl.u32 %v4077, 7
    %v4079 = vsub.s32 2, %v4078
    %v4080 = vrot.slane %v3991, %v4079
    %v4081 = vlaneseq
    %v4082 = vshrl.u32 %v4081, 7
    %v4083 = vsub.s32 0, %v4082
    %v4084 = vrot.slane %v3998, %v4083
    %v4085 = vlaneseq
    %v4086 = vshrl.u32 %v4085, 7
    %v4087 = vsub.s32 1, %v4086
    %v4088 = vrot.slane %v3998, %v4087
    %v4089 = vlaneseq
    %v4090 = vshrl.u32 %v4089, 7
    %v4091 = vsub.s32 2, %v4090
    %v4092 = vrot.slane %v3998, %v4091
    %v4093 = vlaneseq
    %v4094 = vshrl.u32 %v4093, 7
    %v4095 = vsub.s32 0, %v4094
    %v4096 = vrot.slane %v4005, %v4095
    %v4097 = vlaneseq
    %v4098 = vshrl.u32 %v4097, 7
    %v4099 = vsub.s32 1, %v4098
    %v4100 = vrot.slane %v4005, %v4099
    %v4101 = vlaneseq
    %v4102 = vshrl.u32 %v4101, 7
    %v4103 = vsub.s32 2, %v4102
    %v4104 = vrot.slane %v4005, %v4103
    %v4105 = vlaneseq
    %v4106 = vshrl.u32 %v4105, 7
    %v4107 = vsub.s32 0, %v4106
    %v4108 = vrot.slane %v4012, %v4107
    %v4109 = vlaneseq
    %v4110 = vshrl.u32 %v4109, 7
    %v4111 = vsub.s32 1, %v4110
    %v4112 = vrot.slane %v4012, %v4111
    %v4113 = vlaneseq
    %v4114 = vshrl.u32 %v4113, 7
    %v4115 = vsub.s32 2, %v4114
    %v4116 = vrot.slane %v4012, %v4115
    %v4141 = vmul.f32 %v3933, %v4024
    %v4142 = vmul.f32 %v3934, %v4028
    %v4143 = vmul.f32 %v3935, %v4032
    %v4144 = vmul.f32 %v3936, %v4036
    %v4145 = vmul.f32 %v3937, %v4040
    %v4146 = vmul.f32 %v3938, %v4044
    %v4147 = vmul.f32 %v3939, %v4048
    %v4148 = vmul.f32 %v3940, %v4052
    %v4149 = vmul.f32 %v3941, %v4056
    %v4150 = vmul.f32 %v3942, %v4060
    %v4151 = vmul.f32 %v3943, %v4064
    %v4152 = vmul.f32 %v3944, %v4068
    %v4153 = vmul.f32 %v3945, %v4072
    %v4154 = vmul.f32 %v3946, %v4076
    %v4155 = vmul.f32 %v3947, %v4080
    %v4156 = vmul.f32 %v3948, %v4084
    %v4157 = vmul.f32 %v3949, %v4088
    %v4158 = vmul.f32 %v3950, %v4092
    %v4159 = vmul.f32 %v3951, %v4096
    %v4160 = vmul.f32 %v3952, %v4100
    %v4161 = vmul.f32 %v3953, %v4104
    %v4162 = vmul.f32 %v3954, %v4108
    %v4163 = vmul.f32 %v3955, %v4112
    %v4164 = vmul.f32 %v3956, %v4116
    %v4189 = vcombine.low %v4141, %v4142
    %v4190 = vcombine.low %v4143, %v4144
    %v4191 = vcombine.low %v4145, %v4146
    %v4192 = vcombine.low %v4147, %v4148
    %v4194 = vunpack.c.l.s4 1966171168
    %v4195 = vunpack.c.0.s8 %v4194
    %v4196 = vlaneseq
    %v4197 = vshrl.u32 %v4196, 7
    %v4198 = vsub.s32 %v4195, %v4197
    %v4199 = vrot.slane %v4189, %v4198
    %v4201 = vunpack.c.l.s4 1966171168
    %v4202 = vunpack.c.0.s8 %v4201
    %v4203 = vlaneseq
    %v4204 = vshrl.u32 %v4203, 7
    %v4205 = vsub.s32 %v4202, %v4204
    %v4206 = vrot.slane %v4190, %v4205
    %v4208 = vunpack.c.l.s4 1966171168
    %v4209 = vunpack.c.0.s8 %v4208
    %v4210 = vlaneseq
    %v4211 = vshrl.u32 %v4210, 7
    %v4212 = vsub.s32 %v4209, %v4211
    %v4213 = vrot.slane %v4191, %v4212
    %v4215 = vunpack.c.l.s4 1966171168
    %v4216 = vunpack.c.0.s8 %v4215
    %v4217 = vlaneseq
    %v4218 = vshrl.u32 %v4217, 7
    %v4219 = vsub.s32 %v4216, %v4218
    %v4220 = vrot.slane %v4192, %v4219
    %v4221 = vcombine.low %v4199, %v4206
    %v4222 = vcombine.low %v4213, %v4220
    %v4224 = vunpack.c.l.s4 1966171168
    %v4225 = vunpack.c.0.s8 %v4224
    %v4226 = vlaneseq
    %v4227 = vshrl.u32 %v4226, 7
    %v4228 = vsub.s32 %v4225, %v4227
    %v4229 = vrot.slane %v4221, %v4228
    %v4231 = vunpack.c.l.s4 1966171168
    %v4232 = vunpack.c.0.s8 %v4231
    %v4233 = vlaneseq
    %v4234 = vshrl.u32 %v4233, 7
    %v4235 = vsub.s32 %v4232, %v4234
    %v4236 = vrot.slane %v4222, %v4235
    %v4237 = vcombine.low %v4229, %v4236
    %v4238 = vcombine.low %v4149, %v4150
    %v4239 = vcombine.low %v4151, %v4152
    %v4240 = vcombine.low %v4153, %v4154
    %v4241 = vcombine.low %v4155, %v4156
    %v4243 = vunpack.c.l.s4 1966171168
    %v4244 = vunpack.c.0.s8 %v4243
    %v4245 = vlaneseq
    %v4246 = vshrl.u32 %v4245, 7
    %v4247 = vsub.s32 %v4244, %v4246
    %v4248 = vrot.slane %v4238, %v4247
    %v4250 = vunpack.c.l.s4 1966171168
    %v4251 = vunpack.c.0.s8 %v4250
    %v4252 = vlaneseq
    %v4253 = vshrl.u32 %v4252, 7
    %v4254 = vsub.s32 %v4251, %v4253
    %v4255 = vrot.slane %v4239, %v4254
    %v4257 = vunpack.c.l.s4 1966171168
    %v4258 = vunpack.c.0.s8 %v4257
    %v4259 = vlaneseq
    %v4260 = vshrl.u32 %v4259, 7
    %v4261 = vsub.s32 %v4258, %v4260
    %v4262 = vrot.slane %v4240, %v4261
    %v4264 = vunpack.c.l.s4 1966171168
    %v4265 = vunpack.c.0.s8 %v4264
    %v4266 = vlaneseq
    %v4267 = vshrl.u32 %v4266, 7
    %v4268 = vsub.s32 %v4265, %v4267
    %v4269 = vrot.slane %v4241, %v4268
    %v4270 = vcombine.low %v4248, %v4255
    %v4271 = vcombine.low %v4262, %v4269
    %v4273 = vunpack.c.l.s4 1966171168
    %v4274 = vunpack.c.0.s8 %v4273
    %v4275 = vlaneseq
    %v4276 = vshrl.u32 %v4275, 7
    %v4277 = vsub.s32 %v4274, %v4276
    %v4278 = vrot.slane %v4270, %v4277
    %v4280 = vunpack.c.l.s4 1966171168
    %v4281 = vunpack.c.0.s8 %v4280
    %v4282 = vlaneseq
    %v4283 = vshrl.u32 %v4282, 7
    %v4284 = vsub.s32 %v4281, %v4283
    %v4285 = vrot.slane %v4271, %v4284
    %v4286 = vcombine.low %v4278, %v4285
    %v4287 = vcombine.low %v4157, %v4158
    %v4288 = vcombine.low %v4159, %v4160
    %v4289 = vcombine.low %v4161, %v4162
    %v4290 = vcombine.low %v4163, %v4164
    %v4292 = vunpack.c.l.s4 1966171168
    %v4293 = vunpack.c.0.s8 %v4292
    %v4294 = vlaneseq
    %v4295 = vshrl.u32 %v4294, 7
    %v4296 = vsub.s32 %v4293, %v4295
    %v4297 = vrot.slane %v4287, %v4296
    %v4299 = vunpack.c.l.s4 1966171168
    %v4300 = vunpack.c.0.s8 %v4299
    %v4301 = vlaneseq
    %v4302 = vshrl.u32 %v4301, 7
    %v4303 = vsub.s32 %v4300, %v4302
    %v4304 = vrot.slane %v4288, %v4303
    %v4306 = vunpack.c.l.s4 1966171168
    %v4307 = vunpack.c.0.s8 %v4306
    %v4308 = vlaneseq
    %v4309 = vshrl.u32 %v4308, 7
    %v4310 = vsub.s32 %v4307, %v4309
    %v4311 = vrot.slane %v4289, %v4310
    %v4313 = vunpack.c.l.s4 1966171168
    %v4314 = vunpack.c.0.s8 %v4313
    %v4315 = vlaneseq
    %v4316 = vshrl.u32 %v4315, 7
    %v4317 = vsub.s32 %v4314, %v4316
    %v4318 = vrot.slane %v4290, %v4317
    %v4319 = vcombine.low %v4297, %v4304
    %v4320 = vcombine.low %v4311, %v4318
    %v4322 = vunpack.c.l.s4 1966171168
    %v4323 = vunpack.c.0.s8 %v4322
    %v4324 = vlaneseq
    %v4325 = vshrl.u32 %v4324, 7
    %v4326 = vsub.s32 %v4323, %v4325
    %v4327 = vrot.slane %v4319, %v4326
    %v4329 = vunpack.c.l.s4 1966171168
    %v4330 = vunpack.c.0.s8 %v4329
    %v4331 = vlaneseq
    %v4332 = vshrl.u32 %v4331, 7
    %v4333 = vsub.s32 %v4330, %v4332
    %v4334 = vrot.slane %v4320, %v4333
    %v4335 = vcombine.low %v4327, %v4334
    %v4339 = vpack.c.bf16 %v4286, %v4237
    %v4340 = vpack.c.bf16 %v4335, %v4335
    %v4342 = vsel %vm201, %v4339, 0
    %v4345 = vsel %vm201, %v4340, 0
    %v4348 = vsel %vm201, %v227, 0
    %4350 = vmatprep.subr.bf16.mxu0 0
    %4351 = vmatpush1.bf16.xpose.msra.mxu0 %v4348
    %4352 = vmatprep.subr.bf16.mxu0 0
    %4353 = vmatpush1.bf16.xpose.msra.mxu0 0
    %4354 = vmatprep.subr.bf16.mxu0 0
    %4355 = vmatpush1.bf16.xpose.msra.mxu0 0
    %4356 = vmatprep.subr.bf16.mxu0 0
    %4357 = vmatpush1.bf16.xpose.msra.mxu0 0
    %4358 = vmatprep.subr.bf16.mxu0 0
    %4359 = vmatpush1.bf16.xpose.msra.mxu0 0
    %4360 = vmatprep.subr.bf16.mxu0 0
    %4361 = vmatpush1.bf16.xpose.msra.mxu0 0
    %4362 = vmatprep.subr.bf16.mxu0 0
    %4363 = vmatpush1.bf16.xpose.msra.mxu0 0
    %4364 = vmatprep.subr.bf16.mxu0 0
    %4365 = vmatpush1.bf16.xpose.msra.mxu0 0
    %4366 = vmatprep.subr.bf16.mxu0 0
    %4367 = vmatpush1.bf16.xpose.msra.mxu0 0
    %4368 = vmatprep.subr.bf16.mxu0 0
    %4369 = vmatpush1.bf16.xpose.msra.mxu0 0
    %4370 = vmatprep.subr.bf16.mxu0 0
    %4371 = vmatpush1.bf16.xpose.msra.mxu0 0
    %4372 = vmatprep.subr.bf16.mxu0 0
    %4373 = vmatpush1.bf16.xpose.msra.mxu0 0
    %4374 = vmatprep.subr.bf16.mxu0 0
    %4375 = vmatpush1.bf16.xpose.msra.mxu0 0
    %4376 = vmatprep.subr.bf16.mxu0 0
    %4377 = vmatpush1.bf16.xpose.msra.mxu0 0
    %4378 = vmatprep.subr.bf16.mxu0 0
    %4379 = vmatpush1.bf16.xpose.msra.mxu0 0
    %4380 = vmatprep.subr.bf16.mxu0 0
    %4381 = vmatpush1.bf16.xpose.msra.mxu0 0
    %4382 = vmatprep.mubr.bf16.mxu0 0
    %4383 = vmatmul.mubr.bf16.gmra.mrb[0].mxu0 %v4342
    %v4384 = vpop.f32.mrb[0].mxu0
    %v4385 = vadd.f32 0.0, %v4384
    %v4386 = vpop.f32.mrb[0].mxu0
    %v4387 = vpop.f32.mrb[0].mxu0
    %v4388 = vadd.f32 0.0, %v4387
    %v4389 = vpop.f32.mrb[0].mxu0
    %4390 = vmatprep.mubr.bf16.mxu0 0
    %4391 = vmatmul.mubr.bf16.gmra.mrb[0].mxu0 %v4345
    %v4392 = vpop.f32.mrb[0].mxu0
    %v4393 = vadd.f32 0.0, %v4392
    %v4394 = vpop.f32.mrb[0].mxu0
    %v4395 = vpop.f32.mrb[0].mxu0
    %v4396 = vpop.f32.mrb[0].mxu0
    %4397 = vdwg.mxu0
    %v4399 = vsel %vm201, %v228, 0
    %4401 = vmatprep.subr.bf16.mxu0 0
    %4402 = vmatpush1.bf16.xpose.msra.mxu0 %v4399
    %4403 = vmatprep.subr.bf16.mxu0 0
    %4404 = vmatpush1.bf16.xpose.msra.mxu0 0
    %4405 = vmatprep.subr.bf16.mxu0 0
    %4406 = vmatpush1.bf16.xpose.msra.mxu0 0
    %4407 = vmatprep.subr.bf16.mxu0 0
    %4408 = vmatpush1.bf16.xpose.msra.mxu0 0
    %4409 = vmatprep.subr.bf16.mxu0 0
    %4410 = vmatpush1.bf16.xpose.msra.mxu0 0
    %4411 = vmatprep.subr.bf16.mxu0 0
    %4412 = vmatpush1.bf16.xpose.msra.mxu0 0
    %4413 = vmatprep.subr.bf16.mxu0 0
    %4414 = vmatpush1.bf16.xpose.msra.mxu0 0
    %4415 = vmatprep.subr.bf16.mxu0 0
    %4416 = vmatpush1.bf16.xpose.msra.mxu0 0
    %4417 = vmatprep.subr.bf16.mxu0 0
    %4418 = vmatpush1.bf16.xpose.msra.mxu0 0
    %4419 = vmatprep.subr.bf16.mxu0 0
    %4420 = vmatpush1.bf16.xpose.msra.mxu0 0
    %4421 = vmatprep.subr.bf16.mxu0 0
    %4422 = vmatpush1.bf16.xpose.msra.mxu0 0
    %4423 = vmatprep.subr.bf16.mxu0 0
    %4424 = vmatpush1.bf16.xpose.msra.mxu0 0
    %4425 = vmatprep.subr.bf16.mxu0 0
    %4426 = vmatpush1.bf16.xpose.msra.mxu0 0
    %4427 = vmatprep.subr.bf16.mxu0 0
    %4428 = vmatpush1.bf16.xpose.msra.mxu0 0
    %4429 = vmatprep.subr.bf16.mxu0 0
    %4430 = vmatpush1.bf16.xpose.msra.mxu0 0
    %4431 = vmatprep.subr.bf16.mxu0 0
    %4432 = vmatpush1.bf16.xpose.msra.mxu0 0
    %4433 = vmatprep.mubr.bf16.mxu0 0
    %4434 = vmatmul.mubr.bf16.gmra.mrb[0].mxu0 %v4342
    %v4435 = vpop.f32.mrb[0].mxu0
    %v4436 = vadd.f32 0.0, %v4435
    %v4437 = vpop.f32.mrb[0].mxu0
    %v4438 = vpop.f32.mrb[0].mxu0
    %v4439 = vadd.f32 0.0, %v4438
    %v4440 = vpop.f32.mrb[0].mxu0
    %4441 = vmatprep.mubr.bf16.mxu0 0
    %4442 = vmatmul.mubr.bf16.gmra.mrb[0].mxu0 %v4345
    %v4443 = vpop.f32.mrb[0].mxu0
    %v4444 = vadd.f32 0.0, %v4443
    %v4445 = vpop.f32.mrb[0].mxu0
    %v4446 = vpop.f32.mrb[0].mxu0
    %v4447 = vpop.f32.mrb[0].mxu0
    %4448 = vdwg.mxu0
    %v4450 = vsel %vm201, %v229, 0
    %4452 = vmatprep.subr.bf16.mxu0 0
    %4453 = vmatpush1.bf16.xpose.msra.mxu0 %v4450
    %4454 = vmatprep.subr.bf16.mxu0 0
    %4455 = vmatpush1.bf16.xpose.msra.mxu0 0
    %4456 = vmatprep.subr.bf16.mxu0 0
    %4457 = vmatpush1.bf16.xpose.msra.mxu0 0
    %4458 = vmatprep.subr.bf16.mxu0 0
    %4459 = vmatpush1.bf16.xpose.msra.mxu0 0
    %4460 = vmatprep.subr.bf16.mxu0 0
    %4461 = vmatpush1.bf16.xpose.msra.mxu0 0
    %4462 = vmatprep.subr.bf16.mxu0 0
    %4463 = vmatpush1.bf16.xpose.msra.mxu0 0
    %4464 = vmatprep.subr.bf16.mxu0 0
    %4465 = vmatpush1.bf16.xpose.msra.mxu0 0
    %4466 = vmatprep.subr.bf16.mxu0 0
    %4467 = vmatpush1.bf16.xpose.msra.mxu0 0
    %4468 = vmatprep.subr.bf16.mxu0 0
    %4469 = vmatpush1.bf16.xpose.msra.mxu0 0
    %4470 = vmatprep.subr.bf16.mxu0 0
    %4471 = vmatpush1.bf16.xpose.msra.mxu0 0
    %4472 = vmatprep.subr.bf16.mxu0 0
    %4473 = vmatpush1.bf16.xpose.msra.mxu0 0
    %4474 = vmatprep.subr.bf16.mxu0 0
    %4475 = vmatpush1.bf16.xpose.msra.mxu0 0
    %4476 = vmatprep.subr.bf16.mxu0 0
    %4477 = vmatpush1.bf16.xpose.msra.mxu0 0
    %4478 = vmatprep.subr.bf16.mxu0 0
    %4479 = vmatpush1.bf16.xpose.msra.mxu0 0
    %4480 = vmatprep.subr.bf16.mxu0 0
    %4481 = vmatpush1.bf16.xpose.msra.mxu0 0
    %4482 = vmatprep.subr.bf16.mxu0 0
    %4483 = vmatpush1.bf16.xpose.msra.mxu0 0
    %4484 = vmatprep.mubr.bf16.mxu0 0
    %4485 = vmatmul.mubr.bf16.gmra.mrb[0].mxu0 %v4342
    %v4486 = vpop.f32.mrb[0].mxu0
    %v4487 = vadd.f32 0.0, %v4486
    %v4488 = vpop.f32.mrb[0].mxu0
    %v4489 = vpop.f32.mrb[0].mxu0
    %v4490 = vadd.f32 0.0, %v4489
    %v4491 = vpop.f32.mrb[0].mxu0
    %4492 = vmatprep.mubr.bf16.mxu0 0
    %4493 = vmatmul.mubr.bf16.gmra.mrb[0].mxu0 %v4345
    %v4494 = vpop.f32.mrb[0].mxu0
    %v4495 = vadd.f32 0.0, %v4494
    %v4496 = vpop.f32.mrb[0].mxu0
    %v4497 = vpop.f32.mrb[0].mxu0
    %v4498 = vpop.f32.mrb[0].mxu0
    %4499 = vdwg.mxu0
    %v4500 = vmul.f32 %v4385, 0.1
    %v4501 = vmul.f32 %v4388, 0.1
    %v4502 = vmul.f32 %v4393, 0.1
    %v4503 = vmul.f32 %v4436, 0.1
    %v4504 = vmul.f32 %v4439, 0.1
    %v4505 = vmul.f32 %v4444, 0.1
    %v4506 = vmul.f32 %v4487, 0.1
    %v4507 = vmul.f32 %v4490, 0.1
    %v4508 = vmul.f32 %v4495, 0.1
    %v4509 = vmax.f32 %v4385, %v4500
    %v4510 = vmax.f32 %v4388, %v4501
    %v4511 = vmax.f32 %v4393, %v4502
    %v4512 = vmax.f32 %v4436, %v4503
    %v4513 = vmax.f32 %v4439, %v4504
    %v4514 = vmax.f32 %v4444, %v4505
    %v4515 = vmax.f32 %v4487, %v4506
    %v4516 = vmax.f32 %v4490, %v4507
    %v4517 = vmax.f32 %v4495, %v4508
    %v4527 = vcombine.high %v4509, %v4509
    %v4529 = vunpack.c.l.s4 1966171168
    %v4530 = vunpack.c.0.s8 %v4529
    %v4531 = vlaneseq
    %v4532 = vshrl.u32 %v4531, 7
    %v4533 = vsub.s32 %v4530, %v4532
    %v4534 = vrot.slane %v4509, %v4533
    %v4536 = vunpack.c.l.s4 1966171168
    %v4537 = vunpack.c.0.s8 %v4536
    %v4538 = vlaneseq
    %v4539 = vshrl.u32 %v4538, 7
    %v4540 = vsub.s32 %v4537, %v4539
    %v4541 = vrot.slane %v4527, %v4540
    %v4542 = vcombine.high %v4534, %v4534
    %v4543 = vcombine.high %v4541, %v4541
    %v4545 = vunpack.c.l.s4 1966171168
    %v4546 = vunpack.c.0.s8 %v4545
    %v4547 = vlaneseq
    %v4548 = vshrl.u32 %v4547, 7
    %v4549 = vsub.s32 %v4546, %v4548
    %v4550 = vrot.slane %v4534, %v4549
    %v4552 = vunpack.c.l.s4 1966171168
    %v4553 = vunpack.c.0.s8 %v4552
    %v4554 = vlaneseq
    %v4555 = vshrl.u32 %v4554, 7
    %v4556 = vsub.s32 %v4553, %v4555
    %v4557 = vrot.slane %v4541, %v4556
    %v4559 = vunpack.c.l.s4 1966171168
    %v4560 = vunpack.c.0.s8 %v4559
    %v4561 = vlaneseq
    %v4562 = vshrl.u32 %v4561, 7
    %v4563 = vsub.s32 %v4560, %v4562
    %v4564 = vrot.slane %v4542, %v4563
    %v4566 = vunpack.c.l.s4 1966171168
    %v4567 = vunpack.c.0.s8 %v4566
    %v4568 = vlaneseq
    %v4569 = vshrl.u32 %v4568, 7
    %v4570 = vsub.s32 %v4567, %v4569
    %v4571 = vrot.slane %v4543, %v4570
    %v4572 = vcombine.high %v4550, %v4550
    %v4573 = vcombine.high %v4557, %v4557
    %v4574 = vcombine.high %v4564, %v4564
    %v4575 = vcombine.high %v4571, %v4571
    %v4576 = vcombine.high %v4510, %v4510
    %v4578 = vunpack.c.l.s4 1966171168
    %v4579 = vunpack.c.0.s8 %v4578
    %v4580 = vlaneseq
    %v4581 = vshrl.u32 %v4580, 7
    %v4582 = vsub.s32 %v4579, %v4581
    %v4583 = vrot.slane %v4510, %v4582
    %v4585 = vunpack.c.l.s4 1966171168
    %v4586 = vunpack.c.0.s8 %v4585
    %v4587 = vlaneseq
    %v4588 = vshrl.u32 %v4587, 7
    %v4589 = vsub.s32 %v4586, %v4588
    %v4590 = vrot.slane %v4576, %v4589
    %v4591 = vcombine.high %v4583, %v4583
    %v4592 = vcombine.high %v4590, %v4590
    %v4594 = vunpack.c.l.s4 1966171168
    %v4595 = vunpack.c.0.s8 %v4594
    %v4596 = vlaneseq
    %v4597 = vshrl.u32 %v4596, 7
    %v4598 = vsub.s32 %v4595, %v4597
    %v4599 = vrot.slane %v4583, %v4598
    %v4601 = vunpack.c.l.s4 1966171168
    %v4602 = vunpack.c.0.s8 %v4601
    %v4603 = vlaneseq
    %v4604 = vshrl.u32 %v4603, 7
    %v4605 = vsub.s32 %v4602, %v4604
    %v4606 = vrot.slane %v4590, %v4605
    %v4608 = vunpack.c.l.s4 1966171168
    %v4609 = vunpack.c.0.s8 %v4608
    %v4610 = vlaneseq
    %v4611 = vshrl.u32 %v4610, 7
    %v4612 = vsub.s32 %v4609, %v4611
    %v4613 = vrot.slane %v4591, %v4612
    %v4615 = vunpack.c.l.s4 1966171168
    %v4616 = vunpack.c.0.s8 %v4615
    %v4617 = vlaneseq
    %v4618 = vshrl.u32 %v4617, 7
    %v4619 = vsub.s32 %v4616, %v4618
    %v4620 = vrot.slane %v4592, %v4619
    %v4621 = vcombine.high %v4599, %v4599
    %v4622 = vcombine.high %v4606, %v4606
    %v4623 = vcombine.high %v4613, %v4613
    %v4624 = vcombine.high %v4620, %v4620
    %v4625 = vcombine.high %v4511, %v4511
    %v4627 = vunpack.c.l.s4 1966171168
    %v4628 = vunpack.c.0.s8 %v4627
    %v4629 = vlaneseq
    %v4630 = vshrl.u32 %v4629, 7
    %v4631 = vsub.s32 %v4628, %v4630
    %v4632 = vrot.slane %v4511, %v4631
    %v4634 = vunpack.c.l.s4 1966171168
    %v4635 = vunpack.c.0.s8 %v4634
    %v4636 = vlaneseq
    %v4637 = vshrl.u32 %v4636, 7
    %v4638 = vsub.s32 %v4635, %v4637
    %v4639 = vrot.slane %v4625, %v4638
    %v4640 = vcombine.high %v4632, %v4632
    %v4641 = vcombine.high %v4639, %v4639
    %v4643 = vunpack.c.l.s4 1966171168
    %v4644 = vunpack.c.0.s8 %v4643
    %v4645 = vlaneseq
    %v4646 = vshrl.u32 %v4645, 7
    %v4647 = vsub.s32 %v4644, %v4646
    %v4648 = vrot.slane %v4632, %v4647
    %v4650 = vunpack.c.l.s4 1966171168
    %v4651 = vunpack.c.0.s8 %v4650
    %v4652 = vlaneseq
    %v4653 = vshrl.u32 %v4652, 7
    %v4654 = vsub.s32 %v4651, %v4653
    %v4655 = vrot.slane %v4639, %v4654
    %v4657 = vunpack.c.l.s4 1966171168
    %v4658 = vunpack.c.0.s8 %v4657
    %v4659 = vlaneseq
    %v4660 = vshrl.u32 %v4659, 7
    %v4661 = vsub.s32 %v4658, %v4660
    %v4662 = vrot.slane %v4640, %v4661
    %v4664 = vunpack.c.l.s4 1966171168
    %v4665 = vunpack.c.0.s8 %v4664
    %v4666 = vlaneseq
    %v4667 = vshrl.u32 %v4666, 7
    %v4668 = vsub.s32 %v4665, %v4667
    %v4669 = vrot.slane %v4641, %v4668
    %v4670 = vcombine.high %v4648, %v4648
    %v4671 = vcombine.high %v4655, %v4655
    %v4672 = vcombine.high %v4662, %v4662
    %v4673 = vcombine.high %v4669, %v4669
    %v4674 = vcombine.high %v4512, %v4512
    %v4676 = vunpack.c.l.s4 1966171168
    %v4677 = vunpack.c.0.s8 %v4676
    %v4678 = vlaneseq
    %v4679 = vshrl.u32 %v4678, 7
    %v4680 = vsub.s32 %v4677, %v4679
    %v4681 = vrot.slane %v4512, %v4680
    %v4683 = vunpack.c.l.s4 1966171168
    %v4684 = vunpack.c.0.s8 %v4683
    %v4685 = vlaneseq
    %v4686 = vshrl.u32 %v4685, 7
    %v4687 = vsub.s32 %v4684, %v4686
    %v4688 = vrot.slane %v4674, %v4687
    %v4689 = vcombine.high %v4681, %v4681
    %v4690 = vcombine.high %v4688, %v4688
    %v4692 = vunpack.c.l.s4 1966171168
    %v4693 = vunpack.c.0.s8 %v4692
    %v4694 = vlaneseq
    %v4695 = vshrl.u32 %v4694, 7
    %v4696 = vsub.s32 %v4693, %v4695
    %v4697 = vrot.slane %v4681, %v4696
    %v4699 = vunpack.c.l.s4 1966171168
    %v4700 = vunpack.c.0.s8 %v4699
    %v4701 = vlaneseq
    %v4702 = vshrl.u32 %v4701, 7
    %v4703 = vsub.s32 %v4700, %v4702
    %v4704 = vrot.slane %v4688, %v4703
    %v4706 = vunpack.c.l.s4 1966171168
    %v4707 = vunpack.c.0.s8 %v4706
    %v4708 = vlaneseq
    %v4709 = vshrl.u32 %v4708, 7
    %v4710 = vsub.s32 %v4707, %v4709
    %v4711 = vrot.slane %v4689, %v4710
    %v4713 = vunpack.c.l.s4 1966171168
    %v4714 = vunpack.c.0.s8 %v4713
    %v4715 = vlaneseq
    %v4716 = vshrl.u32 %v4715, 7
    %v4717 = vsub.s32 %v4714, %v4716
    %v4718 = vrot.slane %v4690, %v4717
    %v4719 = vcombine.high %v4697, %v4697
    %v4720 = vcombine.high %v4704, %v4704
    %v4721 = vcombine.high %v4711, %v4711
    %v4722 = vcombine.high %v4718, %v4718
    %v4723 = vcombine.high %v4513, %v4513
    %v4725 = vunpack.c.l.s4 1966171168
    %v4726 = vunpack.c.0.s8 %v4725
    %v4727 = vlaneseq
    %v4728 = vshrl.u32 %v4727, 7
    %v4729 = vsub.s32 %v4726, %v4728
    %v4730 = vrot.slane %v4513, %v4729
    %v4732 = vunpack.c.l.s4 1966171168
    %v4733 = vunpack.c.0.s8 %v4732
    %v4734 = vlaneseq
    %v4735 = vshrl.u32 %v4734, 7
    %v4736 = vsub.s32 %v4733, %v4735
    %v4737 = vrot.slane %v4723, %v4736
    %v4738 = vcombine.high %v4730, %v4730
    %v4739 = vcombine.high %v4737, %v4737
    %v4741 = vunpack.c.l.s4 1966171168
    %v4742 = vunpack.c.0.s8 %v4741
    %v4743 = vlaneseq
    %v4744 = vshrl.u32 %v4743, 7
    %v4745 = vsub.s32 %v4742, %v4744
    %v4746 = vrot.slane %v4730, %v4745
    %v4748 = vunpack.c.l.s4 1966171168
    %v4749 = vunpack.c.0.s8 %v4748
    %v4750 = vlaneseq
    %v4751 = vshrl.u32 %v4750, 7
    %v4752 = vsub.s32 %v4749, %v4751
    %v4753 = vrot.slane %v4737, %v4752
    %v4755 = vunpack.c.l.s4 1966171168
    %v4756 = vunpack.c.0.s8 %v4755
    %v4757 = vlaneseq
    %v4758 = vshrl.u32 %v4757, 7
    %v4759 = vsub.s32 %v4756, %v4758
    %v4760 = vrot.slane %v4738, %v4759
    %v4762 = vunpack.c.l.s4 1966171168
    %v4763 = vunpack.c.0.s8 %v4762
    %v4764 = vlaneseq
    %v4765 = vshrl.u32 %v4764, 7
    %v4766 = vsub.s32 %v4763, %v4765
    %v4767 = vrot.slane %v4739, %v4766
    %v4768 = vcombine.high %v4746, %v4746
    %v4769 = vcombine.high %v4753, %v4753
    %v4770 = vcombine.high %v4760, %v4760
    %v4771 = vcombine.high %v4767, %v4767
    %v4772 = vcombine.high %v4514, %v4514
    %v4774 = vunpack.c.l.s4 1966171168
    %v4775 = vunpack.c.0.s8 %v4774
    %v4776 = vlaneseq
    %v4777 = vshrl.u32 %v4776, 7
    %v4778 = vsub.s32 %v4775, %v4777
    %v4779 = vrot.slane %v4514, %v4778
    %v4781 = vunpack.c.l.s4 1966171168
    %v4782 = vunpack.c.0.s8 %v4781
    %v4783 = vlaneseq
    %v4784 = vshrl.u32 %v4783, 7
    %v4785 = vsub.s32 %v4782, %v4784
    %v4786 = vrot.slane %v4772, %v4785
    %v4787 = vcombine.high %v4779, %v4779
    %v4788 = vcombine.high %v4786, %v4786
    %v4790 = vunpack.c.l.s4 1966171168
    %v4791 = vunpack.c.0.s8 %v4790
    %v4792 = vlaneseq
    %v4793 = vshrl.u32 %v4792, 7
    %v4794 = vsub.s32 %v4791, %v4793
    %v4795 = vrot.slane %v4779, %v4794
    %v4797 = vunpack.c.l.s4 1966171168
    %v4798 = vunpack.c.0.s8 %v4797
    %v4799 = vlaneseq
    %v4800 = vshrl.u32 %v4799, 7
    %v4801 = vsub.s32 %v4798, %v4800
    %v4802 = vrot.slane %v4786, %v4801
    %v4804 = vunpack.c.l.s4 1966171168
    %v4805 = vunpack.c.0.s8 %v4804
    %v4806 = vlaneseq
    %v4807 = vshrl.u32 %v4806, 7
    %v4808 = vsub.s32 %v4805, %v4807
    %v4809 = vrot.slane %v4787, %v4808
    %v4811 = vunpack.c.l.s4 1966171168
    %v4812 = vunpack.c.0.s8 %v4811
    %v4813 = vlaneseq
    %v4814 = vshrl.u32 %v4813, 7
    %v4815 = vsub.s32 %v4812, %v4814
    %v4816 = vrot.slane %v4788, %v4815
    %v4817 = vcombine.high %v4795, %v4795
    %v4818 = vcombine.high %v4802, %v4802
    %v4819 = vcombine.high %v4809, %v4809
    %v4820 = vcombine.high %v4816, %v4816
    %v4821 = vcombine.high %v4515, %v4515
    %v4823 = vunpack.c.l.s4 1966171168
    %v4824 = vunpack.c.0.s8 %v4823
    %v4825 = vlaneseq
    %v4826 = vshrl.u32 %v4825, 7
    %v4827 = vsub.s32 %v4824, %v4826
    %v4828 = vrot.slane %v4515, %v4827
    %v4830 = vunpack.c.l.s4 1966171168
    %v4831 = vunpack.c.0.s8 %v4830
    %v4832 = vlaneseq
    %v4833 = vshrl.u32 %v4832, 7
    %v4834 = vsub.s32 %v4831, %v4833
    %v4835 = vrot.slane %v4821, %v4834
    %v4836 = vcombine.high %v4828, %v4828
    %v4837 = vcombine.high %v4835, %v4835
    %v4839 = vunpack.c.l.s4 1966171168
    %v4840 = vunpack.c.0.s8 %v4839
    %v4841 = vlaneseq
    %v4842 = vshrl.u32 %v4841, 7
    %v4843 = vsub.s32 %v4840, %v4842
    %v4844 = vrot.slane %v4828, %v4843
    %v4846 = vunpack.c.l.s4 1966171168
    %v4847 = vunpack.c.0.s8 %v4846
    %v4848 = vlaneseq
    %v4849 = vshrl.u32 %v4848, 7
    %v4850 = vsub.s32 %v4847, %v4849
    %v4851 = vrot.slane %v4835, %v4850
    %v4853 = vunpack.c.l.s4 1966171168
    %v4854 = vunpack.c.0.s8 %v4853
    %v4855 = vlaneseq
    %v4856 = vshrl.u32 %v4855, 7
    %v4857 = vsub.s32 %v4854, %v4856
    %v4858 = vrot.slane %v4836, %v4857
    %v4860 = vunpack.c.l.s4 1966171168
    %v4861 = vunpack.c.0.s8 %v4860
    %v4862 = vlaneseq
    %v4863 = vshrl.u32 %v4862, 7
    %v4864 = vsub.s32 %v4861, %v4863
    %v4865 = vrot.slane %v4837, %v4864
    %v4866 = vcombine.high %v4844, %v4844
    %v4867 = vcombine.high %v4851, %v4851
    %v4868 = vcombine.high %v4858, %v4858
    %v4869 = vcombine.high %v4865, %v4865
    %v4870 = vcombine.high %v4516, %v4516
    %v4872 = vunpack.c.l.s4 1966171168
    %v4873 = vunpack.c.0.s8 %v4872
    %v4874 = vlaneseq
    %v4875 = vshrl.u32 %v4874, 7
    %v4876 = vsub.s32 %v4873, %v4875
    %v4877 = vrot.slane %v4516, %v4876
    %v4879 = vunpack.c.l.s4 1966171168
    %v4880 = vunpack.c.0.s8 %v4879
    %v4881 = vlaneseq
    %v4882 = vshrl.u32 %v4881, 7
    %v4883 = vsub.s32 %v4880, %v4882
    %v4884 = vrot.slane %v4870, %v4883
    %v4885 = vcombine.high %v4877, %v4877
    %v4886 = vcombine.high %v4884, %v4884
    %v4888 = vunpack.c.l.s4 1966171168
    %v4889 = vunpack.c.0.s8 %v4888
    %v4890 = vlaneseq
    %v4891 = vshrl.u32 %v4890, 7
    %v4892 = vsub.s32 %v4889, %v4891
    %v4893 = vrot.slane %v4877, %v4892
    %v4895 = vunpack.c.l.s4 1966171168
    %v4896 = vunpack.c.0.s8 %v4895
    %v4897 = vlaneseq
    %v4898 = vshrl.u32 %v4897, 7
    %v4899 = vsub.s32 %v4896, %v4898
    %v4900 = vrot.slane %v4884, %v4899
    %v4902 = vunpack.c.l.s4 1966171168
    %v4903 = vunpack.c.0.s8 %v4902
    %v4904 = vlaneseq
    %v4905 = vshrl.u32 %v4904, 7
    %v4906 = vsub.s32 %v4903, %v4905
    %v4907 = vrot.slane %v4885, %v4906
    %v4909 = vunpack.c.l.s4 1966171168
    %v4910 = vunpack.c.0.s8 %v4909
    %v4911 = vlaneseq
    %v4912 = vshrl.u32 %v4911, 7
    %v4913 = vsub.s32 %v4910, %v4912
    %v4914 = vrot.slane %v4886, %v4913
    %v4915 = vcombine.high %v4893, %v4893
    %v4916 = vcombine.high %v4900, %v4900
    %v4917 = vcombine.high %v4907, %v4907
    %v4918 = vcombine.high %v4914, %v4914
    %v4919 = vcombine.high %v4517, %v4517
    %v4921 = vunpack.c.l.s4 1966171168
    %v4922 = vunpack.c.0.s8 %v4921
    %v4923 = vlaneseq
    %v4924 = vshrl.u32 %v4923, 7
    %v4925 = vsub.s32 %v4922, %v4924
    %v4926 = vrot.slane %v4517, %v4925
    %v4928 = vunpack.c.l.s4 1966171168
    %v4929 = vunpack.c.0.s8 %v4928
    %v4930 = vlaneseq
    %v4931 = vshrl.u32 %v4930, 7
    %v4932 = vsub.s32 %v4929, %v4931
    %v4933 = vrot.slane %v4919, %v4932
    %v4934 = vcombine.high %v4926, %v4926
    %v4935 = vcombine.high %v4933, %v4933
    %v4937 = vunpack.c.l.s4 1966171168
    %v4938 = vunpack.c.0.s8 %v4937
    %v4939 = vlaneseq
    %v4940 = vshrl.u32 %v4939, 7
    %v4941 = vsub.s32 %v4938, %v4940
    %v4942 = vrot.slane %v4926, %v4941
    %v4944 = vunpack.c.l.s4 1966171168
    %v4945 = vunpack.c.0.s8 %v4944
    %v4946 = vlaneseq
    %v4947 = vshrl.u32 %v4946, 7
    %v4948 = vsub.s32 %v4945, %v4947
    %v4949 = vrot.slane %v4933, %v4948
    %v4951 = vunpack.c.l.s4 1966171168
    %v4952 = vunpack.c.0.s8 %v4951
    %v4953 = vlaneseq
    %v4954 = vshrl.u32 %v4953, 7
    %v4955 = vsub.s32 %v4952, %v4954
    %v4956 = vrot.slane %v4934, %v4955
    %v4958 = vunpack.c.l.s4 1966171168
    %v4959 = vunpack.c.0.s8 %v4958
    %v4960 = vlaneseq
    %v4961 = vshrl.u32 %v4960, 7
    %v4962 = vsub.s32 %v4959, %v4961
    %v4963 = vrot.slane %v4935, %v4962
    %v4964 = vcombine.high %v4942, %v4942
    %v4965 = vcombine.high %v4949, %v4949
    %v4966 = vcombine.high %v4956, %v4956
    %v4967 = vcombine.high %v4963, %v4963
    %v5040 = vmul.f32 %v4550, %v4024
    %v5041 = vmul.f32 %v4564, %v4028
    %v5042 = vmul.f32 %v4572, %v4032
    %v5043 = vmul.f32 %v4574, %v4036
    %v5044 = vmul.f32 %v4557, %v4040
    %v5045 = vmul.f32 %v4571, %v4044
    %v5046 = vmul.f32 %v4573, %v4048
    %v5047 = vmul.f32 %v4575, %v4052
    %v5048 = vmul.f32 %v4599, %v4056
    %v5049 = vmul.f32 %v4613, %v4060
    %v5050 = vmul.f32 %v4621, %v4064
    %v5051 = vmul.f32 %v4623, %v4068
    %v5052 = vmul.f32 %v4606, %v4072
    %v5053 = vmul.f32 %v4620, %v4076
    %v5054 = vmul.f32 %v4622, %v4080
    %v5055 = vmul.f32 %v4624, %v4084
    %v5056 = vmul.f32 %v4648, %v4088
    %v5057 = vmul.f32 %v4662, %v4092
    %v5058 = vmul.f32 %v4670, %v4096
    %v5059 = vmul.f32 %v4672, %v4100
    %v5060 = vmul.f32 %v4655, %v4104
    %v5061 = vmul.f32 %v4669, %v4108
    %v5062 = vmul.f32 %v4671, %v4112
    %v5063 = vmul.f32 %v4673, %v4116
    %v5064 = vmul.f32 %v4697, %v4024
    %v5065 = vmul.f32 %v4711, %v4028
    %v5066 = vmul.f32 %v4719, %v4032
    %v5067 = vmul.f32 %v4721, %v4036
    %v5068 = vmul.f32 %v4704, %v4040
    %v5069 = vmul.f32 %v4718, %v4044
    %v5070 = vmul.f32 %v4720, %v4048
    %v5071 = vmul.f32 %v4722, %v4052
    %v5072 = vmul.f32 %v4746, %v4056
    %v5073 = vmul.f32 %v4760, %v4060
    %v5074 = vmul.f32 %v4768, %v4064
    %v5075 = vmul.f32 %v4770, %v4068
    %v5076 = vmul.f32 %v4753, %v4072
    %v5077 = vmul.f32 %v4767, %v4076
    %v5078 = vmul.f32 %v4769, %v4080
    %v5079 = vmul.f32 %v4771, %v4084
    %v5080 = vmul.f32 %v4795, %v4088
    %v5081 = vmul.f32 %v4809, %v4092
    %v5082 = vmul.f32 %v4817, %v4096
    %v5083 = vmul.f32 %v4819, %v4100
    %v5084 = vmul.f32 %v4802, %v4104
    %v5085 = vmul.f32 %v4816, %v4108
    %v5086 = vmul.f32 %v4818, %v4112
    %v5087 = vmul.f32 %v4820, %v4116
    %v5088 = vmul.f32 %v4844, %v4024
    %v5089 = vmul.f32 %v4858, %v4028
    %v5090 = vmul.f32 %v4866, %v4032
    %v5091 = vmul.f32 %v4868, %v4036
    %v5092 = vmul.f32 %v4851, %v4040
    %v5093 = vmul.f32 %v4865, %v4044
    %v5094 = vmul.f32 %v4867, %v4048
    %v5095 = vmul.f32 %v4869, %v4052
    %v5096 = vmul.f32 %v4893, %v4056
    %v5097 = vmul.f32 %v4907, %v4060
    %v5098 = vmul.f32 %v4915, %v4064
    %v5099 = vmul.f32 %v4917, %v4068
    %v5100 = vmul.f32 %v4900, %v4072
    %v5101 = vmul.f32 %v4914, %v4076
    %v5102 = vmul.f32 %v4916, %v4080
    %v5103 = vmul.f32 %v4918, %v4084
    %v5104 = vmul.f32 %v4942, %v4088
    %v5105 = vmul.f32 %v4956, %v4092
    %v5106 = vmul.f32 %v4964, %v4096
    %v5107 = vmul.f32 %v4966, %v4100
    %v5108 = vmul.f32 %v4949, %v4104
    %v5109 = vmul.f32 %v4963, %v4108
    %v5110 = vmul.f32 %v4965, %v4112
    %v5111 = vmul.f32 %v4967, %v4116
    %v5112 = vmul.f32 %v5040, %v5040
    %v5113 = vmul.f32 %v5041, %v5041
    %v5114 = vmul.f32 %v5042, %v5042
    %v5115 = vmul.f32 %v5043, %v5043
    %v5116 = vmul.f32 %v5044, %v5044
    %v5117 = vmul.f32 %v5045, %v5045
    %v5118 = vmul.f32 %v5046, %v5046
    %v5119 = vmul.f32 %v5047, %v5047
    %v5120 = vmul.f32 %v5048, %v5048
    %v5121 = vmul.f32 %v5049, %v5049
    %v5122 = vmul.f32 %v5050, %v5050
    %v5123 = vmul.f32 %v5051, %v5051
    %v5124 = vmul.f32 %v5052, %v5052
    %v5125 = vmul.f32 %v5053, %v5053
    %v5126 = vmul.f32 %v5054, %v5054
    %v5127 = vmul.f32 %v5055, %v5055
    %v5128 = vmul.f32 %v5056, %v5056
    %v5129 = vmul.f32 %v5057, %v5057
    %v5130 = vmul.f32 %v5058, %v5058
    %v5131 = vmul.f32 %v5059, %v5059
    %v5132 = vmul.f32 %v5060, %v5060
    %v5133 = vmul.f32 %v5061, %v5061
    %v5134 = vmul.f32 %v5062, %v5062
    %v5135 = vmul.f32 %v5063, %v5063
    %v5136 = vmul.f32 %v5064, %v5064
    %v5137 = vmul.f32 %v5065, %v5065
    %v5138 = vmul.f32 %v5066, %v5066
    %v5139 = vmul.f32 %v5067, %v5067
    %v5140 = vmul.f32 %v5068, %v5068
    %v5141 = vmul.f32 %v5069, %v5069
    %v5142 = vmul.f32 %v5070, %v5070
    %v5143 = vmul.f32 %v5071, %v5071
    %v5144 = vmul.f32 %v5072, %v5072
    %v5145 = vmul.f32 %v5073, %v5073
    %v5146 = vmul.f32 %v5074, %v5074
    %v5147 = vmul.f32 %v5075, %v5075
    %v5148 = vmul.f32 %v5076, %v5076
    %v5149 = vmul.f32 %v5077, %v5077
    %v5150 = vmul.f32 %v5078, %v5078
    %v5151 = vmul.f32 %v5079, %v5079
    %v5152 = vmul.f32 %v5080, %v5080
    %v5153 = vmul.f32 %v5081, %v5081
    %v5154 = vmul.f32 %v5082, %v5082
    %v5155 = vmul.f32 %v5083, %v5083
    %v5156 = vmul.f32 %v5084, %v5084
    %v5157 = vmul.f32 %v5085, %v5085
    %v5158 = vmul.f32 %v5086, %v5086
    %v5159 = vmul.f32 %v5087, %v5087
    %v5160 = vmul.f32 %v5088, %v5088
    %v5161 = vmul.f32 %v5089, %v5089
    %v5162 = vmul.f32 %v5090, %v5090
    %v5163 = vmul.f32 %v5091, %v5091
    %v5164 = vmul.f32 %v5092, %v5092
    %v5165 = vmul.f32 %v5093, %v5093
    %v5166 = vmul.f32 %v5094, %v5094
    %v5167 = vmul.f32 %v5095, %v5095
    %v5168 = vmul.f32 %v5096, %v5096
    %v5169 = vmul.f32 %v5097, %v5097
    %v5170 = vmul.f32 %v5098, %v5098
    %v5171 = vmul.f32 %v5099, %v5099
    %v5172 = vmul.f32 %v5100, %v5100
    %v5173 = vmul.f32 %v5101, %v5101
    %v5174 = vmul.f32 %v5102, %v5102
    %v5175 = vmul.f32 %v5103, %v5103
    %v5176 = vmul.f32 %v5104, %v5104
    %v5177 = vmul.f32 %v5105, %v5105
    %v5178 = vmul.f32 %v5106, %v5106
    %v5179 = vmul.f32 %v5107, %v5107
    %v5180 = vmul.f32 %v5108, %v5108
    %v5181 = vmul.f32 %v5109, %v5109
    %v5182 = vmul.f32 %v5110, %v5110
    %v5183 = vmul.f32 %v5111, %v5111
    %v5256 = vcombine.low %v5112, %v5113
    %v5258 = vunpack.c.l.s4 1966171168
    %v5259 = vunpack.c.0.s8 %v5258
    %v5260 = vlaneseq
    %v5261 = vshrl.u32 %v5260, 7
    %v5262 = vsub.s32 %v5259, %v5261
    %v5263 = vrot.slane %v5256, %v5262
    %v5265 = vunpack.c.l.s4 1966171168
    %v5266 = vunpack.c.0.s8 %v5265
    %v5267 = vlaneseq
    %v5268 = vshrl.u32 %v5267, 7
    %v5269 = vsub.s32 %v5266, %v5268
    %v5270 = vrot.slane %v5114, %v5269
    %v5271 = vcombine.low %v5263, %v5270
    %v5273 = vunpack.c.l.s4 1966171168
    %v5274 = vunpack.c.0.s8 %v5273
    %v5275 = vlaneseq
    %v5276 = vshrl.u32 %v5275, 7
    %v5277 = vsub.s32 %v5274, %v5276
    %v5278 = vrot.slane %v5271, %v5277
    %v5279 = vcombine.low %v5115, %v5116
    %v5281 = vunpack.c.l.s4 1966171168
    %v5282 = vunpack.c.0.s8 %v5281
    %v5283 = vlaneseq
    %v5284 = vshrl.u32 %v5283, 7
    %v5285 = vsub.s32 %v5282, %v5284
    %v5286 = vrot.slane %v5279, %v5285
    %v5288 = vunpack.c.l.s4 1966171168
    %v5289 = vunpack.c.0.s8 %v5288
    %v5290 = vlaneseq
    %v5291 = vshrl.u32 %v5290, 7
    %v5292 = vsub.s32 %v5289, %v5291
    %v5293 = vrot.slane %v5117, %v5292
    %v5294 = vcombine.low %v5286, %v5293
    %v5296 = vunpack.c.l.s4 1966171168
    %v5297 = vunpack.c.0.s8 %v5296
    %v5298 = vlaneseq
    %v5299 = vshrl.u32 %v5298, 7
    %v5300 = vsub.s32 %v5297, %v5299
    %v5301 = vrot.slane %v5294, %v5300
    %v5302 = vcombine.low %v5118, %v5119
    %v5304 = vunpack.c.l.s4 1966171168
    %v5305 = vunpack.c.0.s8 %v5304
    %v5306 = vlaneseq
    %v5307 = vshrl.u32 %v5306, 7
    %v5308 = vsub.s32 %v5305, %v5307
    %v5309 = vrot.slane %v5302, %v5308
    %v5311 = vunpack.c.l.s4 1966171168
    %v5312 = vunpack.c.0.s8 %v5311
    %v5313 = vlaneseq
    %v5314 = vshrl.u32 %v5313, 7
    %v5315 = vsub.s32 %v5312, %v5314
    %v5316 = vrot.slane %v5120, %v5315
    %v5317 = vcombine.low %v5309, %v5316
    %v5319 = vunpack.c.l.s4 1966171168
    %v5320 = vunpack.c.0.s8 %v5319
    %v5321 = vlaneseq
    %v5322 = vshrl.u32 %v5321, 7
    %v5323 = vsub.s32 %v5320, %v5322
    %v5324 = vrot.slane %v5317, %v5323
    %v5325 = vcombine.low %v5121, %v5122
    %v5327 = vunpack.c.l.s4 1966171168
    %v5328 = vunpack.c.0.s8 %v5327
    %v5329 = vlaneseq
    %v5330 = vshrl.u32 %v5329, 7
    %v5331 = vsub.s32 %v5328, %v5330
    %v5332 = vrot.slane %v5325, %v5331
    %v5334 = vunpack.c.l.s4 1966171168
    %v5335 = vunpack.c.0.s8 %v5334
    %v5336 = vlaneseq
    %v5337 = vshrl.u32 %v5336, 7
    %v5338 = vsub.s32 %v5335, %v5337
    %v5339 = vrot.slane %v5123, %v5338
    %v5340 = vcombine.low %v5332, %v5339
    %v5342 = vunpack.c.l.s4 1966171168
    %v5343 = vunpack.c.0.s8 %v5342
    %v5344 = vlaneseq
    %v5345 = vshrl.u32 %v5344, 7
    %v5346 = vsub.s32 %v5343, %v5345
    %v5347 = vrot.slane %v5340, %v5346
    %v5348 = vcombine.low %v5124, %v5125
    %v5350 = vunpack.c.l.s4 1966171168
    %v5351 = vunpack.c.0.s8 %v5350
    %v5352 = vlaneseq
    %v5353 = vshrl.u32 %v5352, 7
    %v5354 = vsub.s32 %v5351, %v5353
    %v5355 = vrot.slane %v5348, %v5354
    %v5357 = vunpack.c.l.s4 1966171168
    %v5358 = vunpack.c.0.s8 %v5357
    %v5359 = vlaneseq
    %v5360 = vshrl.u32 %v5359, 7
    %v5361 = vsub.s32 %v5358, %v5360
    %v5362 = vrot.slane %v5126, %v5361
    %v5363 = vcombine.low %v5355, %v5362
    %v5365 = vunpack.c.l.s4 1966171168
    %v5366 = vunpack.c.0.s8 %v5365
    %v5367 = vlaneseq
    %v5368 = vshrl.u32 %v5367, 7
    %v5369 = vsub.s32 %v5366, %v5368
    %v5370 = vrot.slane %v5363, %v5369
    %v5371 = vcombine.low %v5127, %v5128
    %v5373 = vunpack.c.l.s4 1966171168
    %v5374 = vunpack.c.0.s8 %v5373
    %v5375 = vlaneseq
    %v5376 = vshrl.u32 %v5375, 7
    %v5377 = vsub.s32 %v5374, %v5376
    %v5378 = vrot.slane %v5371, %v5377
    %v5380 = vunpack.c.l.s4 1966171168
    %v5381 = vunpack.c.0.s8 %v5380
    %v5382 = vlaneseq
    %v5383 = vshrl.u32 %v5382, 7
    %v5384 = vsub.s32 %v5381, %v5383
    %v5385 = vrot.slane %v5129, %v5384
    %v5386 = vcombine.low %v5378, %v5385
    %v5388 = vunpack.c.l.s4 1966171168
    %v5389 = vunpack.c.0.s8 %v5388
    %v5390 = vlaneseq
    %v5391 = vshrl.u32 %v5390, 7
    %v5392 = vsub.s32 %v5389, %v5391
    %v5393 = vrot.slane %v5386, %v5392
    %v5394 = vcombine.low %v5130, %v5131
    %v5396 = vunpack.c.l.s4 1966171168
    %v5397 = vunpack.c.0.s8 %v5396
    %v5398 = vlaneseq
    %v5399 = vshrl.u32 %v5398, 7
    %v5400 = vsub.s32 %v5397, %v5399
    %v5401 = vrot.slane %v5394, %v5400
    %v5403 = vunpack.c.l.s4 1966171168
    %v5404 = vunpack.c.0.s8 %v5403
    %v5405 = vlaneseq
    %v5406 = vshrl.u32 %v5405, 7
    %v5407 = vsub.s32 %v5404, %v5406
    %v5408 = vrot.slane %v5132, %v5407
    %v5409 = vcombine.low %v5401, %v5408
    %v5411 = vunpack.c.l.s4 1966171168
    %v5412 = vunpack.c.0.s8 %v5411
    %v5413 = vlaneseq
    %v5414 = vshrl.u32 %v5413, 7
    %v5415 = vsub.s32 %v5412, %v5414
    %v5416 = vrot.slane %v5409, %v5415
    %v5417 = vcombine.low %v5133, %v5134
    %v5419 = vunpack.c.l.s4 1966171168
    %v5420 = vunpack.c.0.s8 %v5419
    %v5421 = vlaneseq
    %v5422 = vshrl.u32 %v5421, 7
    %v5423 = vsub.s32 %v5420, %v5422
    %v5424 = vrot.slane %v5417, %v5423
    %v5426 = vunpack.c.l.s4 1966171168
    %v5427 = vunpack.c.0.s8 %v5426
    %v5428 = vlaneseq
    %v5429 = vshrl.u32 %v5428, 7
    %v5430 = vsub.s32 %v5427, %v5429
    %v5431 = vrot.slane %v5135, %v5430
    %v5432 = vcombine.low %v5424, %v5431
    %v5434 = vunpack.c.l.s4 1966171168
    %v5435 = vunpack.c.0.s8 %v5434
    %v5436 = vlaneseq
    %v5437 = vshrl.u32 %v5436, 7
    %v5438 = vsub.s32 %v5435, %v5437
    %v5439 = vrot.slane %v5432, %v5438
    %v5440 = vcombine.low %v5136, %v5137
    %v5442 = vunpack.c.l.s4 1966171168
    %v5443 = vunpack.c.0.s8 %v5442
    %v5444 = vlaneseq
    %v5445 = vshrl.u32 %v5444, 7
    %v5446 = vsub.s32 %v5443, %v5445
    %v5447 = vrot.slane %v5440, %v5446
    %v5449 = vunpack.c.l.s4 1966171168
    %v5450 = vunpack.c.0.s8 %v5449
    %v5451 = vlaneseq
    %v5452 = vshrl.u32 %v5451, 7
    %v5453 = vsub.s32 %v5450, %v5452
    %v5454 = vrot.slane %v5138, %v5453
    %v5455 = vcombine.low %v5447, %v5454
    %v5457 = vunpack.c.l.s4 1966171168
    %v5458 = vunpack.c.0.s8 %v5457
    %v5459 = vlaneseq
    %v5460 = vshrl.u32 %v5459, 7
    %v5461 = vsub.s32 %v5458, %v5460
    %v5462 = vrot.slane %v5455, %v5461
    %v5463 = vcombine.low %v5139, %v5140
    %v5465 = vunpack.c.l.s4 1966171168
    %v5466 = vunpack.c.0.s8 %v5465
    %v5467 = vlaneseq
    %v5468 = vshrl.u32 %v5467, 7
    %v5469 = vsub.s32 %v5466, %v5468
    %v5470 = vrot.slane %v5463, %v5469
    %v5472 = vunpack.c.l.s4 1966171168
    %v5473 = vunpack.c.0.s8 %v5472
    %v5474 = vlaneseq
    %v5475 = vshrl.u32 %v5474, 7
    %v5476 = vsub.s32 %v5473, %v5475
    %v5477 = vrot.slane %v5141, %v5476
    %v5478 = vcombine.low %v5470, %v5477
    %v5480 = vunpack.c.l.s4 1966171168
    %v5481 = vunpack.c.0.s8 %v5480
    %v5482 = vlaneseq
    %v5483 = vshrl.u32 %v5482, 7
    %v5484 = vsub.s32 %v5481, %v5483
    %v5485 = vrot.slane %v5478, %v5484
    %v5486 = vcombine.low %v5142, %v5143
    %v5488 = vunpack.c.l.s4 1966171168
    %v5489 = vunpack.c.0.s8 %v5488
    %v5490 = vlaneseq
    %v5491 = vshrl.u32 %v5490, 7
    %v5492 = vsub.s32 %v5489, %v5491
    %v5493 = vrot.slane %v5486, %v5492
    %v5495 = vunpack.c.l.s4 1966171168
    %v5496 = vunpack.c.0.s8 %v5495
    %v5497 = vlaneseq
    %v5498 = vshrl.u32 %v5497, 7
    %v5499 = vsub.s32 %v5496, %v5498
    %v5500 = vrot.slane %v5144, %v5499
    %v5501 = vcombine.low %v5493, %v5500
    %v5503 = vunpack.c.l.s4 1966171168
    %v5504 = vunpack.c.0.s8 %v5503
    %v5505 = vlaneseq
    %v5506 = vshrl.u32 %v5505, 7
    %v5507 = vsub.s32 %v5504, %v5506
    %v5508 = vrot.slane %v5501, %v5507
    %v5509 = vcombine.low %v5145, %v5146
    %v5511 = vunpack.c.l.s4 1966171168
    %v5512 = vunpack.c.0.s8 %v5511
    %v5513 = vlaneseq
    %v5514 = vshrl.u32 %v5513, 7
    %v5515 = vsub.s32 %v5512, %v5514
    %v5516 = vrot.slane %v5509, %v5515
    %v5518 = vunpack.c.l.s4 1966171168
    %v5519 = vunpack.c.0.s8 %v5518
    %v5520 = vlaneseq
    %v5521 = vshrl.u32 %v5520, 7
    %v5522 = vsub.s32 %v5519, %v5521
    %v5523 = vrot.slane %v5147, %v5522
    %v5524 = vcombine.low %v5516, %v5523
    %v5526 = vunpack.c.l.s4 1966171168
    %v5527 = vunpack.c.0.s8 %v5526
    %v5528 = vlaneseq
    %v5529 = vshrl.u32 %v5528, 7
    %v5530 = vsub.s32 %v5527, %v5529
    %v5531 = vrot.slane %v5524, %v5530
    %v5532 = vcombine.low %v5148, %v5149
    %v5534 = vunpack.c.l.s4 1966171168
    %v5535 = vunpack.c.0.s8 %v5534
    %v5536 = vlaneseq
    %v5537 = vshrl.u32 %v5536, 7
    %v5538 = vsub.s32 %v5535, %v5537
    %v5539 = vrot.slane %v5532, %v5538
    %v5541 = vunpack.c.l.s4 1966171168
    %v5542 = vunpack.c.0.s8 %v5541
    %v5543 = vlaneseq
    %v5544 = vshrl.u32 %v5543, 7
    %v5545 = vsub.s32 %v5542, %v5544
    %v5546 = vrot.slane %v5150, %v5545
    %v5547 = vcombine.low %v5539, %v5546
    %v5549 = vunpack.c.l.s4 1966171168
    %v5550 = vunpack.c.0.s8 %v5549
    %v5551 = vlaneseq
    %v5552 = vshrl.u32 %v5551, 7
    %v5553 = vsub.s32 %v5550, %v5552
    %v5554 = vrot.slane %v5547, %v5553
    %v5555 = vcombine.low %v5151, %v5152
    %v5557 = vunpack.c.l.s4 1966171168
    %v5558 = vunpack.c.0.s8 %v5557
    %v5559 = vlaneseq
    %v5560 = vshrl.u32 %v5559, 7
    %v5561 = vsub.s32 %v5558, %v5560
    %v5562 = vrot.slane %v5555, %v5561
    %v5564 = vunpack.c.l.s4 1966171168
    %v5565 = vunpack.c.0.s8 %v5564
    %v5566 = vlaneseq
    %v5567 = vshrl.u32 %v5566, 7
    %v5568 = vsub.s32 %v5565, %v5567
    %v5569 = vrot.slane %v5153, %v5568
    %v5570 = vcombine.low %v5562, %v5569
    %v5572 = vunpack.c.l.s4 1966171168
    %v5573 = vunpack.c.0.s8 %v5572
    %v5574 = vlaneseq
    %v5575 = vshrl.u32 %v5574, 7
    %v5576 = vsub.s32 %v5573, %v5575
    %v5577 = vrot.slane %v5570, %v5576
    %v5578 = vcombine.low %v5154, %v5155
    %v5580 = vunpack.c.l.s4 1966171168
    %v5581 = vunpack.c.0.s8 %v5580
    %v5582 = vlaneseq
    %v5583 = vshrl.u32 %v5582, 7
    %v5584 = vsub.s32 %v5581, %v5583
    %v5585 = vrot.slane %v5578, %v5584
    %v5587 = vunpack.c.l.s4 1966171168
    %v5588 = vunpack.c.0.s8 %v5587
    %v5589 = vlaneseq
    %v5590 = vshrl.u32 %v5589, 7
    %v5591 = vsub.s32 %v5588, %v5590
    %v5592 = vrot.slane %v5156, %v5591
    %v5593 = vcombine.low %v5585, %v5592
    %v5595 = vunpack.c.l.s4 1966171168
    %v5596 = vunpack.c.0.s8 %v5595
    %v5597 = vlaneseq
    %v5598 = vshrl.u32 %v5597, 7
    %v5599 = vsub.s32 %v5596, %v5598
    %v5600 = vrot.slane %v5593, %v5599
    %v5601 = vcombine.low %v5157, %v5158
    %v5603 = vunpack.c.l.s4 1966171168
    %v5604 = vunpack.c.0.s8 %v5603
    %v5605 = vlaneseq
    %v5606 = vshrl.u32 %v5605, 7
    %v5607 = vsub.s32 %v5604, %v5606
    %v5608 = vrot.slane %v5601, %v5607
    %v5610 = vunpack.c.l.s4 1966171168
    %v5611 = vunpack.c.0.s8 %v5610
    %v5612 = vlaneseq
    %v5613 = vshrl.u32 %v5612, 7
    %v5614 = vsub.s32 %v5611, %v5613
    %v5615 = vrot.slane %v5159, %v5614
    %v5616 = vcombine.low %v5608, %v5615
    %v5618 = vunpack.c.l.s4 1966171168
    %v5619 = vunpack.c.0.s8 %v5618
    %v5620 = vlaneseq
    %v5621 = vshrl.u32 %v5620, 7
    %v5622 = vsub.s32 %v5619, %v5621
    %v5623 = vrot.slane %v5616, %v5622
    %v5624 = vcombine.low %v5160, %v5161
    %v5626 = vunpack.c.l.s4 1966171168
    %v5627 = vunpack.c.0.s8 %v5626
    %v5628 = vlaneseq
    %v5629 = vshrl.u32 %v5628, 7
    %v5630 = vsub.s32 %v5627, %v5629
    %v5631 = vrot.slane %v5624, %v5630
    %v5633 = vunpack.c.l.s4 1966171168
    %v5634 = vunpack.c.0.s8 %v5633
    %v5635 = vlaneseq
    %v5636 = vshrl.u32 %v5635, 7
    %v5637 = vsub.s32 %v5634, %v5636
    %v5638 = vrot.slane %v5162, %v5637
    %v5639 = vcombine.low %v5631, %v5638
    %v5641 = vunpack.c.l.s4 1966171168
    %v5642 = vunpack.c.0.s8 %v5641
    %v5643 = vlaneseq
    %v5644 = vshrl.u32 %v5643, 7
    %v5645 = vsub.s32 %v5642, %v5644
    %v5646 = vrot.slane %v5639, %v5645
    %v5647 = vcombine.low %v5163, %v5164
    %v5649 = vunpack.c.l.s4 1966171168
    %v5650 = vunpack.c.0.s8 %v5649
    %v5651 = vlaneseq
    %v5652 = vshrl.u32 %v5651, 7
    %v5653 = vsub.s32 %v5650, %v5652
    %v5654 = vrot.slane %v5647, %v5653
    %v5656 = vunpack.c.l.s4 1966171168
    %v5657 = vunpack.c.0.s8 %v5656
    %v5658 = vlaneseq
    %v5659 = vshrl.u32 %v5658, 7
    %v5660 = vsub.s32 %v5657, %v5659
    %v5661 = vrot.slane %v5165, %v5660
    %v5662 = vcombine.low %v5654, %v5661
    %v5664 = vunpack.c.l.s4 1966171168
    %v5665 = vunpack.c.0.s8 %v5664
    %v5666 = vlaneseq
    %v5667 = vshrl.u32 %v5666, 7
    %v5668 = vsub.s32 %v5665, %v5667
    %v5669 = vrot.slane %v5662, %v5668
    %v5670 = vcombine.low %v5166, %v5167
    %v5672 = vunpack.c.l.s4 1966171168
    %v5673 = vunpack.c.0.s8 %v5672
    %v5674 = vlaneseq
    %v5675 = vshrl.u32 %v5674, 7
    %v5676 = vsub.s32 %v5673, %v5675
    %v5677 = vrot.slane %v5670, %v5676
    %v5679 = vunpack.c.l.s4 1966171168
    %v5680 = vunpack.c.0.s8 %v5679
    %v5681 = vlaneseq
    %v5682 = vshrl.u32 %v5681, 7
    %v5683 = vsub.s32 %v5680, %v5682
    %v5684 = vrot.slane %v5168, %v5683
    %v5685 = vcombine.low %v5677, %v5684
    %v5687 = vunpack.c.l.s4 1966171168
    %v5688 = vunpack.c.0.s8 %v5687
    %v5689 = vlaneseq
    %v5690 = vshrl.u32 %v5689, 7
    %v5691 = vsub.s32 %v5688, %v5690
    %v5692 = vrot.slane %v5685, %v5691
    %v5693 = vcombine.low %v5169, %v5170
    %v5695 = vunpack.c.l.s4 1966171168
    %v5696 = vunpack.c.0.s8 %v5695
    %v5697 = vlaneseq
    %v5698 = vshrl.u32 %v5697, 7
    %v5699 = vsub.s32 %v5696, %v5698
    %v5700 = vrot.slane %v5693, %v5699
    %v5702 = vunpack.c.l.s4 1966171168
    %v5703 = vunpack.c.0.s8 %v5702
    %v5704 = vlaneseq
    %v5705 = vshrl.u32 %v5704, 7
    %v5706 = vsub.s32 %v5703, %v5705
    %v5707 = vrot.slane %v5171, %v5706
    %v5708 = vcombine.low %v5700, %v5707
    %v5710 = vunpack.c.l.s4 1966171168
    %v5711 = vunpack.c.0.s8 %v5710
    %v5712 = vlaneseq
    %v5713 = vshrl.u32 %v5712, 7
    %v5714 = vsub.s32 %v5711, %v5713
    %v5715 = vrot.slane %v5708, %v5714
    %v5716 = vcombine.low %v5172, %v5173
    %v5718 = vunpack.c.l.s4 1966171168
    %v5719 = vunpack.c.0.s8 %v5718
    %v5720 = vlaneseq
    %v5721 = vshrl.u32 %v5720, 7
    %v5722 = vsub.s32 %v5719, %v5721
    %v5723 = vrot.slane %v5716, %v5722
    %v5725 = vunpack.c.l.s4 1966171168
    %v5726 = vunpack.c.0.s8 %v5725
    %v5727 = vlaneseq
    %v5728 = vshrl.u32 %v5727, 7
    %v5729 = vsub.s32 %v5726, %v5728
    %v5730 = vrot.slane %v5174, %v5729
    %v5731 = vcombine.low %v5723, %v5730
    %v5733 = vunpack.c.l.s4 1966171168
    %v5734 = vunpack.c.0.s8 %v5733
    %v5735 = vlaneseq
    %v5736 = vshrl.u32 %v5735, 7
    %v5737 = vsub.s32 %v5734, %v5736
    %v5738 = vrot.slane %v5731, %v5737
    %v5739 = vcombine.low %v5175, %v5176
    %v5741 = vunpack.c.l.s4 1966171168
    %v5742 = vunpack.c.0.s8 %v5741
    %v5743 = vlaneseq
    %v5744 = vshrl.u32 %v5743, 7
    %v5745 = vsub.s32 %v5742, %v5744
    %v5746 = vrot.slane %v5739, %v5745
    %v5748 = vunpack.c.l.s4 1966171168
    %v5749 = vunpack.c.0.s8 %v5748
    %v5750 = vlaneseq
    %v5751 = vshrl.u32 %v5750, 7
    %v5752 = vsub.s32 %v5749, %v5751
    %v5753 = vrot.slane %v5177, %v5752
    %v5754 = vcombine.low %v5746, %v5753
    %v5756 = vunpack.c.l.s4 1966171168
    %v5757 = vunpack.c.0.s8 %v5756
    %v5758 = vlaneseq
    %v5759 = vshrl.u32 %v5758, 7
    %v5760 = vsub.s32 %v5757, %v5759
    %v5761 = vrot.slane %v5754, %v5760
    %v5762 = vcombine.low %v5178, %v5179
    %v5764 = vunpack.c.l.s4 1966171168
    %v5765 = vunpack.c.0.s8 %v5764
    %v5766 = vlaneseq
    %v5767 = vshrl.u32 %v5766, 7
    %v5768 = vsub.s32 %v5765, %v5767
    %v5769 = vrot.slane %v5762, %v5768
    %v5771 = vunpack.c.l.s4 1966171168
    %v5772 = vunpack.c.0.s8 %v5771
    %v5773 = vlaneseq
    %v5774 = vshrl.u32 %v5773, 7
    %v5775 = vsub.s32 %v5772, %v5774
    %v5776 = vrot.slane %v5180, %v5775
    %v5777 = vcombine.low %v5769, %v5776
    %v5779 = vunpack.c.l.s4 1966171168
    %v5780 = vunpack.c.0.s8 %v5779
    %v5781 = vlaneseq
    %v5782 = vshrl.u32 %v5781, 7
    %v5783 = vsub.s32 %v5780, %v5782
    %v5784 = vrot.slane %v5777, %v5783
    %v5785 = vcombine.low %v5181, %v5182
    %v5787 = vunpack.c.l.s4 1966171168
    %v5788 = vunpack.c.0.s8 %v5787
    %v5789 = vlaneseq
    %v5790 = vshrl.u32 %v5789, 7
    %v5791 = vsub.s32 %v5788, %v5790
    %v5792 = vrot.slane %v5785, %v5791
    %v5794 = vunpack.c.l.s4 1966171168
    %v5795 = vunpack.c.0.s8 %v5794
    %v5796 = vlaneseq
    %v5797 = vshrl.u32 %v5796, 7
    %v5798 = vsub.s32 %v5795, %v5797
    %v5799 = vrot.slane %v5183, %v5798
    %v5800 = vcombine.low %v5792, %v5799
    %v5802 = vunpack.c.l.s4 1966171168
    %v5803 = vunpack.c.0.s8 %v5802
    %v5804 = vlaneseq
    %v5805 = vshrl.u32 %v5804, 7
    %v5806 = vsub.s32 %v5803, %v5805
    %v5807 = vrot.slane %v5800, %v5806
    %vm5832 = vcmask 59392
    %v5833 = vsel %vm5832, %v5278, 0.0
    %v5834 = vsel %vm5832, %v5301, 0.0
    %v5835 = vadd.f32 %v5833, %v5834
    %v5836 = vsel %vm5832, %v5324, 0.0
    %v5837 = vadd.f32 %v5835, %v5836
    %v5838 = vsel %vm5832, %v5347, 0.0
    %v5839 = vadd.f32 %v5837, %v5838
    %v5840 = vsel %vm5832, %v5370, 0.0
    %v5841 = vadd.f32 %v5839, %v5840
    %v5842 = vsel %vm5832, %v5393, 0.0
    %v5843 = vadd.f32 %v5841, %v5842
    %v5844 = vsel %vm5832, %v5416, 0.0
    %v5845 = vadd.f32 %v5843, %v5844
    %v5846 = vsel %vm5832, %v5439, 0.0
    %v5847 = vadd.f32 %v5845, %v5846
    %v5848 = vsel %vm5832, %v5462, 0.0
    %v5849 = vsel %vm5832, %v5485, 0.0
    %v5850 = vadd.f32 %v5848, %v5849
    %v5851 = vsel %vm5832, %v5508, 0.0
    %v5852 = vadd.f32 %v5850, %v5851
    %v5853 = vsel %vm5832, %v5531, 0.0
    %v5854 = vadd.f32 %v5852, %v5853
    %v5855 = vsel %vm5832, %v5554, 0.0
    %v5856 = vadd.f32 %v5854, %v5855
    %v5857 = vsel %vm5832, %v5577, 0.0
    %v5858 = vadd.f32 %v5856, %v5857
    %v5859 = vsel %vm5832, %v5600, 0.0
    %v5860 = vadd.f32 %v5858, %v5859
    %v5861 = vsel %vm5832, %v5623, 0.0
    %v5862 = vadd.f32 %v5860, %v5861
    %v5863 = vsel %vm5832, %v5646, 0.0
    %v5864 = vsel %vm5832, %v5669, 0.0
    %v5865 = vadd.f32 %v5863, %v5864
    %v5866 = vsel %vm5832, %v5692, 0.0
    %v5867 = vadd.f32 %v5865, %v5866
    %v5868 = vsel %vm5832, %v5715, 0.0
    %v5869 = vadd.f32 %v5867, %v5868
    %v5870 = vsel %vm5832, %v5738, 0.0
    %v5871 = vadd.f32 %v5869, %v5870
    %v5872 = vsel %vm5832, %v5761, 0.0
    %v5873 = vadd.f32 %v5871, %v5872
    %v5874 = vsel %vm5832, %v5784, 0.0
    %v5875 = vadd.f32 %v5873, %v5874
    %v5876 = vsel %vm5832, %v5807, 0.0
    %v5877 = vadd.f32 %v5875, %v5876
    %v5878 = vadd.f32 %v5847, 1e-16
    %v5879 = vadd.f32 %v5862, 1e-16
    %v5880 = vadd.f32 %v5877, 1e-16
    %v5881 = vrsqrt.pop %v5878
    %v5882 = vrsqrt.pop %v5879
    %v5883 = vrsqrt.pop %v5880
    %v5888 = vunpack.c.l.s4 1966171168
    %v5889 = vunpack.c.0.s8 %v5888
    %v5890 = vlaneseq
    %v5891 = vshrl.u32 %v5890, 7
    %v5892 = vsub.s32 %v5889, %v5891
    %v5893 = vrot.slane %v5881, %v5892
    %v5894 = vcombine.high %v5893, %v5893
    %v5896 = vunpack.c.l.s4 1966171168
    %v5897 = vunpack.c.0.s8 %v5896
    %v5898 = vlaneseq
    %v5899 = vshrl.u32 %v5898, 7
    %v5900 = vsub.s32 %v5897, %v5899
    %v5901 = vrot.slane %v5893, %v5900
    %v5903 = vunpack.c.l.s4 1966171168
    %v5904 = vunpack.c.0.s8 %v5903
    %v5905 = vlaneseq
    %v5906 = vshrl.u32 %v5905, 7
    %v5907 = vsub.s32 %v5904, %v5906
    %v5908 = vrot.slane %v5894, %v5907
    %v5909 = vcombine.high %v5901, %v5901
    %v5911 = vunpack.c.l.s4 1966171168
    %v5912 = vunpack.c.0.s8 %v5911
    %v5913 = vlaneseq
    %v5914 = vshrl.u32 %v5913, 7
    %v5915 = vsub.s32 %v5912, %v5914
    %v5916 = vrot.slane %v5882, %v5915
    %v5917 = vcombine.high %v5916, %v5916
    %v5919 = vunpack.c.l.s4 1966171168
    %v5920 = vunpack.c.0.s8 %v5919
    %v5921 = vlaneseq
    %v5922 = vshrl.u32 %v5921, 7
    %v5923 = vsub.s32 %v5920, %v5922
    %v5924 = vrot.slane %v5916, %v5923
    %v5926 = vunpack.c.l.s4 1966171168
    %v5927 = vunpack.c.0.s8 %v5926
    %v5928 = vlaneseq
    %v5929 = vshrl.u32 %v5928, 7
    %v5930 = vsub.s32 %v5927, %v5929
    %v5931 = vrot.slane %v5917, %v5930
    %v5932 = vcombine.high %v5924, %v5924
    %v5934 = vunpack.c.l.s4 1966171168
    %v5935 = vunpack.c.0.s8 %v5934
    %v5936 = vlaneseq
    %v5937 = vshrl.u32 %v5936, 7
    %v5938 = vsub.s32 %v5935, %v5937
    %v5939 = vrot.slane %v5883, %v5938
    %v5940 = vcombine.high %v5939, %v5939
    %v5942 = vunpack.c.l.s4 1966171168
    %v5943 = vunpack.c.0.s8 %v5942
    %v5944 = vlaneseq
    %v5945 = vshrl.u32 %v5944, 7
    %v5946 = vsub.s32 %v5943, %v5945
    %v5947 = vrot.slane %v5939, %v5946
    %v5949 = vunpack.c.l.s4 1966171168
    %v5950 = vunpack.c.0.s8 %v5949
    %v5951 = vlaneseq
    %v5952 = vshrl.u32 %v5951, 7
    %v5953 = vsub.s32 %v5950, %v5952
    %v5954 = vrot.slane %v5940, %v5953
    %v5955 = vcombine.high %v5947, %v5947
    %v5965 = vmul.f32 %v5040, %v5901
    %v5966 = vmul.f32 %v5041, %v5908
    %v5967 = vmul.f32 %v5042, %v5909
    %v5968 = vmul.f32 %v5043, %v5901
    %v5969 = vmul.f32 %v5044, %v5908
    %v5970 = vmul.f32 %v5045, %v5909
    %v5971 = vmul.f32 %v5046, %v5901
    %v5972 = vmul.f32 %v5047, %v5908
    %v5973 = vmul.f32 %v5048, %v5909
    %v5974 = vmul.f32 %v5049, %v5901
    %v5975 = vmul.f32 %v5050, %v5908
    %v5976 = vmul.f32 %v5051, %v5909
    %v5977 = vmul.f32 %v5052, %v5901
    %v5978 = vmul.f32 %v5053, %v5908
    %v5979 = vmul.f32 %v5054, %v5909
    %v5980 = vmul.f32 %v5055, %v5901
    %v5981 = vmul.f32 %v5056, %v5908
    %v5982 = vmul.f32 %v5057, %v5909
    %v5983 = vmul.f32 %v5058, %v5901
    %v5984 = vmul.f32 %v5059, %v5908
    %v5985 = vmul.f32 %v5060, %v5909
    %v5986 = vmul.f32 %v5061, %v5901
    %v5987 = vmul.f32 %v5062, %v5908
    %v5988 = vmul.f32 %v5063, %v5909
    %v5989 = vmul.f32 %v5064, %v5924
    %v5990 = vmul.f32 %v5065, %v5931
    %v5991 = vmul.f32 %v5066, %v5932
    %v5992 = vmul.f32 %v5067, %v5924
    %v5993 = vmul.f32 %v5068, %v5931
    %v5994 = vmul.f32 %v5069, %v5932
    %v5995 = vmul.f32 %v5070, %v5924
    %v5996 = vmul.f32 %v5071, %v5931
    %v5997 = vmul.f32 %v5072, %v5932
    %v5998 = vmul.f32 %v5073, %v5924
    %v5999 = vmul.f32 %v5074, %v5931
    %v6000 = vmul.f32 %v5075, %v5932
    %v6001 = vmul.f32 %v5076, %v5924
    %v6002 = vmul.f32 %v5077, %v5931
    %v6003 = vmul.f32 %v5078, %v5932
    %v6004 = vmul.f32 %v5079, %v5924
    %v6005 = vmul.f32 %v5080, %v5931
    %v6006 = vmul.f32 %v5081, %v5932
    %v6007 = vmul.f32 %v5082, %v5924
    %v6008 = vmul.f32 %v5083, %v5931
    %v6009 = vmul.f32 %v5084, %v5932
    %v6010 = vmul.f32 %v5085, %v5924
    %v6011 = vmul.f32 %v5086, %v5931
    %v6012 = vmul.f32 %v5087, %v5932
    %v6013 = vmul.f32 %v5088, %v5947
    %v6014 = vmul.f32 %v5089, %v5954
    %v6015 = vmul.f32 %v5090, %v5955
    %v6016 = vmul.f32 %v5091, %v5947
    %v6017 = vmul.f32 %v5092, %v5954
    %v6018 = vmul.f32 %v5093, %v5955
    %v6019 = vmul.f32 %v5094, %v5947
    %v6020 = vmul.f32 %v5095, %v5954
    %v6021 = vmul.f32 %v5096, %v5955
    %v6022 = vmul.f32 %v5097, %v5947
    %v6023 = vmul.f32 %v5098, %v5954
    %v6024 = vmul.f32 %v5099, %v5955
    %v6025 = vmul.f32 %v5100, %v5947
    %v6026 = vmul.f32 %v5101, %v5954
    %v6027 = vmul.f32 %v5102, %v5955
    %v6028 = vmul.f32 %v5103, %v5947
    %v6029 = vmul.f32 %v5104, %v5954
    %v6030 = vmul.f32 %v5105, %v5955
    %v6031 = vmul.f32 %v5106, %v5947
    %v6032 = vmul.f32 %v5107, %v5954
    %v6033 = vmul.f32 %v5108, %v5955
    %v6034 = vmul.f32 %v5109, %v5947
    %v6035 = vmul.f32 %v5110, %v5954
    %v6036 = vmul.f32 %v5111, %v5955
    %v6037 = vmul.f32 %v5965, 9.0
    %v6038 = vmul.f32 %v5966, 9.0
    %v6039 = vmul.f32 %v5967, 9.0
    %v6040 = vmul.f32 %v5968, 9.0
    %v6041 = vmul.f32 %v5969, 9.0
    %v6042 = vmul.f32 %v5970, 9.0
    %v6043 = vmul.f32 %v5971, 9.0
    %v6044 = vmul.f32 %v5972, 9.0
    %v6045 = vmul.f32 %v5973, 9.0
    %v6046 = vmul.f32 %v5974, 9.0
    %v6047 = vmul.f32 %v5975, 9.0
    %v6048 = vmul.f32 %v5976, 9.0
    %v6049 = vmul.f32 %v5977, 9.0
    %v6050 = vmul.f32 %v5978, 9.0
    %v6051 = vmul.f32 %v5979, 9.0
    %v6052 = vmul.f32 %v5980, 9.0
    %v6053 = vmul.f32 %v5981, 9.0
    %v6054 = vmul.f32 %v5982, 9.0
    %v6055 = vmul.f32 %v5983, 9.0
    %v6056 = vmul.f32 %v5984, 9.0
    %v6057 = vmul.f32 %v5985, 9.0
    %v6058 = vmul.f32 %v5986, 9.0
    %v6059 = vmul.f32 %v5987, 9.0
    %v6060 = vmul.f32 %v5988, 9.0
    %v6061 = vmul.f32 %v5989, 9.0
    %v6062 = vmul.f32 %v5990, 9.0
    %v6063 = vmul.f32 %v5991, 9.0
    %v6064 = vmul.f32 %v5992, 9.0
    %v6065 = vmul.f32 %v5993, 9.0
    %v6066 = vmul.f32 %v5994, 9.0
    %v6067 = vmul.f32 %v5995, 9.0
    %v6068 = vmul.f32 %v5996, 9.0
    %v6069 = vmul.f32 %v5997, 9.0
    %v6070 = vmul.f32 %v5998, 9.0
    %v6071 = vmul.f32 %v5999, 9.0
    %v6072 = vmul.f32 %v6000, 9.0
    %v6073 = vmul.f32 %v6001, 9.0
    %v6074 = vmul.f32 %v6002, 9.0
    %v6075 = vmul.f32 %v6003, 9.0
    %v6076 = vmul.f32 %v6004, 9.0
    %v6077 = vmul.f32 %v6005, 9.0
    %v6078 = vmul.f32 %v6006, 9.0
    %v6079 = vmul.f32 %v6007, 9.0
    %v6080 = vmul.f32 %v6008, 9.0
    %v6081 = vmul.f32 %v6009, 9.0
    %v6082 = vmul.f32 %v6010, 9.0
    %v6083 = vmul.f32 %v6011, 9.0
    %v6084 = vmul.f32 %v6012, 9.0
    %v6085 = vmul.f32 %v6013, 9.0
    %v6086 = vmul.f32 %v6014, 9.0
    %v6087 = vmul.f32 %v6015, 9.0
    %v6088 = vmul.f32 %v6016, 9.0
    %v6089 = vmul.f32 %v6017, 9.0
    %v6090 = vmul.f32 %v6018, 9.0
    %v6091 = vmul.f32 %v6019, 9.0
    %v6092 = vmul.f32 %v6020, 9.0
    %v6093 = vmul.f32 %v6021, 9.0
    %v6094 = vmul.f32 %v6022, 9.0
    %v6095 = vmul.f32 %v6023, 9.0
    %v6096 = vmul.f32 %v6024, 9.0
    %v6097 = vmul.f32 %v6025, 9.0
    %v6098 = vmul.f32 %v6026, 9.0
    %v6099 = vmul.f32 %v6027, 9.0
    %v6100 = vmul.f32 %v6028, 9.0
    %v6101 = vmul.f32 %v6029, 9.0
    %v6102 = vmul.f32 %v6030, 9.0
    %v6103 = vmul.f32 %v6031, 9.0
    %v6104 = vmul.f32 %v6032, 9.0
    %v6105 = vmul.f32 %v6033, 9.0
    %v6106 = vmul.f32 %v6034, 9.0
    %v6107 = vmul.f32 %v6035, 9.0
    %v6108 = vmul.f32 %v6036, 9.0
    %v6181 = vcombine.low %v6037, %v6038
    %v6183 = vunpack.c.l.s4 1966171168
    %v6184 = vunpack.c.0.s8 %v6183
    %v6185 = vlaneseq
    %v6186 = vshrl.u32 %v6185, 7
    %v6187 = vsub.s32 %v6184, %v6186
    %v6188 = vrot.slane %v6181, %v6187
    %v6190 = vunpack.c.l.s4 1966171168
    %v6191 = vunpack.c.0.s8 %v6190
    %v6192 = vlaneseq
    %v6193 = vshrl.u32 %v6192, 7
    %v6194 = vsub.s32 %v6191, %v6193
    %v6195 = vrot.slane %v6039, %v6194
    %v6196 = vcombine.low %v6188, %v6195
    %v6198 = vunpack.c.l.s4 1966171168
    %v6199 = vunpack.c.0.s8 %v6198
    %v6200 = vlaneseq
    %v6201 = vshrl.u32 %v6200, 7
    %v6202 = vsub.s32 %v6199, %v6201
    %v6203 = vrot.slane %v6196, %v6202
    %v6204 = vcombine.low %v6040, %v6041
    %v6206 = vunpack.c.l.s4 1966171168
    %v6207 = vunpack.c.0.s8 %v6206
    %v6208 = vlaneseq
    %v6209 = vshrl.u32 %v6208, 7
    %v6210 = vsub.s32 %v6207, %v6209
    %v6211 = vrot.slane %v6204, %v6210
    %v6213 = vunpack.c.l.s4 1966171168
    %v6214 = vunpack.c.0.s8 %v6213
    %v6215 = vlaneseq
    %v6216 = vshrl.u32 %v6215, 7
    %v6217 = vsub.s32 %v6214, %v6216
    %v6218 = vrot.slane %v6042, %v6217
    %v6219 = vcombine.low %v6211, %v6218
    %v6221 = vunpack.c.l.s4 1966171168
    %v6222 = vunpack.c.0.s8 %v6221
    %v6223 = vlaneseq
    %v6224 = vshrl.u32 %v6223, 7
    %v6225 = vsub.s32 %v6222, %v6224
    %v6226 = vrot.slane %v6219, %v6225
    %v6227 = vcombine.low %v6043, %v6044
    %v6229 = vunpack.c.l.s4 1966171168
    %v6230 = vunpack.c.0.s8 %v6229
    %v6231 = vlaneseq
    %v6232 = vshrl.u32 %v6231, 7
    %v6233 = vsub.s32 %v6230, %v6232
    %v6234 = vrot.slane %v6227, %v6233
    %v6236 = vunpack.c.l.s4 1966171168
    %v6237 = vunpack.c.0.s8 %v6236
    %v6238 = vlaneseq
    %v6239 = vshrl.u32 %v6238, 7
    %v6240 = vsub.s32 %v6237, %v6239
    %v6241 = vrot.slane %v6045, %v6240
    %v6242 = vcombine.low %v6234, %v6241
    %v6244 = vunpack.c.l.s4 1966171168
    %v6245 = vunpack.c.0.s8 %v6244
    %v6246 = vlaneseq
    %v6247 = vshrl.u32 %v6246, 7
    %v6248 = vsub.s32 %v6245, %v6247
    %v6249 = vrot.slane %v6242, %v6248
    %v6250 = vcombine.low %v6046, %v6047
    %v6252 = vunpack.c.l.s4 1966171168
    %v6253 = vunpack.c.0.s8 %v6252
    %v6254 = vlaneseq
    %v6255 = vshrl.u32 %v6254, 7
    %v6256 = vsub.s32 %v6253, %v6255
    %v6257 = vrot.slane %v6250, %v6256
    %v6259 = vunpack.c.l.s4 1966171168
    %v6260 = vunpack.c.0.s8 %v6259
    %v6261 = vlaneseq
    %v6262 = vshrl.u32 %v6261, 7
    %v6263 = vsub.s32 %v6260, %v6262
    %v6264 = vrot.slane %v6048, %v6263
    %v6265 = vcombine.low %v6257, %v6264
    %v6267 = vunpack.c.l.s4 1966171168
    %v6268 = vunpack.c.0.s8 %v6267
    %v6269 = vlaneseq
    %v6270 = vshrl.u32 %v6269, 7
    %v6271 = vsub.s32 %v6268, %v6270
    %v6272 = vrot.slane %v6265, %v6271
    %v6273 = vcombine.low %v6049, %v6050
    %v6275 = vunpack.c.l.s4 1966171168
    %v6276 = vunpack.c.0.s8 %v6275
    %v6277 = vlaneseq
    %v6278 = vshrl.u32 %v6277, 7
    %v6279 = vsub.s32 %v6276, %v6278
    %v6280 = vrot.slane %v6273, %v6279
    %v6282 = vunpack.c.l.s4 1966171168
    %v6283 = vunpack.c.0.s8 %v6282
    %v6284 = vlaneseq
    %v6285 = vshrl.u32 %v6284, 7
    %v6286 = vsub.s32 %v6283, %v6285
    %v6287 = vrot.slane %v6051, %v6286
    %v6288 = vcombine.low %v6280, %v6287
    %v6290 = vunpack.c.l.s4 1966171168
    %v6291 = vunpack.c.0.s8 %v6290
    %v6292 = vlaneseq
    %v6293 = vshrl.u32 %v6292, 7
    %v6294 = vsub.s32 %v6291, %v6293
    %v6295 = vrot.slane %v6288, %v6294
    %v6296 = vcombine.low %v6052, %v6053
    %v6298 = vunpack.c.l.s4 1966171168
    %v6299 = vunpack.c.0.s8 %v6298
    %v6300 = vlaneseq
    %v6301 = vshrl.u32 %v6300, 7
    %v6302 = vsub.s32 %v6299, %v6301
    %v6303 = vrot.slane %v6296, %v6302
    %v6305 = vunpack.c.l.s4 1966171168
    %v6306 = vunpack.c.0.s8 %v6305
    %v6307 = vlaneseq
    %v6308 = vshrl.u32 %v6307, 7
    %v6309 = vsub.s32 %v6306, %v6308
    %v6310 = vrot.slane %v6054, %v6309
    %v6311 = vcombine.low %v6303, %v6310
    %v6313 = vunpack.c.l.s4 1966171168
    %v6314 = vunpack.c.0.s8 %v6313
    %v6315 = vlaneseq
    %v6316 = vshrl.u32 %v6315, 7
    %v6317 = vsub.s32 %v6314, %v6316
    %v6318 = vrot.slane %v6311, %v6317
    %v6319 = vcombine.low %v6055, %v6056
    %v6321 = vunpack.c.l.s4 1966171168
    %v6322 = vunpack.c.0.s8 %v6321
    %v6323 = vlaneseq
    %v6324 = vshrl.u32 %v6323, 7
    %v6325 = vsub.s32 %v6322, %v6324
    %v6326 = vrot.slane %v6319, %v6325
    %v6328 = vunpack.c.l.s4 1966171168
    %v6329 = vunpack.c.0.s8 %v6328
    %v6330 = vlaneseq
    %v6331 = vshrl.u32 %v6330, 7
    %v6332 = vsub.s32 %v6329, %v6331
    %v6333 = vrot.slane %v6057, %v6332
    %v6334 = vcombine.low %v6326, %v6333
    %v6336 = vunpack.c.l.s4 1966171168
    %v6337 = vunpack.c.0.s8 %v6336
    %v6338 = vlaneseq
    %v6339 = vshrl.u32 %v6338, 7
    %v6340 = vsub.s32 %v6337, %v6339
    %v6341 = vrot.slane %v6334, %v6340
    %v6342 = vcombine.low %v6058, %v6059
    %v6344 = vunpack.c.l.s4 1966171168
    %v6345 = vunpack.c.0.s8 %v6344
    %v6346 = vlaneseq
    %v6347 = vshrl.u32 %v6346, 7
    %v6348 = vsub.s32 %v6345, %v6347
    %v6349 = vrot.slane %v6342, %v6348
    %v6351 = vunpack.c.l.s4 1966171168
    %v6352 = vunpack.c.0.s8 %v6351
    %v6353 = vlaneseq
    %v6354 = vshrl.u32 %v6353, 7
    %v6355 = vsub.s32 %v6352, %v6354
    %v6356 = vrot.slane %v6060, %v6355
    %v6357 = vcombine.low %v6349, %v6356
    %v6359 = vunpack.c.l.s4 1966171168
    %v6360 = vunpack.c.0.s8 %v6359
    %v6361 = vlaneseq
    %v6362 = vshrl.u32 %v6361, 7
    %v6363 = vsub.s32 %v6360, %v6362
    %v6364 = vrot.slane %v6357, %v6363
    %v6365 = vcombine.low %v6061, %v6062
    %v6367 = vunpack.c.l.s4 1966171168
    %v6368 = vunpack.c.0.s8 %v6367
    %v6369 = vlaneseq
    %v6370 = vshrl.u32 %v6369, 7
    %v6371 = vsub.s32 %v6368, %v6370
    %v6372 = vrot.slane %v6365, %v6371
    %v6374 = vunpack.c.l.s4 1966171168
    %v6375 = vunpack.c.0.s8 %v6374
    %v6376 = vlaneseq
    %v6377 = vshrl.u32 %v6376, 7
    %v6378 = vsub.s32 %v6375, %v6377
    %v6379 = vrot.slane %v6063, %v6378
    %v6380 = vcombine.low %v6372, %v6379
    %v6382 = vunpack.c.l.s4 1966171168
    %v6383 = vunpack.c.0.s8 %v6382
    %v6384 = vlaneseq
    %v6385 = vshrl.u32 %v6384, 7
    %v6386 = vsub.s32 %v6383, %v6385
    %v6387 = vrot.slane %v6380, %v6386
    %v6388 = vcombine.low %v6064, %v6065
    %v6390 = vunpack.c.l.s4 1966171168
    %v6391 = vunpack.c.0.s8 %v6390
    %v6392 = vlaneseq
    %v6393 = vshrl.u32 %v6392, 7
    %v6394 = vsub.s32 %v6391, %v6393
    %v6395 = vrot.slane %v6388, %v6394
    %v6397 = vunpack.c.l.s4 1966171168
    %v6398 = vunpack.c.0.s8 %v6397
    %v6399 = vlaneseq
    %v6400 = vshrl.u32 %v6399, 7
    %v6401 = vsub.s32 %v6398, %v6400
    %v6402 = vrot.slane %v6066, %v6401
    %v6403 = vcombine.low %v6395, %v6402
    %v6405 = vunpack.c.l.s4 1966171168
    %v6406 = vunpack.c.0.s8 %v6405
    %v6407 = vlaneseq
    %v6408 = vshrl.u32 %v6407, 7
    %v6409 = vsub.s32 %v6406, %v6408
    %v6410 = vrot.slane %v6403, %v6409
    %v6411 = vcombine.low %v6067, %v6068
    %v6413 = vunpack.c.l.s4 1966171168
    %v6414 = vunpack.c.0.s8 %v6413
    %v6415 = vlaneseq
    %v6416 = vshrl.u32 %v6415, 7
    %v6417 = vsub.s32 %v6414, %v6416
    %v6418 = vrot.slane %v6411, %v6417
    %v6420 = vunpack.c.l.s4 1966171168
    %v6421 = vunpack.c.0.s8 %v6420
    %v6422 = vlaneseq
    %v6423 = vshrl.u32 %v6422, 7
    %v6424 = vsub.s32 %v6421, %v6423
    %v6425 = vrot.slane %v6069, %v6424
    %v6426 = vcombine.low %v6418, %v6425
    %v6428 = vunpack.c.l.s4 1966171168
    %v6429 = vunpack.c.0.s8 %v6428
    %v6430 = vlaneseq
    %v6431 = vshrl.u32 %v6430, 7
    %v6432 = vsub.s32 %v6429, %v6431
    %v6433 = vrot.slane %v6426, %v6432
    %v6434 = vcombine.low %v6070, %v6071
    %v6436 = vunpack.c.l.s4 1966171168
    %v6437 = vunpack.c.0.s8 %v6436
    %v6438 = vlaneseq
    %v6439 = vshrl.u32 %v6438, 7
    %v6440 = vsub.s32 %v6437, %v6439
    %v6441 = vrot.slane %v6434, %v6440
    %v6443 = vunpack.c.l.s4 1966171168
    %v6444 = vunpack.c.0.s8 %v6443
    %v6445 = vlaneseq
    %v6446 = vshrl.u32 %v6445, 7
    %v6447 = vsub.s32 %v6444, %v6446
    %v6448 = vrot.slane %v6072, %v6447
    %v6449 = vcombine.low %v6441, %v6448
    %v6451 = vunpack.c.l.s4 1966171168
    %v6452 = vunpack.c.0.s8 %v6451
    %v6453 = vlaneseq
    %v6454 = vshrl.u32 %v6453, 7
    %v6455 = vsub.s32 %v6452, %v6454
    %v6456 = vrot.slane %v6449, %v6455
    %v6457 = vcombine.low %v6073, %v6074
    %v6459 = vunpack.c.l.s4 1966171168
    %v6460 = vunpack.c.0.s8 %v6459
    %v6461 = vlaneseq
    %v6462 = vshrl.u32 %v6461, 7
    %v6463 = vsub.s32 %v6460, %v6462
    %v6464 = vrot.slane %v6457, %v6463
    %v6466 = vunpack.c.l.s4 1966171168
    %v6467 = vunpack.c.0.s8 %v6466
    %v6468 = vlaneseq
    %v6469 = vshrl.u32 %v6468, 7
    %v6470 = vsub.s32 %v6467, %v6469
    %v6471 = vrot.slane %v6075, %v6470
    %v6472 = vcombine.low %v6464, %v6471
    %v6474 = vunpack.c.l.s4 1966171168
    %v6475 = vunpack.c.0.s8 %v6474
    %v6476 = vlaneseq
    %v6477 = vshrl.u32 %v6476, 7
    %v6478 = vsub.s32 %v6475, %v6477
    %v6479 = vrot.slane %v6472, %v6478
    %v6480 = vcombine.low %v6076, %v6077
    %v6482 = vunpack.c.l.s4 1966171168
    %v6483 = vunpack.c.0.s8 %v6482
    %v6484 = vlaneseq
    %v6485 = vshrl.u32 %v6484, 7
    %v6486 = vsub.s32 %v6483, %v6485
    %v6487 = vrot.slane %v6480, %v6486
    %v6489 = vunpack.c.l.s4 1966171168
    %v6490 = vunpack.c.0.s8 %v6489
    %v6491 = vlaneseq
    %v6492 = vshrl.u32 %v6491, 7
    %v6493 = vsub.s32 %v6490, %v6492
    %v6494 = vrot.slane %v6078, %v6493
    %v6495 = vcombine.low %v6487, %v6494
    %v6497 = vunpack.c.l.s4 1966171168
    %v6498 = vunpack.c.0.s8 %v6497
    %v6499 = vlaneseq
    %v6500 = vshrl.u32 %v6499, 7
    %v6501 = vsub.s32 %v6498, %v6500
    %v6502 = vrot.slane %v6495, %v6501
    %v6503 = vcombine.low %v6079, %v6080
    %v6505 = vunpack.c.l.s4 1966171168
    %v6506 = vunpack.c.0.s8 %v6505
    %v6507 = vlaneseq
    %v6508 = vshrl.u32 %v6507, 7
    %v6509 = vsub.s32 %v6506, %v6508
    %v6510 = vrot.slane %v6503, %v6509
    %v6512 = vunpack.c.l.s4 1966171168
    %v6513 = vunpack.c.0.s8 %v6512
    %v6514 = vlaneseq
    %v6515 = vshrl.u32 %v6514, 7
    %v6516 = vsub.s32 %v6513, %v6515
    %v6517 = vrot.slane %v6081, %v6516
    %v6518 = vcombine.low %v6510, %v6517
    %v6520 = vunpack.c.l.s4 1966171168
    %v6521 = vunpack.c.0.s8 %v6520
    %v6522 = vlaneseq
    %v6523 = vshrl.u32 %v6522, 7
    %v6524 = vsub.s32 %v6521, %v6523
    %v6525 = vrot.slane %v6518, %v6524
    %v6526 = vcombine.low %v6082, %v6083
    %v6528 = vunpack.c.l.s4 1966171168
    %v6529 = vunpack.c.0.s8 %v6528
    %v6530 = vlaneseq
    %v6531 = vshrl.u32 %v6530, 7
    %v6532 = vsub.s32 %v6529, %v6531
    %v6533 = vrot.slane %v6526, %v6532
    %v6535 = vunpack.c.l.s4 1966171168
    %v6536 = vunpack.c.0.s8 %v6535
    %v6537 = vlaneseq
    %v6538 = vshrl.u32 %v6537, 7
    %v6539 = vsub.s32 %v6536, %v6538
    %v6540 = vrot.slane %v6084, %v6539
    %v6541 = vcombine.low %v6533, %v6540
    %v6543 = vunpack.c.l.s4 1966171168
    %v6544 = vunpack.c.0.s8 %v6543
    %v6545 = vlaneseq
    %v6546 = vshrl.u32 %v6545, 7
    %v6547 = vsub.s32 %v6544, %v6546
    %v6548 = vrot.slane %v6541, %v6547
    %v6549 = vcombine.low %v6085, %v6086
    %v6551 = vunpack.c.l.s4 1966171168
    %v6552 = vunpack.c.0.s8 %v6551
    %v6553 = vlaneseq
    %v6554 = vshrl.u32 %v6553, 7
    %v6555 = vsub.s32 %v6552, %v6554
    %v6556 = vrot.slane %v6549, %v6555
    %v6558 = vunpack.c.l.s4 1966171168
    %v6559 = vunpack.c.0.s8 %v6558
    %v6560 = vlaneseq
    %v6561 = vshrl.u32 %v6560, 7
    %v6562 = vsub.s32 %v6559, %v6561
    %v6563 = vrot.slane %v6087, %v6562
    %v6564 = vcombine.low %v6556, %v6563
    %v6566 = vunpack.c.l.s4 1966171168
    %v6567 = vunpack.c.0.s8 %v6566
    %v6568 = vlaneseq
    %v6569 = vshrl.u32 %v6568, 7
    %v6570 = vsub.s32 %v6567, %v6569
    %v6571 = vrot.slane %v6564, %v6570
    %v6572 = vcombine.low %v6088, %v6089
    %v6574 = vunpack.c.l.s4 1966171168
    %v6575 = vunpack.c.0.s8 %v6574
    %v6576 = vlaneseq
    %v6577 = vshrl.u32 %v6576, 7
    %v6578 = vsub.s32 %v6575, %v6577
    %v6579 = vrot.slane %v6572, %v6578
    %v6581 = vunpack.c.l.s4 1966171168
    %v6582 = vunpack.c.0.s8 %v6581
    %v6583 = vlaneseq
    %v6584 = vshrl.u32 %v6583, 7
    %v6585 = vsub.s32 %v6582, %v6584
    %v6586 = vrot.slane %v6090, %v6585
    %v6587 = vcombine.low %v6579, %v6586
    %v6589 = vunpack.c.l.s4 1966171168
    %v6590 = vunpack.c.0.s8 %v6589
    %v6591 = vlaneseq
    %v6592 = vshrl.u32 %v6591, 7
    %v6593 = vsub.s32 %v6590, %v6592
    %v6594 = vrot.slane %v6587, %v6593
    %v6595 = vcombine.low %v6091, %v6092
    %v6597 = vunpack.c.l.s4 1966171168
    %v6598 = vunpack.c.0.s8 %v6597
    %v6599 = vlaneseq
    %v6600 = vshrl.u32 %v6599, 7
    %v6601 = vsub.s32 %v6598, %v6600
    %v6602 = vrot.slane %v6595, %v6601
    %v6604 = vunpack.c.l.s4 1966171168
    %v6605 = vunpack.c.0.s8 %v6604
    %v6606 = vlaneseq
    %v6607 = vshrl.u32 %v6606, 7
    %v6608 = vsub.s32 %v6605, %v6607
    %v6609 = vrot.slane %v6093, %v6608
    %v6610 = vcombine.low %v6602, %v6609
    %v6612 = vunpack.c.l.s4 1966171168
    %v6613 = vunpack.c.0.s8 %v6612
    %v6614 = vlaneseq
    %v6615 = vshrl.u32 %v6614, 7
    %v6616 = vsub.s32 %v6613, %v6615
    %v6617 = vrot.slane %v6610, %v6616
    %v6618 = vcombine.low %v6094, %v6095
    %v6620 = vunpack.c.l.s4 1966171168
    %v6621 = vunpack.c.0.s8 %v6620
    %v6622 = vlaneseq
    %v6623 = vshrl.u32 %v6622, 7
    %v6624 = vsub.s32 %v6621, %v6623
    %v6625 = vrot.slane %v6618, %v6624
    %v6627 = vunpack.c.l.s4 1966171168
    %v6628 = vunpack.c.0.s8 %v6627
    %v6629 = vlaneseq
    %v6630 = vshrl.u32 %v6629, 7
    %v6631 = vsub.s32 %v6628, %v6630
    %v6632 = vrot.slane %v6096, %v6631
    %v6633 = vcombine.low %v6625, %v6632
    %v6635 = vunpack.c.l.s4 1966171168
    %v6636 = vunpack.c.0.s8 %v6635
    %v6637 = vlaneseq
    %v6638 = vshrl.u32 %v6637, 7
    %v6639 = vsub.s32 %v6636, %v6638
    %v6640 = vrot.slane %v6633, %v6639
    %v6641 = vcombine.low %v6097, %v6098
    %v6643 = vunpack.c.l.s4 1966171168
    %v6644 = vunpack.c.0.s8 %v6643
    %v6645 = vlaneseq
    %v6646 = vshrl.u32 %v6645, 7
    %v6647 = vsub.s32 %v6644, %v6646
    %v6648 = vrot.slane %v6641, %v6647
    %v6650 = vunpack.c.l.s4 1966171168
    %v6651 = vunpack.c.0.s8 %v6650
    %v6652 = vlaneseq
    %v6653 = vshrl.u32 %v6652, 7
    %v6654 = vsub.s32 %v6651, %v6653
    %v6655 = vrot.slane %v6099, %v6654
    %v6656 = vcombine.low %v6648, %v6655
    %v6658 = vunpack.c.l.s4 1966171168
    %v6659 = vunpack.c.0.s8 %v6658
    %v6660 = vlaneseq
    %v6661 = vshrl.u32 %v6660, 7
    %v6662 = vsub.s32 %v6659, %v6661
    %v6663 = vrot.slane %v6656, %v6662
    %v6664 = vcombine.low %v6100, %v6101
    %v6666 = vunpack.c.l.s4 1966171168
    %v6667 = vunpack.c.0.s8 %v6666
    %v6668 = vlaneseq
    %v6669 = vshrl.u32 %v6668, 7
    %v6670 = vsub.s32 %v6667, %v6669
    %v6671 = vrot.slane %v6664, %v6670
    %v6673 = vunpack.c.l.s4 1966171168
    %v6674 = vunpack.c.0.s8 %v6673
    %v6675 = vlaneseq
    %v6676 = vshrl.u32 %v6675, 7
    %v6677 = vsub.s32 %v6674, %v6676
    %v6678 = vrot.slane %v6102, %v6677
    %v6679 = vcombine.low %v6671, %v6678
    %v6681 = vunpack.c.l.s4 1966171168
    %v6682 = vunpack.c.0.s8 %v6681
    %v6683 = vlaneseq
    %v6684 = vshrl.u32 %v6683, 7
    %v6685 = vsub.s32 %v6682, %v6684
    %v6686 = vrot.slane %v6679, %v6685
    %v6687 = vcombine.low %v6103, %v6104
    %v6689 = vunpack.c.l.s4 1966171168
    %v6690 = vunpack.c.0.s8 %v6689
    %v6691 = vlaneseq
    %v6692 = vshrl.u32 %v6691, 7
    %v6693 = vsub.s32 %v6690, %v6692
    %v6694 = vrot.slane %v6687, %v6693
    %v6696 = vunpack.c.l.s4 1966171168
    %v6697 = vunpack.c.0.s8 %v6696
    %v6698 = vlaneseq
    %v6699 = vshrl.u32 %v6698, 7
    %v6700 = vsub.s32 %v6697, %v6699
    %v6701 = vrot.slane %v6105, %v6700
    %v6702 = vcombine.low %v6694, %v6701
    %v6704 = vunpack.c.l.s4 1966171168
    %v6705 = vunpack.c.0.s8 %v6704
    %v6706 = vlaneseq
    %v6707 = vshrl.u32 %v6706, 7
    %v6708 = vsub.s32 %v6705, %v6707
    %v6709 = vrot.slane %v6702, %v6708
    %v6710 = vcombine.low %v6106, %v6107
    %v6712 = vunpack.c.l.s4 1966171168
    %v6713 = vunpack.c.0.s8 %v6712
    %v6714 = vlaneseq
    %v6715 = vshrl.u32 %v6714, 7
    %v6716 = vsub.s32 %v6713, %v6715
    %v6717 = vrot.slane %v6710, %v6716
    %v6719 = vunpack.c.l.s4 1966171168
    %v6720 = vunpack.c.0.s8 %v6719
    %v6721 = vlaneseq
    %v6722 = vshrl.u32 %v6721, 7
    %v6723 = vsub.s32 %v6720, %v6722
    %v6724 = vrot.slane %v6108, %v6723
    %v6725 = vcombine.low %v6717, %v6724
    %v6727 = vunpack.c.l.s4 1966171168
    %v6728 = vunpack.c.0.s8 %v6727
    %v6729 = vlaneseq
    %v6730 = vshrl.u32 %v6729, 7
    %v6731 = vsub.s32 %v6728, %v6730
    %v6732 = vrot.slane %v6725, %v6731
    %v6757 = vsel %vm5832, %v6203, -inf
    %6758 = vmax.xlane.f32.xlu0 %v6757
    %v6759 = vpop.xlane.xlu0 %6758
    %v6760 = vsel %vm5832, %v6226, -inf
    %6761 = vmax.xlane.f32.xlu0 %v6760
    %v6762 = vpop.xlane.xlu0 %6761
    %v6763 = vsel %vm5832, %v6249, -inf
    %6764 = vmax.xlane.f32.xlu0 %v6763
    %v6765 = vpop.xlane.xlu0 %6764
    %v6766 = vsel %vm5832, %v6272, -inf
    %6767 = vmax.xlane.f32.xlu0 %v6766
    %v6768 = vpop.xlane.xlu0 %6767
    %v6769 = vsel %vm5832, %v6295, -inf
    %6770 = vmax.xlane.f32.xlu0 %v6769
    %v6771 = vpop.xlane.xlu0 %6770
    %v6772 = vsel %vm5832, %v6318, -inf
    %6773 = vmax.xlane.f32.xlu0 %v6772
    %v6774 = vpop.xlane.xlu0 %6773
    %v6775 = vsel %vm5832, %v6341, -inf
    %6776 = vmax.xlane.f32.xlu0 %v6775
    %v6777 = vpop.xlane.xlu0 %6776
    %v6778 = vsel %vm5832, %v6364, -inf
    %6779 = vmax.xlane.f32.xlu0 %v6778
    %v6780 = vpop.xlane.xlu0 %6779
    %v6781 = vsel %vm5832, %v6387, -inf
    %6782 = vmax.xlane.f32.xlu0 %v6781
    %v6783 = vpop.xlane.xlu0 %6782
    %v6784 = vsel %vm5832, %v6410, -inf
    %6785 = vmax.xlane.f32.xlu0 %v6784
    %v6786 = vpop.xlane.xlu0 %6785
    %v6787 = vsel %vm5832, %v6433, -inf
    %6788 = vmax.xlane.f32.xlu0 %v6787
    %v6789 = vpop.xlane.xlu0 %6788
    %v6790 = vsel %vm5832, %v6456, -inf
    %6791 = vmax.xlane.f32.xlu0 %v6790
    %v6792 = vpop.xlane.xlu0 %6791
    %v6793 = vsel %vm5832, %v6479, -inf
    %6794 = vmax.xlane.f32.xlu0 %v6793
    %v6795 = vpop.xlane.xlu0 %6794
    %v6796 = vsel %vm5832, %v6502, -inf
    %6797 = vmax.xlane.f32.xlu0 %v6796
    %v6798 = vpop.xlane.xlu0 %6797
    %v6799 = vsel %vm5832, %v6525, -inf
    %6800 = vmax.xlane.f32.xlu0 %v6799
    %v6801 = vpop.xlane.xlu0 %6800
    %v6802 = vsel %vm5832, %v6548, -inf
    %6803 = vmax.xlane.f32.xlu0 %v6802
    %v6804 = vpop.xlane.xlu0 %6803
    %v6805 = vsel %vm5832, %v6571, -inf
    %6806 = vmax.xlane.f32.xlu0 %v6805
    %v6807 = vpop.xlane.xlu0 %6806
    %v6808 = vsel %vm5832, %v6594, -inf
    %6809 = vmax.xlane.f32.xlu0 %v6808
    %v6810 = vpop.xlane.xlu0 %6809
    %v6811 = vsel %vm5832, %v6617, -inf
    %6812 = vmax.xlane.f32.xlu0 %v6811
    %v6813 = vpop.xlane.xlu0 %6812
    %v6814 = vsel %vm5832, %v6640, -inf
    %6815 = vmax.xlane.f32.xlu0 %v6814
    %v6816 = vpop.xlane.xlu0 %6815
    %v6817 = vsel %vm5832, %v6663, -inf
    %6818 = vmax.xlane.f32.xlu0 %v6817
    %v6819 = vpop.xlane.xlu0 %6818
    %v6820 = vsel %vm5832, %v6686, -inf
    %6821 = vmax.xlane.f32.xlu0 %v6820
    %v6822 = vpop.xlane.xlu0 %6821
    %v6823 = vsel %vm5832, %v6709, -inf
    %6824 = vmax.xlane.f32.xlu0 %v6823
    %v6825 = vpop.xlane.xlu0 %6824
    %v6826 = vsel %vm5832, %v6732, -inf
    %6827 = vmax.xlane.f32.xlu0 %v6826
    %v6828 = vpop.xlane.xlu0 %6827
    %v6853 = vlaneseq
    %v6854 = vshrl.u32 %v6853, 7
    %v6855 = vsub.s32 0, %v6854
    %v6856 = vrot.slane %v6759, %v6855
    %v6857 = vlaneseq
    %v6858 = vshrl.u32 %v6857, 7
    %v6859 = vsub.s32 1, %v6858
    %v6860 = vrot.slane %v6759, %v6859
    %v6861 = vlaneseq
    %v6862 = vshrl.u32 %v6861, 7
    %v6863 = vsub.s32 2, %v6862
    %v6864 = vrot.slane %v6759, %v6863
    %v6865 = vlaneseq
    %v6866 = vshrl.u32 %v6865, 7
    %v6867 = vsub.s32 0, %v6866
    %v6868 = vrot.slane %v6762, %v6867
    %v6869 = vlaneseq
    %v6870 = vshrl.u32 %v6869, 7
    %v6871 = vsub.s32 1, %v6870
    %v6872 = vrot.slane %v6762, %v6871
    %v6873 = vlaneseq
    %v6874 = vshrl.u32 %v6873, 7
    %v6875 = vsub.s32 2, %v6874
    %v6876 = vrot.slane %v6762, %v6875
    %v6877 = vlaneseq
    %v6878 = vshrl.u32 %v6877, 7
    %v6879 = vsub.s32 0, %v6878
    %v6880 = vrot.slane %v6765, %v6879
    %v6881 = vlaneseq
    %v6882 = vshrl.u32 %v6881, 7
    %v6883 = vsub.s32 1, %v6882
    %v6884 = vrot.slane %v6765, %v6883
    %v6885 = vlaneseq
    %v6886 = vshrl.u32 %v6885, 7
    %v6887 = vsub.s32 2, %v6886
    %v6888 = vrot.slane %v6765, %v6887
    %v6889 = vlaneseq
    %v6890 = vshrl.u32 %v6889, 7
    %v6891 = vsub.s32 0, %v6890
    %v6892 = vrot.slane %v6768, %v6891
    %v6893 = vlaneseq
    %v6894 = vshrl.u32 %v6893, 7
    %v6895 = vsub.s32 1, %v6894
    %v6896 = vrot.slane %v6768, %v6895
    %v6897 = vlaneseq
    %v6898 = vshrl.u32 %v6897, 7
    %v6899 = vsub.s32 2, %v6898
    %v6900 = vrot.slane %v6768, %v6899
    %v6901 = vlaneseq
    %v6902 = vshrl.u32 %v6901, 7
    %v6903 = vsub.s32 0, %v6902
    %v6904 = vrot.slane %v6771, %v6903
    %v6905 = vlaneseq
    %v6906 = vshrl.u32 %v6905, 7
    %v6907 = vsub.s32 1, %v6906
    %v6908 = vrot.slane %v6771, %v6907
    %v6909 = vlaneseq
    %v6910 = vshrl.u32 %v6909, 7
    %v6911 = vsub.s32 2, %v6910
    %v6912 = vrot.slane %v6771, %v6911
    %v6913 = vlaneseq
    %v6914 = vshrl.u32 %v6913, 7
    %v6915 = vsub.s32 0, %v6914
    %v6916 = vrot.slane %v6774, %v6915
    %v6917 = vlaneseq
    %v6918 = vshrl.u32 %v6917, 7
    %v6919 = vsub.s32 1, %v6918
    %v6920 = vrot.slane %v6774, %v6919
    %v6921 = vlaneseq
    %v6922 = vshrl.u32 %v6921, 7
    %v6923 = vsub.s32 2, %v6922
    %v6924 = vrot.slane %v6774, %v6923
    %v6925 = vlaneseq
    %v6926 = vshrl.u32 %v6925, 7
    %v6927 = vsub.s32 0, %v6926
    %v6928 = vrot.slane %v6777, %v6927
    %v6929 = vlaneseq
    %v6930 = vshrl.u32 %v6929, 7
    %v6931 = vsub.s32 1, %v6930
    %v6932 = vrot.slane %v6777, %v6931
    %v6933 = vlaneseq
    %v6934 = vshrl.u32 %v6933, 7
    %v6935 = vsub.s32 2, %v6934
    %v6936 = vrot.slane %v6777, %v6935
    %v6937 = vlaneseq
    %v6938 = vshrl.u32 %v6937, 7
    %v6939 = vsub.s32 0, %v6938
    %v6940 = vrot.slane %v6780, %v6939
    %v6941 = vlaneseq
    %v6942 = vshrl.u32 %v6941, 7
    %v6943 = vsub.s32 1, %v6942
    %v6944 = vrot.slane %v6780, %v6943
    %v6945 = vlaneseq
    %v6946 = vshrl.u32 %v6945, 7
    %v6947 = vsub.s32 2, %v6946
    %v6948 = vrot.slane %v6780, %v6947
    %v6949 = vlaneseq
    %v6950 = vshrl.u32 %v6949, 7
    %v6951 = vsub.s32 0, %v6950
    %v6952 = vrot.slane %v6783, %v6951
    %v6953 = vlaneseq
    %v6954 = vshrl.u32 %v6953, 7
    %v6955 = vsub.s32 1, %v6954
    %v6956 = vrot.slane %v6783, %v6955
    %v6957 = vlaneseq
    %v6958 = vshrl.u32 %v6957, 7
    %v6959 = vsub.s32 2, %v6958
    %v6960 = vrot.slane %v6783, %v6959
    %v6961 = vlaneseq
    %v6962 = vshrl.u32 %v6961, 7
    %v6963 = vsub.s32 0, %v6962
    %v6964 = vrot.slane %v6786, %v6963
    %v6965 = vlaneseq
    %v6966 = vshrl.u32 %v6965, 7
    %v6967 = vsub.s32 1, %v6966
    %v6968 = vrot.slane %v6786, %v6967
    %v6969 = vlaneseq
    %v6970 = vshrl.u32 %v6969, 7
    %v6971 = vsub.s32 2, %v6970
    %v6972 = vrot.slane %v6786, %v6971
    %v6973 = vlaneseq
    %v6974 = vshrl.u32 %v6973, 7
    %v6975 = vsub.s32 0, %v6974
    %v6976 = vrot.slane %v6789, %v6975
    %v6977 = vlaneseq
    %v6978 = vshrl.u32 %v6977, 7
    %v6979 = vsub.s32 1, %v6978
    %v6980 = vrot.slane %v6789, %v6979
    %v6981 = vlaneseq
    %v6982 = vshrl.u32 %v6981, 7
    %v6983 = vsub.s32 2, %v6982
    %v6984 = vrot.slane %v6789, %v6983
    %v6985 = vlaneseq
    %v6986 = vshrl.u32 %v6985, 7
    %v6987 = vsub.s32 0, %v6986
    %v6988 = vrot.slane %v6792, %v6987
    %v6989 = vlaneseq
    %v6990 = vshrl.u32 %v6989, 7
    %v6991 = vsub.s32 1, %v6990
    %v6992 = vrot.slane %v6792, %v6991
    %v6993 = vlaneseq
    %v6994 = vshrl.u32 %v6993, 7
    %v6995 = vsub.s32 2, %v6994
    %v6996 = vrot.slane %v6792, %v6995
    %v6997 = vlaneseq
    %v6998 = vshrl.u32 %v6997, 7
    %v6999 = vsub.s32 0, %v6998
    %v7000 = vrot.slane %v6795, %v6999
    %v7001 = vlaneseq
    %v7002 = vshrl.u32 %v7001, 7
    %v7003 = vsub.s32 1, %v7002
    %v7004 = vrot.slane %v6795, %v7003
    %v7005 = vlaneseq
    %v7006 = vshrl.u32 %v7005, 7
    %v7007 = vsub.s32 2, %v7006
    %v7008 = vrot.slane %v6795, %v7007
    %v7009 = vlaneseq
    %v7010 = vshrl.u32 %v7009, 7
    %v7011 = vsub.s32 0, %v7010
    %v7012 = vrot.slane %v6798, %v7011
    %v7013 = vlaneseq
    %v7014 = vshrl.u32 %v7013, 7
    %v7015 = vsub.s32 1, %v7014
    %v7016 = vrot.slane %v6798, %v7015
    %v7017 = vlaneseq
    %v7018 = vshrl.u32 %v7017, 7
    %v7019 = vsub.s32 2, %v7018
    %v7020 = vrot.slane %v6798, %v7019
    %v7021 = vlaneseq
    %v7022 = vshrl.u32 %v7021, 7
    %v7023 = vsub.s32 0, %v7022
    %v7024 = vrot.slane %v6801, %v7023
    %v7025 = vlaneseq
    %v7026 = vshrl.u32 %v7025, 7
    %v7027 = vsub.s32 1, %v7026
    %v7028 = vrot.slane %v6801, %v7027
    %v7029 = vlaneseq
    %v7030 = vshrl.u32 %v7029, 7
    %v7031 = vsub.s32 2, %v7030
    %v7032 = vrot.slane %v6801, %v7031
    %v7033 = vlaneseq
    %v7034 = vshrl.u32 %v7033, 7
    %v7035 = vsub.s32 0, %v7034
    %v7036 = vrot.slane %v6804, %v7035
    %v7037 = vlaneseq
    %v7038 = vshrl.u32 %v7037, 7
    %v7039 = vsub.s32 1, %v7038
    %v7040 = vrot.slane %v6804, %v7039
    %v7041 = vlaneseq
    %v7042 = vshrl.u32 %v7041, 7
    %v7043 = vsub.s32 2, %v7042
    %v7044 = vrot.slane %v6804, %v7043
    %v7045 = vlaneseq
    %v7046 = vshrl.u32 %v7045, 7
    %v7047 = vsub.s32 0, %v7046
    %v7048 = vrot.slane %v6807, %v7047
    %v7049 = vlaneseq
    %v7050 = vshrl.u32 %v7049, 7
    %v7051 = vsub.s32 1, %v7050
    %v7052 = vrot.slane %v6807, %v7051
    %v7053 = vlaneseq
    %v7054 = vshrl.u32 %v7053, 7
    %v7055 = vsub.s32 2, %v7054
    %v7056 = vrot.slane %v6807, %v7055
    %v7057 = vlaneseq
    %v7058 = vshrl.u32 %v7057, 7
    %v7059 = vsub.s32 0, %v7058
    %v7060 = vrot.slane %v6810, %v7059
    %v7061 = vlaneseq
    %v7062 = vshrl.u32 %v7061, 7
    %v7063 = vsub.s32 1, %v7062
    %v7064 = vrot.slane %v6810, %v7063
    %v7065 = vlaneseq
    %v7066 = vshrl.u32 %v7065, 7
    %v7067 = vsub.s32 2, %v7066
    %v7068 = vrot.slane %v6810, %v7067
    %v7069 = vlaneseq
    %v7070 = vshrl.u32 %v7069, 7
    %v7071 = vsub.s32 0, %v7070
    %v7072 = vrot.slane %v6813, %v7071
    %v7073 = vlaneseq
    %v7074 = vshrl.u32 %v7073, 7
    %v7075 = vsub.s32 1, %v7074
    %v7076 = vrot.slane %v6813, %v7075
    %v7077 = vlaneseq
    %v7078 = vshrl.u32 %v7077, 7
    %v7079 = vsub.s32 2, %v7078
    %v7080 = vrot.slane %v6813, %v7079
    %v7081 = vlaneseq
    %v7082 = vshrl.u32 %v7081, 7
    %v7083 = vsub.s32 0, %v7082
    %v7084 = vrot.slane %v6816, %v7083
    %v7085 = vlaneseq
    %v7086 = vshrl.u32 %v7085, 7
    %v7087 = vsub.s32 1, %v7086
    %v7088 = vrot.slane %v6816, %v7087
    %v7089 = vlaneseq
    %v7090 = vshrl.u32 %v7089, 7
    %v7091 = vsub.s32 2, %v7090
    %v7092 = vrot.slane %v6816, %v7091
    %v7093 = vlaneseq
    %v7094 = vshrl.u32 %v7093, 7
    %v7095 = vsub.s32 0, %v7094
    %v7096 = vrot.slane %v6819, %v7095
    %v7097 = vlaneseq
    %v7098 = vshrl.u32 %v7097, 7
    %v7099 = vsub.s32 1, %v7098
    %v7100 = vrot.slane %v6819, %v7099
    %v7101 = vlaneseq
    %v7102 = vshrl.u32 %v7101, 7
    %v7103 = vsub.s32 2, %v7102
    %v7104 = vrot.slane %v6819, %v7103
    %v7105 = vlaneseq
    %v7106 = vshrl.u32 %v7105, 7
    %v7107 = vsub.s32 0, %v7106
    %v7108 = vrot.slane %v6822, %v7107
    %v7109 = vlaneseq
    %v7110 = vshrl.u32 %v7109, 7
    %v7111 = vsub.s32 1, %v7110
    %v7112 = vrot.slane %v6822, %v7111
    %v7113 = vlaneseq
    %v7114 = vshrl.u32 %v7113, 7
    %v7115 = vsub.s32 2, %v7114
    %v7116 = vrot.slane %v6822, %v7115
    %v7117 = vlaneseq
    %v7118 = vshrl.u32 %v7117, 7
    %v7119 = vsub.s32 0, %v7118
    %v7120 = vrot.slane %v6825, %v7119
    %v7121 = vlaneseq
    %v7122 = vshrl.u32 %v7121, 7
    %v7123 = vsub.s32 1, %v7122
    %v7124 = vrot.slane %v6825, %v7123
    %v7125 = vlaneseq
    %v7126 = vshrl.u32 %v7125, 7
    %v7127 = vsub.s32 2, %v7126
    %v7128 = vrot.slane %v6825, %v7127
    %v7129 = vlaneseq
    %v7130 = vshrl.u32 %v7129, 7
    %v7131 = vsub.s32 0, %v7130
    %v7132 = vrot.slane %v6828, %v7131
    %v7133 = vlaneseq
    %v7134 = vshrl.u32 %v7133, 7
    %v7135 = vsub.s32 1, %v7134
    %v7136 = vrot.slane %v6828, %v7135
    %v7137 = vlaneseq
    %v7138 = vshrl.u32 %v7137, 7
    %v7139 = vsub.s32 2, %v7138
    %v7140 = vrot.slane %v6828, %v7139
    %v7213 = vsub.f32 %v6037, %v6856
    %v7214 = vsub.f32 %v6038, %v6860
    %v7215 = vsub.f32 %v6039, %v6864
    %v7216 = vsub.f32 %v6040, %v6868
    %v7217 = vsub.f32 %v6041, %v6872
    %v7218 = vsub.f32 %v6042, %v6876
    %v7219 = vsub.f32 %v6043, %v6880
    %v7220 = vsub.f32 %v6044, %v6884
    %v7221 = vsub.f32 %v6045, %v6888
    %v7222 = vsub.f32 %v6046, %v6892
    %v7223 = vsub.f32 %v6047, %v6896
    %v7224 = vsub.f32 %v6048, %v6900
    %v7225 = vsub.f32 %v6049, %v6904
    %v7226 = vsub.f32 %v6050, %v6908
    %v7227 = vsub.f32 %v6051, %v6912
    %v7228 = vsub.f32 %v6052, %v6916
    %v7229 = vsub.f32 %v6053, %v6920
    %v7230 = vsub.f32 %v6054, %v6924
    %v7231 = vsub.f32 %v6055, %v6928
    %v7232 = vsub.f32 %v6056, %v6932
    %v7233 = vsub.f32 %v6057, %v6936
    %v7234 = vsub.f32 %v6058, %v6940
    %v7235 = vsub.f32 %v6059, %v6944
    %v7236 = vsub.f32 %v6060, %v6948
    %v7237 = vsub.f32 %v6061, %v6952
    %v7238 = vsub.f32 %v6062, %v6956
    %v7239 = vsub.f32 %v6063, %v6960
    %v7240 = vsub.f32 %v6064, %v6964
    %v7241 = vsub.f32 %v6065, %v6968
    %v7242 = vsub.f32 %v6066, %v6972
    %v7243 = vsub.f32 %v6067, %v6976
    %v7244 = vsub.f32 %v6068, %v6980
    %v7245 = vsub.f32 %v6069, %v6984
    %v7246 = vsub.f32 %v6070, %v6988
    %v7247 = vsub.f32 %v6071, %v6992
    %v7248 = vsub.f32 %v6072, %v6996
    %v7249 = vsub.f32 %v6073, %v7000
    %v7250 = vsub.f32 %v6074, %v7004
    %v7251 = vsub.f32 %v6075, %v7008
    %v7252 = vsub.f32 %v6076, %v7012
    %v7253 = vsub.f32 %v6077, %v7016
    %v7254 = vsub.f32 %v6078, %v7020
    %v7255 = vsub.f32 %v6079, %v7024
    %v7256 = vsub.f32 %v6080, %v7028
    %v7257 = vsub.f32 %v6081, %v7032
    %v7258 = vsub.f32 %v6082, %v7036
    %v7259 = vsub.f32 %v6083, %v7040
    %v7260 = vsub.f32 %v6084, %v7044
    %v7261 = vsub.f32 %v6085, %v7048
    %v7262 = vsub.f32 %v6086, %v7052
    %v7263 = vsub.f32 %v6087, %v7056
    %v7264 = vsub.f32 %v6088, %v7060
    %v7265 = vsub.f32 %v6089, %v7064
    %v7266 = vsub.f32 %v6090, %v7068
    %v7267 = vsub.f32 %v6091, %v7072
    %v7268 = vsub.f32 %v6092, %v7076
    %v7269 = vsub.f32 %v6093, %v7080
    %v7270 = vsub.f32 %v6094, %v7084
    %v7271 = vsub.f32 %v6095, %v7088
    %v7272 = vsub.f32 %v6096, %v7092
    %v7273 = vsub.f32 %v6097, %v7096
    %v7274 = vsub.f32 %v6098, %v7100
    %v7275 = vsub.f32 %v6099, %v7104
    %v7276 = vsub.f32 %v6100, %v7108
    %v7277 = vsub.f32 %v6101, %v7112
    %v7278 = vsub.f32 %v6102, %v7116
    %v7279 = vsub.f32 %v6103, %v7120
    %v7280 = vsub.f32 %v6104, %v7124
    %v7281 = vsub.f32 %v6105, %v7128
    %v7282 = vsub.f32 %v6106, %v7132
    %v7283 = vsub.f32 %v6107, %v7136
    %v7284 = vsub.f32 %v6108, %v7140
    %v7285 = vmul.f32 %v7213, 1.442695
    %v7286 = vpow.pop %v7285
    %v7287 = vmul.f32 %v7214, 1.442695
    %v7288 = vpow.pop %v7287
    %v7289 = vmul.f32 %v7215, 1.442695
    %v7290 = vpow.pop %v7289
    %v7291 = vmul.f32 %v7216, 1.442695
    %v7292 = vpow.pop %v7291
    %v7293 = vmul.f32 %v7217, 1.442695
    %v7294 = vpow.pop %v7293
    %v7295 = vmul.f32 %v7218, 1.442695
    %v7296 = vpow.pop %v7295
    %v7297 = vmul.f32 %v7219, 1.442695
    %v7298 = vpow.pop %v7297
    %v7299 = vmul.f32 %v7220, 1.442695
    %v7300 = vpow.pop %v7299
    %v7301 = vmul.f32 %v7221, 1.442695
    %v7302 = vpow.pop %v7301
    %v7303 = vmul.f32 %v7222, 1.442695
    %v7304 = vpow.pop %v7303
    %v7305 = vmul.f32 %v7223, 1.442695
    %v7306 = vpow.pop %v7305
    %v7307 = vmul.f32 %v7224, 1.442695
    %v7308 = vpow.pop %v7307
    %v7309 = vmul.f32 %v7225, 1.442695
    %v7310 = vpow.pop %v7309
    %v7311 = vmul.f32 %v7226, 1.442695
    %v7312 = vpow.pop %v7311
    %v7313 = vmul.f32 %v7227, 1.442695
    %v7314 = vpow.pop %v7313
    %v7315 = vmul.f32 %v7228, 1.442695
    %v7316 = vpow.pop %v7315
    %v7317 = vmul.f32 %v7229, 1.442695
    %v7318 = vpow.pop %v7317
    %v7319 = vmul.f32 %v7230, 1.442695
    %v7320 = vpow.pop %v7319
    %v7321 = vmul.f32 %v7231, 1.442695
    %v7322 = vpow.pop %v7321
    %v7323 = vmul.f32 %v7232, 1.442695
    %v7324 = vpow.pop %v7323
    %v7325 = vmul.f32 %v7233, 1.442695
    %v7326 = vpow.pop %v7325
    %v7327 = vmul.f32 %v7234, 1.442695
    %v7328 = vpow.pop %v7327
    %v7329 = vmul.f32 %v7235, 1.442695
    %v7330 = vpow.pop %v7329
    %v7331 = vmul.f32 %v7236, 1.442695
    %v7332 = vpow.pop %v7331
    %v7333 = vmul.f32 %v7237, 1.442695
    %v7334 = vpow.pop %v7333
    %v7335 = vmul.f32 %v7238, 1.442695
    %v7336 = vpow.pop %v7335
    %v7337 = vmul.f32 %v7239, 1.442695
    %v7338 = vpow.pop %v7337
    %v7339 = vmul.f32 %v7240, 1.442695
    %v7340 = vpow.pop %v7339
    %v7341 = vmul.f32 %v7241, 1.442695
    %v7342 = vpow.pop %v7341
    %v7343 = vmul.f32 %v7242, 1.442695
    %v7344 = vpow.pop %v7343
    %v7345 = vmul.f32 %v7243, 1.442695
    %v7346 = vpow.pop %v7345
    %v7347 = vmul.f32 %v7244, 1.442695
    %v7348 = vpow.pop %v7347
    %v7349 = vmul.f32 %v7245, 1.442695
    %v7350 = vpow.pop %v7349
    %v7351 = vmul.f32 %v7246, 1.442695
    %v7352 = vpow.pop %v7351
    %v7353 = vmul.f32 %v7247, 1.442695
    %v7354 = vpow.pop %v7353
    %v7355 = vmul.f32 %v7248, 1.442695
    %v7356 = vpow.pop %v7355
    %v7357 = vmul.f32 %v7249, 1.442695
    %v7358 = vpow.pop %v7357
    %v7359 = vmul.f32 %v7250, 1.442695
    %v7360 = vpow.pop %v7359
    %v7361 = vmul.f32 %v7251, 1.442695
    %v7362 = vpow.pop %v7361
    %v7363 = vmul.f32 %v7252, 1.442695
    %v7364 = vpow.pop %v7363
    %v7365 = vmul.f32 %v7253, 1.442695
    %v7366 = vpow.pop %v7365
    %v7367 = vmul.f32 %v7254, 1.442695
    %v7368 = vpow.pop %v7367
    %v7369 = vmul.f32 %v7255, 1.442695
    %v7370 = vpow.pop %v7369
    %v7371 = vmul.f32 %v7256, 1.442695
    %v7372 = vpow.pop %v7371
    %v7373 = vmul.f32 %v7257, 1.442695
    %v7374 = vpow.pop %v7373
    %v7375 = vmul.f32 %v7258, 1.442695
    %v7376 = vpow.pop %v7375
    %v7377 = vmul.f32 %v7259, 1.442695
    %v7378 = vpow.pop %v7377
    %v7379 = vmul.f32 %v7260, 1.442695
    %v7380 = vpow.pop %v7379
    %v7381 = vmul.f32 %v7261, 1.442695
    %v7382 = vpow.pop %v7381
    %v7383 = vmul.f32 %v7262, 1.442695
    %v7384 = vpow.pop %v7383
    %v7385 = vmul.f32 %v7263, 1.442695
    %v7386 = vpow.pop %v7385
    %v7387 = vmul.f32 %v7264, 1.442695
    %v7388 = vpow.pop %v7387
    %v7389 = vmul.f32 %v7265, 1.442695
    %v7390 = vpow.pop %v7389
    %v7391 = vmul.f32 %v7266, 1.442695
    %v7392 = vpow.pop %v7391
    %v7393 = vmul.f32 %v7267, 1.442695
    %v7394 = vpow.pop %v7393
    %v7395 = vmul.f32 %v7268, 1.442695
    %v7396 = vpow.pop %v7395
    %v7397 = vmul.f32 %v7269, 1.442695
    %v7398 = vpow.pop %v7397
    %v7399 = vmul.f32 %v7270, 1.442695
    %v7400 = vpow.pop %v7399
    %v7401 = vmul.f32 %v7271, 1.442695
    %v7402 = vpow.pop %v7401
    %v7403 = vmul.f32 %v7272, 1.442695
    %v7404 = vpow.pop %v7403
    %v7405 = vmul.f32 %v7273, 1.442695
    %v7406 = vpow.pop %v7405
    %v7407 = vmul.f32 %v7274, 1.442695
    %v7408 = vpow.pop %v7407
    %v7409 = vmul.f32 %v7275, 1.442695
    %v7410 = vpow.pop %v7409
    %v7411 = vmul.f32 %v7276, 1.442695
    %v7412 = vpow.pop %v7411
    %v7413 = vmul.f32 %v7277, 1.442695
    %v7414 = vpow.pop %v7413
    %v7415 = vmul.f32 %v7278, 1.442695
    %v7416 = vpow.pop %v7415
    %v7417 = vmul.f32 %v7279, 1.442695
    %v7418 = vpow.pop %v7417
    %v7419 = vmul.f32 %v7280, 1.442695
    %v7420 = vpow.pop %v7419
    %v7421 = vmul.f32 %v7281, 1.442695
    %v7422 = vpow.pop %v7421
    %v7423 = vmul.f32 %v7282, 1.442695
    %v7424 = vpow.pop %v7423
    %v7425 = vmul.f32 %v7283, 1.442695
    %v7426 = vpow.pop %v7425
    %v7427 = vmul.f32 %v7284, 1.442695
    %v7428 = vpow.pop %v7427
    %v7501 = vcombine.low %v7286, %v7288
    %v7503 = vunpack.c.l.s4 1966171168
    %v7504 = vunpack.c.0.s8 %v7503
    %v7505 = vlaneseq
    %v7506 = vshrl.u32 %v7505, 7
    %v7507 = vsub.s32 %v7504, %v7506
    %v7508 = vrot.slane %v7501, %v7507
    %v7510 = vunpack.c.l.s4 1966171168
    %v7511 = vunpack.c.0.s8 %v7510
    %v7512 = vlaneseq
    %v7513 = vshrl.u32 %v7512, 7
    %v7514 = vsub.s32 %v7511, %v7513
    %v7515 = vrot.slane %v7290, %v7514
    %v7516 = vcombine.low %v7508, %v7515
    %v7518 = vunpack.c.l.s4 1966171168
    %v7519 = vunpack.c.0.s8 %v7518
    %v7520 = vlaneseq
    %v7521 = vshrl.u32 %v7520, 7
    %v7522 = vsub.s32 %v7519, %v7521
    %v7523 = vrot.slane %v7516, %v7522
    %v7524 = vcombine.low %v7292, %v7294
    %v7526 = vunpack.c.l.s4 1966171168
    %v7527 = vunpack.c.0.s8 %v7526
    %v7528 = vlaneseq
    %v7529 = vshrl.u32 %v7528, 7
    %v7530 = vsub.s32 %v7527, %v7529
    %v7531 = vrot.slane %v7524, %v7530
    %v7533 = vunpack.c.l.s4 1966171168
    %v7534 = vunpack.c.0.s8 %v7533
    %v7535 = vlaneseq
    %v7536 = vshrl.u32 %v7535, 7
    %v7537 = vsub.s32 %v7534, %v7536
    %v7538 = vrot.slane %v7296, %v7537
    %v7539 = vcombine.low %v7531, %v7538
    %v7541 = vunpack.c.l.s4 1966171168
    %v7542 = vunpack.c.0.s8 %v7541
    %v7543 = vlaneseq
    %v7544 = vshrl.u32 %v7543, 7
    %v7545 = vsub.s32 %v7542, %v7544
    %v7546 = vrot.slane %v7539, %v7545
    %v7547 = vcombine.low %v7298, %v7300
    %v7549 = vunpack.c.l.s4 1966171168
    %v7550 = vunpack.c.0.s8 %v7549
    %v7551 = vlaneseq
    %v7552 = vshrl.u32 %v7551, 7
    %v7553 = vsub.s32 %v7550, %v7552
    %v7554 = vrot.slane %v7547, %v7553
    %v7556 = vunpack.c.l.s4 1966171168
    %v7557 = vunpack.c.0.s8 %v7556
    %v7558 = vlaneseq
    %v7559 = vshrl.u32 %v7558, 7
    %v7560 = vsub.s32 %v7557, %v7559
    %v7561 = vrot.slane %v7302, %v7560
    %v7562 = vcombine.low %v7554, %v7561
    %v7564 = vunpack.c.l.s4 1966171168
    %v7565 = vunpack.c.0.s8 %v7564
    %v7566 = vlaneseq
    %v7567 = vshrl.u32 %v7566, 7
    %v7568 = vsub.s32 %v7565, %v7567
    %v7569 = vrot.slane %v7562, %v7568
    %v7570 = vcombine.low %v7304, %v7306
    %v7572 = vunpack.c.l.s4 1966171168
    %v7573 = vunpack.c.0.s8 %v7572
    %v7574 = vlaneseq
    %v7575 = vshrl.u32 %v7574, 7
    %v7576 = vsub.s32 %v7573, %v7575
    %v7577 = vrot.slane %v7570, %v7576
    %v7579 = vunpack.c.l.s4 1966171168
    %v7580 = vunpack.c.0.s8 %v7579
    %v7581 = vlaneseq
    %v7582 = vshrl.u32 %v7581, 7
    %v7583 = vsub.s32 %v7580, %v7582
    %v7584 = vrot.slane %v7308, %v7583
    %v7585 = vcombine.low %v7577, %v7584
    %v7587 = vunpack.c.l.s4 1966171168
    %v7588 = vunpack.c.0.s8 %v7587
    %v7589 = vlaneseq
    %v7590 = vshrl.u32 %v7589, 7
    %v7591 = vsub.s32 %v7588, %v7590
    %v7592 = vrot.slane %v7585, %v7591
    %v7593 = vcombine.low %v7310, %v7312
    %v7595 = vunpack.c.l.s4 1966171168
    %v7596 = vunpack.c.0.s8 %v7595
    %v7597 = vlaneseq
    %v7598 = vshrl.u32 %v7597, 7
    %v7599 = vsub.s32 %v7596, %v7598
    %v7600 = vrot.slane %v7593, %v7599
    %v7602 = vunpack.c.l.s4 1966171168
    %v7603 = vunpack.c.0.s8 %v7602
    %v7604 = vlaneseq
    %v7605 = vshrl.u32 %v7604, 7
    %v7606 = vsub.s32 %v7603, %v7605
    %v7607 = vrot.slane %v7314, %v7606
    %v7608 = vcombine.low %v7600, %v7607
    %v7610 = vunpack.c.l.s4 1966171168
    %v7611 = vunpack.c.0.s8 %v7610
    %v7612 = vlaneseq
    %v7613 = vshrl.u32 %v7612, 7
    %v7614 = vsub.s32 %v7611, %v7613
    %v7615 = vrot.slane %v7608, %v7614
    %v7616 = vcombine.low %v7316, %v7318
    %v7618 = vunpack.c.l.s4 1966171168
    %v7619 = vunpack.c.0.s8 %v7618
    %v7620 = vlaneseq
    %v7621 = vshrl.u32 %v7620, 7
    %v7622 = vsub.s32 %v7619, %v7621
    %v7623 = vrot.slane %v7616, %v7622
    %v7625 = vunpack.c.l.s4 1966171168
    %v7626 = vunpack.c.0.s8 %v7625
    %v7627 = vlaneseq
    %v7628 = vshrl.u32 %v7627, 7
    %v7629 = vsub.s32 %v7626, %v7628
    %v7630 = vrot.slane %v7320, %v7629
    %v7631 = vcombine.low %v7623, %v7630
    %v7633 = vunpack.c.l.s4 1966171168
    %v7634 = vunpack.c.0.s8 %v7633
    %v7635 = vlaneseq
    %v7636 = vshrl.u32 %v7635, 7
    %v7637 = vsub.s32 %v7634, %v7636
    %v7638 = vrot.slane %v7631, %v7637
    %v7639 = vcombine.low %v7322, %v7324
    %v7641 = vunpack.c.l.s4 1966171168
    %v7642 = vunpack.c.0.s8 %v7641
    %v7643 = vlaneseq
    %v7644 = vshrl.u32 %v7643, 7
    %v7645 = vsub.s32 %v7642, %v7644
    %v7646 = vrot.slane %v7639, %v7645
    %v7648 = vunpack.c.l.s4 1966171168
    %v7649 = vunpack.c.0.s8 %v7648
    %v7650 = vlaneseq
    %v7651 = vshrl.u32 %v7650, 7
    %v7652 = vsub.s32 %v7649, %v7651
    %v7653 = vrot.slane %v7326, %v7652
    %v7654 = vcombine.low %v7646, %v7653
    %v7656 = vunpack.c.l.s4 1966171168
    %v7657 = vunpack.c.0.s8 %v7656
    %v7658 = vlaneseq
    %v7659 = vshrl.u32 %v7658, 7
    %v7660 = vsub.s32 %v7657, %v7659
    %v7661 = vrot.slane %v7654, %v7660
    %v7662 = vcombine.low %v7328, %v7330
    %v7664 = vunpack.c.l.s4 1966171168
    %v7665 = vunpack.c.0.s8 %v7664
    %v7666 = vlaneseq
    %v7667 = vshrl.u32 %v7666, 7
    %v7668 = vsub.s32 %v7665, %v7667
    %v7669 = vrot.slane %v7662, %v7668
    %v7671 = vunpack.c.l.s4 1966171168
    %v7672 = vunpack.c.0.s8 %v7671
    %v7673 = vlaneseq
    %v7674 = vshrl.u32 %v7673, 7
    %v7675 = vsub.s32 %v7672, %v7674
    %v7676 = vrot.slane %v7332, %v7675
    %v7677 = vcombine.low %v7669, %v7676
    %v7679 = vunpack.c.l.s4 1966171168
    %v7680 = vunpack.c.0.s8 %v7679
    %v7681 = vlaneseq
    %v7682 = vshrl.u32 %v7681, 7
    %v7683 = vsub.s32 %v7680, %v7682
    %v7684 = vrot.slane %v7677, %v7683
    %v7685 = vcombine.low %v7334, %v7336
    %v7687 = vunpack.c.l.s4 1966171168
    %v7688 = vunpack.c.0.s8 %v7687
    %v7689 = vlaneseq
    %v7690 = vshrl.u32 %v7689, 7
    %v7691 = vsub.s32 %v7688, %v7690
    %v7692 = vrot.slane %v7685, %v7691
    %v7694 = vunpack.c.l.s4 1966171168
    %v7695 = vunpack.c.0.s8 %v7694
    %v7696 = vlaneseq
    %v7697 = vshrl.u32 %v7696, 7
    %v7698 = vsub.s32 %v7695, %v7697
    %v7699 = vrot.slane %v7338, %v7698
    %v7700 = vcombine.low %v7692, %v7699
    %v7702 = vunpack.c.l.s4 1966171168
    %v7703 = vunpack.c.0.s8 %v7702
    %v7704 = vlaneseq
    %v7705 = vshrl.u32 %v7704, 7
    %v7706 = vsub.s32 %v7703, %v7705
    %v7707 = vrot.slane %v7700, %v7706
    %v7708 = vcombine.low %v7340, %v7342
    %v7710 = vunpack.c.l.s4 1966171168
    %v7711 = vunpack.c.0.s8 %v7710
    %v7712 = vlaneseq
    %v7713 = vshrl.u32 %v7712, 7
    %v7714 = vsub.s32 %v7711, %v7713
    %v7715 = vrot.slane %v7708, %v7714
    %v7717 = vunpack.c.l.s4 1966171168
    %v7718 = vunpack.c.0.s8 %v7717
    %v7719 = vlaneseq
    %v7720 = vshrl.u32 %v7719, 7
    %v7721 = vsub.s32 %v7718, %v7720
    %v7722 = vrot.slane %v7344, %v7721
    %v7723 = vcombine.low %v7715, %v7722
    %v7725 = vunpack.c.l.s4 1966171168
    %v7726 = vunpack.c.0.s8 %v7725
    %v7727 = vlaneseq
    %v7728 = vshrl.u32 %v7727, 7
    %v7729 = vsub.s32 %v7726, %v7728
    %v7730 = vrot.slane %v7723, %v7729
    %v7731 = vcombine.low %v7346, %v7348
    %v7733 = vunpack.c.l.s4 1966171168
    %v7734 = vunpack.c.0.s8 %v7733
    %v7735 = vlaneseq
    %v7736 = vshrl.u32 %v7735, 7
    %v7737 = vsub.s32 %v7734, %v7736
    %v7738 = vrot.slane %v7731, %v7737
    %v7740 = vunpack.c.l.s4 1966171168
    %v7741 = vunpack.c.0.s8 %v7740
    %v7742 = vlaneseq
    %v7743 = vshrl.u32 %v7742, 7
    %v7744 = vsub.s32 %v7741, %v7743
    %v7745 = vrot.slane %v7350, %v7744
    %v7746 = vcombine.low %v7738, %v7745
    %v7748 = vunpack.c.l.s4 1966171168
    %v7749 = vunpack.c.0.s8 %v7748
    %v7750 = vlaneseq
    %v7751 = vshrl.u32 %v7750, 7
    %v7752 = vsub.s32 %v7749, %v7751
    %v7753 = vrot.slane %v7746, %v7752
    %v7754 = vcombine.low %v7352, %v7354
    %v7756 = vunpack.c.l.s4 1966171168
    %v7757 = vunpack.c.0.s8 %v7756
    %v7758 = vlaneseq
    %v7759 = vshrl.u32 %v7758, 7
    %v7760 = vsub.s32 %v7757, %v7759
    %v7761 = vrot.slane %v7754, %v7760
    %v7763 = vunpack.c.l.s4 1966171168
    %v7764 = vunpack.c.0.s8 %v7763
    %v7765 = vlaneseq
    %v7766 = vshrl.u32 %v7765, 7
    %v7767 = vsub.s32 %v7764, %v7766
    %v7768 = vrot.slane %v7356, %v7767
    %v7769 = vcombine.low %v7761, %v7768
    %v7771 = vunpack.c.l.s4 1966171168
    %v7772 = vunpack.c.0.s8 %v7771
    %v7773 = vlaneseq
    %v7774 = vshrl.u32 %v7773, 7
    %v7775 = vsub.s32 %v7772, %v7774
    %v7776 = vrot.slane %v7769, %v7775
    %v7777 = vcombine.low %v7358, %v7360
    %v7779 = vunpack.c.l.s4 1966171168
    %v7780 = vunpack.c.0.s8 %v7779
    %v7781 = vlaneseq
    %v7782 = vshrl.u32 %v7781, 7
    %v7783 = vsub.s32 %v7780, %v7782
    %v7784 = vrot.slane %v7777, %v7783
    %v7786 = vunpack.c.l.s4 1966171168
    %v7787 = vunpack.c.0.s8 %v7786
    %v7788 = vlaneseq
    %v7789 = vshrl.u32 %v7788, 7
    %v7790 = vsub.s32 %v7787, %v7789
    %v7791 = vrot.slane %v7362, %v7790
    %v7792 = vcombine.low %v7784, %v7791
    %v7794 = vunpack.c.l.s4 1966171168
    %v7795 = vunpack.c.0.s8 %v7794
    %v7796 = vlaneseq
    %v7797 = vshrl.u32 %v7796, 7
    %v7798 = vsub.s32 %v7795, %v7797
    %v7799 = vrot.slane %v7792, %v7798
    %v7800 = vcombine.low %v7364, %v7366
    %v7802 = vunpack.c.l.s4 1966171168
    %v7803 = vunpack.c.0.s8 %v7802
    %v7804 = vlaneseq
    %v7805 = vshrl.u32 %v7804, 7
    %v7806 = vsub.s32 %v7803, %v7805
    %v7807 = vrot.slane %v7800, %v7806
    %v7809 = vunpack.c.l.s4 1966171168
    %v7810 = vunpack.c.0.s8 %v7809
    %v7811 = vlaneseq
    %v7812 = vshrl.u32 %v7811, 7
    %v7813 = vsub.s32 %v7810, %v7812
    %v7814 = vrot.slane %v7368, %v7813
    %v7815 = vcombine.low %v7807, %v7814
    %v7817 = vunpack.c.l.s4 1966171168
    %v7818 = vunpack.c.0.s8 %v7817
    %v7819 = vlaneseq
    %v7820 = vshrl.u32 %v7819, 7
    %v7821 = vsub.s32 %v7818, %v7820
    %v7822 = vrot.slane %v7815, %v7821
    %v7823 = vcombine.low %v7370, %v7372
    %v7825 = vunpack.c.l.s4 1966171168
    %v7826 = vunpack.c.0.s8 %v7825
    %v7827 = vlaneseq
    %v7828 = vshrl.u32 %v7827, 7
    %v7829 = vsub.s32 %v7826, %v7828
    %v7830 = vrot.slane %v7823, %v7829
    %v7832 = vunpack.c.l.s4 1966171168
    %v7833 = vunpack.c.0.s8 %v7832
    %v7834 = vlaneseq
    %v7835 = vshrl.u32 %v7834, 7
    %v7836 = vsub.s32 %v7833, %v7835
    %v7837 = vrot.slane %v7374, %v7836
    %v7838 = vcombine.low %v7830, %v7837
    %v7840 = vunpack.c.l.s4 1966171168
    %v7841 = vunpack.c.0.s8 %v7840
    %v7842 = vlaneseq
    %v7843 = vshrl.u32 %v7842, 7
    %v7844 = vsub.s32 %v7841, %v7843
    %v7845 = vrot.slane %v7838, %v7844
    %v7846 = vcombine.low %v7376, %v7378
    %v7848 = vunpack.c.l.s4 1966171168
    %v7849 = vunpack.c.0.s8 %v7848
    %v7850 = vlaneseq
    %v7851 = vshrl.u32 %v7850, 7
    %v7852 = vsub.s32 %v7849, %v7851
    %v7853 = vrot.slane %v7846, %v7852
    %v7855 = vunpack.c.l.s4 1966171168
    %v7856 = vunpack.c.0.s8 %v7855
    %v7857 = vlaneseq
    %v7858 = vshrl.u32 %v7857, 7
    %v7859 = vsub.s32 %v7856, %v7858
    %v7860 = vrot.slane %v7380, %v7859
    %v7861 = vcombine.low %v7853, %v7860
    %v7863 = vunpack.c.l.s4 1966171168
    %v7864 = vunpack.c.0.s8 %v7863
    %v7865 = vlaneseq
    %v7866 = vshrl.u32 %v7865, 7
    %v7867 = vsub.s32 %v7864, %v7866
    %v7868 = vrot.slane %v7861, %v7867
    %v7869 = vcombine.low %v7382, %v7384
    %v7871 = vunpack.c.l.s4 1966171168
    %v7872 = vunpack.c.0.s8 %v7871
    %v7873 = vlaneseq
    %v7874 = vshrl.u32 %v7873, 7
    %v7875 = vsub.s32 %v7872, %v7874
    %v7876 = vrot.slane %v7869, %v7875
    %v7878 = vunpack.c.l.s4 1966171168
    %v7879 = vunpack.c.0.s8 %v7878
    %v7880 = vlaneseq
    %v7881 = vshrl.u32 %v7880, 7
    %v7882 = vsub.s32 %v7879, %v7881
    %v7883 = vrot.slane %v7386, %v7882
    %v7884 = vcombine.low %v7876, %v7883
    %v7886 = vunpack.c.l.s4 1966171168
    %v7887 = vunpack.c.0.s8 %v7886
    %v7888 = vlaneseq
    %v7889 = vshrl.u32 %v7888, 7
    %v7890 = vsub.s32 %v7887, %v7889
    %v7891 = vrot.slane %v7884, %v7890
    %v7892 = vcombine.low %v7388, %v7390
    %v7894 = vunpack.c.l.s4 1966171168
    %v7895 = vunpack.c.0.s8 %v7894
    %v7896 = vlaneseq
    %v7897 = vshrl.u32 %v7896, 7
    %v7898 = vsub.s32 %v7895, %v7897
    %v7899 = vrot.slane %v7892, %v7898
    %v7901 = vunpack.c.l.s4 1966171168
    %v7902 = vunpack.c.0.s8 %v7901
    %v7903 = vlaneseq
    %v7904 = vshrl.u32 %v7903, 7
    %v7905 = vsub.s32 %v7902, %v7904
    %v7906 = vrot.slane %v7392, %v7905
    %v7907 = vcombine.low %v7899, %v7906
    %v7909 = vunpack.c.l.s4 1966171168
    %v7910 = vunpack.c.0.s8 %v7909
    %v7911 = vlaneseq
    %v7912 = vshrl.u32 %v7911, 7
    %v7913 = vsub.s32 %v7910, %v7912
    %v7914 = vrot.slane %v7907, %v7913
    %v7915 = vcombine.low %v7394, %v7396
    %v7917 = vunpack.c.l.s4 1966171168
    %v7918 = vunpack.c.0.s8 %v7917
    %v7919 = vlaneseq
    %v7920 = vshrl.u32 %v7919, 7
    %v7921 = vsub.s32 %v7918, %v7920
    %v7922 = vrot.slane %v7915, %v7921
    %v7924 = vunpack.c.l.s4 1966171168
    %v7925 = vunpack.c.0.s8 %v7924
    %v7926 = vlaneseq
    %v7927 = vshrl.u32 %v7926, 7
    %v7928 = vsub.s32 %v7925, %v7927
    %v7929 = vrot.slane %v7398, %v7928
    %v7930 = vcombine.low %v7922, %v7929
    %v7932 = vunpack.c.l.s4 1966171168
    %v7933 = vunpack.c.0.s8 %v7932
    %v7934 = vlaneseq
    %v7935 = vshrl.u32 %v7934, 7
    %v7936 = vsub.s32 %v7933, %v7935
    %v7937 = vrot.slane %v7930, %v7936
    %v7938 = vcombine.low %v7400, %v7402
    %v7940 = vunpack.c.l.s4 1966171168
    %v7941 = vunpack.c.0.s8 %v7940
    %v7942 = vlaneseq
    %v7943 = vshrl.u32 %v7942, 7
    %v7944 = vsub.s32 %v7941, %v7943
    %v7945 = vrot.slane %v7938, %v7944
    %v7947 = vunpack.c.l.s4 1966171168
    %v7948 = vunpack.c.0.s8 %v7947
    %v7949 = vlaneseq
    %v7950 = vshrl.u32 %v7949, 7
    %v7951 = vsub.s32 %v7948, %v7950
    %v7952 = vrot.slane %v7404, %v7951
    %v7953 = vcombine.low %v7945, %v7952
    %v7955 = vunpack.c.l.s4 1966171168
    %v7956 = vunpack.c.0.s8 %v7955
    %v7957 = vlaneseq
    %v7958 = vshrl.u32 %v7957, 7
    %v7959 = vsub.s32 %v7956, %v7958
    %v7960 = vrot.slane %v7953, %v7959
    %v7961 = vcombine.low %v7406, %v7408
    %v7963 = vunpack.c.l.s4 1966171168
    %v7964 = vunpack.c.0.s8 %v7963
    %v7965 = vlaneseq
    %v7966 = vshrl.u32 %v7965, 7
    %v7967 = vsub.s32 %v7964, %v7966
    %v7968 = vrot.slane %v7961, %v7967
    %v7970 = vunpack.c.l.s4 1966171168
    %v7971 = vunpack.c.0.s8 %v7970
    %v7972 = vlaneseq
    %v7973 = vshrl.u32 %v7972, 7
    %v7974 = vsub.s32 %v7971, %v7973
    %v7975 = vrot.slane %v7410, %v7974
    %v7976 = vcombine.low %v7968, %v7975
    %v7978 = vunpack.c.l.s4 1966171168
    %v7979 = vunpack.c.0.s8 %v7978
    %v7980 = vlaneseq
    %v7981 = vshrl.u32 %v7980, 7
    %v7982 = vsub.s32 %v7979, %v7981
    %v7983 = vrot.slane %v7976, %v7982
    %v7984 = vcombine.low %v7412, %v7414
    %v7986 = vunpack.c.l.s4 1966171168
    %v7987 = vunpack.c.0.s8 %v7986
    %v7988 = vlaneseq
    %v7989 = vshrl.u32 %v7988, 7
    %v7990 = vsub.s32 %v7987, %v7989
    %v7991 = vrot.slane %v7984, %v7990
    %v7993 = vunpack.c.l.s4 1966171168
    %v7994 = vunpack.c.0.s8 %v7993
    %v7995 = vlaneseq
    %v7996 = vshrl.u32 %v7995, 7
    %v7997 = vsub.s32 %v7994, %v7996
    %v7998 = vrot.slane %v7416, %v7997
    %v7999 = vcombine.low %v7991, %v7998
    %v8001 = vunpack.c.l.s4 1966171168
    %v8002 = vunpack.c.0.s8 %v8001
    %v8003 = vlaneseq
    %v8004 = vshrl.u32 %v8003, 7
    %v8005 = vsub.s32 %v8002, %v8004
    %v8006 = vrot.slane %v7999, %v8005
    %v8007 = vcombine.low %v7418, %v7420
    %v8009 = vunpack.c.l.s4 1966171168
    %v8010 = vunpack.c.0.s8 %v8009
    %v8011 = vlaneseq
    %v8012 = vshrl.u32 %v8011, 7
    %v8013 = vsub.s32 %v8010, %v8012
    %v8014 = vrot.slane %v8007, %v8013
    %v8016 = vunpack.c.l.s4 1966171168
    %v8017 = vunpack.c.0.s8 %v8016
    %v8018 = vlaneseq
    %v8019 = vshrl.u32 %v8018, 7
    %v8020 = vsub.s32 %v8017, %v8019
    %v8021 = vrot.slane %v7422, %v8020
    %v8022 = vcombine.low %v8014, %v8021
    %v8024 = vunpack.c.l.s4 1966171168
    %v8025 = vunpack.c.0.s8 %v8024
    %v8026 = vlaneseq
    %v8027 = vshrl.u32 %v8026, 7
    %v8028 = vsub.s32 %v8025, %v8027
    %v8029 = vrot.slane %v8022, %v8028
    %v8030 = vcombine.low %v7424, %v7426
    %v8032 = vunpack.c.l.s4 1966171168
    %v8033 = vunpack.c.0.s8 %v8032
    %v8034 = vlaneseq
    %v8035 = vshrl.u32 %v8034, 7
    %v8036 = vsub.s32 %v8033, %v8035
    %v8037 = vrot.slane %v8030, %v8036
    %v8039 = vunpack.c.l.s4 1966171168
    %v8040 = vunpack.c.0.s8 %v8039
    %v8041 = vlaneseq
    %v8042 = vshrl.u32 %v8041, 7
    %v8043 = vsub.s32 %v8040, %v8042
    %v8044 = vrot.slane %v7428, %v8043
    %v8045 = vcombine.low %v8037, %v8044
    %v8047 = vunpack.c.l.s4 1966171168
    %v8048 = vunpack.c.0.s8 %v8047
    %v8049 = vlaneseq
    %v8050 = vshrl.u32 %v8049, 7
    %v8051 = vsub.s32 %v8048, %v8050
    %v8052 = vrot.slane %v8045, %v8051
    %v8077 = vsel %vm5832, %v7523, 0.0
    %8078 = vadd.xlane.f32.xlu0 %v8077
    %v8079 = vpop.xlane.xlu0 %8078
    %v8080 = vsel %vm5832, %v7546, 0.0
    %8081 = vadd.xlane.f32.xlu0 %v8080
    %v8082 = vpop.xlane.xlu0 %8081
    %v8083 = vsel %vm5832, %v7569, 0.0
    %8084 = vadd.xlane.f32.xlu0 %v8083
    %v8085 = vpop.xlane.xlu0 %8084
    %v8086 = vsel %vm5832, %v7592, 0.0
    %8087 = vadd.xlane.f32.xlu0 %v8086
    %v8088 = vpop.xlane.xlu0 %8087
    %v8089 = vsel %vm5832, %v7615, 0.0
    %8090 = vadd.xlane.f32.xlu0 %v8089
    %v8091 = vpop.xlane.xlu0 %8090
    %v8092 = vsel %vm5832, %v7638, 0.0
    %8093 = vadd.xlane.f32.xlu0 %v8092
    %v8094 = vpop.xlane.xlu0 %8093
    %v8095 = vsel %vm5832, %v7661, 0.0
    %8096 = vadd.xlane.f32.xlu0 %v8095
    %v8097 = vpop.xlane.xlu0 %8096
    %v8098 = vsel %vm5832, %v7684, 0.0
    %8099 = vadd.xlane.f32.xlu0 %v8098
    %v8100 = vpop.xlane.xlu0 %8099
    %v8101 = vsel %vm5832, %v7707, 0.0
    %8102 = vadd.xlane.f32.xlu0 %v8101
    %v8103 = vpop.xlane.xlu0 %8102
    %v8104 = vsel %vm5832, %v7730, 0.0
    %8105 = vadd.xlane.f32.xlu0 %v8104
    %v8106 = vpop.xlane.xlu0 %8105
    %v8107 = vsel %vm5832, %v7753, 0.0
    %8108 = vadd.xlane.f32.xlu0 %v8107
    %v8109 = vpop.xlane.xlu0 %8108
    %v8110 = vsel %vm5832, %v7776, 0.0
    %8111 = vadd.xlane.f32.xlu0 %v8110
    %v8112 = vpop.xlane.xlu0 %8111
    %v8113 = vsel %vm5832, %v7799, 0.0
    %8114 = vadd.xlane.f32.xlu0 %v8113
    %v8115 = vpop.xlane.xlu0 %8114
    %v8116 = vsel %vm5832, %v7822, 0.0
    %8117 = vadd.xlane.f32.xlu0 %v8116
    %v8118 = vpop.xlane.xlu0 %8117
    %v8119 = vsel %vm5832, %v7845, 0.0
    %8120 = vadd.xlane.f32.xlu0 %v8119
    %v8121 = vpop.xlane.xlu0 %8120
    %v8122 = vsel %vm5832, %v7868, 0.0
    %8123 = vadd.xlane.f32.xlu0 %v8122
    %v8124 = vpop.xlane.xlu0 %8123
    %v8125 = vsel %vm5832, %v7891, 0.0
    %8126 = vadd.xlane.f32.xlu0 %v8125
    %v8127 = vpop.xlane.xlu0 %8126
    %v8128 = vsel %vm5832, %v7914, 0.0
    %8129 = vadd.xlane.f32.xlu0 %v8128
    %v8130 = vpop.xlane.xlu0 %8129
    %v8131 = vsel %vm5832, %v7937, 0.0
    %8132 = vadd.xlane.f32.xlu0 %v8131
    %v8133 = vpop.xlane.xlu0 %8132
    %v8134 = vsel %vm5832, %v7960, 0.0
    %8135 = vadd.xlane.f32.xlu0 %v8134
    %v8136 = vpop.xlane.xlu0 %8135
    %v8137 = vsel %vm5832, %v7983, 0.0
    %8138 = vadd.xlane.f32.xlu0 %v8137
    %v8139 = vpop.xlane.xlu0 %8138
    %v8140 = vsel %vm5832, %v8006, 0.0
    %8141 = vadd.xlane.f32.xlu0 %v8140
    %v8142 = vpop.xlane.xlu0 %8141
    %v8143 = vsel %vm5832, %v8029, 0.0
    %8144 = vadd.xlane.f32.xlu0 %v8143
    %v8145 = vpop.xlane.xlu0 %8144
    %v8146 = vsel %vm5832, %v8052, 0.0
    %8147 = vadd.xlane.f32.xlu0 %v8146
    %v8148 = vpop.xlane.xlu0 %8147
    %v8149 = vrcp.pop %v8079
    %v8150 = vrcp.pop %v8082
    %v8151 = vrcp.pop %v8085
    %v8152 = vrcp.pop %v8088
    %v8153 = vrcp.pop %v8091
    %v8154 = vrcp.pop %v8094
    %v8155 = vrcp.pop %v8097
    %v8156 = vrcp.pop %v8100
    %v8157 = vrcp.pop %v8103
    %v8158 = vrcp.pop %v8106
    %v8159 = vrcp.pop %v8109
    %v8160 = vrcp.pop %v8112
    %v8161 = vrcp.pop %v8115
    %v8162 = vrcp.pop %v8118
    %v8163 = vrcp.pop %v8121
    %v8164 = vrcp.pop %v8124
    %v8165 = vrcp.pop %v8127
    %v8166 = vrcp.pop %v8130
    %v8167 = vrcp.pop %v8133
    %v8168 = vrcp.pop %v8136
    %v8169 = vrcp.pop %v8139
    %v8170 = vrcp.pop %v8142
    %v8171 = vrcp.pop %v8145
    %v8172 = vrcp.pop %v8148
    %v8197 = vlaneseq
    %v8198 = vshrl.u32 %v8197, 7
    %v8199 = vsub.s32 0, %v8198
    %v8200 = vrot.slane %v8149, %v8199
    %v8201 = vlaneseq
    %v8202 = vshrl.u32 %v8201, 7
    %v8203 = vsub.s32 1, %v8202
    %v8204 = vrot.slane %v8149, %v8203
    %v8205 = vlaneseq
    %v8206 = vshrl.u32 %v8205, 7
    %v8207 = vsub.s32 2, %v8206
    %v8208 = vrot.slane %v8149, %v8207
    %v8209 = vlaneseq
    %v8210 = vshrl.u32 %v8209, 7
    %v8211 = vsub.s32 0, %v8210
    %v8212 = vrot.slane %v8150, %v8211
    %v8213 = vlaneseq
    %v8214 = vshrl.u32 %v8213, 7
    %v8215 = vsub.s32 1, %v8214
    %v8216 = vrot.slane %v8150, %v8215
    %v8217 = vlaneseq
    %v8218 = vshrl.u32 %v8217, 7
    %v8219 = vsub.s32 2, %v8218
    %v8220 = vrot.slane %v8150, %v8219
    %v8221 = vlaneseq
    %v8222 = vshrl.u32 %v8221, 7
    %v8223 = vsub.s32 0, %v8222
    %v8224 = vrot.slane %v8151, %v8223
    %v8225 = vlaneseq
    %v8226 = vshrl.u32 %v8225, 7
    %v8227 = vsub.s32 1, %v8226
    %v8228 = vrot.slane %v8151, %v8227
    %v8229 = vlaneseq
    %v8230 = vshrl.u32 %v8229, 7
    %v8231 = vsub.s32 2, %v8230
    %v8232 = vrot.slane %v8151, %v8231
    %v8233 = vlaneseq
    %v8234 = vshrl.u32 %v8233, 7
    %v8235 = vsub.s32 0, %v8234
    %v8236 = vrot.slane %v8152, %v8235
    %v8237 = vlaneseq
    %v8238 = vshrl.u32 %v8237, 7
    %v8239 = vsub.s32 1, %v8238
    %v8240 = vrot.slane %v8152, %v8239
    %v8241 = vlaneseq
    %v8242 = vshrl.u32 %v8241, 7
    %v8243 = vsub.s32 2, %v8242
    %v8244 = vrot.slane %v8152, %v8243
    %v8245 = vlaneseq
    %v8246 = vshrl.u32 %v8245, 7
    %v8247 = vsub.s32 0, %v8246
    %v8248 = vrot.slane %v8153, %v8247
    %v8249 = vlaneseq
    %v8250 = vshrl.u32 %v8249, 7
    %v8251 = vsub.s32 1, %v8250
    %v8252 = vrot.slane %v8153, %v8251
    %v8253 = vlaneseq
    %v8254 = vshrl.u32 %v8253, 7
    %v8255 = vsub.s32 2, %v8254
    %v8256 = vrot.slane %v8153, %v8255
    %v8257 = vlaneseq
    %v8258 = vshrl.u32 %v8257, 7
    %v8259 = vsub.s32 0, %v8258
    %v8260 = vrot.slane %v8154, %v8259
    %v8261 = vlaneseq
    %v8262 = vshrl.u32 %v8261, 7
    %v8263 = vsub.s32 1, %v8262
    %v8264 = vrot.slane %v8154, %v8263
    %v8265 = vlaneseq
    %v8266 = vshrl.u32 %v8265, 7
    %v8267 = vsub.s32 2, %v8266
    %v8268 = vrot.slane %v8154, %v8267
    %v8269 = vlaneseq
    %v8270 = vshrl.u32 %v8269, 7
    %v8271 = vsub.s32 0, %v8270
    %v8272 = vrot.slane %v8155, %v8271
    %v8273 = vlaneseq
    %v8274 = vshrl.u32 %v8273, 7
    %v8275 = vsub.s32 1, %v8274
    %v8276 = vrot.slane %v8155, %v8275
    %v8277 = vlaneseq
    %v8278 = vshrl.u32 %v8277, 7
    %v8279 = vsub.s32 2, %v8278
    %v8280 = vrot.slane %v8155, %v8279
    %v8281 = vlaneseq
    %v8282 = vshrl.u32 %v8281, 7
    %v8283 = vsub.s32 0, %v8282
    %v8284 = vrot.slane %v8156, %v8283
    %v8285 = vlaneseq
    %v8286 = vshrl.u32 %v8285, 7
    %v8287 = vsub.s32 1, %v8286
    %v8288 = vrot.slane %v8156, %v8287
    %v8289 = vlaneseq
    %v8290 = vshrl.u32 %v8289, 7
    %v8291 = vsub.s32 2, %v8290
    %v8292 = vrot.slane %v8156, %v8291
    %v8293 = vlaneseq
    %v8294 = vshrl.u32 %v8293, 7
    %v8295 = vsub.s32 0, %v8294
    %v8296 = vrot.slane %v8157, %v8295
    %v8297 = vlaneseq
    %v8298 = vshrl.u32 %v8297, 7
    %v8299 = vsub.s32 1, %v8298
    %v8300 = vrot.slane %v8157, %v8299
    %v8301 = vlaneseq
    %v8302 = vshrl.u32 %v8301, 7
    %v8303 = vsub.s32 2, %v8302
    %v8304 = vrot.slane %v8157, %v8303
    %v8305 = vlaneseq
    %v8306 = vshrl.u32 %v8305, 7
    %v8307 = vsub.s32 0, %v8306
    %v8308 = vrot.slane %v8158, %v8307
    %v8309 = vlaneseq
    %v8310 = vshrl.u32 %v8309, 7
    %v8311 = vsub.s32 1, %v8310
    %v8312 = vrot.slane %v8158, %v8311
    %v8313 = vlaneseq
    %v8314 = vshrl.u32 %v8313, 7
    %v8315 = vsub.s32 2, %v8314
    %v8316 = vrot.slane %v8158, %v8315
    %v8317 = vlaneseq
    %v8318 = vshrl.u32 %v8317, 7
    %v8319 = vsub.s32 0, %v8318
    %v8320 = vrot.slane %v8159, %v8319
    %v8321 = vlaneseq
    %v8322 = vshrl.u32 %v8321, 7
    %v8323 = vsub.s32 1, %v8322
    %v8324 = vrot.slane %v8159, %v8323
    %v8325 = vlaneseq
    %v8326 = vshrl.u32 %v8325, 7
    %v8327 = vsub.s32 2, %v8326
    %v8328 = vrot.slane %v8159, %v8327
    %v8329 = vlaneseq
    %v8330 = vshrl.u32 %v8329, 7
    %v8331 = vsub.s32 0, %v8330
    %v8332 = vrot.slane %v8160, %v8331
    %v8333 = vlaneseq
    %v8334 = vshrl.u32 %v8333, 7
    %v8335 = vsub.s32 1, %v8334
    %v8336 = vrot.slane %v8160, %v8335
    %v8337 = vlaneseq
    %v8338 = vshrl.u32 %v8337, 7
    %v8339 = vsub.s32 2, %v8338
    %v8340 = vrot.slane %v8160, %v8339
    %v8341 = vlaneseq
    %v8342 = vshrl.u32 %v8341, 7
    %v8343 = vsub.s32 0, %v8342
    %v8344 = vrot.slane %v8161, %v8343
    %v8345 = vlaneseq
    %v8346 = vshrl.u32 %v8345, 7
    %v8347 = vsub.s32 1, %v8346
    %v8348 = vrot.slane %v8161, %v8347
    %v8349 = vlaneseq
    %v8350 = vshrl.u32 %v8349, 7
    %v8351 = vsub.s32 2, %v8350
    %v8352 = vrot.slane %v8161, %v8351
    %v8353 = vlaneseq
    %v8354 = vshrl.u32 %v8353, 7
    %v8355 = vsub.s32 0, %v8354
    %v8356 = vrot.slane %v8162, %v8355
    %v8357 = vlaneseq
    %v8358 = vshrl.u32 %v8357, 7
    %v8359 = vsub.s32 1, %v8358
    %v8360 = vrot.slane %v8162, %v8359
    %v8361 = vlaneseq
    %v8362 = vshrl.u32 %v8361, 7
    %v8363 = vsub.s32 2, %v8362
    %v8364 = vrot.slane %v8162, %v8363
    %v8365 = vlaneseq
    %v8366 = vshrl.u32 %v8365, 7
    %v8367 = vsub.s32 0, %v8366
    %v8368 = vrot.slane %v8163, %v8367
    %v8369 = vlaneseq
    %v8370 = vshrl.u32 %v8369, 7
    %v8371 = vsub.s32 1, %v8370
    %v8372 = vrot.slane %v8163, %v8371
    %v8373 = vlaneseq
    %v8374 = vshrl.u32 %v8373, 7
    %v8375 = vsub.s32 2, %v8374
    %v8376 = vrot.slane %v8163, %v8375
    %v8377 = vlaneseq
    %v8378 = vshrl.u32 %v8377, 7
    %v8379 = vsub.s32 0, %v8378
    %v8380 = vrot.slane %v8164, %v8379
    %v8381 = vlaneseq
    %v8382 = vshrl.u32 %v8381, 7
    %v8383 = vsub.s32 1, %v8382
    %v8384 = vrot.slane %v8164, %v8383
    %v8385 = vlaneseq
    %v8386 = vshrl.u32 %v8385, 7
    %v8387 = vsub.s32 2, %v8386
    %v8388 = vrot.slane %v8164, %v8387
    %v8389 = vlaneseq
    %v8390 = vshrl.u32 %v8389, 7
    %v8391 = vsub.s32 0, %v8390
    %v8392 = vrot.slane %v8165, %v8391
    %v8393 = vlaneseq
    %v8394 = vshrl.u32 %v8393, 7
    %v8395 = vsub.s32 1, %v8394
    %v8396 = vrot.slane %v8165, %v8395
    %v8397 = vlaneseq
    %v8398 = vshrl.u32 %v8397, 7
    %v8399 = vsub.s32 2, %v8398
    %v8400 = vrot.slane %v8165, %v8399
    %v8401 = vlaneseq
    %v8402 = vshrl.u32 %v8401, 7
    %v8403 = vsub.s32 0, %v8402
    %v8404 = vrot.slane %v8166, %v8403
    %v8405 = vlaneseq
    %v8406 = vshrl.u32 %v8405, 7
    %v8407 = vsub.s32 1, %v8406
    %v8408 = vrot.slane %v8166, %v8407
    %v8409 = vlaneseq
    %v8410 = vshrl.u32 %v8409, 7
    %v8411 = vsub.s32 2, %v8410
    %v8412 = vrot.slane %v8166, %v8411
    %v8413 = vlaneseq
    %v8414 = vshrl.u32 %v8413, 7
    %v8415 = vsub.s32 0, %v8414
    %v8416 = vrot.slane %v8167, %v8415
    %v8417 = vlaneseq
    %v8418 = vshrl.u32 %v8417, 7
    %v8419 = vsub.s32 1, %v8418
    %v8420 = vrot.slane %v8167, %v8419
    %v8421 = vlaneseq
    %v8422 = vshrl.u32 %v8421, 7
    %v8423 = vsub.s32 2, %v8422
    %v8424 = vrot.slane %v8167, %v8423
    %v8425 = vlaneseq
    %v8426 = vshrl.u32 %v8425, 7
    %v8427 = vsub.s32 0, %v8426
    %v8428 = vrot.slane %v8168, %v8427
    %v8429 = vlaneseq
    %v8430 = vshrl.u32 %v8429, 7
    %v8431 = vsub.s32 1, %v8430
    %v8432 = vrot.slane %v8168, %v8431
    %v8433 = vlaneseq
    %v8434 = vshrl.u32 %v8433, 7
    %v8435 = vsub.s32 2, %v8434
    %v8436 = vrot.slane %v8168, %v8435
    %v8437 = vlaneseq
    %v8438 = vshrl.u32 %v8437, 7
    %v8439 = vsub.s32 0, %v8438
    %v8440 = vrot.slane %v8169, %v8439
    %v8441 = vlaneseq
    %v8442 = vshrl.u32 %v8441, 7
    %v8443 = vsub.s32 1, %v8442
    %v8444 = vrot.slane %v8169, %v8443
    %v8445 = vlaneseq
    %v8446 = vshrl.u32 %v8445, 7
    %v8447 = vsub.s32 2, %v8446
    %v8448 = vrot.slane %v8169, %v8447
    %v8449 = vlaneseq
    %v8450 = vshrl.u32 %v8449, 7
    %v8451 = vsub.s32 0, %v8450
    %v8452 = vrot.slane %v8170, %v8451
    %v8453 = vlaneseq
    %v8454 = vshrl.u32 %v8453, 7
    %v8455 = vsub.s32 1, %v8454
    %v8456 = vrot.slane %v8170, %v8455
    %v8457 = vlaneseq
    %v8458 = vshrl.u32 %v8457, 7
    %v8459 = vsub.s32 2, %v8458
    %v8460 = vrot.slane %v8170, %v8459
    %v8461 = vlaneseq
    %v8462 = vshrl.u32 %v8461, 7
    %v8463 = vsub.s32 0, %v8462
    %v8464 = vrot.slane %v8171, %v8463
    %v8465 = vlaneseq
    %v8466 = vshrl.u32 %v8465, 7
    %v8467 = vsub.s32 1, %v8466
    %v8468 = vrot.slane %v8171, %v8467
    %v8469 = vlaneseq
    %v8470 = vshrl.u32 %v8469, 7
    %v8471 = vsub.s32 2, %v8470
    %v8472 = vrot.slane %v8171, %v8471
    %v8473 = vlaneseq
    %v8474 = vshrl.u32 %v8473, 7
    %v8475 = vsub.s32 0, %v8474
    %v8476 = vrot.slane %v8172, %v8475
    %v8477 = vlaneseq
    %v8478 = vshrl.u32 %v8477, 7
    %v8479 = vsub.s32 1, %v8478
    %v8480 = vrot.slane %v8172, %v8479
    %v8481 = vlaneseq
    %v8482 = vshrl.u32 %v8481, 7
    %v8483 = vsub.s32 2, %v8482
    %v8484 = vrot.slane %v8172, %v8483
    %v8557 = vmul.f32 %v7286, %v8200
    %v8558 = vmul.f32 %v7288, %v8204
    %v8559 = vmul.f32 %v7290, %v8208
    %v8560 = vmul.f32 %v7292, %v8212
    %v8561 = vmul.f32 %v7294, %v8216
    %v8562 = vmul.f32 %v7296, %v8220
    %v8563 = vmul.f32 %v7298, %v8224
    %v8564 = vmul.f32 %v7300, %v8228
    %v8565 = vmul.f32 %v7302, %v8232
    %v8566 = vmul.f32 %v7304, %v8236
    %v8567 = vmul.f32 %v7306, %v8240
    %v8568 = vmul.f32 %v7308, %v8244
    %v8569 = vmul.f32 %v7310, %v8248
    %v8570 = vmul.f32 %v7312, %v8252
    %v8571 = vmul.f32 %v7314, %v8256
    %v8572 = vmul.f32 %v7316, %v8260
    %v8573 = vmul.f32 %v7318, %v8264
    %v8574 = vmul.f32 %v7320, %v8268
    %v8575 = vmul.f32 %v7322, %v8272
    %v8576 = vmul.f32 %v7324, %v8276
    %v8577 = vmul.f32 %v7326, %v8280
    %v8578 = vmul.f32 %v7328, %v8284
    %v8579 = vmul.f32 %v7330, %v8288
    %v8580 = vmul.f32 %v7332, %v8292
    %v8581 = vmul.f32 %v7334, %v8296
    %v8582 = vmul.f32 %v7336, %v8300
    %v8583 = vmul.f32 %v7338, %v8304
    %v8584 = vmul.f32 %v7340, %v8308
    %v8585 = vmul.f32 %v7342, %v8312
    %v8586 = vmul.f32 %v7344, %v8316
    %v8587 = vmul.f32 %v7346, %v8320
    %v8588 = vmul.f32 %v7348, %v8324
    %v8589 = vmul.f32 %v7350, %v8328
    %v8590 = vmul.f32 %v7352, %v8332
    %v8591 = vmul.f32 %v7354, %v8336
    %v8592 = vmul.f32 %v7356, %v8340
    %v8593 = vmul.f32 %v7358, %v8344
    %v8594 = vmul.f32 %v7360, %v8348
    %v8595 = vmul.f32 %v7362, %v8352
    %v8596 = vmul.f32 %v7364, %v8356
    %v8597 = vmul.f32 %v7366, %v8360
    %v8598 = vmul.f32 %v7368, %v8364
    %v8599 = vmul.f32 %v7370, %v8368
    %v8600 = vmul.f32 %v7372, %v8372
    %v8601 = vmul.f32 %v7374, %v8376
    %v8602 = vmul.f32 %v7376, %v8380
    %v8603 = vmul.f32 %v7378, %v8384
    %v8604 = vmul.f32 %v7380, %v8388
    %v8605 = vmul.f32 %v7382, %v8392
    %v8606 = vmul.f32 %v7384, %v8396
    %v8607 = vmul.f32 %v7386, %v8400
    %v8608 = vmul.f32 %v7388, %v8404
    %v8609 = vmul.f32 %v7390, %v8408
    %v8610 = vmul.f32 %v7392, %v8412
    %v8611 = vmul.f32 %v7394, %v8416
    %v8612 = vmul.f32 %v7396, %v8420
    %v8613 = vmul.f32 %v7398, %v8424
    %v8614 = vmul.f32 %v7400, %v8428
    %v8615 = vmul.f32 %v7402, %v8432
    %v8616 = vmul.f32 %v7404, %v8436
    %v8617 = vmul.f32 %v7406, %v8440
    %v8618 = vmul.f32 %v7408, %v8444
    %v8619 = vmul.f32 %v7410, %v8448
    %v8620 = vmul.f32 %v7412, %v8452
    %v8621 = vmul.f32 %v7414, %v8456
    %v8622 = vmul.f32 %v7416, %v8460
    %v8623 = vmul.f32 %v7418, %v8464
    %v8624 = vmul.f32 %v7420, %v8468
    %v8625 = vmul.f32 %v7422, %v8472
    %v8626 = vmul.f32 %v7424, %v8476
    %v8627 = vmul.f32 %v7426, %v8480
    %v8628 = vmul.f32 %v7428, %v8484
    %v8629 = vmul.f32 %v8557, %v4024
    %v8630 = vmul.f32 %v8558, %v4028
    %v8631 = vmul.f32 %v8559, %v4032
    %v8632 = vmul.f32 %v8560, %v4036
    %v8633 = vmul.f32 %v8561, %v4040
    %v8634 = vmul.f32 %v8562, %v4044
    %v8635 = vmul.f32 %v8563, %v4048
    %v8636 = vmul.f32 %v8564, %v4052
    %v8637 = vmul.f32 %v8565, %v4056
    %v8638 = vmul.f32 %v8566, %v4060
    %v8639 = vmul.f32 %v8567, %v4064
    %v8640 = vmul.f32 %v8568, %v4068
    %v8641 = vmul.f32 %v8569, %v4072
    %v8642 = vmul.f32 %v8570, %v4076
    %v8643 = vmul.f32 %v8571, %v4080
    %v8644 = vmul.f32 %v8572, %v4084
    %v8645 = vmul.f32 %v8573, %v4088
    %v8646 = vmul.f32 %v8574, %v4092
    %v8647 = vmul.f32 %v8575, %v4096
    %v8648 = vmul.f32 %v8576, %v4100
    %v8649 = vmul.f32 %v8577, %v4104
    %v8650 = vmul.f32 %v8578, %v4108
    %v8651 = vmul.f32 %v8579, %v4112
    %v8652 = vmul.f32 %v8580, %v4116
    %v8653 = vmul.f32 %v8581, %v4024
    %v8654 = vmul.f32 %v8582, %v4028
    %v8655 = vmul.f32 %v8583, %v4032
    %v8656 = vmul.f32 %v8584, %v4036
    %v8657 = vmul.f32 %v8585, %v4040
    %v8658 = vmul.f32 %v8586, %v4044
    %v8659 = vmul.f32 %v8587, %v4048
    %v8660 = vmul.f32 %v8588, %v4052
    %v8661 = vmul.f32 %v8589, %v4056
    %v8662 = vmul.f32 %v8590, %v4060
    %v8663 = vmul.f32 %v8591, %v4064
    %v8664 = vmul.f32 %v8592, %v4068
    %v8665 = vmul.f32 %v8593, %v4072
    %v8666 = vmul.f32 %v8594, %v4076
    %v8667 = vmul.f32 %v8595, %v4080
    %v8668 = vmul.f32 %v8596, %v4084
    %v8669 = vmul.f32 %v8597, %v4088
    %v8670 = vmul.f32 %v8598, %v4092
    %v8671 = vmul.f32 %v8599, %v4096
    %v8672 = vmul.f32 %v8600, %v4100
    %v8673 = vmul.f32 %v8601, %v4104
    %v8674 = vmul.f32 %v8602, %v4108
    %v8675 = vmul.f32 %v8603, %v4112
    %v8676 = vmul.f32 %v8604, %v4116
    %v8677 = vmul.f32 %v8605, %v4024
    %v8678 = vmul.f32 %v8606, %v4028
    %v8679 = vmul.f32 %v8607, %v4032
    %v8680 = vmul.f32 %v8608, %v4036
    %v8681 = vmul.f32 %v8609, %v4040
    %v8682 = vmul.f32 %v8610, %v4044
    %v8683 = vmul.f32 %v8611, %v4048
    %v8684 = vmul.f32 %v8612, %v4052
    %v8685 = vmul.f32 %v8613, %v4056
    %v8686 = vmul.f32 %v8614, %v4060
    %v8687 = vmul.f32 %v8615, %v4064
    %v8688 = vmul.f32 %v8616, %v4068
    %v8689 = vmul.f32 %v8617, %v4072
    %v8690 = vmul.f32 %v8618, %v4076
    %v8691 = vmul.f32 %v8619, %v4080
    %v8692 = vmul.f32 %v8620, %v4084
    %v8693 = vmul.f32 %v8621, %v4088
    %v8694 = vmul.f32 %v8622, %v4092
    %v8695 = vmul.f32 %v8623, %v4096
    %v8696 = vmul.f32 %v8624, %v4100
    %v8697 = vmul.f32 %v8625, %v4104
    %v8698 = vmul.f32 %v8626, %v4108
    %v8699 = vmul.f32 %v8627, %v4112
    %v8700 = vmul.f32 %v8628, %v4116
    %v8773 = vcombine.low %v8629, %v8630
    %v8774 = vcombine.low %v8631, %v8632
    %v8775 = vcombine.low %v8633, %v8634
    %v8776 = vcombine.low %v8635, %v8636
    %v8778 = vunpack.c.l.s4 1966171168
    %v8779 = vunpack.c.0.s8 %v8778
    %v8780 = vlaneseq
    %v8781 = vshrl.u32 %v8780, 7
    %v8782 = vsub.s32 %v8779, %v8781
    %v8783 = vrot.slane %v8773, %v8782
    %v8785 = vunpack.c.l.s4 1966171168
    %v8786 = vunpack.c.0.s8 %v8785
    %v8787 = vlaneseq
    %v8788 = vshrl.u32 %v8787, 7
    %v8789 = vsub.s32 %v8786, %v8788
    %v8790 = vrot.slane %v8774, %v8789
    %v8792 = vunpack.c.l.s4 1966171168
    %v8793 = vunpack.c.0.s8 %v8792
    %v8794 = vlaneseq
    %v8795 = vshrl.u32 %v8794, 7
    %v8796 = vsub.s32 %v8793, %v8795
    %v8797 = vrot.slane %v8775, %v8796
    %v8799 = vunpack.c.l.s4 1966171168
    %v8800 = vunpack.c.0.s8 %v8799
    %v8801 = vlaneseq
    %v8802 = vshrl.u32 %v8801, 7
    %v8803 = vsub.s32 %v8800, %v8802
    %v8804 = vrot.slane %v8776, %v8803
    %v8805 = vcombine.low %v8783, %v8790
    %v8806 = vcombine.low %v8797, %v8804
    %v8808 = vunpack.c.l.s4 1966171168
    %v8809 = vunpack.c.0.s8 %v8808
    %v8810 = vlaneseq
    %v8811 = vshrl.u32 %v8810, 7
    %v8812 = vsub.s32 %v8809, %v8811
    %v8813 = vrot.slane %v8805, %v8812
    %v8815 = vunpack.c.l.s4 1966171168
    %v8816 = vunpack.c.0.s8 %v8815
    %v8817 = vlaneseq
    %v8818 = vshrl.u32 %v8817, 7
    %v8819 = vsub.s32 %v8816, %v8818
    %v8820 = vrot.slane %v8806, %v8819
    %v8821 = vcombine.low %v8813, %v8820
    %v8822 = vcombine.low %v8637, %v8638
    %v8823 = vcombine.low %v8639, %v8640
    %v8824 = vcombine.low %v8641, %v8642
    %v8825 = vcombine.low %v8643, %v8644
    %v8827 = vunpack.c.l.s4 1966171168
    %v8828 = vunpack.c.0.s8 %v8827
    %v8829 = vlaneseq
    %v8830 = vshrl.u32 %v8829, 7
    %v8831 = vsub.s32 %v8828, %v8830
    %v8832 = vrot.slane %v8822, %v8831
    %v8834 = vunpack.c.l.s4 1966171168
    %v8835 = vunpack.c.0.s8 %v8834
    %v8836 = vlaneseq
    %v8837 = vshrl.u32 %v8836, 7
    %v8838 = vsub.s32 %v8835, %v8837
    %v8839 = vrot.slane %v8823, %v8838
    %v8841 = vunpack.c.l.s4 1966171168
    %v8842 = vunpack.c.0.s8 %v8841
    %v8843 = vlaneseq
    %v8844 = vshrl.u32 %v8843, 7
    %v8845 = vsub.s32 %v8842, %v8844
    %v8846 = vrot.slane %v8824, %v8845
    %v8848 = vunpack.c.l.s4 1966171168
    %v8849 = vunpack.c.0.s8 %v8848
    %v8850 = vlaneseq
    %v8851 = vshrl.u32 %v8850, 7
    %v8852 = vsub.s32 %v8849, %v8851
    %v8853 = vrot.slane %v8825, %v8852
    %v8854 = vcombine.low %v8832, %v8839
    %v8855 = vcombine.low %v8846, %v8853
    %v8857 = vunpack.c.l.s4 1966171168
    %v8858 = vunpack.c.0.s8 %v8857
    %v8859 = vlaneseq
    %v8860 = vshrl.u32 %v8859, 7
    %v8861 = vsub.s32 %v8858, %v8860
    %v8862 = vrot.slane %v8854, %v8861
    %v8864 = vunpack.c.l.s4 1966171168
    %v8865 = vunpack.c.0.s8 %v8864
    %v8866 = vlaneseq
    %v8867 = vshrl.u32 %v8866, 7
    %v8868 = vsub.s32 %v8865, %v8867
    %v8869 = vrot.slane %v8855, %v8868
    %v8870 = vcombine.low %v8862, %v8869
    %v8871 = vcombine.low %v8645, %v8646
    %v8872 = vcombine.low %v8647, %v8648
    %v8873 = vcombine.low %v8649, %v8650
    %v8874 = vcombine.low %v8651, %v8652
    %v8876 = vunpack.c.l.s4 1966171168
    %v8877 = vunpack.c.0.s8 %v8876
    %v8878 = vlaneseq
    %v8879 = vshrl.u32 %v8878, 7
    %v8880 = vsub.s32 %v8877, %v8879
    %v8881 = vrot.slane %v8871, %v8880
    %v8883 = vunpack.c.l.s4 1966171168
    %v8884 = vunpack.c.0.s8 %v8883
    %v8885 = vlaneseq
    %v8886 = vshrl.u32 %v8885, 7
    %v8887 = vsub.s32 %v8884, %v8886
    %v8888 = vrot.slane %v8872, %v8887
    %v8890 = vunpack.c.l.s4 1966171168
    %v8891 = vunpack.c.0.s8 %v8890
    %v8892 = vlaneseq
    %v8893 = vshrl.u32 %v8892, 7
    %v8894 = vsub.s32 %v8891, %v8893
    %v8895 = vrot.slane %v8873, %v8894
    %v8897 = vunpack.c.l.s4 1966171168
    %v8898 = vunpack.c.0.s8 %v8897
    %v8899 = vlaneseq
    %v8900 = vshrl.u32 %v8899, 7
    %v8901 = vsub.s32 %v8898, %v8900
    %v8902 = vrot.slane %v8874, %v8901
    %v8903 = vcombine.low %v8881, %v8888
    %v8904 = vcombine.low %v8895, %v8902
    %v8906 = vunpack.c.l.s4 1966171168
    %v8907 = vunpack.c.0.s8 %v8906
    %v8908 = vlaneseq
    %v8909 = vshrl.u32 %v8908, 7
    %v8910 = vsub.s32 %v8907, %v8909
    %v8911 = vrot.slane %v8903, %v8910
    %v8913 = vunpack.c.l.s4 1966171168
    %v8914 = vunpack.c.0.s8 %v8913
    %v8915 = vlaneseq
    %v8916 = vshrl.u32 %v8915, 7
    %v8917 = vsub.s32 %v8914, %v8916
    %v8918 = vrot.slane %v8904, %v8917
    %v8919 = vcombine.low %v8911, %v8918
    %v8920 = vcombine.low %v8653, %v8654
    %v8921 = vcombine.low %v8655, %v8656
    %v8922 = vcombine.low %v8657, %v8658
    %v8923 = vcombine.low %v8659, %v8660
    %v8925 = vunpack.c.l.s4 1966171168
    %v8926 = vunpack.c.0.s8 %v8925
    %v8927 = vlaneseq
    %v8928 = vshrl.u32 %v8927, 7
    %v8929 = vsub.s32 %v8926, %v8928
    %v8930 = vrot.slane %v8920, %v8929
    %v8932 = vunpack.c.l.s4 1966171168
    %v8933 = vunpack.c.0.s8 %v8932
    %v8934 = vlaneseq
    %v8935 = vshrl.u32 %v8934, 7
    %v8936 = vsub.s32 %v8933, %v8935
    %v8937 = vrot.slane %v8921, %v8936
    %v8939 = vunpack.c.l.s4 1966171168
    %v8940 = vunpack.c.0.s8 %v8939
    %v8941 = vlaneseq
    %v8942 = vshrl.u32 %v8941, 7
    %v8943 = vsub.s32 %v8940, %v8942
    %v8944 = vrot.slane %v8922, %v8943
    %v8946 = vunpack.c.l.s4 1966171168
    %v8947 = vunpack.c.0.s8 %v8946
    %v8948 = vlaneseq
    %v8949 = vshrl.u32 %v8948, 7
    %v8950 = vsub.s32 %v8947, %v8949
    %v8951 = vrot.slane %v8923, %v8950
    %v8952 = vcombine.low %v8930, %v8937
    %v8953 = vcombine.low %v8944, %v8951
    %v8955 = vunpack.c.l.s4 1966171168
    %v8956 = vunpack.c.0.s8 %v8955
    %v8957 = vlaneseq
    %v8958 = vshrl.u32 %v8957, 7
    %v8959 = vsub.s32 %v8956, %v8958
    %v8960 = vrot.slane %v8952, %v8959
    %v8962 = vunpack.c.l.s4 1966171168
    %v8963 = vunpack.c.0.s8 %v8962
    %v8964 = vlaneseq
    %v8965 = vshrl.u32 %v8964, 7
    %v8966 = vsub.s32 %v8963, %v8965
    %v8967 = vrot.slane %v8953, %v8966
    %v8968 = vcombine.low %v8960, %v8967
    %v8969 = vcombine.low %v8661, %v8662
    %v8970 = vcombine.low %v8663, %v8664
    %v8971 = vcombine.low %v8665, %v8666
    %v8972 = vcombine.low %v8667, %v8668
    %v8974 = vunpack.c.l.s4 1966171168
    %v8975 = vunpack.c.0.s8 %v8974
    %v8976 = vlaneseq
    %v8977 = vshrl.u32 %v8976, 7
    %v8978 = vsub.s32 %v8975, %v8977
    %v8979 = vrot.slane %v8969, %v8978
    %v8981 = vunpack.c.l.s4 1966171168
    %v8982 = vunpack.c.0.s8 %v8981
    %v8983 = vlaneseq
    %v8984 = vshrl.u32 %v8983, 7
    %v8985 = vsub.s32 %v8982, %v8984
    %v8986 = vrot.slane %v8970, %v8985
    %v8988 = vunpack.c.l.s4 1966171168
    %v8989 = vunpack.c.0.s8 %v8988
    %v8990 = vlaneseq
    %v8991 = vshrl.u32 %v8990, 7
    %v8992 = vsub.s32 %v8989, %v8991
    %v8993 = vrot.slane %v8971, %v8992
    %v8995 = vunpack.c.l.s4 1966171168
    %v8996 = vunpack.c.0.s8 %v8995
    %v8997 = vlaneseq
    %v8998 = vshrl.u32 %v8997, 7
    %v8999 = vsub.s32 %v8996, %v8998
    %v9000 = vrot.slane %v8972, %v8999
    %v9001 = vcombine.low %v8979, %v8986
    %v9002 = vcombine.low %v8993, %v9000
    %v9004 = vunpack.c.l.s4 1966171168
    %v9005 = vunpack.c.0.s8 %v9004
    %v9006 = vlaneseq
    %v9007 = vshrl.u32 %v9006, 7
    %v9008 = vsub.s32 %v9005, %v9007
    %v9009 = vrot.slane %v9001, %v9008
    %v9011 = vunpack.c.l.s4 1966171168
    %v9012 = vunpack.c.0.s8 %v9011
    %v9013 = vlaneseq
    %v9014 = vshrl.u32 %v9013, 7
    %v9015 = vsub.s32 %v9012, %v9014
    %v9016 = vrot.slane %v9002, %v9015
    %v9017 = vcombine.low %v9009, %v9016
    %v9018 = vcombine.low %v8669, %v8670
    %v9019 = vcombine.low %v8671, %v8672
    %v9020 = vcombine.low %v8673, %v8674
    %v9021 = vcombine.low %v8675, %v8676
    %v9023 = vunpack.c.l.s4 1966171168
    %v9024 = vunpack.c.0.s8 %v9023
    %v9025 = vlaneseq
    %v9026 = vshrl.u32 %v9025, 7
    %v9027 = vsub.s32 %v9024, %v9026
    %v9028 = vrot.slane %v9018, %v9027
    %v9030 = vunpack.c.l.s4 1966171168
    %v9031 = vunpack.c.0.s8 %v9030
    %v9032 = vlaneseq
    %v9033 = vshrl.u32 %v9032, 7
    %v9034 = vsub.s32 %v9031, %v9033
    %v9035 = vrot.slane %v9019, %v9034
    %v9037 = vunpack.c.l.s4 1966171168
    %v9038 = vunpack.c.0.s8 %v9037
    %v9039 = vlaneseq
    %v9040 = vshrl.u32 %v9039, 7
    %v9041 = vsub.s32 %v9038, %v9040
    %v9042 = vrot.slane %v9020, %v9041
    %v9044 = vunpack.c.l.s4 1966171168
    %v9045 = vunpack.c.0.s8 %v9044
    %v9046 = vlaneseq
    %v9047 = vshrl.u32 %v9046, 7
    %v9048 = vsub.s32 %v9045, %v9047
    %v9049 = vrot.slane %v9021, %v9048
    %v9050 = vcombine.low %v9028, %v9035
    %v9051 = vcombine.low %v9042, %v9049
    %v9053 = vunpack.c.l.s4 1966171168
    %v9054 = vunpack.c.0.s8 %v9053
    %v9055 = vlaneseq
    %v9056 = vshrl.u32 %v9055, 7
    %v9057 = vsub.s32 %v9054, %v9056
    %v9058 = vrot.slane %v9050, %v9057
    %v9060 = vunpack.c.l.s4 1966171168
    %v9061 = vunpack.c.0.s8 %v9060
    %v9062 = vlaneseq
    %v9063 = vshrl.u32 %v9062, 7
    %v9064 = vsub.s32 %v9061, %v9063
    %v9065 = vrot.slane %v9051, %v9064
    %v9066 = vcombine.low %v9058, %v9065
    %v9067 = vcombine.low %v8677, %v8678
    %v9068 = vcombine.low %v8679, %v8680
    %v9069 = vcombine.low %v8681, %v8682
    %v9070 = vcombine.low %v8683, %v8684
    %v9072 = vunpack.c.l.s4 1966171168
    %v9073 = vunpack.c.0.s8 %v9072
    %v9074 = vlaneseq
    %v9075 = vshrl.u32 %v9074, 7
    %v9076 = vsub.s32 %v9073, %v9075
    %v9077 = vrot.slane %v9067, %v9076
    %v9079 = vunpack.c.l.s4 1966171168
    %v9080 = vunpack.c.0.s8 %v9079
    %v9081 = vlaneseq
    %v9082 = vshrl.u32 %v9081, 7
    %v9083 = vsub.s32 %v9080, %v9082
    %v9084 = vrot.slane %v9068, %v9083
    %v9086 = vunpack.c.l.s4 1966171168
    %v9087 = vunpack.c.0.s8 %v9086
    %v9088 = vlaneseq
    %v9089 = vshrl.u32 %v9088, 7
    %v9090 = vsub.s32 %v9087, %v9089
    %v9091 = vrot.slane %v9069, %v9090
    %v9093 = vunpack.c.l.s4 1966171168
    %v9094 = vunpack.c.0.s8 %v9093
    %v9095 = vlaneseq
    %v9096 = vshrl.u32 %v9095, 7
    %v9097 = vsub.s32 %v9094, %v9096
    %v9098 = vrot.slane %v9070, %v9097
    %v9099 = vcombine.low %v9077, %v9084
    %v9100 = vcombine.low %v9091, %v9098
    %v9102 = vunpack.c.l.s4 1966171168
    %v9103 = vunpack.c.0.s8 %v9102
    %v9104 = vlaneseq
    %v9105 = vshrl.u32 %v9104, 7
    %v9106 = vsub.s32 %v9103, %v9105
    %v9107 = vrot.slane %v9099, %v9106
    %v9109 = vunpack.c.l.s4 1966171168
    %v9110 = vunpack.c.0.s8 %v9109
    %v9111 = vlaneseq
    %v9112 = vshrl.u32 %v9111, 7
    %v9113 = vsub.s32 %v9110, %v9112
    %v9114 = vrot.slane %v9100, %v9113
    %v9115 = vcombine.low %v9107, %v9114
    %v9116 = vcombine.low %v8685, %v8686
    %v9117 = vcombine.low %v8687, %v8688
    %v9118 = vcombine.low %v8689, %v8690
    %v9119 = vcombine.low %v8691, %v8692
    %v9121 = vunpack.c.l.s4 1966171168
    %v9122 = vunpack.c.0.s8 %v9121
    %v9123 = vlaneseq
    %v9124 = vshrl.u32 %v9123, 7
    %v9125 = vsub.s32 %v9122, %v9124
    %v9126 = vrot.slane %v9116, %v9125
    %v9128 = vunpack.c.l.s4 1966171168
    %v9129 = vunpack.c.0.s8 %v9128
    %v9130 = vlaneseq
    %v9131 = vshrl.u32 %v9130, 7
    %v9132 = vsub.s32 %v9129, %v9131
    %v9133 = vrot.slane %v9117, %v9132
    %v9135 = vunpack.c.l.s4 1966171168
    %v9136 = vunpack.c.0.s8 %v9135
    %v9137 = vlaneseq
    %v9138 = vshrl.u32 %v9137, 7
    %v9139 = vsub.s32 %v9136, %v9138
    %v9140 = vrot.slane %v9118, %v9139
    %v9142 = vunpack.c.l.s4 1966171168
    %v9143 = vunpack.c.0.s8 %v9142
    %v9144 = vlaneseq
    %v9145 = vshrl.u32 %v9144, 7
    %v9146 = vsub.s32 %v9143, %v9145
    %v9147 = vrot.slane %v9119, %v9146
    %v9148 = vcombine.low %v9126, %v9133
    %v9149 = vcombine.low %v9140, %v9147
    %v9151 = vunpack.c.l.s4 1966171168
    %v9152 = vunpack.c.0.s8 %v9151
    %v9153 = vlaneseq
    %v9154 = vshrl.u32 %v9153, 7
    %v9155 = vsub.s32 %v9152, %v9154
    %v9156 = vrot.slane %v9148, %v9155
    %v9158 = vunpack.c.l.s4 1966171168
    %v9159 = vunpack.c.0.s8 %v9158
    %v9160 = vlaneseq
    %v9161 = vshrl.u32 %v9160, 7
    %v9162 = vsub.s32 %v9159, %v9161
    %v9163 = vrot.slane %v9149, %v9162
    %v9164 = vcombine.low %v9156, %v9163
    %v9165 = vcombine.low %v8693, %v8694
    %v9166 = vcombine.low %v8695, %v8696
    %v9167 = vcombine.low %v8697, %v8698
    %v9168 = vcombine.low %v8699, %v8700
    %v9170 = vunpack.c.l.s4 1966171168
    %v9171 = vunpack.c.0.s8 %v9170
    %v9172 = vlaneseq
    %v9173 = vshrl.u32 %v9172, 7
    %v9174 = vsub.s32 %v9171, %v9173
    %v9175 = vrot.slane %v9165, %v9174
    %v9177 = vunpack.c.l.s4 1966171168
    %v9178 = vunpack.c.0.s8 %v9177
    %v9179 = vlaneseq
    %v9180 = vshrl.u32 %v9179, 7
    %v9181 = vsub.s32 %v9178, %v9180
    %v9182 = vrot.slane %v9166, %v9181
    %v9184 = vunpack.c.l.s4 1966171168
    %v9185 = vunpack.c.0.s8 %v9184
    %v9186 = vlaneseq
    %v9187 = vshrl.u32 %v9186, 7
    %v9188 = vsub.s32 %v9185, %v9187
    %v9189 = vrot.slane %v9167, %v9188
    %v9191 = vunpack.c.l.s4 1966171168
    %v9192 = vunpack.c.0.s8 %v9191
    %v9193 = vlaneseq
    %v9194 = vshrl.u32 %v9193, 7
    %v9195 = vsub.s32 %v9192, %v9194
    %v9196 = vrot.slane %v9168, %v9195
    %v9197 = vcombine.low %v9175, %v9182
    %v9198 = vcombine.low %v9189, %v9196
    %v9200 = vunpack.c.l.s4 1966171168
    %v9201 = vunpack.c.0.s8 %v9200
    %v9202 = vlaneseq
    %v9203 = vshrl.u32 %v9202, 7
    %v9204 = vsub.s32 %v9201, %v9203
    %v9205 = vrot.slane %v9197, %v9204
    %v9207 = vunpack.c.l.s4 1966171168
    %v9208 = vunpack.c.0.s8 %v9207
    %v9209 = vlaneseq
    %v9210 = vshrl.u32 %v9209, 7
    %v9211 = vsub.s32 %v9208, %v9210
    %v9212 = vrot.slane %v9198, %v9211
    %v9213 = vcombine.low %v9205, %v9212
    %v9223 = vpack.c.bf16 %v8870, %v8821
    %v9224 = vpack.c.bf16 %v8919, %v8919
    %v9225 = vpack.c.bf16 %v9017, %v8968
    %v9226 = vpack.c.bf16 %v9066, %v9066
    %v9227 = vpack.c.bf16 %v9164, %v9115
    %v9228 = vpack.c.bf16 %v9213, %v9213
    %vm9229 = vcmask 64512
    %v9231 = vsel %vm9229, %v9223, 0
    %v9234 = vsel %vm9229, %v9224, 0
    %vm9236 = vcmask 1043456
    %v9237 = vsel %vm9236, %v227, 0
    %9239 = vmatprep.subr.bf16.mxu0 0
    %9240 = vmatpush1.bf16.msra.mxu0 %v9237
    %9241 = vmatprep.subr.bf16.mxu0 0
    %9242 = vmatpush1.bf16.msra.mxu0 0
    %9243 = vmatprep.subr.bf16.mxu0 0
    %9244 = vmatpush1.bf16.msra.mxu0 0
    %9245 = vmatprep.subr.bf16.mxu0 0
    %9246 = vmatpush1.bf16.msra.mxu0 0
    %9247 = vmatprep.subr.bf16.mxu0 0
    %9248 = vmatpush1.bf16.msra.mxu0 0
    %9249 = vmatprep.subr.bf16.mxu0 0
    %9250 = vmatpush1.bf16.msra.mxu0 0
    %9251 = vmatprep.subr.bf16.mxu0 0
    %9252 = vmatpush1.bf16.msra.mxu0 0
    %9253 = vmatprep.subr.bf16.mxu0 0
    %9254 = vmatpush1.bf16.msra.mxu0 0
    %9255 = vmatprep.subr.bf16.mxu0 0
    %9256 = vmatpush1.bf16.msra.mxu0 0
    %9257 = vmatprep.subr.bf16.mxu0 0
    %9258 = vmatpush1.bf16.msra.mxu0 0
    %9259 = vmatprep.subr.bf16.mxu0 0
    %9260 = vmatpush1.bf16.msra.mxu0 0
    %9261 = vmatprep.subr.bf16.mxu0 0
    %9262 = vmatpush1.bf16.msra.mxu0 0
    %9263 = vmatprep.subr.bf16.mxu0 0
    %9264 = vmatpush1.bf16.msra.mxu0 0
    %9265 = vmatprep.subr.bf16.mxu0 0
    %9266 = vmatpush1.bf16.msra.mxu0 0
    %9267 = vmatprep.subr.bf16.mxu0 0
    %9268 = vmatpush1.bf16.msra.mxu0 0
    %9269 = vmatprep.subr.bf16.mxu0 0
    %9270 = vmatpush1.bf16.msra.mxu0 0
    %9271 = vmatprep.mubr.bf16.mxu0 0
    %9272 = vmatmul.mubr.bf16.gmra.mrb[0].mxu0 %v9231
    %v9273 = vpop.f32.mrb[0].mxu0
    %v9274 = vadd.f32 0.0, %v9273
    %v9275 = vpop.f32.mrb[0].mxu0
    %v9276 = vpop.f32.mrb[0].mxu0
    %v9277 = vadd.f32 0.0, %v9276
    %v9278 = vpop.f32.mrb[0].mxu0
    %9279 = vmatprep.mubr.bf16.mxu0 0
    %9280 = vmatmul.mubr.bf16.gmra.mrb[0].mxu0 %v9234
    %v9281 = vpop.f32.mrb[0].mxu0
    %v9282 = vadd.f32 0.0, %v9281
    %v9283 = vpop.f32.mrb[0].mxu0
    %v9284 = vpop.f32.mrb[0].mxu0
    %v9285 = vpop.f32.mrb[0].mxu0
    %9286 = vdwg.mxu0
    %v9288 = vsel %vm9229, %v9225, 0
    %v9291 = vsel %vm9229, %v9226, 0
    %v9293 = vsel %vm9236, %v228, 0
    %9295 = vmatprep.subr.bf16.mxu0 0
    %9296 = vmatpush1.bf16.msra.mxu0 %v9293
    %9297 = vmatprep.subr.bf16.mxu0 0
    %9298 = vmatpush1.bf16.msra.mxu0 0
    %9299 = vmatprep.subr.bf16.mxu0 0
    %9300 = vmatpush1.bf16.msra.mxu0 0
    %9301 = vmatprep.subr.bf16.mxu0 0
    %9302 = vmatpush1.bf16.msra.mxu0 0
    %9303 = vmatprep.subr.bf16.mxu0 0
    %9304 = vmatpush1.bf16.msra.mxu0 0
    %9305 = vmatprep.subr.bf16.mxu0 0
    %9306 = vmatpush1.bf16.msra.mxu0 0
    %9307 = vmatprep.subr.bf16.mxu0 0
    %9308 = vmatpush1.bf16.msra.mxu0 0
    %9309 = vmatprep.subr.bf16.mxu0 0
    %9310 = vmatpush1.bf16.msra.mxu0 0
    %9311 = vmatprep.subr.bf16.mxu0 0
    %9312 = vmatpush1.bf16.msra.mxu0 0
    %9313 = vmatprep.subr.bf16.mxu0 0
    %9314 = vmatpush1.bf16.msra.mxu0 0
    %9315 = vmatprep.subr.bf16.mxu0 0
    %9316 = vmatpush1.bf16.msra.mxu0 0
    %9317 = vmatprep.subr.bf16.mxu0 0
    %9318 = vmatpush1.bf16.msra.mxu0 0
    %9319 = vmatprep.subr.bf16.mxu0 0
    %9320 = vmatpush1.bf16.msra.mxu0 0
    %9321 = vmatprep.subr.bf16.mxu0 0
    %9322 = vmatpush1.bf16.msra.mxu0 0
    %9323 = vmatprep.subr.bf16.mxu0 0
    %9324 = vmatpush1.bf16.msra.mxu0 0
    %9325 = vmatprep.subr.bf16.mxu0 0
    %9326 = vmatpush1.bf16.msra.mxu0 0
    %9327 = vmatprep.mubr.bf16.mxu0 0
    %9328 = vmatmul.mubr.bf16.gmra.mrb[0].mxu0 %v9288
    %v9329 = vpop.f32.mrb[0].mxu0
    %v9330 = vadd.f32 0.0, %v9329
    %v9331 = vpop.f32.mrb[0].mxu0
    %v9332 = vpop.f32.mrb[0].mxu0
    %v9333 = vadd.f32 0.0, %v9332
    %v9334 = vpop.f32.mrb[0].mxu0
    %9335 = vmatprep.mubr.bf16.mxu0 0
    %9336 = vmatmul.mubr.bf16.gmra.mrb[0].mxu0 %v9291
    %v9337 = vpop.f32.mrb[0].mxu0
    %v9338 = vadd.f32 0.0, %v9337
    %v9339 = vpop.f32.mrb[0].mxu0
    %v9340 = vpop.f32.mrb[0].mxu0
    %v9341 = vpop.f32.mrb[0].mxu0
    %9342 = vdwg.mxu0
    %v9344 = vsel %vm9229, %v9227, 0
    %v9347 = vsel %vm9229, %v9228, 0
    %v9349 = vsel %vm9236, %v229, 0
    %9351 = vmatprep.subr.bf16.mxu0 0
    %9352 = vmatpush1.bf16.msra.mxu0 %v9349
    %9353 = vmatprep.subr.bf16.mxu0 0
    %9354 = vmatpush1.bf16.msra.mxu0 0
    %9355 = vmatprep.subr.bf16.mxu0 0
    %9356 = vmatpush1.bf16.msra.mxu0 0
    %9357 = vmatprep.subr.bf16.mxu0 0
    %9358 = vmatpush1.bf16.msra.mxu0 0
    %9359 = vmatprep.subr.bf16.mxu0 0
    %9360 = vmatpush1.bf16.msra.mxu0 0
    %9361 = vmatprep.subr.bf16.mxu0 0
    %9362 = vmatpush1.bf16.msra.mxu0 0
    %9363 = vmatprep.subr.bf16.mxu0 0
    %9364 = vmatpush1.bf16.msra.mxu0 0
    %9365 = vmatprep.subr.bf16.mxu0 0
    %9366 = vmatpush1.bf16.msra.mxu0 0
    %9367 = vmatprep.subr.bf16.mxu0 0
    %9368 = vmatpush1.bf16.msra.mxu0 0
    %9369 = vmatprep.subr.bf16.mxu0 0
    %9370 = vmatpush1.bf16.msra.mxu0 0
    %9371 = vmatprep.subr.bf16.mxu0 0
    %9372 = vmatpush1.bf16.msra.mxu0 0
    %9373 = vmatprep.subr.bf16.mxu0 0
    %9374 = vmatpush1.bf16.msra.mxu0 0
    %9375 = vmatprep.subr.bf16.mxu0 0
    %9376 = vmatpush1.bf16.msra.mxu0 0
    %9377 = vmatprep.subr.bf16.mxu0 0
    %9378 = vmatpush1.bf16.msra.mxu0 0
    %9379 = vmatprep.subr.bf16.mxu0 0
    %9380 = vmatpush1.bf16.msra.mxu0 0
    %9381 = vmatprep.subr.bf16.mxu0 0
    %9382 = vmatpush1.bf16.msra.mxu0 0
    %9383 = vmatprep.mubr.bf16.mxu0 0
    %9384 = vmatmul.mubr.bf16.gmra.mrb[0].mxu0 %v9344
    %v9385 = vpop.f32.mrb[0].mxu0
    %v9386 = vadd.f32 0.0, %v9385
    %v9387 = vpop.f32.mrb[0].mxu0
    %v9388 = vpop.f32.mrb[0].mxu0
    %v9389 = vadd.f32 0.0, %v9388
    %v9390 = vpop.f32.mrb[0].mxu0
    %9391 = vmatprep.mubr.bf16.mxu0 0
    %9392 = vmatmul.mubr.bf16.gmra.mrb[0].mxu0 %v9347
    %v9393 = vpop.f32.mrb[0].mxu0
    %v9394 = vadd.f32 0.0, %v9393
    %v9395 = vpop.f32.mrb[0].mxu0
    %v9396 = vpop.f32.mrb[0].mxu0
    %v9397 = vpop.f32.mrb[0].mxu0
    %9398 = vdwg.mxu0
    %v9399 = vmul.f32 %v9274, %v9274
    %v9400 = vmul.f32 %v9277, %v9277
    %v9401 = vmul.f32 %v9282, %v9282
    %v9402 = vmul.f32 %v9330, %v9330
    %v9403 = vmul.f32 %v9333, %v9333
    %v9404 = vmul.f32 %v9338, %v9338
    %v9405 = vmul.f32 %v9386, %v9386
    %v9406 = vmul.f32 %v9389, %v9389
    %v9407 = vmul.f32 %v9394, %v9394
    %v9408 = vsel %vm201, %v9399, 0.0
    %9409 = vadd.xlane.f32.xlu0 %v9408
    %v9410 = vpop.xlane.xlu0 %9409
    %v9411 = vsel %vm201, %v9400, 0.0
    %9412 = vadd.xlane.f32.xlu0 %v9411
    %v9413 = vpop.xlane.xlu0 %9412
    %v9414 = vsel %vm201, %v9401, 0.0
    %9415 = vadd.xlane.f32.xlu0 %v9414
    %v9416 = vpop.xlane.xlu0 %9415
    %v9417 = vsel %vm201, %v9402, 0.0
    %9418 = vadd.xlane.f32.xlu0 %v9417
    %v9419 = vpop.xlane.xlu0 %9418
    %v9420 = vsel %vm201, %v9403, 0.0
    %9421 = vadd.xlane.f32.xlu0 %v9420
    %v9422 = vpop.xlane.xlu0 %9421
    %v9423 = vsel %vm201, %v9404, 0.0
    %9424 = vadd.xlane.f32.xlu0 %v9423
    %v9425 = vpop.xlane.xlu0 %9424
    %v9426 = vsel %vm201, %v9405, 0.0
    %9427 = vadd.xlane.f32.xlu0 %v9426
    %v9428 = vpop.xlane.xlu0 %9427
    %v9429 = vsel %vm201, %v9406, 0.0
    %9430 = vadd.xlane.f32.xlu0 %v9429
    %v9431 = vpop.xlane.xlu0 %9430
    %v9432 = vsel %vm201, %v9407, 0.0
    %9433 = vadd.xlane.f32.xlu0 %v9432
    %v9434 = vpop.xlane.xlu0 %9433
    %v9435 = vadd.f32 %v9410, 1e-16
    %v9436 = vadd.f32 %v9413, 1e-16
    %v9437 = vadd.f32 %v9416, 1e-16
    %v9438 = vadd.f32 %v9419, 1e-16
    %v9439 = vadd.f32 %v9422, 1e-16
    %v9440 = vadd.f32 %v9425, 1e-16
    %v9441 = vadd.f32 %v9428, 1e-16
    %v9442 = vadd.f32 %v9431, 1e-16
    %v9443 = vadd.f32 %v9434, 1e-16
    %v9444 = vrsqrt.pop %v9435
    %v9445 = vrsqrt.pop %v9436
    %v9446 = vrsqrt.pop %v9437
    %v9447 = vrsqrt.pop %v9438
    %v9448 = vrsqrt.pop %v9439
    %v9449 = vrsqrt.pop %v9440
    %v9450 = vrsqrt.pop %v9441
    %v9451 = vrsqrt.pop %v9442
    %v9452 = vrsqrt.pop %v9443
    %v9453 = vmul.f32 %v9274, %v9444
    %v9454 = vmul.f32 %v9277, %v9445
    %v9455 = vmul.f32 %v9282, %v9446
    %v9456 = vmul.f32 %v9330, %v9447
    %v9457 = vmul.f32 %v9333, %v9448
    %v9458 = vmul.f32 %v9338, %v9449
    %v9459 = vmul.f32 %v9386, %v9450
    %v9460 = vmul.f32 %v9389, %v9451
    %v9461 = vmul.f32 %v9394, %v9452
    %v9462 = vsub.f32 %v9453, %v4237
    %v9463 = vsub.f32 %v9454, %v4286
    %v9464 = vsub.f32 %v9455, %v4335
    %v9465 = vsub.f32 %v9456, %v4237
    %v9466 = vsub.f32 %v9457, %v4286
    %v9467 = vsub.f32 %v9458, %v4335
    %v9468 = vsub.f32 %v9459, %v4237
    %v9469 = vsub.f32 %v9460, %v4286
    %v9470 = vsub.f32 %v9461, %v4335
    %v9471 = vmul.f32 %v9462, %v9462
    %v9472 = vmul.f32 %v9463, %v9463
    %v9473 = vmul.f32 %v9464, %v9464
    %v9474 = vmul.f32 %v9465, %v9465
    %v9475 = vmul.f32 %v9466, %v9466
    %v9476 = vmul.f32 %v9467, %v9467
    %v9477 = vmul.f32 %v9468, %v9468
    %v9478 = vmul.f32 %v9469, %v9469
    %v9479 = vmul.f32 %v9470, %v9470
    %v9480 = vpack.c.bf16 %v9472, %v9471
    %v9481 = vpack.c.bf16 %v9474, %v9473
    %v9482 = vpack.c.bf16 %v9476, %v9475
    %v9483 = vpack.c.bf16 %v9478, %v9477
    %v9484 = vpack.c.bf16 %v9479, %v9479
    %v9485 = vld [vmem:[%s15] sm:$0xf]
    %v9486 = vld [vmem:[%s15 + $0x4] sm:$0xf]
    %v9487 = vld [vmem:[%s15 + $0x8] sm:$0xf]
    %v9488 = vld [vmem:[%s15 + $0xc] sm:$0xf]
    %v9489 = vld [vmem:[%s16] sm:$0x1]
    %v9491 = vlaneseq
    %v9492 = vshrl.u32 %v9491, 7
    %v9493 = vsub.s32 0, %v9492
    %v9494 = vrot.slane %v9489, %v9493
    %v9500 = vunpack.c.l.b16 %v9485
    %v9501 = vunpack.c.l.b16 %v9486
    %v9502 = vunpack.c.l.b16 %v9487
    %v9503 = vunpack.c.l.b16 %v9488
    %v9504 = vpack.c.b16 %v9501, %v9500
    %v9505 = vpack.c.b16 %v9503, %v9502
    %v9509 = vsel %vm201, %v9480, 0
    %v9512 = vsel %vm201, %v9481, 0
    %v9515 = vsel %vm201, %v9482, 0
    %v9518 = vsel %vm201, %v9483, 0
    %v9521 = vsel %vm201, %v9484, 0
    %9523 = vmatprep.subr.bf16.mxu0 0
    %9524 = vmatpush1.bf16.msra.mxu0 %v9504
    %9525 = vmatprep.subr.bf16.mxu0 0
    %9526 = vmatpush1.bf16.msra.mxu0 %v9505
    %9527 = vmatprep.subr.bf16.mxu0 0
    %9528 = vmatpush1.bf16.msra.mxu0 0
    %9529 = vmatprep.subr.bf16.mxu0 0
    %9530 = vmatpush1.bf16.msra.mxu0 0
    %9531 = vmatprep.subr.bf16.mxu0 0
    %9532 = vmatpush1.bf16.msra.mxu0 0
    %9533 = vmatprep.subr.bf16.mxu0 0
    %9534 = vmatpush1.bf16.msra.mxu0 0
    %9535 = vmatprep.subr.bf16.mxu0 0
    %9536 = vmatpush1.bf16.msra.mxu0 0
    %9537 = vmatprep.subr.bf16.mxu0 0
    %9538 = vmatpush1.bf16.msra.mxu0 0
    %9539 = vmatprep.subr.bf16.mxu0 0
    %9540 = vmatpush1.bf16.msra.mxu0 0
    %9541 = vmatprep.subr.bf16.mxu0 0
    %9542 = vmatpush1.bf16.msra.mxu0 0
    %9543 = vmatprep.subr.bf16.mxu0 0
    %9544 = vmatpush1.bf16.msra.mxu0 0
    %9545 = vmatprep.subr.bf16.mxu0 0
    %9546 = vmatpush1.bf16.msra.mxu0 0
    %9547 = vmatprep.subr.bf16.mxu0 0
    %9548 = vmatpush1.bf16.msra.mxu0 0
    %9549 = vmatprep.subr.bf16.mxu0 0
    %9550 = vmatpush1.bf16.msra.mxu0 0
    %9551 = vmatprep.subr.bf16.mxu0 0
    %9552 = vmatpush1.bf16.msra.mxu0 0
    %9553 = vmatprep.subr.bf16.mxu0 0
    %9554 = vmatpush1.bf16.msra.mxu0 0
    %9555 = vmatprep.mubr.bf16.mxu0 0
    %9556 = vmatmul.mubr.bf16.gmra.mrb[0].mxu0 %v9509
    %v9557 = vpop.f32.mrb[0].mxu0
    %v9558 = vadd.f32 %v9494, %v9557
    %v9559 = vpop.f32.mrb[0].mxu0
    %v9560 = vpop.f32.mrb[0].mxu0
    %v9561 = vadd.f32 %v9494, %v9560
    %v9562 = vpop.f32.mrb[0].mxu0
    %9563 = vmatprep.mubr.bf16.mxu0 0
    %9564 = vmatmul.mubr.bf16.gmra.mrb[0].mxu0 %v9512
    %v9565 = vpop.f32.mrb[0].mxu0
    %v9566 = vadd.f32 %v9494, %v9565
    %v9567 = vpop.f32.mrb[0].mxu0
    %v9568 = vpop.f32.mrb[0].mxu0
    %v9569 = vadd.f32 %v9494, %v9568
    %v9570 = vpop.f32.mrb[0].mxu0
    %9571 = vmatprep.mubr.bf16.mxu0 0
    %9572 = vmatmul.mubr.bf16.gmra.mrb[0].mxu0 %v9515
    %v9573 = vpop.f32.mrb[0].mxu0
    %v9574 = vadd.f32 %v9494, %v9573
    %v9575 = vpop.f32.mrb[0].mxu0
    %v9576 = vpop.f32.mrb[0].mxu0
    %v9577 = vadd.f32 %v9494, %v9576
    %v9578 = vpop.f32.mrb[0].mxu0
    %9579 = vmatprep.mubr.bf16.mxu0 0
    %9580 = vmatmul.mubr.bf16.gmra.mrb[0].mxu0 %v9518
    %v9581 = vpop.f32.mrb[0].mxu0
    %v9582 = vadd.f32 %v9494, %v9581
    %v9583 = vpop.f32.mrb[0].mxu0
    %v9584 = vpop.f32.mrb[0].mxu0
    %v9585 = vadd.f32 %v9494, %v9584
    %v9586 = vpop.f32.mrb[0].mxu0
    %9587 = vmatprep.mubr.bf16.mxu0 0
    %9588 = vmatmul.mubr.bf16.gmra.mrb[0].mxu0 %v9521
    %v9589 = vpop.f32.mrb[0].mxu0
    %v9590 = vadd.f32 %v9494, %v9589
    %v9591 = vpop.f32.mrb[0].mxu0
    %v9592 = vpop.f32.mrb[0].mxu0
    %v9593 = vpop.f32.mrb[0].mxu0
    %9594 = vdwg.mxu0
    %v9595 = vmul.f32 %v9558, %v9558
    %v9596 = vmul.f32 %v9561, %v9561
    %v9597 = vmul.f32 %v9566, %v9566
    %v9598 = vmul.f32 %v9569, %v9569
    %v9599 = vmul.f32 %v9574, %v9574
    %v9600 = vmul.f32 %v9577, %v9577
    %v9601 = vmul.f32 %v9582, %v9582
    %v9602 = vmul.f32 %v9585, %v9585
    %v9603 = vmul.f32 %v9590, %v9590
    %v9604 = vsel %vm434, %v9595, 0.0
    %9605 = vadd.xlane.f32.xlu0 %v9604
    %v9606 = vpop.xlane.xlu0 %9605
    %v9607 = vsel %vm434, %v9596, 0.0
    %9608 = vadd.xlane.f32.xlu0 %v9607
    %v9609 = vpop.xlane.xlu0 %9608
    %v9610 = vsel %vm434, %v9597, 0.0
    %9611 = vadd.xlane.f32.xlu0 %v9610
    %v9612 = vpop.xlane.xlu0 %9611
    %v9613 = vsel %vm434, %v9598, 0.0
    %9614 = vadd.xlane.f32.xlu0 %v9613
    %v9615 = vpop.xlane.xlu0 %9614
    %v9616 = vsel %vm434, %v9599, 0.0
    %9617 = vadd.xlane.f32.xlu0 %v9616
    %v9618 = vpop.xlane.xlu0 %9617
    %v9619 = vsel %vm434, %v9600, 0.0
    %9620 = vadd.xlane.f32.xlu0 %v9619
    %v9621 = vpop.xlane.xlu0 %9620
    %v9622 = vsel %vm434, %v9601, 0.0
    %9623 = vadd.xlane.f32.xlu0 %v9622
    %v9624 = vpop.xlane.xlu0 %9623
    %v9625 = vsel %vm434, %v9602, 0.0
    %9626 = vadd.xlane.f32.xlu0 %v9625
    %v9627 = vpop.xlane.xlu0 %9626
    %v9628 = vsel %vm434, %v9603, 0.0
    %9629 = vadd.xlane.f32.xlu0 %v9628
    %v9630 = vpop.xlane.xlu0 %9629
    %v9631 = vadd.f32 %v9606, 1e-16
    %v9632 = vadd.f32 %v9609, 1e-16
    %v9633 = vadd.f32 %v9612, 1e-16
    %v9634 = vadd.f32 %v9615, 1e-16
    %v9635 = vadd.f32 %v9618, 1e-16
    %v9636 = vadd.f32 %v9621, 1e-16
    %v9637 = vadd.f32 %v9624, 1e-16
    %v9638 = vadd.f32 %v9627, 1e-16
    %v9639 = vadd.f32 %v9630, 1e-16
    %v9640 = vrsqrt.pop %v9631
    %v9641 = vrsqrt.pop %v9632
    %v9642 = vrsqrt.pop %v9633
    %v9643 = vrsqrt.pop %v9634
    %v9644 = vrsqrt.pop %v9635
    %v9645 = vrsqrt.pop %v9636
    %v9646 = vrsqrt.pop %v9637
    %v9647 = vrsqrt.pop %v9638
    %v9648 = vrsqrt.pop %v9639
    %v9649 = vmul.f32 %v9558, %v9640
    %v9650 = vmul.f32 %v9561, %v9641
    %v9651 = vmul.f32 %v9566, %v9642
    %v9652 = vmul.f32 %v9569, %v9643
    %v9653 = vmul.f32 %v9574, %v9644
    %v9654 = vmul.f32 %v9577, %v9645
    %v9655 = vmul.f32 %v9582, %v9646
    %v9656 = vmul.f32 %v9585, %v9647
    %v9657 = vmul.f32 %v9590, %v9648
    %v9667 = vcombine.high %v9649, %v9649
    %v9669 = vunpack.c.l.s4 1966171168
    %v9670 = vunpack.c.0.s8 %v9669
    %v9671 = vlaneseq
    %v9672 = vshrl.u32 %v9671, 7
    %v9673 = vsub.s32 %v9670, %v9672
    %v9674 = vrot.slane %v9649, %v9673
    %v9676 = vunpack.c.l.s4 1966171168
    %v9677 = vunpack.c.0.s8 %v9676
    %v9678 = vlaneseq
    %v9679 = vshrl.u32 %v9678, 7
    %v9680 = vsub.s32 %v9677, %v9679
    %v9681 = vrot.slane %v9667, %v9680
    %v9682 = vcombine.high %v9674, %v9674
    %v9683 = vcombine.high %v9681, %v9681
    %v9685 = vunpack.c.l.s4 1966171168
    %v9686 = vunpack.c.0.s8 %v9685
    %v9687 = vlaneseq
    %v9688 = vshrl.u32 %v9687, 7
    %v9689 = vsub.s32 %v9686, %v9688
    %v9690 = vrot.slane %v9674, %v9689
    %v9692 = vunpack.c.l.s4 1966171168
    %v9693 = vunpack.c.0.s8 %v9692
    %v9694 = vlaneseq
    %v9695 = vshrl.u32 %v9694, 7
    %v9696 = vsub.s32 %v9693, %v9695
    %v9697 = vrot.slane %v9681, %v9696
    %v9699 = vunpack.c.l.s4 1966171168
    %v9700 = vunpack.c.0.s8 %v9699
    %v9701 = vlaneseq
    %v9702 = vshrl.u32 %v9701, 7
    %v9703 = vsub.s32 %v9700, %v9702
    %v9704 = vrot.slane %v9682, %v9703
    %v9706 = vunpack.c.l.s4 1966171168
    %v9707 = vunpack.c.0.s8 %v9706
    %v9708 = vlaneseq
    %v9709 = vshrl.u32 %v9708, 7
    %v9710 = vsub.s32 %v9707, %v9709
    %v9711 = vrot.slane %v9683, %v9710
    %v9712 = vcombine.high %v9690, %v9690
    %v9713 = vcombine.high %v9697, %v9697
    %v9714 = vcombine.high %v9704, %v9704
    %v9715 = vcombine.high %v9711, %v9711
    %v9716 = vcombine.high %v9650, %v9650
    %v9718 = vunpack.c.l.s4 1966171168
    %v9719 = vunpack.c.0.s8 %v9718
    %v9720 = vlaneseq
    %v9721 = vshrl.u32 %v9720, 7
    %v9722 = vsub.s32 %v9719, %v9721
    %v9723 = vrot.slane %v9650, %v9722
    %v9725 = vunpack.c.l.s4 1966171168
    %v9726 = vunpack.c.0.s8 %v9725
    %v9727 = vlaneseq
    %v9728 = vshrl.u32 %v9727, 7
    %v9729 = vsub.s32 %v9726, %v9728
    %v9730 = vrot.slane %v9716, %v9729
    %v9731 = vcombine.high %v9723, %v9723
    %v9732 = vcombine.high %v9730, %v9730
    %v9734 = vunpack.c.l.s4 1966171168
    %v9735 = vunpack.c.0.s8 %v9734
    %v9736 = vlaneseq
    %v9737 = vshrl.u32 %v9736, 7
    %v9738 = vsub.s32 %v9735, %v9737
    %v9739 = vrot.slane %v9723, %v9738
    %v9741 = vunpack.c.l.s4 1966171168
    %v9742 = vunpack.c.0.s8 %v9741
    %v9743 = vlaneseq
    %v9744 = vshrl.u32 %v9743, 7
    %v9745 = vsub.s32 %v9742, %v9744
    %v9746 = vrot.slane %v9730, %v9745
    %v9748 = vunpack.c.l.s4 1966171168
    %v9749 = vunpack.c.0.s8 %v9748
    %v9750 = vlaneseq
    %v9751 = vshrl.u32 %v9750, 7
    %v9752 = vsub.s32 %v9749, %v9751
    %v9753 = vrot.slane %v9731, %v9752
    %v9755 = vunpack.c.l.s4 1966171168
    %v9756 = vunpack.c.0.s8 %v9755
    %v9757 = vlaneseq
    %v9758 = vshrl.u32 %v9757, 7
    %v9759 = vsub.s32 %v9756, %v9758
    %v9760 = vrot.slane %v9732, %v9759
    %v9761 = vcombine.high %v9739, %v9739
    %v9762 = vcombine.high %v9746, %v9746
    %v9763 = vcombine.high %v9753, %v9753
    %v9764 = vcombine.high %v9760, %v9760
    %v9765 = vcombine.high %v9651, %v9651
    %v9767 = vunpack.c.l.s4 1966171168
    %v9768 = vunpack.c.0.s8 %v9767
    %v9769 = vlaneseq
    %v9770 = vshrl.u32 %v9769, 7
    %v9771 = vsub.s32 %v9768, %v9770
    %v9772 = vrot.slane %v9651, %v9771
    %v9774 = vunpack.c.l.s4 1966171168
    %v9775 = vunpack.c.0.s8 %v9774
    %v9776 = vlaneseq
    %v9777 = vshrl.u32 %v9776, 7
    %v9778 = vsub.s32 %v9775, %v9777
    %v9779 = vrot.slane %v9765, %v9778
    %v9780 = vcombine.high %v9772, %v9772
    %v9781 = vcombine.high %v9779, %v9779
    %v9783 = vunpack.c.l.s4 1966171168
    %v9784 = vunpack.c.0.s8 %v9783
    %v9785 = vlaneseq
    %v9786 = vshrl.u32 %v9785, 7
    %v9787 = vsub.s32 %v9784, %v9786
    %v9788 = vrot.slane %v9772, %v9787
    %v9790 = vunpack.c.l.s4 1966171168
    %v9791 = vunpack.c.0.s8 %v9790
    %v9792 = vlaneseq
    %v9793 = vshrl.u32 %v9792, 7
    %v9794 = vsub.s32 %v9791, %v9793
    %v9795 = vrot.slane %v9779, %v9794
    %v9797 = vunpack.c.l.s4 1966171168
    %v9798 = vunpack.c.0.s8 %v9797
    %v9799 = vlaneseq
    %v9800 = vshrl.u32 %v9799, 7
    %v9801 = vsub.s32 %v9798, %v9800
    %v9802 = vrot.slane %v9780, %v9801
    %v9804 = vunpack.c.l.s4 1966171168
    %v9805 = vunpack.c.0.s8 %v9804
    %v9806 = vlaneseq
    %v9807 = vshrl.u32 %v9806, 7
    %v9808 = vsub.s32 %v9805, %v9807
    %v9809 = vrot.slane %v9781, %v9808
    %v9810 = vcombine.high %v9788, %v9788
    %v9811 = vcombine.high %v9795, %v9795
    %v9812 = vcombine.high %v9802, %v9802
    %v9813 = vcombine.high %v9809, %v9809
    %v9814 = vcombine.high %v9652, %v9652
    %v9816 = vunpack.c.l.s4 1966171168
    %v9817 = vunpack.c.0.s8 %v9816
    %v9818 = vlaneseq
    %v9819 = vshrl.u32 %v9818, 7
    %v9820 = vsub.s32 %v9817, %v9819
    %v9821 = vrot.slane %v9652, %v9820
    %v9823 = vunpack.c.l.s4 1966171168
    %v9824 = vunpack.c.0.s8 %v9823
    %v9825 = vlaneseq
    %v9826 = vshrl.u32 %v9825, 7
    %v9827 = vsub.s32 %v9824, %v9826
    %v9828 = vrot.slane %v9814, %v9827
    %v9829 = vcombine.high %v9821, %v9821
    %v9830 = vcombine.high %v9828, %v9828
    %v9832 = vunpack.c.l.s4 1966171168
    %v9833 = vunpack.c.0.s8 %v9832
    %v9834 = vlaneseq
    %v9835 = vshrl.u32 %v9834, 7
    %v9836 = vsub.s32 %v9833, %v9835
    %v9837 = vrot.slane %v9821, %v9836
    %v9839 = vunpack.c.l.s4 1966171168
    %v9840 = vunpack.c.0.s8 %v9839
    %v9841 = vlaneseq
    %v9842 = vshrl.u32 %v9841, 7
    %v9843 = vsub.s32 %v9840, %v9842
    %v9844 = vrot.slane %v9828, %v9843
    %v9846 = vunpack.c.l.s4 1966171168
    %v9847 = vunpack.c.0.s8 %v9846
    %v9848 = vlaneseq
    %v9849 = vshrl.u32 %v9848, 7
    %v9850 = vsub.s32 %v9847, %v9849
    %v9851 = vrot.slane %v9829, %v9850
    %v9853 = vunpack.c.l.s4 1966171168
    %v9854 = vunpack.c.0.s8 %v9853
    %v9855 = vlaneseq
    %v9856 = vshrl.u32 %v9855, 7
    %v9857 = vsub.s32 %v9854, %v9856
    %v9858 = vrot.slane %v9830, %v9857
    %v9859 = vcombine.high %v9837, %v9837
    %v9860 = vcombine.high %v9844, %v9844
    %v9861 = vcombine.high %v9851, %v9851
    %v9862 = vcombine.high %v9858, %v9858
    %v9863 = vcombine.high %v9653, %v9653
    %v9865 = vunpack.c.l.s4 1966171168
    %v9866 = vunpack.c.0.s8 %v9865
    %v9867 = vlaneseq
    %v9868 = vshrl.u32 %v9867, 7
    %v9869 = vsub.s32 %v9866, %v9868
    %v9870 = vrot.slane %v9653, %v9869
    %v9872 = vunpack.c.l.s4 1966171168
    %v9873 = vunpack.c.0.s8 %v9872
    %v9874 = vlaneseq
    %v9875 = vshrl.u32 %v9874, 7
    %v9876 = vsub.s32 %v9873, %v9875
    %v9877 = vrot.slane %v9863, %v9876
    %v9878 = vcombine.high %v9870, %v9870
    %v9879 = vcombine.high %v9877, %v9877
    %v9881 = vunpack.c.l.s4 1966171168
    %v9882 = vunpack.c.0.s8 %v9881
    %v9883 = vlaneseq
    %v9884 = vshrl.u32 %v9883, 7
    %v9885 = vsub.s32 %v9882, %v9884
    %v9886 = vrot.slane %v9870, %v9885
    %v9888 = vunpack.c.l.s4 1966171168
    %v9889 = vunpack.c.0.s8 %v9888
    %v9890 = vlaneseq
    %v9891 = vshrl.u32 %v9890, 7
    %v9892 = vsub.s32 %v9889, %v9891
    %v9893 = vrot.slane %v9877, %v9892
    %v9895 = vunpack.c.l.s4 1966171168
    %v9896 = vunpack.c.0.s8 %v9895
    %v9897 = vlaneseq
    %v9898 = vshrl.u32 %v9897, 7
    %v9899 = vsub.s32 %v9896, %v9898
    %v9900 = vrot.slane %v9878, %v9899
    %v9902 = vunpack.c.l.s4 1966171168
    %v9903 = vunpack.c.0.s8 %v9902
    %v9904 = vlaneseq
    %v9905 = vshrl.u32 %v9904, 7
    %v9906 = vsub.s32 %v9903, %v9905
    %v9907 = vrot.slane %v9879, %v9906
    %v9908 = vcombine.high %v9886, %v9886
    %v9909 = vcombine.high %v9893, %v9893
    %v9910 = vcombine.high %v9900, %v9900
    %v9911 = vcombine.high %v9907, %v9907
    %v9912 = vcombine.high %v9654, %v9654
    %v9914 = vunpack.c.l.s4 1966171168
    %v9915 = vunpack.c.0.s8 %v9914
    %v9916 = vlaneseq
    %v9917 = vshrl.u32 %v9916, 7
    %v9918 = vsub.s32 %v9915, %v9917
    %v9919 = vrot.slane %v9654, %v9918
    %v9921 = vunpack.c.l.s4 1966171168
    %v9922 = vunpack.c.0.s8 %v9921
    %v9923 = vlaneseq
    %v9924 = vshrl.u32 %v9923, 7
    %v9925 = vsub.s32 %v9922, %v9924
    %v9926 = vrot.slane %v9912, %v9925
    %v9927 = vcombine.high %v9919, %v9919
    %v9928 = vcombine.high %v9926, %v9926
    %v9930 = vunpack.c.l.s4 1966171168
    %v9931 = vunpack.c.0.s8 %v9930
    %v9932 = vlaneseq
    %v9933 = vshrl.u32 %v9932, 7
    %v9934 = vsub.s32 %v9931, %v9933
    %v9935 = vrot.slane %v9919, %v9934
    %v9937 = vunpack.c.l.s4 1966171168
    %v9938 = vunpack.c.0.s8 %v9937
    %v9939 = vlaneseq
    %v9940 = vshrl.u32 %v9939, 7
    %v9941 = vsub.s32 %v9938, %v9940
    %v9942 = vrot.slane %v9926, %v9941
    %v9944 = vunpack.c.l.s4 1966171168
    %v9945 = vunpack.c.0.s8 %v9944
    %v9946 = vlaneseq
    %v9947 = vshrl.u32 %v9946, 7
    %v9948 = vsub.s32 %v9945, %v9947
    %v9949 = vrot.slane %v9927, %v9948
    %v9951 = vunpack.c.l.s4 1966171168
    %v9952 = vunpack.c.0.s8 %v9951
    %v9953 = vlaneseq
    %v9954 = vshrl.u32 %v9953, 7
    %v9955 = vsub.s32 %v9952, %v9954
    %v9956 = vrot.slane %v9928, %v9955
    %v9957 = vcombine.high %v9935, %v9935
    %v9958 = vcombine.high %v9942, %v9942
    %v9959 = vcombine.high %v9949, %v9949
    %v9960 = vcombine.high %v9956, %v9956
    %v9961 = vcombine.high %v9655, %v9655
    %v9963 = vunpack.c.l.s4 1966171168
    %v9964 = vunpack.c.0.s8 %v9963
    %v9965 = vlaneseq
    %v9966 = vshrl.u32 %v9965, 7
    %v9967 = vsub.s32 %v9964, %v9966
    %v9968 = vrot.slane %v9655, %v9967
    %v9970 = vunpack.c.l.s4 1966171168
    %v9971 = vunpack.c.0.s8 %v9970
    %v9972 = vlaneseq
    %v9973 = vshrl.u32 %v9972, 7
    %v9974 = vsub.s32 %v9971, %v9973
    %v9975 = vrot.slane %v9961, %v9974
    %v9976 = vcombine.high %v9968, %v9968
    %v9977 = vcombine.high %v9975, %v9975
    %v9979 = vunpack.c.l.s4 1966171168
    %v9980 = vunpack.c.0.s8 %v9979
    %v9981 = vlaneseq
    %v9982 = vshrl.u32 %v9981, 7
    %v9983 = vsub.s32 %v9980, %v9982
    %v9984 = vrot.slane %v9968, %v9983
    %v9986 = vunpack.c.l.s4 1966171168
    %v9987 = vunpack.c.0.s8 %v9986
    %v9988 = vlaneseq
    %v9989 = vshrl.u32 %v9988, 7
    %v9990 = vsub.s32 %v9987, %v9989
    %v9991 = vrot.slane %v9975, %v9990
    %v9993 = vunpack.c.l.s4 1966171168
    %v9994 = vunpack.c.0.s8 %v9993
    %v9995 = vlaneseq
    %v9996 = vshrl.u32 %v9995, 7
    %v9997 = vsub.s32 %v9994, %v9996
    %v9998 = vrot.slane %v9976, %v9997
    %v10000 = vunpack.c.l.s4 1966171168
    %v10001 = vunpack.c.0.s8 %v10000
    %v10002 = vlaneseq
    %v10003 = vshrl.u32 %v10002, 7
    %v10004 = vsub.s32 %v10001, %v10003
    %v10005 = vrot.slane %v9977, %v10004
    %v10006 = vcombine.high %v9984, %v9984
    %v10007 = vcombine.high %v9991, %v9991
    %v10008 = vcombine.high %v9998, %v9998
    %v10009 = vcombine.high %v10005, %v10005
    %v10010 = vcombine.high %v9656, %v9656
    %v10012 = vunpack.c.l.s4 1966171168
    %v10013 = vunpack.c.0.s8 %v10012
    %v10014 = vlaneseq
    %v10015 = vshrl.u32 %v10014, 7
    %v10016 = vsub.s32 %v10013, %v10015
    %v10017 = vrot.slane %v9656, %v10016
    %v10019 = vunpack.c.l.s4 1966171168
    %v10020 = vunpack.c.0.s8 %v10019
    %v10021 = vlaneseq
    %v10022 = vshrl.u32 %v10021, 7
    %v10023 = vsub.s32 %v10020, %v10022
    %v10024 = vrot.slane %v10010, %v10023
    %v10025 = vcombine.high %v10017, %v10017
    %v10026 = vcombine.high %v10024, %v10024
    %v10028 = vunpack.c.l.s4 1966171168
    %v10029 = vunpack.c.0.s8 %v10028
    %v10030 = vlaneseq
    %v10031 = vshrl.u32 %v10030, 7
    %v10032 = vsub.s32 %v10029, %v10031
    %v10033 = vrot.slane %v10017, %v10032
    %v10035 = vunpack.c.l.s4 1966171168
    %v10036 = vunpack.c.0.s8 %v10035
    %v10037 = vlaneseq
    %v10038 = vshrl.u32 %v10037, 7
    %v10039 = vsub.s32 %v10036, %v10038
    %v10040 = vrot.slane %v10024, %v10039
    %v10042 = vunpack.c.l.s4 1966171168
    %v10043 = vunpack.c.0.s8 %v10042
    %v10044 = vlaneseq
    %v10045 = vshrl.u32 %v10044, 7
    %v10046 = vsub.s32 %v10043, %v10045
    %v10047 = vrot.slane %v10025, %v10046
    %v10049 = vunpack.c.l.s4 1966171168
    %v10050 = vunpack.c.0.s8 %v10049
    %v10051 = vlaneseq
    %v10052 = vshrl.u32 %v10051, 7
    %v10053 = vsub.s32 %v10050, %v10052
    %v10054 = vrot.slane %v10026, %v10053
    %v10055 = vcombine.high %v10033, %v10033
    %v10056 = vcombine.high %v10040, %v10040
    %v10057 = vcombine.high %v10047, %v10047
    %v10058 = vcombine.high %v10054, %v10054
    %v10059 = vcombine.high %v9657, %v9657
    %v10061 = vunpack.c.l.s4 1966171168
    %v10062 = vunpack.c.0.s8 %v10061
    %v10063 = vlaneseq
    %v10064 = vshrl.u32 %v10063, 7
    %v10065 = vsub.s32 %v10062, %v10064
    %v10066 = vrot.slane %v9657, %v10065
    %v10068 = vunpack.c.l.s4 1966171168
    %v10069 = vunpack.c.0.s8 %v10068
    %v10070 = vlaneseq
    %v10071 = vshrl.u32 %v10070, 7
    %v10072 = vsub.s32 %v10069, %v10071
    %v10073 = vrot.slane %v10059, %v10072
    %v10074 = vcombine.high %v10066, %v10066
    %v10075 = vcombine.high %v10073, %v10073
    %v10077 = vunpack.c.l.s4 1966171168
    %v10078 = vunpack.c.0.s8 %v10077
    %v10079 = vlaneseq
    %v10080 = vshrl.u32 %v10079, 7
    %v10081 = vsub.s32 %v10078, %v10080
    %v10082 = vrot.slane %v10066, %v10081
    %v10084 = vunpack.c.l.s4 1966171168
    %v10085 = vunpack.c.0.s8 %v10084
    %v10086 = vlaneseq
    %v10087 = vshrl.u32 %v10086, 7
    %v10088 = vsub.s32 %v10085, %v10087
    %v10089 = vrot.slane %v10073, %v10088
    %v10091 = vunpack.c.l.s4 1966171168
    %v10092 = vunpack.c.0.s8 %v10091
    %v10093 = vlaneseq
    %v10094 = vshrl.u32 %v10093, 7
    %v10095 = vsub.s32 %v10092, %v10094
    %v10096 = vrot.slane %v10074, %v10095
    %v10098 = vunpack.c.l.s4 1966171168
    %v10099 = vunpack.c.0.s8 %v10098
    %v10100 = vlaneseq
    %v10101 = vshrl.u32 %v10100, 7
    %v10102 = vsub.s32 %v10099, %v10101
    %v10103 = vrot.slane %v10075, %v10102
    %v10104 = vcombine.high %v10082, %v10082
    %v10105 = vcombine.high %v10089, %v10089
    %v10106 = vcombine.high %v10096, %v10096
    %v10107 = vcombine.high %v10103, %v10103
    %v10180 = vmul.f32 %v9690, %v4024
    %v10181 = vmul.f32 %v9704, %v4028
    %v10182 = vmul.f32 %v9712, %v4032
    %v10183 = vmul.f32 %v9714, %v4036
    %v10184 = vmul.f32 %v9697, %v4040
    %v10185 = vmul.f32 %v9711, %v4044
    %v10186 = vmul.f32 %v9713, %v4048
    %v10187 = vmul.f32 %v9715, %v4052
    %v10188 = vmul.f32 %v9739, %v4056
    %v10189 = vmul.f32 %v9753, %v4060
    %v10190 = vmul.f32 %v9761, %v4064
    %v10191 = vmul.f32 %v9763, %v4068
    %v10192 = vmul.f32 %v9746, %v4072
    %v10193 = vmul.f32 %v9760, %v4076
    %v10194 = vmul.f32 %v9762, %v4080
    %v10195 = vmul.f32 %v9764, %v4084
    %v10196 = vmul.f32 %v9788, %v4088
    %v10197 = vmul.f32 %v9802, %v4092
    %v10198 = vmul.f32 %v9810, %v4096
    %v10199 = vmul.f32 %v9812, %v4100
    %v10200 = vmul.f32 %v9795, %v4104
    %v10201 = vmul.f32 %v9809, %v4108
    %v10202 = vmul.f32 %v9811, %v4112
    %v10203 = vmul.f32 %v9813, %v4116
    %v10204 = vmul.f32 %v9837, %v4024
    %v10205 = vmul.f32 %v9851, %v4028
    %v10206 = vmul.f32 %v9859, %v4032
    %v10207 = vmul.f32 %v9861, %v4036
    %v10208 = vmul.f32 %v9844, %v4040
    %v10209 = vmul.f32 %v9858, %v4044
    %v10210 = vmul.f32 %v9860, %v4048
    %v10211 = vmul.f32 %v9862, %v4052
    %v10212 = vmul.f32 %v9886, %v4056
    %v10213 = vmul.f32 %v9900, %v4060
    %v10214 = vmul.f32 %v9908, %v4064
    %v10215 = vmul.f32 %v9910, %v4068
    %v10216 = vmul.f32 %v9893, %v4072
    %v10217 = vmul.f32 %v9907, %v4076
    %v10218 = vmul.f32 %v9909, %v4080
    %v10219 = vmul.f32 %v9911, %v4084
    %v10220 = vmul.f32 %v9935, %v4088
    %v10221 = vmul.f32 %v9949, %v4092
    %v10222 = vmul.f32 %v9957, %v4096
    %v10223 = vmul.f32 %v9959, %v4100
    %v10224 = vmul.f32 %v9942, %v4104
    %v10225 = vmul.f32 %v9956, %v4108
    %v10226 = vmul.f32 %v9958, %v4112
    %v10227 = vmul.f32 %v9960, %v4116
    %v10228 = vmul.f32 %v9984, %v4024
    %v10229 = vmul.f32 %v9998, %v4028
    %v10230 = vmul.f32 %v10006, %v4032
    %v10231 = vmul.f32 %v10008, %v4036
    %v10232 = vmul.f32 %v9991, %v4040
    %v10233 = vmul.f32 %v10005, %v4044
    %v10234 = vmul.f32 %v10007, %v4048
    %v10235 = vmul.f32 %v10009, %v4052
    %v10236 = vmul.f32 %v10033, %v4056
    %v10237 = vmul.f32 %v10047, %v4060
    %v10238 = vmul.f32 %v10055, %v4064
    %v10239 = vmul.f32 %v10057, %v4068
    %v10240 = vmul.f32 %v10040, %v4072
    %v10241 = vmul.f32 %v10054, %v4076
    %v10242 = vmul.f32 %v10056, %v4080
    %v10243 = vmul.f32 %v10058, %v4084
    %v10244 = vmul.f32 %v10082, %v4088
    %v10245 = vmul.f32 %v10096, %v4092
    %v10246 = vmul.f32 %v10104, %v4096
    %v10247 = vmul.f32 %v10106, %v4100
    %v10248 = vmul.f32 %v10089, %v4104
    %v10249 = vmul.f32 %v10103, %v4108
    %v10250 = vmul.f32 %v10105, %v4112
    %v10251 = vmul.f32 %v10107, %v4116
    %v10324 = vcombine.low %v10180, %v10181
    %v10326 = vunpack.c.l.s4 1966171168
    %v10327 = vunpack.c.0.s8 %v10326
    %v10328 = vlaneseq
    %v10329 = vshrl.u32 %v10328, 7
    %v10330 = vsub.s32 %v10327, %v10329
    %v10331 = vrot.slane %v10324, %v10330
    %v10333 = vunpack.c.l.s4 1966171168
    %v10334 = vunpack.c.0.s8 %v10333
    %v10335 = vlaneseq
    %v10336 = vshrl.u32 %v10335, 7
    %v10337 = vsub.s32 %v10334, %v10336
    %v10338 = vrot.slane %v10182, %v10337
    %v10339 = vcombine.low %v10331, %v10338
    %v10341 = vunpack.c.l.s4 1966171168
    %v10342 = vunpack.c.0.s8 %v10341
    %v10343 = vlaneseq
    %v10344 = vshrl.u32 %v10343, 7
    %v10345 = vsub.s32 %v10342, %v10344
    %v10346 = vrot.slane %v10339, %v10345
    %v10347 = vcombine.low %v10183, %v10184
    %v10349 = vunpack.c.l.s4 1966171168
    %v10350 = vunpack.c.0.s8 %v10349
    %v10351 = vlaneseq
    %v10352 = vshrl.u32 %v10351, 7
    %v10353 = vsub.s32 %v10350, %v10352
    %v10354 = vrot.slane %v10347, %v10353
    %v10356 = vunpack.c.l.s4 1966171168
    %v10357 = vunpack.c.0.s8 %v10356
    %v10358 = vlaneseq
    %v10359 = vshrl.u32 %v10358, 7
    %v10360 = vsub.s32 %v10357, %v10359
    %v10361 = vrot.slane %v10185, %v10360
    %v10362 = vcombine.low %v10354, %v10361
    %v10364 = vunpack.c.l.s4 1966171168
    %v10365 = vunpack.c.0.s8 %v10364
    %v10366 = vlaneseq
    %v10367 = vshrl.u32 %v10366, 7
    %v10368 = vsub.s32 %v10365, %v10367
    %v10369 = vrot.slane %v10362, %v10368
    %v10370 = vcombine.low %v10186, %v10187
    %v10372 = vunpack.c.l.s4 1966171168
    %v10373 = vunpack.c.0.s8 %v10372
    %v10374 = vlaneseq
    %v10375 = vshrl.u32 %v10374, 7
    %v10376 = vsub.s32 %v10373, %v10375
    %v10377 = vrot.slane %v10370, %v10376
    %v10379 = vunpack.c.l.s4 1966171168
    %v10380 = vunpack.c.0.s8 %v10379
    %v10381 = vlaneseq
    %v10382 = vshrl.u32 %v10381, 7
    %v10383 = vsub.s32 %v10380, %v10382
    %v10384 = vrot.slane %v10188, %v10383
    %v10385 = vcombine.low %v10377, %v10384
    %v10387 = vunpack.c.l.s4 1966171168
    %v10388 = vunpack.c.0.s8 %v10387
    %v10389 = vlaneseq
    %v10390 = vshrl.u32 %v10389, 7
    %v10391 = vsub.s32 %v10388, %v10390
    %v10392 = vrot.slane %v10385, %v10391
    %v10393 = vcombine.low %v10189, %v10190
    %v10395 = vunpack.c.l.s4 1966171168
    %v10396 = vunpack.c.0.s8 %v10395
    %v10397 = vlaneseq
    %v10398 = vshrl.u32 %v10397, 7
    %v10399 = vsub.s32 %v10396, %v10398
    %v10400 = vrot.slane %v10393, %v10399
    %v10402 = vunpack.c.l.s4 1966171168
    %v10403 = vunpack.c.0.s8 %v10402
    %v10404 = vlaneseq
    %v10405 = vshrl.u32 %v10404, 7
    %v10406 = vsub.s32 %v10403, %v10405
    %v10407 = vrot.slane %v10191, %v10406
    %v10408 = vcombine.low %v10400, %v10407
    %v10410 = vunpack.c.l.s4 1966171168
    %v10411 = vunpack.c.0.s8 %v10410
    %v10412 = vlaneseq
    %v10413 = vshrl.u32 %v10412, 7
    %v10414 = vsub.s32 %v10411, %v10413
    %v10415 = vrot.slane %v10408, %v10414
    %v10416 = vcombine.low %v10192, %v10193
    %v10418 = vunpack.c.l.s4 1966171168
    %v10419 = vunpack.c.0.s8 %v10418
    %v10420 = vlaneseq
    %v10421 = vshrl.u32 %v10420, 7
    %v10422 = vsub.s32 %v10419, %v10421
    %v10423 = vrot.slane %v10416, %v10422
    %v10425 = vunpack.c.l.s4 1966171168
    %v10426 = vunpack.c.0.s8 %v10425
    %v10427 = vlaneseq
    %v10428 = vshrl.u32 %v10427, 7
    %v10429 = vsub.s32 %v10426, %v10428
    %v10430 = vrot.slane %v10194, %v10429
    %v10431 = vcombine.low %v10423, %v10430
    %v10433 = vunpack.c.l.s4 1966171168
    %v10434 = vunpack.c.0.s8 %v10433
    %v10435 = vlaneseq
    %v10436 = vshrl.u32 %v10435, 7
    %v10437 = vsub.s32 %v10434, %v10436
    %v10438 = vrot.slane %v10431, %v10437
    %v10439 = vcombine.low %v10195, %v10196
    %v10441 = vunpack.c.l.s4 1966171168
    %v10442 = vunpack.c.0.s8 %v10441
    %v10443 = vlaneseq
    %v10444 = vshrl.u32 %v10443, 7
    %v10445 = vsub.s32 %v10442, %v10444
    %v10446 = vrot.slane %v10439, %v10445
    %v10448 = vunpack.c.l.s4 1966171168
    %v10449 = vunpack.c.0.s8 %v10448
    %v10450 = vlaneseq
    %v10451 = vshrl.u32 %v10450, 7
    %v10452 = vsub.s32 %v10449, %v10451
    %v10453 = vrot.slane %v10197, %v10452
    %v10454 = vcombine.low %v10446, %v10453
    %v10456 = vunpack.c.l.s4 1966171168
    %v10457 = vunpack.c.0.s8 %v10456
    %v10458 = vlaneseq
    %v10459 = vshrl.u32 %v10458, 7
    %v10460 = vsub.s32 %v10457, %v10459
    %v10461 = vrot.slane %v10454, %v10460
    %v10462 = vcombine.low %v10198, %v10199
    %v10464 = vunpack.c.l.s4 1966171168
    %v10465 = vunpack.c.0.s8 %v10464
    %v10466 = vlaneseq
    %v10467 = vshrl.u32 %v10466, 7
    %v10468 = vsub.s32 %v10465, %v10467
    %v10469 = vrot.slane %v10462, %v10468
    %v10471 = vunpack.c.l.s4 1966171168
    %v10472 = vunpack.c.0.s8 %v10471
    %v10473 = vlaneseq
    %v10474 = vshrl.u32 %v10473, 7
    %v10475 = vsub.s32 %v10472, %v10474
    %v10476 = vrot.slane %v10200, %v10475
    %v10477 = vcombine.low %v10469, %v10476
    %v10479 = vunpack.c.l.s4 1966171168
    %v10480 = vunpack.c.0.s8 %v10479
    %v10481 = vlaneseq
    %v10482 = vshrl.u32 %v10481, 7
    %v10483 = vsub.s32 %v10480, %v10482
    %v10484 = vrot.slane %v10477, %v10483
    %v10485 = vcombine.low %v10201, %v10202
    %v10487 = vunpack.c.l.s4 1966171168
    %v10488 = vunpack.c.0.s8 %v10487
    %v10489 = vlaneseq
    %v10490 = vshrl.u32 %v10489, 7
    %v10491 = vsub.s32 %v10488, %v10490
    %v10492 = vrot.slane %v10485, %v10491
    %v10494 = vunpack.c.l.s4 1966171168
    %v10495 = vunpack.c.0.s8 %v10494
    %v10496 = vlaneseq
    %v10497 = vshrl.u32 %v10496, 7
    %v10498 = vsub.s32 %v10495, %v10497
    %v10499 = vrot.slane %v10203, %v10498
    %v10500 = vcombine.low %v10492, %v10499
    %v10502 = vunpack.c.l.s4 1966171168
    %v10503 = vunpack.c.0.s8 %v10502
    %v10504 = vlaneseq
    %v10505 = vshrl.u32 %v10504, 7
    %v10506 = vsub.s32 %v10503, %v10505
    %v10507 = vrot.slane %v10500, %v10506
    %v10508 = vcombine.low %v10204, %v10205
    %v10510 = vunpack.c.l.s4 1966171168
    %v10511 = vunpack.c.0.s8 %v10510
    %v10512 = vlaneseq
    %v10513 = vshrl.u32 %v10512, 7
    %v10514 = vsub.s32 %v10511, %v10513
    %v10515 = vrot.slane %v10508, %v10514
    %v10517 = vunpack.c.l.s4 1966171168
    %v10518 = vunpack.c.0.s8 %v10517
    %v10519 = vlaneseq
    %v10520 = vshrl.u32 %v10519, 7
    %v10521 = vsub.s32 %v10518, %v10520
    %v10522 = vrot.slane %v10206, %v10521
    %v10523 = vcombine.low %v10515, %v10522
    %v10525 = vunpack.c.l.s4 1966171168
    %v10526 = vunpack.c.0.s8 %v10525
    %v10527 = vlaneseq
    %v10528 = vshrl.u32 %v10527, 7
    %v10529 = vsub.s32 %v10526, %v10528
    %v10530 = vrot.slane %v10523, %v10529
    %v10531 = vcombine.low %v10207, %v10208
    %v10533 = vunpack.c.l.s4 1966171168
    %v10534 = vunpack.c.0.s8 %v10533
    %v10535 = vlaneseq
    %v10536 = vshrl.u32 %v10535, 7
    %v10537 = vsub.s32 %v10534, %v10536
    %v10538 = vrot.slane %v10531, %v10537
    %v10540 = vunpack.c.l.s4 1966171168
    %v10541 = vunpack.c.0.s8 %v10540
    %v10542 = vlaneseq
    %v10543 = vshrl.u32 %v10542, 7
    %v10544 = vsub.s32 %v10541, %v10543
    %v10545 = vrot.slane %v10209, %v10544
    %v10546 = vcombine.low %v10538, %v10545
    %v10548 = vunpack.c.l.s4 1966171168
    %v10549 = vunpack.c.0.s8 %v10548
    %v10550 = vlaneseq
    %v10551 = vshrl.u32 %v10550, 7
    %v10552 = vsub.s32 %v10549, %v10551
    %v10553 = vrot.slane %v10546, %v10552
    %v10554 = vcombine.low %v10210, %v10211
    %v10556 = vunpack.c.l.s4 1966171168
    %v10557 = vunpack.c.0.s8 %v10556
    %v10558 = vlaneseq
    %v10559 = vshrl.u32 %v10558, 7
    %v10560 = vsub.s32 %v10557, %v10559
    %v10561 = vrot.slane %v10554, %v10560
    %v10563 = vunpack.c.l.s4 1966171168
    %v10564 = vunpack.c.0.s8 %v10563
    %v10565 = vlaneseq
    %v10566 = vshrl.u32 %v10565, 7
    %v10567 = vsub.s32 %v10564, %v10566
    %v10568 = vrot.slane %v10212, %v10567
    %v10569 = vcombine.low %v10561, %v10568
    %v10571 = vunpack.c.l.s4 1966171168
    %v10572 = vunpack.c.0.s8 %v10571
    %v10573 = vlaneseq
    %v10574 = vshrl.u32 %v10573, 7
    %v10575 = vsub.s32 %v10572, %v10574
    %v10576 = vrot.slane %v10569, %v10575
    %v10577 = vcombine.low %v10213, %v10214
    %v10579 = vunpack.c.l.s4 1966171168
    %v10580 = vunpack.c.0.s8 %v10579
    %v10581 = vlaneseq
    %v10582 = vshrl.u32 %v10581, 7
    %v10583 = vsub.s32 %v10580, %v10582
    %v10584 = vrot.slane %v10577, %v10583
    %v10586 = vunpack.c.l.s4 1966171168
    %v10587 = vunpack.c.0.s8 %v10586
    %v10588 = vlaneseq
    %v10589 = vshrl.u32 %v10588, 7
    %v10590 = vsub.s32 %v10587, %v10589
    %v10591 = vrot.slane %v10215, %v10590
    %v10592 = vcombine.low %v10584, %v10591
    %v10594 = vunpack.c.l.s4 1966171168
    %v10595 = vunpack.c.0.s8 %v10594
    %v10596 = vlaneseq
    %v10597 = vshrl.u32 %v10596, 7
    %v10598 = vsub.s32 %v10595, %v10597
    %v10599 = vrot.slane %v10592, %v10598
    %v10600 = vcombine.low %v10216, %v10217
    %v10602 = vunpack.c.l.s4 1966171168
    %v10603 = vunpack.c.0.s8 %v10602
    %v10604 = vlaneseq
    %v10605 = vshrl.u32 %v10604, 7
    %v10606 = vsub.s32 %v10603, %v10605
    %v10607 = vrot.slane %v10600, %v10606
    %v10609 = vunpack.c.l.s4 1966171168
    %v10610 = vunpack.c.0.s8 %v10609
    %v10611 = vlaneseq
    %v10612 = vshrl.u32 %v10611, 7
    %v10613 = vsub.s32 %v10610, %v10612
    %v10614 = vrot.slane %v10218, %v10613
    %v10615 = vcombine.low %v10607, %v10614
    %v10617 = vunpack.c.l.s4 1966171168
    %v10618 = vunpack.c.0.s8 %v10617
    %v10619 = vlaneseq
    %v10620 = vshrl.u32 %v10619, 7
    %v10621 = vsub.s32 %v10618, %v10620
    %v10622 = vrot.slane %v10615, %v10621
    %v10623 = vcombine.low %v10219, %v10220
    %v10625 = vunpack.c.l.s4 1966171168
    %v10626 = vunpack.c.0.s8 %v10625
    %v10627 = vlaneseq
    %v10628 = vshrl.u32 %v10627, 7
    %v10629 = vsub.s32 %v10626, %v10628
    %v10630 = vrot.slane %v10623, %v10629
    %v10632 = vunpack.c.l.s4 1966171168
    %v10633 = vunpack.c.0.s8 %v10632
    %v10634 = vlaneseq
    %v10635 = vshrl.u32 %v10634, 7
    %v10636 = vsub.s32 %v10633, %v10635
    %v10637 = vrot.slane %v10221, %v10636
    %v10638 = vcombine.low %v10630, %v10637
    %v10640 = vunpack.c.l.s4 1966171168
    %v10641 = vunpack.c.0.s8 %v10640
    %v10642 = vlaneseq
    %v10643 = vshrl.u32 %v10642, 7
    %v10644 = vsub.s32 %v10641, %v10643
    %v10645 = vrot.slane %v10638, %v10644
    %v10646 = vcombine.low %v10222, %v10223
    %v10648 = vunpack.c.l.s4 1966171168
    %v10649 = vunpack.c.0.s8 %v10648
    %v10650 = vlaneseq
    %v10651 = vshrl.u32 %v10650, 7
    %v10652 = vsub.s32 %v10649, %v10651
    %v10653 = vrot.slane %v10646, %v10652
    %v10655 = vunpack.c.l.s4 1966171168
    %v10656 = vunpack.c.0.s8 %v10655
    %v10657 = vlaneseq
    %v10658 = vshrl.u32 %v10657, 7
    %v10659 = vsub.s32 %v10656, %v10658
    %v10660 = vrot.slane %v10224, %v10659
    %v10661 = vcombine.low %v10653, %v10660
    %v10663 = vunpack.c.l.s4 1966171168
    %v10664 = vunpack.c.0.s8 %v10663
    %v10665 = vlaneseq
    %v10666 = vshrl.u32 %v10665, 7
    %v10667 = vsub.s32 %v10664, %v10666
    %v10668 = vrot.slane %v10661, %v10667
    %v10669 = vcombine.low %v10225, %v10226
    %v10671 = vunpack.c.l.s4 1966171168
    %v10672 = vunpack.c.0.s8 %v10671
    %v10673 = vlaneseq
    %v10674 = vshrl.u32 %v10673, 7
    %v10675 = vsub.s32 %v10672, %v10674
    %v10676 = vrot.slane %v10669, %v10675
    %v10678 = vunpack.c.l.s4 1966171168
    %v10679 = vunpack.c.0.s8 %v10678
    %v10680 = vlaneseq
    %v10681 = vshrl.u32 %v10680, 7
    %v10682 = vsub.s32 %v10679, %v10681
    %v10683 = vrot.slane %v10227, %v10682
    %v10684 = vcombine.low %v10676, %v10683
    %v10686 = vunpack.c.l.s4 1966171168
    %v10687 = vunpack.c.0.s8 %v10686
    %v10688 = vlaneseq
    %v10689 = vshrl.u32 %v10688, 7
    %v10690 = vsub.s32 %v10687, %v10689
    %v10691 = vrot.slane %v10684, %v10690
    %v10692 = vcombine.low %v10228, %v10229
    %v10694 = vunpack.c.l.s4 1966171168
    %v10695 = vunpack.c.0.s8 %v10694
    %v10696 = vlaneseq
    %v10697 = vshrl.u32 %v10696, 7
    %v10698 = vsub.s32 %v10695, %v10697
    %v10699 = vrot.slane %v10692, %v10698
    %v10701 = vunpack.c.l.s4 1966171168
    %v10702 = vunpack.c.0.s8 %v10701
    %v10703 = vlaneseq
    %v10704 = vshrl.u32 %v10703, 7
    %v10705 = vsub.s32 %v10702, %v10704
    %v10706 = vrot.slane %v10230, %v10705
    %v10707 = vcombine.low %v10699, %v10706
    %v10709 = vunpack.c.l.s4 1966171168
    %v10710 = vunpack.c.0.s8 %v10709
    %v10711 = vlaneseq
    %v10712 = vshrl.u32 %v10711, 7
    %v10713 = vsub.s32 %v10710, %v10712
    %v10714 = vrot.slane %v10707, %v10713
    %v10715 = vcombine.low %v10231, %v10232
    %v10717 = vunpack.c.l.s4 1966171168
    %v10718 = vunpack.c.0.s8 %v10717
    %v10719 = vlaneseq
    %v10720 = vshrl.u32 %v10719, 7
    %v10721 = vsub.s32 %v10718, %v10720
    %v10722 = vrot.slane %v10715, %v10721
    %v10724 = vunpack.c.l.s4 1966171168
    %v10725 = vunpack.c.0.s8 %v10724
    %v10726 = vlaneseq
    %v10727 = vshrl.u32 %v10726, 7
    %v10728 = vsub.s32 %v10725, %v10727
    %v10729 = vrot.slane %v10233, %v10728
    %v10730 = vcombine.low %v10722, %v10729
    %v10732 = vunpack.c.l.s4 1966171168
    %v10733 = vunpack.c.0.s8 %v10732
    %v10734 = vlaneseq
    %v10735 = vshrl.u32 %v10734, 7
    %v10736 = vsub.s32 %v10733, %v10735
    %v10737 = vrot.slane %v10730, %v10736
    %v10738 = vcombine.low %v10234, %v10235
    %v10740 = vunpack.c.l.s4 1966171168
    %v10741 = vunpack.c.0.s8 %v10740
    %v10742 = vlaneseq
    %v10743 = vshrl.u32 %v10742, 7
    %v10744 = vsub.s32 %v10741, %v10743
    %v10745 = vrot.slane %v10738, %v10744
    %v10747 = vunpack.c.l.s4 1966171168
    %v10748 = vunpack.c.0.s8 %v10747
    %v10749 = vlaneseq
    %v10750 = vshrl.u32 %v10749, 7
    %v10751 = vsub.s32 %v10748, %v10750
    %v10752 = vrot.slane %v10236, %v10751
    %v10753 = vcombine.low %v10745, %v10752
    %v10755 = vunpack.c.l.s4 1966171168
    %v10756 = vunpack.c.0.s8 %v10755
    %v10757 = vlaneseq
    %v10758 = vshrl.u32 %v10757, 7
    %v10759 = vsub.s32 %v10756, %v10758
    %v10760 = vrot.slane %v10753, %v10759
    %v10761 = vcombine.low %v10237, %v10238
    %v10763 = vunpack.c.l.s4 1966171168
    %v10764 = vunpack.c.0.s8 %v10763
    %v10765 = vlaneseq
    %v10766 = vshrl.u32 %v10765, 7
    %v10767 = vsub.s32 %v10764, %v10766
    %v10768 = vrot.slane %v10761, %v10767
    %v10770 = vunpack.c.l.s4 1966171168
    %v10771 = vunpack.c.0.s8 %v10770
    %v10772 = vlaneseq
    %v10773 = vshrl.u32 %v10772, 7
    %v10774 = vsub.s32 %v10771, %v10773
    %v10775 = vrot.slane %v10239, %v10774
    %v10776 = vcombine.low %v10768, %v10775
    %v10778 = vunpack.c.l.s4 1966171168
    %v10779 = vunpack.c.0.s8 %v10778
    %v10780 = vlaneseq
    %v10781 = vshrl.u32 %v10780, 7
    %v10782 = vsub.s32 %v10779, %v10781
    %v10783 = vrot.slane %v10776, %v10782
    %v10784 = vcombine.low %v10240, %v10241
    %v10786 = vunpack.c.l.s4 1966171168
    %v10787 = vunpack.c.0.s8 %v10786
    %v10788 = vlaneseq
    %v10789 = vshrl.u32 %v10788, 7
    %v10790 = vsub.s32 %v10787, %v10789
    %v10791 = vrot.slane %v10784, %v10790
    %v10793 = vunpack.c.l.s4 1966171168
    %v10794 = vunpack.c.0.s8 %v10793
    %v10795 = vlaneseq
    %v10796 = vshrl.u32 %v10795, 7
    %v10797 = vsub.s32 %v10794, %v10796
    %v10798 = vrot.slane %v10242, %v10797
    %v10799 = vcombine.low %v10791, %v10798
    %v10801 = vunpack.c.l.s4 1966171168
    %v10802 = vunpack.c.0.s8 %v10801
    %v10803 = vlaneseq
    %v10804 = vshrl.u32 %v10803, 7
    %v10805 = vsub.s32 %v10802, %v10804
    %v10806 = vrot.slane %v10799, %v10805
    %v10807 = vcombine.low %v10243, %v10244
    %v10809 = vunpack.c.l.s4 1966171168
    %v10810 = vunpack.c.0.s8 %v10809
    %v10811 = vlaneseq
    %v10812 = vshrl.u32 %v10811, 7
    %v10813 = vsub.s32 %v10810, %v10812
    %v10814 = vrot.slane %v10807, %v10813
    %v10816 = vunpack.c.l.s4 1966171168
    %v10817 = vunpack.c.0.s8 %v10816
    %v10818 = vlaneseq
    %v10819 = vshrl.u32 %v10818, 7
    %v10820 = vsub.s32 %v10817, %v10819
    %v10821 = vrot.slane %v10245, %v10820
    %v10822 = vcombine.low %v10814, %v10821
    %v10824 = vunpack.c.l.s4 1966171168
    %v10825 = vunpack.c.0.s8 %v10824
    %v10826 = vlaneseq
    %v10827 = vshrl.u32 %v10826, 7
    %v10828 = vsub.s32 %v10825, %v10827
    %v10829 = vrot.slane %v10822, %v10828
    %v10830 = vcombine.low %v10246, %v10247
    %v10832 = vunpack.c.l.s4 1966171168
    %v10833 = vunpack.c.0.s8 %v10832
    %v10834 = vlaneseq
    %v10835 = vshrl.u32 %v10834, 7
    %v10836 = vsub.s32 %v10833, %v10835
    %v10837 = vrot.slane %v10830, %v10836
    %v10839 = vunpack.c.l.s4 1966171168
    %v10840 = vunpack.c.0.s8 %v10839
    %v10841 = vlaneseq
    %v10842 = vshrl.u32 %v10841, 7
    %v10843 = vsub.s32 %v10840, %v10842
    %v10844 = vrot.slane %v10248, %v10843
    %v10845 = vcombine.low %v10837, %v10844
    %v10847 = vunpack.c.l.s4 1966171168
    %v10848 = vunpack.c.0.s8 %v10847
    %v10849 = vlaneseq
    %v10850 = vshrl.u32 %v10849, 7
    %v10851 = vsub.s32 %v10848, %v10850
    %v10852 = vrot.slane %v10845, %v10851
    %v10853 = vcombine.low %v10249, %v10250
    %v10855 = vunpack.c.l.s4 1966171168
    %v10856 = vunpack.c.0.s8 %v10855
    %v10857 = vlaneseq
    %v10858 = vshrl.u32 %v10857, 7
    %v10859 = vsub.s32 %v10856, %v10858
    %v10860 = vrot.slane %v10853, %v10859
    %v10862 = vunpack.c.l.s4 1966171168
    %v10863 = vunpack.c.0.s8 %v10862
    %v10864 = vlaneseq
    %v10865 = vshrl.u32 %v10864, 7
    %v10866 = vsub.s32 %v10863, %v10865
    %v10867 = vrot.slane %v10251, %v10866
    %v10868 = vcombine.low %v10860, %v10867
    %v10870 = vunpack.c.l.s4 1966171168
    %v10871 = vunpack.c.0.s8 %v10870
    %v10872 = vlaneseq
    %v10873 = vshrl.u32 %v10872, 7
    %v10874 = vsub.s32 %v10871, %v10873
    %v10875 = vrot.slane %v10868, %v10874
    %vm10900 = vcmask 124928
    %v10901 = vsel %vm10900, %v10346, 0.0
    %v10902 = vsel %vm10900, %v10369, 0.0
    %v10903 = vadd.f32 %v10901, %v10902
    %v10904 = vsel %vm10900, %v10392, 0.0
    %v10905 = vadd.f32 %v10903, %v10904
    %v10906 = vsel %vm10900, %v10415, 0.0
    %v10907 = vadd.f32 %v10905, %v10906
    %v10908 = vsel %vm10900, %v10438, 0.0
    %v10909 = vadd.f32 %v10907, %v10908
    %v10910 = vsel %vm10900, %v10461, 0.0
    %v10911 = vadd.f32 %v10909, %v10910
    %v10912 = vsel %vm10900, %v10484, 0.0
    %v10913 = vadd.f32 %v10911, %v10912
    %v10914 = vsel %vm10900, %v10507, 0.0
    %v10915 = vadd.f32 %v10913, %v10914
    %v10916 = vsel %vm10900, %v10530, 0.0
    %v10917 = vsel %vm10900, %v10553, 0.0
    %v10918 = vadd.f32 %v10916, %v10917
    %v10919 = vsel %vm10900, %v10576, 0.0
    %v10920 = vadd.f32 %v10918, %v10919
    %v10921 = vsel %vm10900, %v10599, 0.0
    %v10922 = vadd.f32 %v10920, %v10921
    %v10923 = vsel %vm10900, %v10622, 0.0
    %v10924 = vadd.f32 %v10922, %v10923
    %v10925 = vsel %vm10900, %v10645, 0.0
    %v10926 = vadd.f32 %v10924, %v10925
    %v10927 = vsel %vm10900, %v10668, 0.0
    %v10928 = vadd.f32 %v10926, %v10927
    %v10929 = vsel %vm10900, %v10691, 0.0
    %v10930 = vadd.f32 %v10928, %v10929
    %v10931 = vsel %vm10900, %v10714, 0.0
    %v10932 = vsel %vm10900, %v10737, 0.0
    %v10933 = vadd.f32 %v10931, %v10932
    %v10934 = vsel %vm10900, %v10760, 0.0
    %v10935 = vadd.f32 %v10933, %v10934
    %v10936 = vsel %vm10900, %v10783, 0.0
    %v10937 = vadd.f32 %v10935, %v10936
    %v10938 = vsel %vm10900, %v10806, 0.0
    %v10939 = vadd.f32 %v10937, %v10938
    %v10940 = vsel %vm10900, %v10829, 0.0
    %v10941 = vadd.f32 %v10939, %v10940
    %v10942 = vsel %vm10900, %v10852, 0.0
    %v10943 = vadd.f32 %v10941, %v10942
    %v10944 = vsel %vm10900, %v10875, 0.0
    %v10945 = vadd.f32 %v10943, %v10944
    %10947 = vbcast.lane.b32.xlu0 %v100, 256
    %v10948 = vpop.permute.xlu0 %10947
    %v10949 = vmul.f32 %v10915, %v10948
    %v10950 = vmul.f32 %v10930, %v10948
    %v10951 = vmul.f32 %v10945, %v10948
    %v10952 = vmul.f32 %v10949, %v10949
    %v10953 = vmul.f32 %v10950, %v10950
    %v10954 = vmul.f32 %v10951, %v10951
    %v10955 = vsel %vm10900, %v10952, 0.0
    %10956 = vadd.xlane.f32.xlu0 %v10955
    %v10957 = vpop.xlane.xlu0 %10956
    %v10958 = vsel %vm10900, %v10953, 0.0
    %10959 = vadd.xlane.f32.xlu0 %v10958
    %v10960 = vpop.xlane.xlu0 %10959
    %v10961 = vsel %vm10900, %v10954, 0.0
    %10962 = vadd.xlane.f32.xlu0 %v10961
    %v10963 = vpop.xlane.xlu0 %10962
    %v10964 = vadd.f32 %v10957, 1e-16
    %v10965 = vadd.f32 %v10960, 1e-16
    %v10966 = vadd.f32 %v10963, 1e-16
    %v10967 = vrsqrt.pop %v10964
    %v10968 = vrsqrt.pop %v10965
    %v10969 = vrsqrt.pop %v10966
    %v10970 = vmul.f32 %v10949, %v10967
    %v10971 = vmul.f32 %v10950, %v10968
    %v10972 = vmul.f32 %v10951, %v10969
    %v10973 = vld [vmem:[%s17] sm:$0x1]
    %v10975 = vlaneseq
    %v10976 = vshrl.u32 %v10975, 7
    %v10977 = vsub.s32 0, %v10976
    %v10978 = vrot.slane %v10973, %v10977
    %v10980 = vmul.f32 %v10970, %v10978
    %v10981 = vmul.f32 %v10971, %v10978
    %v10982 = vmul.f32 %v10972, %v10978
    %v10983 = vsel %vm10900, %v10980, 0.0
    %10984 = vadd.xlane.f32.xlu0 %v10983
    %v10985 = vpop.xlane.xlu0 %10984
    %v10986 = vsel %vm10900, %v10981, 0.0
    %10987 = vadd.xlane.f32.xlu0 %v10986
    %v10988 = vpop.xlane.xlu0 %10987
    %v10989 = vsel %vm10900, %v10982, 0.0
    %10990 = vadd.xlane.f32.xlu0 %v10989
    %v10991 = vpop.xlane.xlu0 %10990
    %v10992 = vld [vmem:[#allocation2] sm:$0x1]
    %v10994 = vlaneseq
    %v10995 = vshrl.u32 %v10994, 7
    %v10996 = vsub.s32 0, %v10995
    %v10997 = vrot.slane %v10992, %v10996
    %10998 = vset.pattern.permute.xlu0 0
    %10999 = vperm.xlu0 %10998, %v10997
    %v11000 = vpop.permute.xlu0 %10999
    %v11002 = vadd.f32 %v10985, %v11000
    %v11003 = vadd.f32 %v10988, %v11000
    %v11004 = vadd.f32 %v10991, %v11000
    %v11005 = vtanh.pop %v11002
    %v11006 = vtanh.pop %v11003
    %v11007 = vtanh.pop %v11004
    %v11011 = vlaneseq
    %v11012 = vshrl.u32 %v11011, 7
    %v11013 = vsub.s32 %v79, %v11012
    %v11014 = vrot.slane %v11005, %v11013
    %v11015 = vlaneseq
    %v11016 = vshrl.u32 %v11015, 7
    %v11017 = vsub.s32 %v79, %v11016
    %v11018 = vrot.slane %v11006, %v11017
    %v11019 = vlaneseq
    %v11020 = vshrl.u32 %v11019, 7
    %v11021 = vsub.s32 %v79, %v11020
    %v11022 = vrot.slane %v11007, %v11021
    %vm11023 = vcmask 1041409
    %v11024 = vsel %vm11023, %v11018, %v11014
    %vm11025 = vcmask 1042434
    %v11026 = vsel %vm11025, %v11022, %v11024
    %vm11028 = vcmask 18432
    %11029 = vst.msk [vmem:[%s19] sm:$0x7] %vm11028, %v11026
    // Predicated region
    $region82: #{sgraf_forward.1} parent=1 // pred_check
      _
    $region83: #{sgraf_forward.1} parent=1 // pred_check_branch
      %11031 = sbr.rel (0) target = $region85
    $region84: #{sgraf_forward.1} parent=1 // pred_region
      _
    $region85: #{sgraf_forward.1} parent=1 // pred_fallthru
      _
    // Predicated region
    $region86: #{sgraf_forward.1} parent=1 // pred_check
      _
    $region87: #{sgraf_forward.1} parent=1 // pred_check_branch
      %11033 = sbr.rel (0) target = $region89
    $region88: #{sgraf_forward.1} parent=1 // pred_region
      _
    $region89: #{sgraf_forward.1} parent=1 // pred_fallthru
      _
    %11034 = vsyncpa [#allocation4], 1

</llo_original>
